<compile_context>
chip_gen: v6e
topology: v6e:2x2x1
jax: 0.10.0
libtpu: 0.0.40
codegen_flags: <defaults>
</compile_context>

<pallas_src>
import functools

import jax
import jax.numpy as jnp
from jax.experimental import pallas as pl
from jax.experimental.pallas import tpu as pltpu

_BN_EPS = 1e-5
_TM_CAND = (256, 128, 64, 32, 16)
_TN_CAND = (512, 256, 128)
_TK_CAND = (512, 256, 128)


def _round_up(x, m):
    return (x + m - 1) // m * m


def _pick_tile(padded_dim, candidates):
    for c in candidates:
        if padded_dim % c == 0:
            return c
    return padded_dim


# ----------------------------------------------------------------------------
# Pallas kernels: tiled GEMM + bias (+ residual) (+ ReLU), f32 accumulator
# ----------------------------------------------------------------------------
def _gemm_kernel(x_ref, w_ref, b_ref, o_ref, acc_ref, *, relu):
    k = pl.program_id(2)

    @pl.when(k == 0)
    def _():
        acc_ref[...] = jnp.zeros_like(acc_ref)

    acc_ref[...] += jnp.dot(x_ref[...], w_ref[...],
                            preferred_element_type=jnp.float32)

    @pl.when(k == pl.num_programs(2) - 1)
    def _():
        y = acc_ref[...] + b_ref[...]
        if relu:
            y = jnp.maximum(y, 0.0)
        o_ref[...] = y.astype(o_ref.dtype)


def _gemm_res_kernel(x_ref, w_ref, b_ref, r_ref, o_ref, acc_ref, *, relu):
    k = pl.program_id(2)

    @pl.when(k == 0)
    def _():
        acc_ref[...] = jnp.zeros_like(acc_ref)

    acc_ref[...] += jnp.dot(x_ref[...], w_ref[...],
                            preferred_element_type=jnp.float32)

    @pl.when(k == pl.num_programs(2) - 1)
    def _():
        y = acc_ref[...] + b_ref[...] + r_ref[...].astype(jnp.float32)
        if relu:
            y = jnp.maximum(y, 0.0)
        o_ref[...] = y.astype(o_ref.dtype)


def fused_gemm_bias(x, w_p, bias_p, M, C, residual=None, relu=False,
                    out_dtype=jnp.bfloat16):
    """out = relu?( x @ w_p + bias_p (+ residual) ), tiled on the MXU.

    x:      (M, K) activations (any float dtype; cast to bf16 here).
    w_p:    (Kp, Cp) bf16, BN-folded and zero-padded (prepared once, static).
    bias_p: (1, Cp)  f32, zero-padded.
    residual: (M, C) optional, added in the epilogue (bf16 on the wire).
    Returns (M, C) out_dtype.
    """
    K = x.shape[1]
    Kp, Cp = w_p.shape
    Mp = _round_up(M, 16)

    tm = _pick_tile(Mp, _TM_CAND)
    tn = _pick_tile(Cp, _TN_CAND)
    tk = _pick_tile(Kp, _TK_CAND)

    xp = jnp.pad(x.astype(jnp.bfloat16), ((0, Mp - M), (0, Kp - K)))

    in_specs = [
        pl.BlockSpec((tm, tk), lambda i, j, k: (i, k)),
        pl.BlockSpec((tk, tn), lambda i, j, k: (k, j)),
        pl.BlockSpec((1, tn), lambda i, j, k: (0, j)),
    ]
    args = [xp, w_p, bias_p]
    bytes_accessed = xp.size * 2 + w_p.size * 2 + Mp * Cp * 2 + Cp * 4
    if residual is not None:
        rp = jnp.pad(residual.astype(jnp.bfloat16), ((0, Mp - M), (0, Cp - C)))
        in_specs.append(pl.BlockSpec((tm, tn), lambda i, j, k: (i, j)))
        args.append(rp)
        bytes_accessed += Mp * Cp * 2
        kernel = functools.partial(_gemm_res_kernel, relu=relu)
    else:
        kernel = functools.partial(_gemm_kernel, relu=relu)

    out = pl.pallas_call(
        kernel,
        out_shape=jax.ShapeDtypeStruct((Mp, Cp), out_dtype),
        grid=(Mp // tm, Cp // tn, Kp // tk),
        in_specs=in_specs,
        out_specs=pl.BlockSpec((tm, tn), lambda i, j, k: (i, j)),
        scratch_shapes=[pltpu.VMEM((tm, tn), jnp.float32)],
        compiler_params=pltpu.CompilerParams(
            dimension_semantics=("parallel", "parallel", "arbitrary")),
        cost_estimate=pl.CostEstimate(
            flops=2 * Mp * Kp * Cp,
            transcendentals=0,
            bytes_accessed=int(bytes_accessed)),
    )(*args)
    return out[:M, :C]


# ----------------------------------------------------------------------------
# Conv = im2col (glue) + fused Pallas GEMM
# ----------------------------------------------------------------------------
def _im2col(x, kh, kw, stride, pad):
    """x: NHWC -> (N*Ho*Wo, kh*kw*C), K ordering (i, j, c)."""
    N, H, W, C = x.shape
    if pad:
        x = jnp.pad(x, ((0, 0), (pad, pad), (pad, pad), (0, 0)))
    Ho = (H + 2 * pad - kh) // stride + 1
    Wo = (W + 2 * pad - kw) // stride + 1
    if kh == 1 and kw == 1:
        patches = x[:, ::stride, ::stride, :]
        return patches.reshape(N * Ho * Wo, C), N, Ho, Wo
    cols = []
    for i in range(kh):
        for j in range(kw):
            cols.append(x[:, i:i + (Ho - 1) * stride + 1:stride,
                             j:j + (Wo - 1) * stride + 1:stride, :])
    patches = jnp.concatenate(cols, axis=-1)
    return patches.reshape(N * Ho * Wo, kh * kw * C), N, Ho, Wo


def conv_bn(x_nhwc, layer, relu=True, residual=None, out_dtype=jnp.bfloat16):
    """conv(no bias) + folded BN(eval) + optional residual + optional ReLU."""
    kh, kw = layer["kh"], layer["kw"]
    stride, pad, cout = layer["stride"], layer["pad"], layer["cout"]
    patches, N, Ho, Wo = _im2col(x_nhwc, kh, kw, stride, pad)
    M = N * Ho * Wo
    res2d = None if residual is None else residual.reshape(M, cout)
    out = fused_gemm_bias(patches, layer["w"], layer["b"], M, cout,
                          residual=res2d, relu=relu, out_dtype=out_dtype)
    return out.reshape(N, Ho, Wo, cout)


def basic_block(x, bp):
    out = conv_bn(x, bp["conv1"], relu=True)
    if "down" in bp:
        identity = conv_bn(x, bp["down"], relu=False)
    else:
        identity = x
    # conv2 + bn2 + residual add + final ReLU, all fused in one kernel call
    out = conv_bn(out, bp["conv2"], relu=True, residual=identity)
    return out


# ----------------------------------------------------------------------------
# Deterministic parameter init (PyTorch-shaped), then one-time preparation
# ----------------------------------------------------------------------------
def _conv_weight(key, cout, cin, k):
    fan_in = cin * k * k
    return jax.random.normal(key, (cout, cin, k, k), jnp.float32) * (2.0 / fan_in) ** 0.5


def _bn_params(key, c):
    k1, k2, k3, k4 = jax.random.split(key, 4)
    gamma = 1.0 + 0.1 * jax.random.normal(k1, (c,), jnp.float32)
    beta = 0.1 * jax.random.normal(k2, (c,), jnp.float32)
    mean = 0.1 * jax.random.normal(k3, (c,), jnp.float32)
    var = 1.0 + 0.1 * jax.random.uniform(k4, (c,), jnp.float32)
    return gamma, beta, mean, var


def init_resnet(key, layers=(1, 1, 1, 1), num_classes=10):
    keys = iter(jax.random.split(key, 256))
    params = {}
    params["conv1_w"] = _conv_weight(next(keys), 64, 3, 7)
    params["bn1"] = _bn_params(next(keys), 64)

    input_size = 64
    all_blocks = []
    for out_size, nblocks, stride in zip((64, 128, 256, 512), layers, (1, 2, 2, 2)):
        layer_blocks = []
        for b in range(nblocks):
            s = stride if b == 0 else 1
            bp = {"stride": s}
            bp["conv1_w"] = _conv_weight(next(keys), out_size, input_size, 3)
            bp["bn1"] = _bn_params(next(keys), out_size)
            bp["conv2_w"] = _conv_weight(next(keys), out_size, out_size, 3)
            bp["bn2"] = _bn_params(next(keys), out_size)
            if b == 0 and (input_size != out_size or stride != 1):
                bp["down_w"] = _conv_weight(next(keys), out_size, input_size, 1)
                bp["down_bn"] = _bn_params(next(keys), out_size)
            input_size = out_size
            layer_blocks.append(bp)
        all_blocks.append(layer_blocks)
    params["blocks"] = all_blocks
    params["fc_w"] = jax.random.normal(next(keys), (num_classes, 512), jnp.float32) * (1.0 / 512) ** 0.5
    params["fc_b"] = 0.1 * jax.random.normal(next(keys), (num_classes,), jnp.float32)
    return params


def _prepare_conv(conv_w, bn, stride, pad):
    """Fold BN scale into the GEMM weight, transpose/pad/cast ONCE."""
    cout, cin, kh, kw = conv_w.shape
    gamma, beta, mean, var = bn
    scale = gamma / jnp.sqrt(var + _BN_EPS)
    shift = beta - mean * scale
    # torch (Cout,Cin,kh,kw) -> (kh*kw*Cin, Cout), matching im2col (i,j,c) order
    w2d = jnp.transpose(conv_w, (2, 3, 1, 0)).reshape(kh * kw * cin, cout)
    w2d = w2d * scale[None, :]                 # BN scale folded into weights
    K, C = w2d.shape
    Kp, Cp = _round_up(K, 128), _round_up(C, 128)
    wp = jnp.pad(w2d, ((0, Kp - K), (0, Cp - C))).astype(jnp.bfloat16)
    bp = jnp.pad(shift[None, :], ((0, 0), (0, Cp - C))).astype(jnp.float32)
    return {"w": wp, "b": bp, "kh": kh, "kw": kw, "stride": stride,
            "pad": pad, "cout": cout}


def prepare_params(params):
    prep = {"conv1": _prepare_conv(params["conv1_w"], params["bn1"],
                                   stride=2, pad=3)}
    blocks = []
    for layer_blocks in params["blocks"]:
        prep_blocks = []
        for bp in layer_blocks:
            nb = {"conv1": _prepare_conv(bp["conv1_w"], bp["bn1"], bp["stride"], 1),
                  "conv2": _prepare_conv(bp["conv2_w"], bp["bn2"], 1, 1)}
            if "down_w" in bp:
                nb["down"] = _prepare_conv(bp["down_w"], bp["down_bn"],
                                           bp["stride"], 0)
            prep_blocks.append(nb)
        blocks.append(prep_blocks)
    prep["blocks"] = blocks
    fc_w = params["fc_w"].T                    # (512, num_classes)
    K, C = fc_w.shape
    Kp, Cp = _round_up(K, 128), _round_up(C, 128)
    prep["fc"] = {
        "w": jnp.pad(fc_w, ((0, Kp - K), (0, Cp - C))).astype(jnp.bfloat16),
        "b": jnp.pad(params["fc_b"][None, :], ((0, 0), (0, Cp - C))).astype(jnp.float32),
        "cout": C,
    }
    return prep


# ----------------------------------------------------------------------------
# Full forward (mirrors ResNet.forward; maxpool intentionally not applied)
# ----------------------------------------------------------------------------
def resnet_forward(prep, x_nchw):
    x = jnp.transpose(x_nchw, (0, 2, 3, 1)).astype(jnp.bfloat16)  # NCHW -> NHWC
    x = conv_bn(x, prep["conv1"], relu=True)
    for layer_blocks in prep["blocks"]:
        for bp in layer_blocks:
            x = basic_block(x, bp)
    # AdaptiveAvgPool2d((1,1)) -> spatial mean (tiny reduction, JAX glue)
    x = jnp.mean(x.astype(jnp.float32), axis=(1, 2))              # (N, 512)
    fc = prep["fc"]
    return fused_gemm_bias(x, fc["w"], fc["b"], x.shape[0], fc["cout"],
                           relu=False, out_dtype=jnp.float32)


if __name__ == "__main__":
    key = jax.random.PRNGKey(0)
    kp, kx = jax.random.split(key)
    raw_params = init_resnet(kp, layers=(1, 1, 1, 1), num_classes=10)
    prep = prepare_params(raw_params)          # one-time weight prep (static)
    x = jax.random.normal(kx, (2, 3, 16, 16), jnp.float32)  # NCHW like PyTorch

    fwd = jax.jit(lambda inp: resnet_forward(prep, inp))
    out = fwd(x)
    out = jax.block_until_ready(out)
    assert out.shape == (2, 10), out.shape
    print("KERNEL_OK")
</pallas_src>

<mosaic_0001>
module attributes {stable_mosaic.version = 11 : i64} {
  func.func @_gemm_kernel(%arg0: i32, %arg1: i32, %arg2: i32, %arg3: memref<128x256xbf16, #tpu.memory_space<vmem>>, %arg4: memref<256x128xbf16, #tpu.memory_space<vmem>>, %arg5: memref<1x128xf32, #tpu.memory_space<vmem>>, %arg6: memref<128x128xbf16, #tpu.memory_space<vmem>>, %arg7: memref<128x128xf32, #tpu.memory_space<vmem>>) attributes {dimension_semantics = [#tpu.dimension_semantics<parallel>, #tpu.dimension_semantics<parallel>, #tpu.dimension_semantics<arbitrary>], iteration_bounds = array<i64: 1, 1, 1>, scalar_prefetch = 0 : i64, scratch_operands = 1 : i64, tpu.core_type = #tpu.core_type<tc>, window_params = [{transform_indices = @transform_0, window_bounds = array<i64: 128, 256>}, {transform_indices = @transform_1, window_bounds = array<i64: 256, 128>}, {transform_indices = @transform_2, window_bounds = array<i64: 1, 128>}, {transform_indices = @transform_3, window_bounds = array<i64: 128, 128>}]} {
    %c0_i32 = arith.constant 0 : i32
    %0 = arith.cmpi eq, %arg2, %c0_i32 : i32
    %1 = arith.extui %0 : i1 to i32
    %c0_i32_0 = arith.constant 0 : i32
    %2 = arith.cmpi ne, %1, %c0_i32_0 : i32
    scf.if %2 {
      %cst_10 = arith.constant 0.000000e+00 : f32
      %12 = vector.broadcast %cst_10 : f32 to vector<128x128xf32>
      %c0_11 = arith.constant 0 : index
      %c0_12 = arith.constant 0 : index
      %13 = vector.load %arg7[%c0_11, %c0_12] : memref<128x128xf32, #tpu.memory_space<vmem>>, vector<128x128xf32>
      tpu.vector_store %arg7[%c0_11, %c0_12], %12 {strides = array<i32>} : memref<128x128xf32, #tpu.memory_space<vmem>>, vector<128x128xf32>,
    } else {
    }
    %c0 = arith.constant 0 : index
    %c0_1 = arith.constant 0 : index
    %3 = vector.load %arg7[%c0, %c0_1] : memref<128x128xf32, #tpu.memory_space<vmem>>, vector<128x128xf32>
    %c0_2 = arith.constant 0 : index
    %c0_3 = arith.constant 0 : index
    %4 = vector.load %arg3[%c0_2, %c0_3] : memref<128x256xbf16, #tpu.memory_space<vmem>>, vector<128x256xbf16>
    %c0_4 = arith.constant 0 : index
    %c0_5 = arith.constant 0 : index
    %5 = vector.load %arg4[%c0_4, %c0_5] : memref<256x128xbf16, #tpu.memory_space<vmem>>, vector<256x128xbf16>
    %cst = arith.constant dense<0.000000e+00> : vector<128x128xf32>
    %6 = tpu.matmul %4, %5, %cst {dimension_numbers = #tpu.dot_dimension_numbers<[1], [0], [0], [1], [0, 0, 1, 1], [], []>} : vector<128x256xbf16>, vector<256x128xbf16>, vector<128x128xf32> -> vector<128x128xf32>
    %7 = arith.addf %3, %6 : vector<128x128xf32>
    %c0_6 = arith.constant 0 : index
    %c0_7 = arith.constant 0 : index
    %8 = vector.load %arg7[%c0_6, %c0_7] : memref<128x128xf32, #tpu.memory_space<vmem>>, vector<128x128xf32>
    tpu.vector_store %arg7[%c0_6, %c0_7], %7 {strides = array<i32>} : memref<128x128xf32, #tpu.memory_space<vmem>>, vector<128x128xf32>,
    %c0_i32_8 = arith.constant 0 : i32
    %9 = arith.cmpi eq, %arg2, %c0_i32_8 : i32
    %10 = arith.extui %9 : i1 to i32
    %c0_i32_9 = arith.constant 0 : i32
    %11 = arith.cmpi ne, %10, %c0_i32_9 : i32
    scf.if %11 {
      %c0_10 = arith.constant 0 : index
      %c0_11 = arith.constant 0 : index
      %12 = vector.load %arg7[%c0_10, %c0_11] : memref<128x128xf32, #tpu.memory_space<vmem>>, vector<128x128xf32>
      %c0_12 = arith.constant 0 : index
      %c0_13 = arith.constant 0 : index
      %13 = vector.load %arg5[%c0_12, %c0_13] : memref<1x128xf32, #tpu.memory_space<vmem>>, vector<1x128xf32>
      %14 = vector.broadcast %13 : vector<1x128xf32> to vector<128x128xf32>
      %15 = arith.addf %12, %14 : vector<128x128xf32>
      %cst_14 = arith.constant 0.000000e+00 : f32
      %16 = vector.broadcast %cst_14 : f32 to vector<128x128xf32>
      %17 = arith.maximumf %15, %16 : vector<128x128xf32>
      %18 = arith.truncf %17 : vector<128x128xf32> to vector<128x128xbf16>
      %c0_15 = arith.constant 0 : index
      %c0_16 = arith.constant 0 : index
      %19 = vector.load %arg6[%c0_15, %c0_16] : memref<128x128xbf16, #tpu.memory_space<vmem>>, vector<128x128xbf16>
      tpu.vector_store %arg6[%c0_15, %c0_16], %18 {strides = array<i32>} : memref<128x128xbf16, #tpu.memory_space<vmem>>, vector<128x128xbf16>,
    } else {
    }
    return
  }
  func.func @transform_0(%arg0: i32, %arg1: i32, %arg2: i32) -> (i32, i32) {
    %c0_i32 = arith.constant 0 : i32
    return %arg0, %arg2 : i32, i32
  }
  func.func @transform_1(%arg0: i32, %arg1: i32, %arg2: i32) -> (i32, i32) {
    %c0_i32 = arith.constant 0 : i32
    return %arg2, %arg1 : i32, i32
  }
  func.func @transform_2(%arg0: i32, %arg1: i32, %arg2: i32) -> (i32, i32) {
    %c0_i32 = arith.constant 0 : i32
    %c0_i32_0 = arith.constant 0 : i32
    return %c0_i32, %arg1 : i32, i32
  }
  func.func @transform_3(%arg0: i32, %arg1: i32, %arg2: i32) -> (i32, i32) {
    %c0_i32 = arith.constant 0 : i32
    return %arg0, %arg1 : i32, i32
  }
}

module attributes {stable_mosaic.version = 11 : i64} {
  func.func @_gemm_kernel(%arg0: i32, %arg1: i32, %arg2: i32, %arg3: memref<128x128xbf16, #tpu.memory_space<vmem>>, %arg4: memref<128x128xbf16, #tpu.memory_space<vmem>>, %arg5: memref<1x128xf32, #tpu.memory_space<vmem>>, %arg6: memref<128x128xbf16, #tpu.memory_space<vmem>>, %arg7: memref<128x128xf32, #tpu.memory_space<vmem>>) attributes {dimension_semantics = [#tpu.dimension_semantics<parallel>, #tpu.dimension_semantics<parallel>, #tpu.dimension_semantics<arbitrary>], iteration_bounds = array<i64: 1, 1, 5>, scalar_prefetch = 0 : i64, scratch_operands = 1 : i64, tpu.core_type = #tpu.core_type<tc>, window_params = [{transform_indices = @transform_0, window_bounds = array<i64: 128, 128>}, {transform_indices = @transform_1, window_bounds = array<i64: 128, 128>}, {transform_indices = @transform_2, window_bounds = array<i64: 1, 128>}, {transform_indices = @transform_3, window_bounds = array<i64: 128, 128>}]} {
    %c0_i32 = arith.constant 0 : i32
    %0 = arith.cmpi eq, %arg2, %c0_i32 : i32
    %1 = arith.extui %0 : i1 to i32
    %c0_i32_0 = arith.constant 0 : i32
    %2 = arith.cmpi ne, %1, %c0_i32_0 : i32
    scf.if %2 {
      %cst_9 = arith.constant 0.000000e+00 : f32
      %12 = vector.broadcast %cst_9 : f32 to vector<128x128xf32>
      %c0_10 = arith.constant 0 : index
      %c0_11 = arith.constant 0 : index
      %13 = vector.load %arg7[%c0_10, %c0_11] : memref<128x128xf32, #tpu.memory_space<vmem>>, vector<128x128xf32>
      tpu.vector_store %arg7[%c0_10, %c0_11], %12 {strides = array<i32>} : memref<128x128xf32, #tpu.memory_space<vmem>>, vector<128x128xf32>,
    } else {
    }
    %c0 = arith.constant 0 : index
    %c0_1 = arith.constant 0 : index
    %3 = vector.load %arg7[%c0, %c0_1] : memref<128x128xf32, #tpu.memory_space<vmem>>, vector<128x128xf32>
    %c0_2 = arith.constant 0 : index
    %c0_3 = arith.constant 0 : index
    %4 = vector.load %arg3[%c0_2, %c0_3] : memref<128x128xbf16, #tpu.memory_space<vmem>>, vector<128x128xbf16>
    %c0_4 = arith.constant 0 : index
    %c0_5 = arith.constant 0 : index
    %5 = vector.load %arg4[%c0_4, %c0_5] : memref<128x128xbf16, #tpu.memory_space<vmem>>, vector<128x128xbf16>
    %cst = arith.constant dense<0.000000e+00> : vector<128x128xf32>
    %6 = tpu.matmul %4, %5, %cst {dimension_numbers = #tpu.dot_dimension_numbers<[1], [0], [0], [1], [0, 0, 1, 1], [], []>} : vector<128x128xbf16>, vector<128x128xbf16>, vector<128x128xf32> -> vector<128x128xf32>
    %7 = arith.addf %3, %6 : vector<128x128xf32>
    %c0_6 = arith.constant 0 : index
    %c0_7 = arith.constant 0 : index
    %8 = vector.load %arg7[%c0_6, %c0_7] : memref<128x128xf32, #tpu.memory_space<vmem>>, vector<128x128xf32>
    tpu.vector_store %arg7[%c0_6, %c0_7], %7 {strides = array<i32>} : memref<128x128xf32, #tpu.memory_space<vmem>>, vector<128x128xf32>,
    %c4_i32 = arith.constant 4 : i32
    %9 = arith.cmpi eq, %arg2, %c4_i32 : i32
    %10 = arith.extui %9 : i1 to i32
    %c0_i32_8 = arith.constant 0 : i32
    %11 = arith.cmpi ne, %10, %c0_i32_8 : i32
    scf.if %11 {
      %c0_9 = arith.constant 0 : index
      %c0_10 = arith.constant 0 : index
      %12 = vector.load %arg7[%c0_9, %c0_10] : memref<128x128xf32, #tpu.memory_space<vmem>>, vector<128x128xf32>
      %c0_11 = arith.constant 0 : index
      %c0_12 = arith.constant 0 : index
      %13 = vector.load %arg5[%c0_11, %c0_12] : memref<1x128xf32, #tpu.memory_space<vmem>>, vector<1x128xf32>
      %14 = vector.broadcast %13 : vector<1x128xf32> to vector<128x128xf32>
      %15 = arith.addf %12, %14 : vector<128x128xf32>
      %cst_13 = arith.constant 0.000000e+00 : f32
      %16 = vector.broadcast %cst_13 : f32 to vector<128x128xf32>
      %17 = arith.maximumf %15, %16 : vector<128x128xf32>
      %18 = arith.truncf %17 : vector<128x128xf32> to vector<128x128xbf16>
      %c0_14 = arith.constant 0 : index
      %c0_15 = arith.constant 0 : index
      %19 = vector.load %arg6[%c0_14, %c0_15] : memref<128x128xbf16, #tpu.memory_space<vmem>>, vector<128x128xbf16>
      tpu.vector_store %arg6[%c0_14, %c0_15], %18 {strides = array<i32>} : memref<128x128xbf16, #tpu.memory_space<vmem>>, vector<128x128xbf16>,
    } else {
    }
    return
  }
  func.func @transform_0(%arg0: i32, %arg1: i32, %arg2: i32) -> (i32, i32) {
    %c0_i32 = arith.constant 0 : i32
    return %arg0, %arg2 : i32, i32
  }
  func.func @transform_1(%arg0: i32, %arg1: i32, %arg2: i32) -> (i32, i32) {
    %c0_i32 = arith.constant 0 : i32
    return %arg2, %arg1 : i32, i32
  }
  func.func @transform_2(%arg0: i32, %arg1: i32, %arg2: i32) -> (i32, i32) {
    %c0_i32 = arith.constant 0 : i32
    %c0_i32_0 = arith.constant 0 : i32
    return %c0_i32, %arg1 : i32, i32
  }
  func.func @transform_3(%arg0: i32, %arg1: i32, %arg2: i32) -> (i32, i32) {
    %c0_i32 = arith.constant 0 : i32
    return %arg0, %arg1 : i32, i32
  }
}

module attributes {stable_mosaic.version = 11 : i64} {
  func.func @_gemm_res_kernel(%arg0: i32, %arg1: i32, %arg2: i32, %arg3: memref<128x128xbf16, #tpu.memory_space<vmem>>, %arg4: memref<128x128xbf16, #tpu.memory_space<vmem>>, %arg5: memref<1x128xf32, #tpu.memory_space<vmem>>, %arg6: memref<128x128xbf16, #tpu.memory_space<vmem>>, %arg7: memref<128x128xbf16, #tpu.memory_space<vmem>>, %arg8: memref<128x128xf32, #tpu.memory_space<vmem>>) attributes {dimension_semantics = [#tpu.dimension_semantics<parallel>, #tpu.dimension_semantics<parallel>, #tpu.dimension_semantics<arbitrary>], iteration_bounds = array<i64: 1, 1, 5>, scalar_prefetch = 0 : i64, scratch_operands = 1 : i64, tpu.core_type = #tpu.core_type<tc>, window_params = [{transform_indices = @transform_0, window_bounds = array<i64: 128, 128>}, {transform_indices = @transform_1, window_bounds = array<i64: 128, 128>}, {transform_indices = @transform_2, window_bounds = array<i64: 1, 128>}, {transform_indices = @transform_3, window_bounds = array<i64: 128, 128>}, {transform_indices = @transform_4, window_bounds = array<i64: 128, 128>}]} {
    %c0_i32 = arith.constant 0 : i32
    %0 = arith.cmpi eq, %arg2, %c0_i32 : i32
    %1 = arith.extui %0 : i1 to i32
    %c0_i32_0 = arith.constant 0 : i32
    %2 = arith.cmpi ne, %1, %c0_i32_0 : i32
    scf.if %2 {
      %cst_9 = arith.constant 0.000000e+00 : f32
      %12 = vector.broadcast %cst_9 : f32 to vector<128x128xf32>
      %c0_10 = arith.constant 0 : index
      %c0_11 = arith.constant 0 : index
      %13 = vector.load %arg8[%c0_10, %c0_11] : memref<128x128xf32, #tpu.memory_space<vmem>>, vector<128x128xf32>
      tpu.vector_store %arg8[%c0_10, %c0_11], %12 {strides = array<i32>} : memref<128x128xf32, #tpu.memory_space<vmem>>, vector<128x128xf32>,
    } else {
    }
    %c0 = arith.constant 0 : index
    %c0_1 = arith.constant 0 : index
    %3 = vector.load %arg8[%c0, %c0_1] : memref<128x128xf32, #tpu.memory_space<vmem>>, vector<128x128xf32>
    %c0_2 = arith.constant 0 : index
    %c0_3 = arith.constant 0 : index
    %4 = vector.load %arg3[%c0_2, %c0_3] : memref<128x128xbf16, #tpu.memory_space<vmem>>, vector<128x128xbf16>
    %c0_4 = arith.constant 0 : index
    %c0_5 = arith.constant 0 : index
    %5 = vector.load %arg4[%c0_4, %c0_5] : memref<128x128xbf16, #tpu.memory_space<vmem>>, vector<128x128xbf16>
    %cst = arith.constant dense<0.000000e+00> : vector<128x128xf32>
    %6 = tpu.matmul %4, %5, %cst {dimension_numbers = #tpu.dot_dimension_numbers<[1], [0], [0], [1], [0, 0, 1, 1], [], []>} : vector<128x128xbf16>, vector<128x128xbf16>, vector<128x128xf32> -> vector<128x128xf32>
    %7 = arith.addf %3, %6 : vector<128x128xf32>
    %c0_6 = arith.constant 0 : index
    %c0_7 = arith.constant 0 : index
    %8 = vector.load %arg8[%c0_6, %c0_7] : memref<128x128xf32, #tpu.memory_space<vmem>>, vector<128x128xf32>
    tpu.vector_store %arg8[%c0_6, %c0_7], %7 {strides = array<i32>} : memref<128x128xf32, #tpu.memory_space<vmem>>, vector<128x128xf32>,
    %c4_i32 = arith.constant 4 : i32
    %9 = arith.cmpi eq, %arg2, %c4_i32 : i32
    %10 = arith.extui %9 : i1 to i32
    %c0_i32_8 = arith.constant 0 : i32
    %11 = arith.cmpi ne, %10, %c0_i32_8 : i32
    scf.if %11 {
      %c0_9 = arith.constant 0 : index
      %c0_10 = arith.constant 0 : index
      %12 = vector.load %arg8[%c0_9, %c0_10] : memref<128x128xf32, #tpu.memory_space<vmem>>, vector<128x128xf32>
      %c0_11 = arith.constant 0 : index
      %c0_12 = arith.constant 0 : index
      %13 = vector.load %arg5[%c0_11, %c0_12] : memref<1x128xf32, #tpu.memory_space<vmem>>, vector<1x128xf32>
      %14 = vector.broadcast %13 : vector<1x128xf32> to vector<128x128xf32>
      %15 = arith.addf %12, %14 : vector<128x128xf32>
      %c0_13 = arith.constant 0 : index
      %c0_14 = arith.constant 0 : index
      %16 = vector.load %arg6[%c0_13, %c0_14] : memref<128x128xbf16, #tpu.memory_space<vmem>>, vector<128x128xbf16>
      %17 = arith.extf %16 : vector<128x128xbf16> to vector<128x128xf32>
      %18 = arith.addf %15, %17 : vector<128x128xf32>
      %cst_15 = arith.constant 0.000000e+00 : f32
      %19 = vector.broadcast %cst_15 : f32 to vector<128x128xf32>
      %20 = arith.maximumf %18, %19 : vector<128x128xf32>
      %21 = arith.truncf %20 : vector<128x128xf32> to vector<128x128xbf16>
      %c0_16 = arith.constant 0 : index
      %c0_17 = arith.constant 0 : index
      %22 = vector.load %arg7[%c0_16, %c0_17] : memref<128x128xbf16, #tpu.memory_space<vmem>>, vector<128x128xbf16>
      tpu.vector_store %arg7[%c0_16, %c0_17], %21 {strides = array<i32>} : memref<128x128xbf16, #tpu.memory_space<vmem>>, vector<128x128xbf16>,
    } else {
    }
    return
  }
  func.func @transform_0(%arg0: i32, %arg1: i32, %arg2: i32) -> (i32, i32) {
    %c0_i32 = arith.constant 0 : i32
    return %arg0, %arg2 : i32, i32
  }
  func.func @transform_1(%arg0: i32, %arg1: i32, %arg2: i32) -> (i32, i32) {
    %c0_i32 = arith.constant 0 : i32
    return %arg2, %arg1 : i32, i32
  }
  func.func @transform_2(%arg0: i32, %arg1: i32, %arg2: i32) -> (i32, i32) {
    %c0_i32 = arith.constant 0 : i32
    %c0_i32_0 = arith.constant 0 : i32
    return %c0_i32, %arg1 : i32, i32
  }
  func.func @transform_3(%arg0: i32, %arg1: i32, %arg2: i32) -> (i32, i32) {
    %c0_i32 = arith.constant 0 : i32
    return %arg0, %arg1 : i32, i32
  }
  func.func @transform_4(%arg0: i32, %arg1: i32, %arg2: i32) -> (i32, i32) {
    %c0_i32 = arith.constant 0 : i32
    return %arg0, %arg1 : i32, i32
  }
}

module attributes {stable_mosaic.version = 11 : i64} {
  func.func @_gemm_kernel(%arg0: i32, %arg1: i32, %arg2: i32, %arg3: memref<32x128xbf16, #tpu.memory_space<vmem>>, %arg4: memref<128x128xbf16, #tpu.memory_space<vmem>>, %arg5: memref<1x128xf32, #tpu.memory_space<vmem>>, %arg6: memref<32x128xbf16, #tpu.memory_space<vmem>>, %arg7: memref<32x128xf32, #tpu.memory_space<vmem>>) attributes {dimension_semantics = [#tpu.dimension_semantics<parallel>, #tpu.dimension_semantics<parallel>, #tpu.dimension_semantics<arbitrary>], iteration_bounds = array<i64: 1, 1, 5>, scalar_prefetch = 0 : i64, scratch_operands = 1 : i64, tpu.core_type = #tpu.core_type<tc>, window_params = [{transform_indices = @transform_0, window_bounds = array<i64: 32, 128>}, {transform_indices = @transform_1, window_bounds = array<i64: 128, 128>}, {transform_indices = @transform_2, window_bounds = array<i64: 1, 128>}, {transform_indices = @transform_3, window_bounds = array<i64: 32, 128>}]} {
    %c0_i32 = arith.constant 0 : i32
    %0 = arith.cmpi eq, %arg2, %c0_i32 : i32
    %1 = arith.extui %0 : i1 to i32
    %c0_i32_0 = arith.constant 0 : i32
    %2 = arith.cmpi ne, %1, %c0_i32_0 : i32
    scf.if %2 {
      %cst_9 = arith.constant 0.000000e+00 : f32
      %12 = vector.broadcast %cst_9 : f32 to vector<32x128xf32>
      %c0_10 = arith.constant 0 : index
      %c0_11 = arith.constant 0 : index
      %13 = vector.load %arg7[%c0_10, %c0_11] : memref<32x128xf32, #tpu.memory_space<vmem>>, vector<32x128xf32>
      tpu.vector_store %arg7[%c0_10, %c0_11], %12 {strides = array<i32>} : memref<32x128xf32, #tpu.memory_space<vmem>>, vector<32x128xf32>,
    } else {
    }
    %c0 = arith.constant 0 : index
    %c0_1 = arith.constant 0 : index
    %3 = vector.load %arg7[%c0, %c0_1] : memref<32x128xf32, #tpu.memory_space<vmem>>, vector<32x128xf32>
    %c0_2 = arith.constant 0 : index
    %c0_3 = arith.constant 0 : index
    %4 = vector.load %arg3[%c0_2, %c0_3] : memref<32x128xbf16, #tpu.memory_space<vmem>>, vector<32x128xbf16>
    %c0_4 = arith.constant 0 : index
    %c0_5 = arith.constant 0 : index
    %5 = vector.load %arg4[%c0_4, %c0_5] : memref<128x128xbf16, #tpu.memory_space<vmem>>, vector<128x128xbf16>
    %cst = arith.constant dense<0.000000e+00> : vector<32x128xf32>
    %6 = tpu.matmul %4, %5, %cst {dimension_numbers = #tpu.dot_dimension_numbers<[1], [0], [0], [1], [0, 0, 1, 1], [], []>} : vector<32x128xbf16>, vector<128x128xbf16>, vector<32x128xf32> -> vector<32x128xf32>
    %7 = arith.addf %3, %6 : vector<32x128xf32>
    %c0_6 = arith.constant 0 : index
    %c0_7 = arith.constant 0 : index
    %8 = vector.load %arg7[%c0_6, %c0_7] : memref<32x128xf32, #tpu.memory_space<vmem>>, vector<32x128xf32>
    tpu.vector_store %arg7[%c0_6, %c0_7], %7 {strides = array<i32>} : memref<32x128xf32, #tpu.memory_space<vmem>>, vector<32x128xf32>,
    %c4_i32 = arith.constant 4 : i32
    %9 = arith.cmpi eq, %arg2, %c4_i32 : i32
    %10 = arith.extui %9 : i1 to i32
    %c0_i32_8 = arith.constant 0 : i32
    %11 = arith.cmpi ne, %10, %c0_i32_8 : i32
    scf.if %11 {
      %c0_9 = arith.constant 0 : index
      %c0_10 = arith.constant 0 : index
      %12 = vector.load %arg7[%c0_9, %c0_10] : memref<32x128xf32, #tpu.memory_space<vmem>>, vector<32x128xf32>
      %c0_11 = arith.constant 0 : index
      %c0_12 = arith.constant 0 : index
      %13 = vector.load %arg5[%c0_11, %c0_12] : memref<1x128xf32, #tpu.memory_space<vmem>>, vector<1x128xf32>
      %14 = vector.broadcast %13 : vector<1x128xf32> to vector<32x128xf32>
      %15 = arith.addf %12, %14 : vector<32x128xf32>
      %cst_13 = arith.constant 0.000000e+00 : f32
      %16 = vector.broadcast %cst_13 : f32 to vector<32x128xf32>
      %17 = arith.maximumf %15, %16 : vector<32x128xf32>
      %18 = arith.truncf %17 : vector<32x128xf32> to vector<32x128xbf16>
      %c0_14 = arith.constant 0 : index
      %c0_15 = arith.constant 0 : index
      %19 = vector.load %arg6[%c0_14, %c0_15] : memref<32x128xbf16, #tpu.memory_space<vmem>>, vector<32x128xbf16>
      tpu.vector_store %arg6[%c0_14, %c0_15], %18 {strides = array<i32>} : memref<32x128xbf16, #tpu.memory_space<vmem>>, vector<32x128xbf16>,
    } else {
    }
    return
  }
  func.func @transform_0(%arg0: i32, %arg1: i32, %arg2: i32) -> (i32, i32) {
    %c0_i32 = arith.constant 0 : i32
    return %arg0, %arg2 : i32, i32
  }
  func.func @transform_1(%arg0: i32, %arg1: i32, %arg2: i32) -> (i32, i32) {
    %c0_i32 = arith.constant 0 : i32
    return %arg2, %arg1 : i32, i32
  }
  func.func @transform_2(%arg0: i32, %arg1: i32, %arg2: i32) -> (i32, i32) {
    %c0_i32 = arith.constant 0 : i32
    %c0_i32_0 = arith.constant 0 : i32
    return %c0_i32, %arg1 : i32, i32
  }
  func.func @transform_3(%arg0: i32, %arg1: i32, %arg2: i32) -> (i32, i32) {
    %c0_i32 = arith.constant 0 : i32
    return %arg0, %arg1 : i32, i32
  }
}

module attributes {stable_mosaic.version = 11 : i64} {
  func.func @_gemm_kernel(%arg0: i32, %arg1: i32, %arg2: i32, %arg3: memref<32x128xbf16, #tpu.memory_space<vmem>>, %arg4: memref<128x128xbf16, #tpu.memory_space<vmem>>, %arg5: memref<1x128xf32, #tpu.memory_space<vmem>>, %arg6: memref<32x128xbf16, #tpu.memory_space<vmem>>, %arg7: memref<32x128xf32, #tpu.memory_space<vmem>>) attributes {dimension_semantics = [#tpu.dimension_semantics<parallel>, #tpu.dimension_semantics<parallel>, #tpu.dimension_semantics<arbitrary>], iteration_bounds = array<i64: 1, 1, 1>, scalar_prefetch = 0 : i64, scratch_operands = 1 : i64, tpu.core_type = #tpu.core_type<tc>, window_params = [{transform_indices = @transform_0, window_bounds = array<i64: 32, 128>}, {transform_indices = @transform_1, window_bounds = array<i64: 128, 128>}, {transform_indices = @transform_2, window_bounds = array<i64: 1, 128>}, {transform_indices = @transform_3, window_bounds = array<i64: 32, 128>}]} {
    %c0_i32 = arith.constant 0 : i32
    %0 = arith.cmpi eq, %arg2, %c0_i32 : i32
    %1 = arith.extui %0 : i1 to i32
    %c0_i32_0 = arith.constant 0 : i32
    %2 = arith.cmpi ne, %1, %c0_i32_0 : i32
    scf.if %2 {
      %cst_10 = arith.constant 0.000000e+00 : f32
      %12 = vector.broadcast %cst_10 : f32 to vector<32x128xf32>
      %c0_11 = arith.constant 0 : index
      %c0_12 = arith.constant 0 : index
      %13 = vector.load %arg7[%c0_11, %c0_12] : memref<32x128xf32, #tpu.memory_space<vmem>>, vector<32x128xf32>
      tpu.vector_store %arg7[%c0_11, %c0_12], %12 {strides = array<i32>} : memref<32x128xf32, #tpu.memory_space<vmem>>, vector<32x128xf32>,
    } else {
    }
    %c0 = arith.constant 0 : index
    %c0_1 = arith.constant 0 : index
    %3 = vector.load %arg7[%c0, %c0_1] : memref<32x128xf32, #tpu.memory_space<vmem>>, vector<32x128xf32>
    %c0_2 = arith.constant 0 : index
    %c0_3 = arith.constant 0 : index
    %4 = vector.load %arg3[%c0_2, %c0_3] : memref<32x128xbf16, #tpu.memory_space<vmem>>, vector<32x128xbf16>
    %c0_4 = arith.constant 0 : index
    %c0_5 = arith.constant 0 : index
    %5 = vector.load %arg4[%c0_4, %c0_5] : memref<128x128xbf16, #tpu.memory_space<vmem>>, vector<128x128xbf16>
    %cst = arith.constant dense<0.000000e+00> : vector<32x128xf32>
    %6 = tpu.matmul %4, %5, %cst {dimension_numbers = #tpu.dot_dimension_numbers<[1], [0], [0], [1], [0, 0, 1, 1], [], []>} : vector<32x128xbf16>, vector<128x128xbf16>, vector<32x128xf32> -> vector<32x128xf32>
    %7 = arith.addf %3, %6 : vector<32x128xf32>
    %c0_6 = arith.constant 0 : index
    %c0_7 = arith.constant 0 : index
    %8 = vector.load %arg7[%c0_6, %c0_7] : memref<32x128xf32, #tpu.memory_space<vmem>>, vector<32x128xf32>
    tpu.vector_store %arg7[%c0_6, %c0_7], %7 {strides = array<i32>} : memref<32x128xf32, #tpu.memory_space<vmem>>, vector<32x128xf32>,
    %c0_i32_8 = arith.constant 0 : i32
    %9 = arith.cmpi eq, %arg2, %c0_i32_8 : i32
    %10 = arith.extui %9 : i1 to i32
    %c0_i32_9 = arith.constant 0 : i32
    %11 = arith.cmpi ne, %10, %c0_i32_9 : i32
    scf.if %11 {
      %c0_10 = arith.constant 0 : index
      %c0_11 = arith.constant 0 : index
      %12 = vector.load %arg7[%c0_10, %c0_11] : memref<32x128xf32, #tpu.memory_space<vmem>>, vector<32x128xf32>
      %c0_12 = arith.constant 0 : index
      %c0_13 = arith.constant 0 : index
      %13 = vector.load %arg5[%c0_12, %c0_13] : memref<1x128xf32, #tpu.memory_space<vmem>>, vector<1x128xf32>
      %14 = vector.broadcast %13 : vector<1x128xf32> to vector<32x128xf32>
      %15 = arith.addf %12, %14 : vector<32x128xf32>
      %16 = arith.truncf %15 : vector<32x128xf32> to vector<32x128xbf16>
      %c0_14 = arith.constant 0 : index
      %c0_15 = arith.constant 0 : index
      %17 = vector.load %arg6[%c0_14, %c0_15] : memref<32x128xbf16, #tpu.memory_space<vmem>>, vector<32x128xbf16>
      tpu.vector_store %arg6[%c0_14, %c0_15], %16 {strides = array<i32>} : memref<32x128xbf16, #tpu.memory_space<vmem>>, vector<32x128xbf16>,
    } else {
    }
    return
  }
  func.func @transform_0(%arg0: i32, %arg1: i32, %arg2: i32) -> (i32, i32) {
    %c0_i32 = arith.constant 0 : i32
    return %arg0, %arg2 : i32, i32
  }
  func.func @transform_1(%arg0: i32, %arg1: i32, %arg2: i32) -> (i32, i32) {
    %c0_i32 = arith.constant 0 : i32
    return %arg2, %arg1 : i32, i32
  }
  func.func @transform_2(%arg0: i32, %arg1: i32, %arg2: i32) -> (i32, i32) {
    %c0_i32 = arith.constant 0 : i32
    %c0_i32_0 = arith.constant 0 : i32
    return %c0_i32, %arg1 : i32, i32
  }
  func.func @transform_3(%arg0: i32, %arg1: i32, %arg2: i32) -> (i32, i32) {
    %c0_i32 = arith.constant 0 : i32
    return %arg0, %arg1 : i32, i32
  }
}

module attributes {stable_mosaic.version = 11 : i64} {
  func.func @_gemm_res_kernel(%arg0: i32, %arg1: i32, %arg2: i32, %arg3: memref<32x128xbf16, #tpu.memory_space<vmem>>, %arg4: memref<128x128xbf16, #tpu.memory_space<vmem>>, %arg5: memref<1x128xf32, #tpu.memory_space<vmem>>, %arg6: memref<32x128xbf16, #tpu.memory_space<vmem>>, %arg7: memref<32x128xbf16, #tpu.memory_space<vmem>>, %arg8: memref<32x128xf32, #tpu.memory_space<vmem>>) attributes {dimension_semantics = [#tpu.dimension_semantics<parallel>, #tpu.dimension_semantics<parallel>, #tpu.dimension_semantics<arbitrary>], iteration_bounds = array<i64: 1, 1, 9>, scalar_prefetch = 0 : i64, scratch_operands = 1 : i64, tpu.core_type = #tpu.core_type<tc>, window_params = [{transform_indices = @transform_0, window_bounds = array<i64: 32, 128>}, {transform_indices = @transform_1, window_bounds = array<i64: 128, 128>}, {transform_indices = @transform_2, window_bounds = array<i64: 1, 128>}, {transform_indices = @transform_3, window_bounds = array<i64: 32, 128>}, {transform_indices = @transform_4, window_bounds = array<i64: 32, 128>}]} {
    %c0_i32 = arith.constant 0 : i32
    %0 = arith.cmpi eq, %arg2, %c0_i32 : i32
    %1 = arith.extui %0 : i1 to i32
    %c0_i32_0 = arith.constant 0 : i32
    %2 = arith.cmpi ne, %1, %c0_i32_0 : i32
    scf.if %2 {
      %cst_9 = arith.constant 0.000000e+00 : f32
      %12 = vector.broadcast %cst_9 : f32 to vector<32x128xf32>
      %c0_10 = arith.constant 0 : index
      %c0_11 = arith.constant 0 : index
      %13 = vector.load %arg8[%c0_10, %c0_11] : memref<32x128xf32, #tpu.memory_space<vmem>>, vector<32x128xf32>
      tpu.vector_store %arg8[%c0_10, %c0_11], %12 {strides = array<i32>} : memref<32x128xf32, #tpu.memory_space<vmem>>, vector<32x128xf32>,
    } else {
    }
    %c0 = arith.constant 0 : index
    %c0_1 = arith.constant 0 : index
    %3 = vector.load %arg8[%c0, %c0_1] : memref<32x128xf32, #tpu.memory_space<vmem>>, vector<32x128xf32>
    %c0_2 = arith.constant 0 : index
    %c0_3 = arith.constant 0 : index
    %4 = vector.load %arg3[%c0_2, %c0_3] : memref<32x128xbf16, #tpu.memory_space<vmem>>, vector<32x128xbf16>
    %c0_4 = arith.constant 0 : index
    %c0_5 = arith.constant 0 : index
    %5 = vector.load %arg4[%c0_4, %c0_5] : memref<128x128xbf16, #tpu.memory_space<vmem>>, vector<128x128xbf16>
    %cst = arith.constant dense<0.000000e+00> : vector<32x128xf32>
    %6 = tpu.matmul %4, %5, %cst {dimension_numbers = #tpu.dot_dimension_numbers<[1], [0], [0], [1], [0, 0, 1, 1], [], []>} : vector<32x128xbf16>, vector<128x128xbf16>, vector<32x128xf32> -> vector<32x128xf32>
    %7 = arith.addf %3, %6 : vector<32x128xf32>
    %c0_6 = arith.constant 0 : index
    %c0_7 = arith.constant 0 : index
    %8 = vector.load %arg8[%c0_6, %c0_7] : memref<32x128xf32, #tpu.memory_space<vmem>>, vector<32x128xf32>
    tpu.vector_store %arg8[%c0_6, %c0_7], %7 {strides = array<i32>} : memref<32x128xf32, #tpu.memory_space<vmem>>, vector<32x128xf32>,
    %c8_i32 = arith.constant 8 : i32
    %9 = arith.cmpi eq, %arg2, %c8_i32 : i32
    %10 = arith.extui %9 : i1 to i32
    %c0_i32_8 = arith.constant 0 : i32
    %11 = arith.cmpi ne, %10, %c0_i32_8 : i32
    scf.if %11 {
      %c0_9 = arith.constant 0 : index
      %c0_10 = arith.constant 0 : index
      %12 = vector.load %arg8[%c0_9, %c0_10] : memref<32x128xf32, #tpu.memory_space<vmem>>, vector<32x128xf32>
      %c0_11 = arith.constant 0 : index
      %c0_12 = arith.constant 0 : index
      %13 = vector.load %arg5[%c0_11, %c0_12] : memref<1x128xf32, #tpu.memory_space<vmem>>, vector<1x128xf32>
      %14 = vector.broadcast %13 : vector<1x128xf32> to vector<32x128xf32>
      %15 = arith.addf %12, %14 : vector<32x128xf32>
      %c0_13 = arith.constant 0 : index
      %c0_14 = arith.constant 0 : index
      %16 = vector.load %arg6[%c0_13, %c0_14] : memref<32x128xbf16, #tpu.memory_space<vmem>>, vector<32x128xbf16>
      %17 = arith.extf %16 : vector<32x128xbf16> to vector<32x128xf32>
      %18 = arith.addf %15, %17 : vector<32x128xf32>
      %cst_15 = arith.constant 0.000000e+00 : f32
      %19 = vector.broadcast %cst_15 : f32 to vector<32x128xf32>
      %20 = arith.maximumf %18, %19 : vector<32x128xf32>
      %21 = arith.truncf %20 : vector<32x128xf32> to vector<32x128xbf16>
      %c0_16 = arith.constant 0 : index
      %c0_17 = arith.constant 0 : index
      %22 = vector.load %arg7[%c0_16, %c0_17] : memref<32x128xbf16, #tpu.memory_space<vmem>>, vector<32x128xbf16>
      tpu.vector_store %arg7[%c0_16, %c0_17], %21 {strides = array<i32>} : memref<32x128xbf16, #tpu.memory_space<vmem>>, vector<32x128xbf16>,
    } else {
    }
    return
  }
  func.func @transform_0(%arg0: i32, %arg1: i32, %arg2: i32) -> (i32, i32) {
    %c0_i32 = arith.constant 0 : i32
    return %arg0, %arg2 : i32, i32
  }
  func.func @transform_1(%arg0: i32, %arg1: i32, %arg2: i32) -> (i32, i32) {
    %c0_i32 = arith.constant 0 : i32
    return %arg2, %arg1 : i32, i32
  }
  func.func @transform_2(%arg0: i32, %arg1: i32, %arg2: i32) -> (i32, i32) {
    %c0_i32 = arith.constant 0 : i32
    %c0_i32_0 = arith.constant 0 : i32
    return %c0_i32, %arg1 : i32, i32
  }
  func.func @transform_3(%arg0: i32, %arg1: i32, %arg2: i32) -> (i32, i32) {
    %c0_i32 = arith.constant 0 : i32
    return %arg0, %arg1 : i32, i32
  }
  func.func @transform_4(%arg0: i32, %arg1: i32, %arg2: i32) -> (i32, i32) {
    %c0_i32 = arith.constant 0 : i32
    return %arg0, %arg1 : i32, i32
  }
}

module attributes {stable_mosaic.version = 11 : i64} {
  func.func @_gemm_kernel(%arg0: i32, %arg1: i32, %arg2: i32, %arg3: memref<16x128xbf16, #tpu.memory_space<vmem>>, %arg4: memref<128x256xbf16, #tpu.memory_space<vmem>>, %arg5: memref<1x256xf32, #tpu.memory_space<vmem>>, %arg6: memref<16x256xbf16, #tpu.memory_space<vmem>>, %arg7: memref<16x256xf32, #tpu.memory_space<vmem>>) attributes {dimension_semantics = [#tpu.dimension_semantics<parallel>, #tpu.dimension_semantics<parallel>, #tpu.dimension_semantics<arbitrary>], iteration_bounds = array<i64: 1, 1, 9>, scalar_prefetch = 0 : i64, scratch_operands = 1 : i64, tpu.core_type = #tpu.core_type<tc>, window_params = [{transform_indices = @transform_0, window_bounds = array<i64: 16, 128>}, {transform_indices = @transform_1, window_bounds = array<i64: 128, 256>}, {transform_indices = @transform_2, window_bounds = array<i64: 1, 256>}, {transform_indices = @transform_3, window_bounds = array<i64: 16, 256>}]} {
    %c0_i32 = arith.constant 0 : i32
    %0 = arith.cmpi eq, %arg2, %c0_i32 : i32
    %1 = arith.extui %0 : i1 to i32
    %c0_i32_0 = arith.constant 0 : i32
    %2 = arith.cmpi ne, %1, %c0_i32_0 : i32
    scf.if %2 {
      %cst_9 = arith.constant 0.000000e+00 : f32
      %12 = vector.broadcast %cst_9 : f32 to vector<16x256xf32>
      %c0_10 = arith.constant 0 : index
      %c0_11 = arith.constant 0 : index
      %13 = vector.load %arg7[%c0_10, %c0_11] : memref<16x256xf32, #tpu.memory_space<vmem>>, vector<16x256xf32>
      tpu.vector_store %arg7[%c0_10, %c0_11], %12 {strides = array<i32>} : memref<16x256xf32, #tpu.memory_space<vmem>>, vector<16x256xf32>,
    } else {
    }
    %c0 = arith.constant 0 : index
    %c0_1 = arith.constant 0 : index
    %3 = vector.load %arg7[%c0, %c0_1] : memref<16x256xf32, #tpu.memory_space<vmem>>, vector<16x256xf32>
    %c0_2 = arith.constant 0 : index
    %c0_3 = arith.constant 0 : index
    %4 = vector.load %arg3[%c0_2, %c0_3] : memref<16x128xbf16, #tpu.memory_space<vmem>>, vector<16x128xbf16>
    %c0_4 = arith.constant 0 : index
    %c0_5 = arith.constant 0 : index
    %5 = vector.load %arg4[%c0_4, %c0_5] : memref<128x256xbf16, #tpu.memory_space<vmem>>, vector<128x256xbf16>
    %cst = arith.constant dense<0.000000e+00> : vector<16x256xf32>
    %6 = tpu.matmul %4, %5, %cst {dimension_numbers = #tpu.dot_dimension_numbers<[1], [0], [0], [1], [0, 0, 1, 1], [], []>} : vector<16x128xbf16>, vector<128x256xbf16>, vector<16x256xf32> -> vector<16x256xf32>
    %7 = arith.addf %3, %6 : vector<16x256xf32>
    %c0_6 = arith.constant 0 : index
    %c0_7 = arith.constant 0 : index
    %8 = vector.load %arg7[%c0_6, %c0_7] : memref<16x256xf32, #tpu.memory_space<vmem>>, vector<16x256xf32>
    tpu.vector_store %arg7[%c0_6, %c0_7], %7 {strides = array<i32>} : memref<16x256xf32, #tpu.memory_space<vmem>>, vector<16x256xf32>,
    %c8_i32 = arith.constant 8 : i32
    %9 = arith.cmpi eq, %arg2, %c8_i32 : i32
    %10 = arith.extui %9 : i1 to i32
    %c0_i32_8 = arith.constant 0 : i32
    %11 = arith.cmpi ne, %10, %c0_i32_8 : i32
    scf.if %11 {
      %c0_9 = arith.constant 0 : index
      %c0_10 = arith.constant 0 : index
      %12 = vector.load %arg7[%c0_9, %c0_10] : memref<16x256xf32, #tpu.memory_space<vmem>>, vector<16x256xf32>
      %c0_11 = arith.constant 0 : index
      %c0_12 = arith.constant 0 : index
      %13 = vector.load %arg5[%c0_11, %c0_12] : memref<1x256xf32, #tpu.memory_space<vmem>>, vector<1x256xf32>
      %14 = vector.broadcast %13 : vector<1x256xf32> to vector<16x256xf32>
      %15 = arith.addf %12, %14 : vector<16x256xf32>
      %cst_13 = arith.constant 0.000000e+00 : f32
      %16 = vector.broadcast %cst_13 : f32 to vector<16x256xf32>
      %17 = arith.maximumf %15, %16 : vector<16x256xf32>
      %18 = arith.truncf %17 : vector<16x256xf32> to vector<16x256xbf16>
      %c0_14 = arith.constant 0 : index
      %c0_15 = arith.constant 0 : index
      %19 = vector.load %arg6[%c0_14, %c0_15] : memref<16x256xbf16, #tpu.memory_space<vmem>>, vector<16x256xbf16>
      tpu.vector_store %arg6[%c0_14, %c0_15], %18 {strides = array<i32>} : memref<16x256xbf16, #tpu.memory_space<vmem>>, vector<16x256xbf16>,
    } else {
    }
    return
  }
  func.func @transform_0(%arg0: i32, %arg1: i32, %arg2: i32) -> (i32, i32) {
    %c0_i32 = arith.constant 0 : i32
    return %arg0, %arg2 : i32, i32
  }
  func.func @transform_1(%arg0: i32, %arg1: i32, %arg2: i32) -> (i32, i32) {
    %c0_i32 = arith.constant 0 : i32
    return %arg2, %arg1 : i32, i32
  }
  func.func @transform_2(%arg0: i32, %arg1: i32, %arg2: i32) -> (i32, i32) {
    %c0_i32 = arith.constant 0 : i32
    %c0_i32_0 = arith.constant 0 : i32
    return %c0_i32, %arg1 : i32, i32
  }
  func.func @transform_3(%arg0: i32, %arg1: i32, %arg2: i32) -> (i32, i32) {
    %c0_i32 = arith.constant 0 : i32
    return %arg0, %arg1 : i32, i32
  }
}

module attributes {stable_mosaic.version = 11 : i64} {
  func.func @_gemm_kernel(%arg0: i32, %arg1: i32, %arg2: i32, %arg3: memref<16x128xbf16, #tpu.memory_space<vmem>>, %arg4: memref<128x256xbf16, #tpu.memory_space<vmem>>, %arg5: memref<1x256xf32, #tpu.memory_space<vmem>>, %arg6: memref<16x256xbf16, #tpu.memory_space<vmem>>, %arg7: memref<16x256xf32, #tpu.memory_space<vmem>>) attributes {dimension_semantics = [#tpu.dimension_semantics<parallel>, #tpu.dimension_semantics<parallel>, #tpu.dimension_semantics<arbitrary>], iteration_bounds = array<i64: 1, 1, 1>, scalar_prefetch = 0 : i64, scratch_operands = 1 : i64, tpu.core_type = #tpu.core_type<tc>, window_params = [{transform_indices = @transform_0, window_bounds = array<i64: 16, 128>}, {transform_indices = @transform_1, window_bounds = array<i64: 128, 256>}, {transform_indices = @transform_2, window_bounds = array<i64: 1, 256>}, {transform_indices = @transform_3, window_bounds = array<i64: 16, 256>}]} {
    %c0_i32 = arith.constant 0 : i32
    %0 = arith.cmpi eq, %arg2, %c0_i32 : i32
    %1 = arith.extui %0 : i1 to i32
    %c0_i32_0 = arith.constant 0 : i32
    %2 = arith.cmpi ne, %1, %c0_i32_0 : i32
    scf.if %2 {
      %cst_10 = arith.constant 0.000000e+00 : f32
      %12 = vector.broadcast %cst_10 : f32 to vector<16x256xf32>
      %c0_11 = arith.constant 0 : index
      %c0_12 = arith.constant 0 : index
      %13 = vector.load %arg7[%c0_11, %c0_12] : memref<16x256xf32, #tpu.memory_space<vmem>>, vector<16x256xf32>
      tpu.vector_store %arg7[%c0_11, %c0_12], %12 {strides = array<i32>} : memref<16x256xf32, #tpu.memory_space<vmem>>, vector<16x256xf32>,
    } else {
    }
    %c0 = arith.constant 0 : index
    %c0_1 = arith.constant 0 : index
    %3 = vector.load %arg7[%c0, %c0_1] : memref<16x256xf32, #tpu.memory_space<vmem>>, vector<16x256xf32>
    %c0_2 = arith.constant 0 : index
    %c0_3 = arith.constant 0 : index
    %4 = vector.load %arg3[%c0_2, %c0_3] : memref<16x128xbf16, #tpu.memory_space<vmem>>, vector<16x128xbf16>
    %c0_4 = arith.constant 0 : index
    %c0_5 = arith.constant 0 : index
    %5 = vector.load %arg4[%c0_4, %c0_5] : memref<128x256xbf16, #tpu.memory_space<vmem>>, vector<128x256xbf16>
    %cst = arith.constant dense<0.000000e+00> : vector<16x256xf32>
    %6 = tpu.matmul %4, %5, %cst {dimension_numbers = #tpu.dot_dimension_numbers<[1], [0], [0], [1], [0, 0, 1, 1], [], []>} : vector<16x128xbf16>, vector<128x256xbf16>, vector<16x256xf32> -> vector<16x256xf32>
    %7 = arith.addf %3, %6 : vector<16x256xf32>
    %c0_6 = arith.constant 0 : index
    %c0_7 = arith.constant 0 : index
    %8 = vector.load %arg7[%c0_6, %c0_7] : memref<16x256xf32, #tpu.memory_space<vmem>>, vector<16x256xf32>
    tpu.vector_store %arg7[%c0_6, %c0_7], %7 {strides = array<i32>} : memref<16x256xf32, #tpu.memory_space<vmem>>, vector<16x256xf32>,
    %c0_i32_8 = arith.constant 0 : i32
    %9 = arith.cmpi eq, %arg2, %c0_i32_8 : i32
    %10 = arith.extui %9 : i1 to i32
    %c0_i32_9 = arith.constant 0 : i32
    %11 = arith.cmpi ne, %10, %c0_i32_9 : i32
    scf.if %11 {
      %c0_10 = arith.constant 0 : index
      %c0_11 = arith.constant 0 : index
      %12 = vector.load %arg7[%c0_10, %c0_11] : memref<16x256xf32, #tpu.memory_space<vmem>>, vector<16x256xf32>
      %c0_12 = arith.constant 0 : index
      %c0_13 = arith.constant 0 : index
      %13 = vector.load %arg5[%c0_12, %c0_13] : memref<1x256xf32, #tpu.memory_space<vmem>>, vector<1x256xf32>
      %14 = vector.broadcast %13 : vector<1x256xf32> to vector<16x256xf32>
      %15 = arith.addf %12, %14 : vector<16x256xf32>
      %16 = arith.truncf %15 : vector<16x256xf32> to vector<16x256xbf16>
      %c0_14 = arith.constant 0 : index
      %c0_15 = arith.constant 0 : index
      %17 = vector.load %arg6[%c0_14, %c0_15] : memref<16x256xbf16, #tpu.memory_space<vmem>>, vector<16x256xbf16>
      tpu.vector_store %arg6[%c0_14, %c0_15], %16 {strides = array<i32>} : memref<16x256xbf16, #tpu.memory_space<vmem>>, vector<16x256xbf16>,
    } else {
    }
    return
  }
  func.func @transform_0(%arg0: i32, %arg1: i32, %arg2: i32) -> (i32, i32) {
    %c0_i32 = arith.constant 0 : i32
    return %arg0, %arg2 : i32, i32
  }
  func.func @transform_1(%arg0: i32, %arg1: i32, %arg2: i32) -> (i32, i32) {
    %c0_i32 = arith.constant 0 : i32
    return %arg2, %arg1 : i32, i32
  }
  func.func @transform_2(%arg0: i32, %arg1: i32, %arg2: i32) -> (i32, i32) {
    %c0_i32 = arith.constant 0 : i32
    %c0_i32_0 = arith.constant 0 : i32
    return %c0_i32, %arg1 : i32, i32
  }
  func.func @transform_3(%arg0: i32, %arg1: i32, %arg2: i32) -> (i32, i32) {
    %c0_i32 = arith.constant 0 : i32
    return %arg0, %arg1 : i32, i32
  }
}

module attributes {stable_mosaic.version = 11 : i64} {
  func.func @_gemm_kernel(%arg0: i32, %arg1: i32, %arg2: i32, %arg3: memref<16x256xbf16, #tpu.memory_space<vmem>>, %arg4: memref<256x512xbf16, #tpu.memory_space<vmem>>, %arg5: memref<1x512xf32, #tpu.memory_space<vmem>>, %arg6: memref<16x512xbf16, #tpu.memory_space<vmem>>, %arg7: memref<16x512xf32, #tpu.memory_space<vmem>>) attributes {dimension_semantics = [#tpu.dimension_semantics<parallel>, #tpu.dimension_semantics<parallel>, #tpu.dimension_semantics<arbitrary>], iteration_bounds = array<i64: 1, 1, 9>, scalar_prefetch = 0 : i64, scratch_operands = 1 : i64, tpu.core_type = #tpu.core_type<tc>, window_params = [{transform_indices = @transform_0, window_bounds = array<i64: 16, 256>}, {transform_indices = @transform_1, window_bounds = array<i64: 256, 512>}, {transform_indices = @transform_2, window_bounds = array<i64: 1, 512>}, {transform_indices = @transform_3, window_bounds = array<i64: 16, 512>}]} {
    %c0_i32 = arith.constant 0 : i32
    %0 = arith.cmpi eq, %arg2, %c0_i32 : i32
    %1 = arith.extui %0 : i1 to i32
    %c0_i32_0 = arith.constant 0 : i32
    %2 = arith.cmpi ne, %1, %c0_i32_0 : i32
    scf.if %2 {
      %cst_9 = arith.constant 0.000000e+00 : f32
      %12 = vector.broadcast %cst_9 : f32 to vector<16x512xf32>
      %c0_10 = arith.constant 0 : index
      %c0_11 = arith.constant 0 : index
      %13 = vector.load %arg7[%c0_10, %c0_11] : memref<16x512xf32, #tpu.memory_space<vmem>>, vector<16x512xf32>
      tpu.vector_store %arg7[%c0_10, %c0_11], %12 {strides = array<i32>} : memref<16x512xf32, #tpu.memory_space<vmem>>, vector<16x512xf32>,
    } else {
    }
    %c0 = arith.constant 0 : index
    %c0_1 = arith.constant 0 : index
    %3 = vector.load %arg7[%c0, %c0_1] : memref<16x512xf32, #tpu.memory_space<vmem>>, vector<16x512xf32>
    %c0_2 = arith.constant 0 : index
    %c0_3 = arith.constant 0 : index
    %4 = vector.load %arg3[%c0_2, %c0_3] : memref<16x256xbf16, #tpu.memory_space<vmem>>, vector<16x256xbf16>
    %c0_4 = arith.constant 0 : index
    %c0_5 = arith.constant 0 : index
    %5 = vector.load %arg4[%c0_4, %c0_5] : memref<256x512xbf16, #tpu.memory_space<vmem>>, vector<256x512xbf16>
    %cst = arith.constant dense<0.000000e+00> : vector<16x512xf32>
    %6 = tpu.matmul %4, %5, %cst {dimension_numbers = #tpu.dot_dimension_numbers<[1], [0], [0], [1], [0, 0, 1, 1], [], []>} : vector<16x256xbf16>, vector<256x512xbf16>, vector<16x512xf32> -> vector<16x512xf32>
    %7 = arith.addf %3, %6 : vector<16x512xf32>
    %c0_6 = arith.constant 0 : index
    %c0_7 = arith.constant 0 : index
    %8 = vector.load %arg7[%c0_6, %c0_7] : memref<16x512xf32, #tpu.memory_space<vmem>>, vector<16x512xf32>
    tpu.vector_store %arg7[%c0_6, %c0_7], %7 {strides = array<i32>} : memref<16x512xf32, #tpu.memory_space<vmem>>, vector<16x512xf32>,
    %c8_i32 = arith.constant 8 : i32
    %9 = arith.cmpi eq, %arg2, %c8_i32 : i32
    %10 = arith.extui %9 : i1 to i32
    %c0_i32_8 = arith.constant 0 : i32
    %11 = arith.cmpi ne, %10, %c0_i32_8 : i32
    scf.if %11 {
      %c0_9 = arith.constant 0 : index
      %c0_10 = arith.constant 0 : index
      %12 = vector.load %arg7[%c0_9, %c0_10] : memref<16x512xf32, #tpu.memory_space<vmem>>, vector<16x512xf32>
      %c0_11 = arith.constant 0 : index
      %c0_12 = arith.constant 0 : index
      %13 = vector.load %arg5[%c0_11, %c0_12] : memref<1x512xf32, #tpu.memory_space<vmem>>, vector<1x512xf32>
      %14 = vector.broadcast %13 : vector<1x512xf32> to vector<16x512xf32>
      %15 = arith.addf %12, %14 : vector<16x512xf32>
      %cst_13 = arith.constant 0.000000e+00 : f32
      %16 = vector.broadcast %cst_13 : f32 to vector<16x512xf32>
      %17 = arith.maximumf %15, %16 : vector<16x512xf32>
      %18 = arith.truncf %17 : vector<16x512xf32> to vector<16x512xbf16>
      %c0_14 = arith.constant 0 : index
      %c0_15 = arith.constant 0 : index
      %19 = vector.load %arg6[%c0_14, %c0_15] : memref<16x512xbf16, #tpu.memory_space<vmem>>, vector<16x512xbf16>
      tpu.vector_store %arg6[%c0_14, %c0_15], %18 {strides = array<i32>} : memref<16x512xbf16, #tpu.memory_space<vmem>>, vector<16x512xbf16>,
    } else {
    }
    return
  }
  func.func @transform_0(%arg0: i32, %arg1: i32, %arg2: i32) -> (i32, i32) {
    %c0_i32 = arith.constant 0 : i32
    return %arg0, %arg2 : i32, i32
  }
  func.func @transform_1(%arg0: i32, %arg1: i32, %arg2: i32) -> (i32, i32) {
    %c0_i32 = arith.constant 0 : i32
    return %arg2, %arg1 : i32, i32
  }
  func.func @transform_2(%arg0: i32, %arg1: i32, %arg2: i32) -> (i32, i32) {
    %c0_i32 = arith.constant 0 : i32
    %c0_i32_0 = arith.constant 0 : i32
    return %c0_i32, %arg1 : i32, i32
  }
  func.func @transform_3(%arg0: i32, %arg1: i32, %arg2: i32) -> (i32, i32) {
    %c0_i32 = arith.constant 0 : i32
    return %arg0, %arg1 : i32, i32
  }
}

module attributes {stable_mosaic.version = 11 : i64} {
  func.func @_gemm_kernel(%arg0: i32, %arg1: i32, %arg2: i32, %arg3: memref<16x256xbf16, #tpu.memory_space<vmem>>, %arg4: memref<256x512xbf16, #tpu.memory_space<vmem>>, %arg5: memref<1x512xf32, #tpu.memory_space<vmem>>, %arg6: memref<16x512xbf16, #tpu.memory_space<vmem>>, %arg7: memref<16x512xf32, #tpu.memory_space<vmem>>) attributes {dimension_semantics = [#tpu.dimension_semantics<parallel>, #tpu.dimension_semantics<parallel>, #tpu.dimension_semantics<arbitrary>], iteration_bounds = array<i64: 1, 1, 1>, scalar_prefetch = 0 : i64, scratch_operands = 1 : i64, tpu.core_type = #tpu.core_type<tc>, window_params = [{transform_indices = @transform_0, window_bounds = array<i64: 16, 256>}, {transform_indices = @transform_1, window_bounds = array<i64: 256, 512>}, {transform_indices = @transform_2, window_bounds = array<i64: 1, 512>}, {transform_indices = @transform_3, window_bounds = array<i64: 16, 512>}]} {
    %c0_i32 = arith.constant 0 : i32
    %0 = arith.cmpi eq, %arg2, %c0_i32 : i32
    %1 = arith.extui %0 : i1 to i32
    %c0_i32_0 = arith.constant 0 : i32
    %2 = arith.cmpi ne, %1, %c0_i32_0 : i32
    scf.if %2 {
      %cst_10 = arith.constant 0.000000e+00 : f32
      %12 = vector.broadcast %cst_10 : f32 to vector<16x512xf32>
      %c0_11 = arith.constant 0 : index
      %c0_12 = arith.constant 0 : index
      %13 = vector.load %arg7[%c0_11, %c0_12] : memref<16x512xf32, #tpu.memory_space<vmem>>, vector<16x512xf32>
      tpu.vector_store %arg7[%c0_11, %c0_12], %12 {strides = array<i32>} : memref<16x512xf32, #tpu.memory_space<vmem>>, vector<16x512xf32>,
    } else {
    }
    %c0 = arith.constant 0 : index
    %c0_1 = arith.constant 0 : index
    %3 = vector.load %arg7[%c0, %c0_1] : memref<16x512xf32, #tpu.memory_space<vmem>>, vector<16x512xf32>
    %c0_2 = arith.constant 0 : index
    %c0_3 = arith.constant 0 : index
    %4 = vector.load %arg3[%c0_2, %c0_3] : memref<16x256xbf16, #tpu.memory_space<vmem>>, vector<16x256xbf16>
    %c0_4 = arith.constant 0 : index
    %c0_5 = arith.constant 0 : index
    %5 = vector.load %arg4[%c0_4, %c0_5] : memref<256x512xbf16, #tpu.memory_space<vmem>>, vector<256x512xbf16>
    %cst = arith.constant dense<0.000000e+00> : vector<16x512xf32>
    %6 = tpu.matmul %4, %5, %cst {dimension_numbers = #tpu.dot_dimension_numbers<[1], [0], [0], [1], [0, 0, 1, 1], [], []>} : vector<16x256xbf16>, vector<256x512xbf16>, vector<16x512xf32> -> vector<16x512xf32>
    %7 = arith.addf %3, %6 : vector<16x512xf32>
    %c0_6 = arith.constant 0 : index
    %c0_7 = arith.constant 0 : index
    %8 = vector.load %arg7[%c0_6, %c0_7] : memref<16x512xf32, #tpu.memory_space<vmem>>, vector<16x512xf32>
    tpu.vector_store %arg7[%c0_6, %c0_7], %7 {strides = array<i32>} : memref<16x512xf32, #tpu.memory_space<vmem>>, vector<16x512xf32>,
    %c0_i32_8 = arith.constant 0 : i32
    %9 = arith.cmpi eq, %arg2, %c0_i32_8 : i32
    %10 = arith.extui %9 : i1 to i32
    %c0_i32_9 = arith.constant 0 : i32
    %11 = arith.cmpi ne, %10, %c0_i32_9 : i32
    scf.if %11 {
      %c0_10 = arith.constant 0 : index
      %c0_11 = arith.constant 0 : index
      %12 = vector.load %arg7[%c0_10, %c0_11] : memref<16x512xf32, #tpu.memory_space<vmem>>, vector<16x512xf32>
      %c0_12 = arith.constant 0 : index
      %c0_13 = arith.constant 0 : index
      %13 = vector.load %arg5[%c0_12, %c0_13] : memref<1x512xf32, #tpu.memory_space<vmem>>, vector<1x512xf32>
      %14 = vector.broadcast %13 : vector<1x512xf32> to vector<16x512xf32>
      %15 = arith.addf %12, %14 : vector<16x512xf32>
      %16 = arith.truncf %15 : vector<16x512xf32> to vector<16x512xbf16>
      %c0_14 = arith.constant 0 : index
      %c0_15 = arith.constant 0 : index
      %17 = vector.load %arg6[%c0_14, %c0_15] : memref<16x512xbf16, #tpu.memory_space<vmem>>, vector<16x512xbf16>
      tpu.vector_store %arg6[%c0_14, %c0_15], %16 {strides = array<i32>} : memref<16x512xbf16, #tpu.memory_space<vmem>>, vector<16x512xbf16>,
    } else {
    }
    return
  }
  func.func @transform_0(%arg0: i32, %arg1: i32, %arg2: i32) -> (i32, i32) {
    %c0_i32 = arith.constant 0 : i32
    return %arg0, %arg2 : i32, i32
  }
  func.func @transform_1(%arg0: i32, %arg1: i32, %arg2: i32) -> (i32, i32) {
    %c0_i32 = arith.constant 0 : i32
    return %arg2, %arg1 : i32, i32
  }
  func.func @transform_2(%arg0: i32, %arg1: i32, %arg2: i32) -> (i32, i32) {
    %c0_i32 = arith.constant 0 : i32
    %c0_i32_0 = arith.constant 0 : i32
    return %c0_i32, %arg1 : i32, i32
  }
  func.func @transform_3(%arg0: i32, %arg1: i32, %arg2: i32) -> (i32, i32) {
    %c0_i32 = arith.constant 0 : i32
    return %arg0, %arg1 : i32, i32
  }
}

module attributes {stable_mosaic.version = 11 : i64} {
  func.func @_gemm_res_kernel(%arg0: i32, %arg1: i32, %arg2: i32, %arg3: memref<16x256xbf16, #tpu.memory_space<vmem>>, %arg4: memref<256x256xbf16, #tpu.memory_space<vmem>>, %arg5: memref<1x256xf32, #tpu.memory_space<vmem>>, %arg6: memref<16x256xbf16, #tpu.memory_space<vmem>>, %arg7: memref<16x256xbf16, #tpu.memory_space<vmem>>, %arg8: memref<16x256xf32, #tpu.memory_space<vmem>>) attributes {dimension_semantics = [#tpu.dimension_semantics<parallel>, #tpu.dimension_semantics<parallel>, #tpu.dimension_semantics<arbitrary>], iteration_bounds = array<i64: 1, 1, 9>, scalar_prefetch = 0 : i64, scratch_operands = 1 : i64, tpu.core_type = #tpu.core_type<tc>, window_params = [{transform_indices = @transform_0, window_bounds = array<i64: 16, 256>}, {transform_indices = @transform_1, window_bounds = array<i64: 256, 256>}, {transform_indices = @transform_2, window_bounds = array<i64: 1, 256>}, {transform_indices = @transform_3, window_bounds = array<i64: 16, 256>}, {transform_indices = @transform_4, window_bounds = array<i64: 16, 256>}]} {
    %c0_i32 = arith.constant 0 : i32
    %0 = arith.cmpi eq, %arg2, %c0_i32 : i32
    %1 = arith.extui %0 : i1 to i32
    %c0_i32_0 = arith.constant 0 : i32
    %2 = arith.cmpi ne, %1, %c0_i32_0 : i32
    scf.if %2 {
      %cst_9 = arith.constant 0.000000e+00 : f32
      %12 = vector.broadcast %cst_9 : f32 to vector<16x256xf32>
      %c0_10 = arith.constant 0 : index
      %c0_11 = arith.constant 0 : index
      %13 = vector.load %arg8[%c0_10, %c0_11] : memref<16x256xf32, #tpu.memory_space<vmem>>, vector<16x256xf32>
      tpu.vector_store %arg8[%c0_10, %c0_11], %12 {strides = array<i32>} : memref<16x256xf32, #tpu.memory_space<vmem>>, vector<16x256xf32>,
    } else {
    }
    %c0 = arith.constant 0 : index
    %c0_1 = arith.constant 0 : index
    %3 = vector.load %arg8[%c0, %c0_1] : memref<16x256xf32, #tpu.memory_space<vmem>>, vector<16x256xf32>
    %c0_2 = arith.constant 0 : index
    %c0_3 = arith.constant 0 : index
    %4 = vector.load %arg3[%c0_2, %c0_3] : memref<16x256xbf16, #tpu.memory_space<vmem>>, vector<16x256xbf16>
    %c0_4 = arith.constant 0 : index
    %c0_5 = arith.constant 0 : index
    %5 = vector.load %arg4[%c0_4, %c0_5] : memref<256x256xbf16, #tpu.memory_space<vmem>>, vector<256x256xbf16>
    %cst = arith.constant dense<0.000000e+00> : vector<16x256xf32>
    %6 = tpu.matmul %4, %5, %cst {dimension_numbers = #tpu.dot_dimension_numbers<[1], [0], [0], [1], [0, 0, 1, 1], [], []>} : vector<16x256xbf16>, vector<256x256xbf16>, vector<16x256xf32> -> vector<16x256xf32>
    %7 = arith.addf %3, %6 : vector<16x256xf32>
    %c0_6 = arith.constant 0 : index
    %c0_7 = arith.constant 0 : index
    %8 = vector.load %arg8[%c0_6, %c0_7] : memref<16x256xf32, #tpu.memory_space<vmem>>, vector<16x256xf32>
    tpu.vector_store %arg8[%c0_6, %c0_7], %7 {strides = array<i32>} : memref<16x256xf32, #tpu.memory_space<vmem>>, vector<16x256xf32>,
    %c8_i32 = arith.constant 8 : i32
    %9 = arith.cmpi eq, %arg2, %c8_i32 : i32
    %10 = arith.extui %9 : i1 to i32
    %c0_i32_8 = arith.constant 0 : i32
    %11 = arith.cmpi ne, %10, %c0_i32_8 : i32
    scf.if %11 {
      %c0_9 = arith.constant 0 : index
      %c0_10 = arith.constant 0 : index
      %12 = vector.load %arg8[%c0_9, %c0_10] : memref<16x256xf32, #tpu.memory_space<vmem>>, vector<16x256xf32>
      %c0_11 = arith.constant 0 : index
      %c0_12 = arith.constant 0 : index
      %13 = vector.load %arg5[%c0_11, %c0_12] : memref<1x256xf32, #tpu.memory_space<vmem>>, vector<1x256xf32>
      %14 = vector.broadcast %13 : vector<1x256xf32> to vector<16x256xf32>
      %15 = arith.addf %12, %14 : vector<16x256xf32>
      %c0_13 = arith.constant 0 : index
      %c0_14 = arith.constant 0 : index
      %16 = vector.load %arg6[%c0_13, %c0_14] : memref<16x256xbf16, #tpu.memory_space<vmem>>, vector<16x256xbf16>
      %17 = arith.extf %16 : vector<16x256xbf16> to vector<16x256xf32>
      %18 = arith.addf %15, %17 : vector<16x256xf32>
      %cst_15 = arith.constant 0.000000e+00 : f32
      %19 = vector.broadcast %cst_15 : f32 to vector<16x256xf32>
      %20 = arith.maximumf %18, %19 : vector<16x256xf32>
      %21 = arith.truncf %20 : vector<16x256xf32> to vector<16x256xbf16>
      %c0_16 = arith.constant 0 : index
      %c0_17 = arith.constant 0 : index
      %22 = vector.load %arg7[%c0_16, %c0_17] : memref<16x256xbf16, #tpu.memory_space<vmem>>, vector<16x256xbf16>
      tpu.vector_store %arg7[%c0_16, %c0_17], %21 {strides = array<i32>} : memref<16x256xbf16, #tpu.memory_space<vmem>>, vector<16x256xbf16>,
    } else {
    }
    return
  }
  func.func @transform_0(%arg0: i32, %arg1: i32, %arg2: i32) -> (i32, i32) {
    %c0_i32 = arith.constant 0 : i32
    return %arg0, %arg2 : i32, i32
  }
  func.func @transform_1(%arg0: i32, %arg1: i32, %arg2: i32) -> (i32, i32) {
    %c0_i32 = arith.constant 0 : i32
    return %arg2, %arg1 : i32, i32
  }
  func.func @transform_2(%arg0: i32, %arg1: i32, %arg2: i32) -> (i32, i32) {
    %c0_i32 = arith.constant 0 : i32
    %c0_i32_0 = arith.constant 0 : i32
    return %c0_i32, %arg1 : i32, i32
  }
  func.func @transform_3(%arg0: i32, %arg1: i32, %arg2: i32) -> (i32, i32) {
    %c0_i32 = arith.constant 0 : i32
    return %arg0, %arg1 : i32, i32
  }
  func.func @transform_4(%arg0: i32, %arg1: i32, %arg2: i32) -> (i32, i32) {
    %c0_i32 = arith.constant 0 : i32
    return %arg0, %arg1 : i32, i32
  }
}

module attributes {stable_mosaic.version = 11 : i64} {
  func.func @_gemm_res_kernel(%arg0: i32, %arg1: i32, %arg2: i32, %arg3: memref<16x512xbf16, #tpu.memory_space<vmem>>, %arg4: memref<512x512xbf16, #tpu.memory_space<vmem>>, %arg5: memref<1x512xf32, #tpu.memory_space<vmem>>, %arg6: memref<16x512xbf16, #tpu.memory_space<vmem>>, %arg7: memref<16x512xbf16, #tpu.memory_space<vmem>>, %arg8: memref<16x512xf32, #tpu.memory_space<vmem>>) attributes {dimension_semantics = [#tpu.dimension_semantics<parallel>, #tpu.dimension_semantics<parallel>, #tpu.dimension_semantics<arbitrary>], iteration_bounds = array<i64: 1, 1, 9>, scalar_prefetch = 0 : i64, scratch_operands = 1 : i64, tpu.core_type = #tpu.core_type<tc>, window_params = [{transform_indices = @transform_0, window_bounds = array<i64: 16, 512>}, {transform_indices = @transform_1, window_bounds = array<i64: 512, 512>}, {transform_indices = @transform_2, window_bounds = array<i64: 1, 512>}, {transform_indices = @transform_3, window_bounds = array<i64: 16, 512>}, {transform_indices = @transform_4, window_bounds = array<i64: 16, 512>}]} {
    %c0_i32 = arith.constant 0 : i32
    %0 = arith.cmpi eq, %arg2, %c0_i32 : i32
    %1 = arith.extui %0 : i1 to i32
    %c0_i32_0 = arith.constant 0 : i32
    %2 = arith.cmpi ne, %1, %c0_i32_0 : i32
    scf.if %2 {
      %cst_9 = arith.constant 0.000000e+00 : f32
      %12 = vector.broadcast %cst_9 : f32 to vector<16x512xf32>
      %c0_10 = arith.constant 0 : index
      %c0_11 = arith.constant 0 : index
      %13 = vector.load %arg8[%c0_10, %c0_11] : memref<16x512xf32, #tpu.memory_space<vmem>>, vector<16x512xf32>
      tpu.vector_store %arg8[%c0_10, %c0_11], %12 {strides = array<i32>} : memref<16x512xf32, #tpu.memory_space<vmem>>, vector<16x512xf32>,
    } else {
    }
    %c0 = arith.constant 0 : index
    %c0_1 = arith.constant 0 : index
    %3 = vector.load %arg8[%c0, %c0_1] : memref<16x512xf32, #tpu.memory_space<vmem>>, vector<16x512xf32>
    %c0_2 = arith.constant 0 : index
    %c0_3 = arith.constant 0 : index
    %4 = vector.load %arg3[%c0_2, %c0_3] : memref<16x512xbf16, #tpu.memory_space<vmem>>, vector<16x512xbf16>
    %c0_4 = arith.constant 0 : index
    %c0_5 = arith.constant 0 : index
    %5 = vector.load %arg4[%c0_4, %c0_5] : memref<512x512xbf16, #tpu.memory_space<vmem>>, vector<512x512xbf16>
    %cst = arith.constant dense<0.000000e+00> : vector<16x512xf32>
    %6 = tpu.matmul %4, %5, %cst {dimension_numbers = #tpu.dot_dimension_numbers<[1], [0], [0], [1], [0, 0, 1, 1], [], []>} : vector<16x512xbf16>, vector<512x512xbf16>, vector<16x512xf32> -> vector<16x512xf32>
    %7 = arith.addf %3, %6 : vector<16x512xf32>
    %c0_6 = arith.constant 0 : index
    %c0_7 = arith.constant 0 : index
    %8 = vector.load %arg8[%c0_6, %c0_7] : memref<16x512xf32, #tpu.memory_space<vmem>>, vector<16x512xf32>
    tpu.vector_store %arg8[%c0_6, %c0_7], %7 {strides = array<i32>} : memref<16x512xf32, #tpu.memory_space<vmem>>, vector<16x512xf32>,
    %c8_i32 = arith.constant 8 : i32
    %9 = arith.cmpi eq, %arg2, %c8_i32 : i32
    %10 = arith.extui %9 : i1 to i32
    %c0_i32_8 = arith.constant 0 : i32
    %11 = arith.cmpi ne, %10, %c0_i32_8 : i32
    scf.if %11 {
      %c0_9 = arith.constant 0 : index
      %c0_10 = arith.constant 0 : index
      %12 = vector.load %arg8[%c0_9, %c0_10] : memref<16x512xf32, #tpu.memory_space<vmem>>, vector<16x512xf32>
      %c0_11 = arith.constant 0 : index
      %c0_12 = arith.constant 0 : index
      %13 = vector.load %arg5[%c0_11, %c0_12] : memref<1x512xf32, #tpu.memory_space<vmem>>, vector<1x512xf32>
      %14 = vector.broadcast %13 : vector<1x512xf32> to vector<16x512xf32>
      %15 = arith.addf %12, %14 : vector<16x512xf32>
      %c0_13 = arith.constant 0 : index
      %c0_14 = arith.constant 0 : index
      %16 = vector.load %arg6[%c0_13, %c0_14] : memref<16x512xbf16, #tpu.memory_space<vmem>>, vector<16x512xbf16>
      %17 = arith.extf %16 : vector<16x512xbf16> to vector<16x512xf32>
      %18 = arith.addf %15, %17 : vector<16x512xf32>
      %cst_15 = arith.constant 0.000000e+00 : f32
      %19 = vector.broadcast %cst_15 : f32 to vector<16x512xf32>
      %20 = arith.maximumf %18, %19 : vector<16x512xf32>
      %21 = arith.truncf %20 : vector<16x512xf32> to vector<16x512xbf16>
      %c0_16 = arith.constant 0 : index
      %c0_17 = arith.constant 0 : index
      %22 = vector.load %arg7[%c0_16, %c0_17] : memref<16x512xbf16, #tpu.memory_space<vmem>>, vector<16x512xbf16>
      tpu.vector_store %arg7[%c0_16, %c0_17], %21 {strides = array<i32>} : memref<16x512xbf16, #tpu.memory_space<vmem>>, vector<16x512xbf16>,
    } else {
    }
    return
  }
  func.func @transform_0(%arg0: i32, %arg1: i32, %arg2: i32) -> (i32, i32) {
    %c0_i32 = arith.constant 0 : i32
    return %arg0, %arg2 : i32, i32
  }
  func.func @transform_1(%arg0: i32, %arg1: i32, %arg2: i32) -> (i32, i32) {
    %c0_i32 = arith.constant 0 : i32
    return %arg2, %arg1 : i32, i32
  }
  func.func @transform_2(%arg0: i32, %arg1: i32, %arg2: i32) -> (i32, i32) {
    %c0_i32 = arith.constant 0 : i32
    %c0_i32_0 = arith.constant 0 : i32
    return %c0_i32, %arg1 : i32, i32
  }
  func.func @transform_3(%arg0: i32, %arg1: i32, %arg2: i32) -> (i32, i32) {
    %c0_i32 = arith.constant 0 : i32
    return %arg0, %arg1 : i32, i32
  }
  func.func @transform_4(%arg0: i32, %arg1: i32, %arg2: i32) -> (i32, i32) {
    %c0_i32 = arith.constant 0 : i32
    return %arg0, %arg1 : i32, i32
  }
}

module attributes {stable_mosaic.version = 11 : i64} {
  func.func @_gemm_kernel(%arg0: i32, %arg1: i32, %arg2: i32, %arg3: memref<16x512xbf16, #tpu.memory_space<vmem>>, %arg4: memref<512x128xbf16, #tpu.memory_space<vmem>>, %arg5: memref<1x128xf32, #tpu.memory_space<vmem>>, %arg6: memref<16x128xf32, #tpu.memory_space<vmem>>, %arg7: memref<16x128xf32, #tpu.memory_space<vmem>>) attributes {dimension_semantics = [#tpu.dimension_semantics<parallel>, #tpu.dimension_semantics<parallel>, #tpu.dimension_semantics<arbitrary>], iteration_bounds = array<i64: 1, 1, 1>, scalar_prefetch = 0 : i64, scratch_operands = 1 : i64, tpu.core_type = #tpu.core_type<tc>, window_params = [{transform_indices = @transform_0, window_bounds = array<i64: 16, 512>}, {transform_indices = @transform_1, window_bounds = array<i64: 512, 128>}, {transform_indices = @transform_2, window_bounds = array<i64: 1, 128>}, {transform_indices = @transform_3, window_bounds = array<i64: 16, 128>}]} {
    %c0_i32 = arith.constant 0 : i32
    %0 = arith.cmpi eq, %arg2, %c0_i32 : i32
    %1 = arith.extui %0 : i1 to i32
    %c0_i32_0 = arith.constant 0 : i32
    %2 = arith.cmpi ne, %1, %c0_i32_0 : i32
    scf.if %2 {
      %cst_10 = arith.constant 0.000000e+00 : f32
      %12 = vector.broadcast %cst_10 : f32 to vector<16x128xf32>
      %c0_11 = arith.constant 0 : index
      %c0_12 = arith.constant 0 : index
      %13 = vector.load %arg7[%c0_11, %c0_12] : memref<16x128xf32, #tpu.memory_space<vmem>>, vector<16x128xf32>
      tpu.vector_store %arg7[%c0_11, %c0_12], %12 {strides = array<i32>} : memref<16x128xf32, #tpu.memory_space<vmem>>, vector<16x128xf32>,
    } else {
    }
    %c0 = arith.constant 0 : index
    %c0_1 = arith.constant 0 : index
    %3 = vector.load %arg7[%c0, %c0_1] : memref<16x128xf32, #tpu.memory_space<vmem>>, vector<16x128xf32>
    %c0_2 = arith.constant 0 : index
    %c0_3 = arith.constant 0 : index
    %4 = vector.load %arg3[%c0_2, %c0_3] : memref<16x512xbf16, #tpu.memory_space<vmem>>, vector<16x512xbf16>
    %c0_4 = arith.constant 0 : index
    %c0_5 = arith.constant 0 : index
    %5 = vector.load %arg4[%c0_4, %c0_5] : memref<512x128xbf16, #tpu.memory_space<vmem>>, vector<512x128xbf16>
    %cst = arith.constant dense<0.000000e+00> : vector<16x128xf32>
    %6 = tpu.matmul %4, %5, %cst {dimension_numbers = #tpu.dot_dimension_numbers<[1], [0], [0], [1], [0, 0, 1, 1], [], []>} : vector<16x512xbf16>, vector<512x128xbf16>, vector<16x128xf32> -> vector<16x128xf32>
    %7 = arith.addf %3, %6 : vector<16x128xf32>
    %c0_6 = arith.constant 0 : index
    %c0_7 = arith.constant 0 : index
    %8 = vector.load %arg7[%c0_6, %c0_7] : memref<16x128xf32, #tpu.memory_space<vmem>>, vector<16x128xf32>
    tpu.vector_store %arg7[%c0_6, %c0_7], %7 {strides = array<i32>} : memref<16x128xf32, #tpu.memory_space<vmem>>, vector<16x128xf32>,
    %c0_i32_8 = arith.constant 0 : i32
    %9 = arith.cmpi eq, %arg2, %c0_i32_8 : i32
    %10 = arith.extui %9 : i1 to i32
    %c0_i32_9 = arith.constant 0 : i32
    %11 = arith.cmpi ne, %10, %c0_i32_9 : i32
    scf.if %11 {
      %c0_10 = arith.constant 0 : index
      %c0_11 = arith.constant 0 : index
      %12 = vector.load %arg7[%c0_10, %c0_11] : memref<16x128xf32, #tpu.memory_space<vmem>>, vector<16x128xf32>
      %c0_12 = arith.constant 0 : index
      %c0_13 = arith.constant 0 : index
      %13 = vector.load %arg5[%c0_12, %c0_13] : memref<1x128xf32, #tpu.memory_space<vmem>>, vector<1x128xf32>
      %14 = vector.broadcast %13 : vector<1x128xf32> to vector<16x128xf32>
      %15 = arith.addf %12, %14 : vector<16x128xf32>
      %c0_14 = arith.constant 0 : index
      %c0_15 = arith.constant 0 : index
      %16 = vector.load %arg6[%c0_14, %c0_15] : memref<16x128xf32, #tpu.memory_space<vmem>>, vector<16x128xf32>
      tpu.vector_store %arg6[%c0_14, %c0_15], %15 {strides = array<i32>} : memref<16x128xf32, #tpu.memory_space<vmem>>, vector<16x128xf32>,
    } else {
    }
    return
  }
  func.func @transform_0(%arg0: i32, %arg1: i32, %arg2: i32) -> (i32, i32) {
    %c0_i32 = arith.constant 0 : i32
    return %arg0, %arg2 : i32, i32
  }
  func.func @transform_1(%arg0: i32, %arg1: i32, %arg2: i32) -> (i32, i32) {
    %c0_i32 = arith.constant 0 : i32
    return %arg2, %arg1 : i32, i32
  }
  func.func @transform_2(%arg0: i32, %arg1: i32, %arg2: i32) -> (i32, i32) {
    %c0_i32 = arith.constant 0 : i32
    %c0_i32_0 = arith.constant 0 : i32
    return %c0_i32, %arg1 : i32, i32
  }
  func.func @transform_3(%arg0: i32, %arg1: i32, %arg2: i32) -> (i32, i32) {
    %c0_i32 = arith.constant 0 : i32
    return %arg0, %arg1 : i32, i32
  }
}

</mosaic_0001>

<llo_original>
// kernel: _lambda_.15
$region0: #{_lambda_.15}
  #allocation0 [shape = 'u32[]', space=smem, size = 0x4, offset = 0x4, fixed_abs, tag = 'smem constant byte address 0x4 - core index']
  #allocation1 [shape = 'u32[144,128]{1,0:T(1,128)}', space=vmem, size = 0x12000, scoped, tag = 'internal scratch']
  #allocation2 [shape = 'f32[128,128]{1,0:T(8,128)}', space=vmem, size = 0x10000, scoped, tag = 'scratch operand']
  %s0 = inlined_call_operand.vmem [shape: bf16[128,640], index: 0, kind: input, shape index: {}]
  %s1 = inlined_call_operand.vmem [shape: bf16[640,128], index: 1, kind: input, shape index: {}]
  %s2 = inlined_call_operand.vmem [shape: f32[1,128], index: 2, kind: input, shape index: {}]
  %s3 = inlined_call_operand.vmem [shape: bf16[128,128], index: 3, kind: input, shape index: {}]
  %s4 = inlined_call_operand.vmem [shape: bf16[128,128], index: 4, kind: output, shape index: {}]
  %s5 = sld [smem:[#allocation0]]
  $region98: #{_lambda_.15} parent=0
    _
  %s7 = ssub.s32 1, %s5
  %s8 = scalar_select 0, %s7, %s5
  $region1: #{_lambda_.15} parent=0
    #allocation3 [shape = 'u8[65536]{0}', space=vmem, size = 0x10000, scoped, tag = 'input window, operand 0']
    loop: start=0, step=1, limit=7
    $region2: #{_lambda_.15} parent=1 // loop_pre_header
      _
    $region3: #{_lambda_.15} parent=1 // loop_header
      %s10 = sphi 0, %s14
      %p11 = scmp.ge.s32.totalorder %s10, 7
      %s17 = sphi 0, %s36
      %s18 = sphi 0, %s32
      %s19 = sphi 0, %s28
      %s20 = sphi 0, %s17
      %s21 = sphi 0, %s18
      %s22 = sphi 0, %s19
      %s23 = sphi 0, %s20
      %s24 = sphi 0, %s21
      %s25 = sphi 0, %s22
      %s41 = sphi 0, %s43
      %s44 = sphi 0, %s41
      %s45 = sphi 0, %s44
      %s61 = sphi 0, %s45
      %s69 = sphi 0, %s71
      %s72 = sphi 0, %s69
      %s73 = sphi 0, %s72
      %s89 = sphi 0, %s73
      %s95 = sphi 0, %s97
      %s98 = sphi 0, %s95
      %s99 = sphi 0, %s98
      %s115 = sphi 0, %s99
      %s123 = sphi 0, %s125
      %s126 = sphi 0, %s123
      %s127 = sphi 0, %s126
      %s143 = sphi 0, %s127
      %s151 = sphi 0, %s153
      %s154 = sphi 0, %s151
      %s155 = sphi 0, %s154
      %s171 = sphi 0, %s155
    $region4: #{_lambda_.15} parent=1 // loop_header_branch
      %13 = sbr.rel (%p11) target = $region8
    $region5: #{_lambda_.15} parent=1 // loop_body
      %s15 = ssub.s32 %s10, 1
      %s16 = ssub.s32 %s10, 2
      %s26 = sadd.s32 1, %s19
      %p27 = scmp.ge.s32.totalorder %s26, 5
      %s28 = scalar_select %p27, 0, %s26
      %s29 = sadd.s32 1, %s18
      %s30 = scalar_select %p27, %s29, %s18
      %p31 = scmp.ge.s32.totalorder %s30, 1
      %s32 = scalar_select %p31, 0, %s30
      %s33 = sadd.s32 1, %s17
      %s34 = scalar_select %p31, %s33, %s17
      %p35 = scmp.ge.s32.totalorder %s34, 1
      %s36 = scalar_select %p35, 0, %s34
      %s37 = ssub.s32 %s17, %s36
      %s38 = ssub.s32 %s19, %s28
      %s39 = sor.u32 %s37, %s38
      %p40 = scmp.eq.s32.totalorder %s39, 0
      %s42 = sadd.s32 %s41, 1
      %s43 = scalar_select %p40, %s41, %s42
      %p46 = pneg %p40
      %p47 = scmp.eq.s32.totalorder %s10, 4
      %p48 = por %p46, %p47
      %p49 = scmp.ne.s32.totalorder %s41, %s44
      %p50 = scmp.eq.s32.totalorder %s10, 0
      %p51 = por %p49, %p50
      %p52 = scmp.ne.s32.totalorder %s41, %s44
      %p53 = scmp.eq.s32.totalorder %s15, 4
      %p54 = por %p52, %p53
      %p55 = scmp.ne.s32.totalorder %s44, %s45
      %p56 = scmp.eq.s32.totalorder %s15, 0
      %p57 = por %p55, %p56
      %p58 = scmp.ne.s32.totalorder %s44, %s45
      %p59 = scmp.eq.s32.totalorder %s16, 4
      %p60 = por %p58, %p59
      %p62 = scmp.ne.s32.totalorder %s45, %s61
      %p63 = scmp.eq.s32.totalorder %s16, 0
      %p64 = por %p62, %p63
      %s65 = ssub.s32 %s19, %s28
      %s66 = ssub.s32 %s18, %s32
      %s67 = sor.u32 %s65, %s66
      %p68 = scmp.eq.s32.totalorder %s67, 0
      %s70 = sadd.s32 %s69, 1
      %s71 = scalar_select %p68, %s69, %s70
      %p74 = pneg %p68
      %p75 = scmp.eq.s32.totalorder %s10, 4
      %p76 = por %p74, %p75
      %p77 = scmp.ne.s32.totalorder %s69, %s72
      %p78 = scmp.eq.s32.totalorder %s10, 0
      %p79 = por %p77, %p78
      %p80 = scmp.ne.s32.totalorder %s69, %s72
      %p81 = scmp.eq.s32.totalorder %s15, 4
      %p82 = por %p80, %p81
      %p83 = scmp.ne.s32.totalorder %s72, %s73
      %p84 = scmp.eq.s32.totalorder %s15, 0
      %p85 = por %p83, %p84
      %p86 = scmp.ne.s32.totalorder %s72, %s73
      %p87 = scmp.eq.s32.totalorder %s16, 4
      %p88 = por %p86, %p87
      %p90 = scmp.ne.s32.totalorder %s73, %s89
      %p91 = scmp.eq.s32.totalorder %s16, 0
      %p92 = por %p90, %p91
      %s93 = ssub.s32 %s18, %s32
      %p94 = scmp.eq.s32.totalorder %s93, 0
      %s96 = sadd.s32 %s95, 1
      %s97 = scalar_select %p94, %s95, %s96
      %p100 = pneg %p94
      %p101 = scmp.eq.s32.totalorder %s10, 4
      %p102 = por %p100, %p101
      %p103 = scmp.ne.s32.totalorder %s95, %s98
      %p104 = scmp.eq.s32.totalorder %s10, 0
      %p105 = por %p103, %p104
      %p106 = scmp.ne.s32.totalorder %s95, %s98
      %p107 = scmp.eq.s32.totalorder %s15, 4
      %p108 = por %p106, %p107
      %p109 = scmp.ne.s32.totalorder %s98, %s99
      %p110 = scmp.eq.s32.totalorder %s15, 0
      %p111 = por %p109, %p110
      %p112 = scmp.ne.s32.totalorder %s98, %s99
      %p113 = scmp.eq.s32.totalorder %s16, 4
      %p114 = por %p112, %p113
      %p116 = scmp.ne.s32.totalorder %s99, %s115
      %p117 = scmp.eq.s32.totalorder %s16, 0
      %p118 = por %p116, %p117
      %s119 = ssub.s32 %s17, %s36
      %s120 = ssub.s32 %s18, %s32
      %s121 = sor.u32 %s119, %s120
      %p122 = scmp.eq.s32.totalorder %s121, 0
      %s124 = sadd.s32 %s123, 1
      %s125 = scalar_select %p122, %s123, %s124
      %p128 = pneg %p122
      %p129 = scmp.eq.s32.totalorder %s10, 4
      %p130 = por %p128, %p129
      %p131 = scmp.ne.s32.totalorder %s123, %s126
      %p132 = scmp.eq.s32.totalorder %s10, 0
      %p133 = por %p131, %p132
      %p134 = scmp.ne.s32.totalorder %s123, %s126
      %p135 = scmp.eq.s32.totalorder %s15, 4
      %p136 = por %p134, %p135
      %p137 = scmp.ne.s32.totalorder %s126, %s127
      %p138 = scmp.eq.s32.totalorder %s15, 0
      %p139 = por %p137, %p138
      %p140 = scmp.ne.s32.totalorder %s126, %s127
      %p141 = scmp.eq.s32.totalorder %s16, 4
      %p142 = por %p140, %p141
      %p144 = scmp.ne.s32.totalorder %s127, %s143
      %p145 = scmp.eq.s32.totalorder %s16, 0
      %p146 = por %p144, %p145
      %s147 = ssub.s32 %s17, %s36
      %s148 = ssub.s32 %s18, %s32
      %s149 = sor.u32 %s147, %s148
      %p150 = scmp.eq.s32.totalorder %s149, 0
      %s152 = sadd.s32 %s151, 1
      %s153 = scalar_select %p150, %s151, %s152
      %p156 = pneg %p150
      %p157 = scmp.eq.s32.totalorder %s10, 4
      %p158 = por %p156, %p157
      %p159 = scmp.ne.s32.totalorder %s151, %s154
      %p160 = scmp.eq.s32.totalorder %s10, 0
      %p161 = por %p159, %p160
      %p162 = scmp.ne.s32.totalorder %s151, %s154
      %p163 = scmp.eq.s32.totalorder %s15, 4
      %p164 = por %p162, %p163
      %p165 = scmp.ne.s32.totalorder %s154, %s155
      %p166 = scmp.eq.s32.totalorder %s15, 0
      %p167 = por %p165, %p166
      %p168 = scmp.ne.s32.totalorder %s154, %s155
      %p169 = scmp.eq.s32.totalorder %s16, 4
      %p170 = por %p168, %p169
      %p172 = scmp.ne.s32.totalorder %s155, %s171
      %p173 = scmp.eq.s32.totalorder %s16, 0
      %p174 = por %p172, %p173
      %p175 = scmp.le.s32.totalorder 1, %s10
      %p176 = scmp.lt.s32.totalorder %s10, 6
      %p177 = pnand %p175, %p176
      %p178 = pneg %p177
      // Predicated region
      $region9: #{_lambda_.15} parent=5 // pred_check
        _
      $region10: #{_lambda_.15} parent=5 // pred_check_branch
        %180 = sbr.rel (%p177) target = $region12
      $region11: #{_lambda_.15} parent=5 // pred_region
        %s181 = ssub.s32 %s10, 1
        // Predicated region
        $region13: #{_lambda_.15} parent=11 // pred_check
          %p182 = pneg %p111
        $region14: #{_lambda_.15} parent=11 // pred_check_branch
          %184 = sbr.rel (%p182) target = $region16
        $region15: #{_lambda_.15} parent=11 // pred_region
          %p185 = scmp.lt.s32.totalorder %s21, 0
          %s186 = scalar_select %p185, %s21, 0
          %s187 = scalar_lea.vmem %s2, %s186
        $region16: #{_lambda_.15} parent=11 // pred_fallthru
          _
        // Predicated region
        $region17: #{_lambda_.15} parent=11 // pred_check
          %p188 = pneg %p139
        $region18: #{_lambda_.15} parent=11 // pred_check_branch
          %190 = sbr.rel (%p188) target = $region20
        $region19: #{_lambda_.15} parent=11 // pred_region
          %s191 = smul.u32 16, %s20
          %p192 = scmp.lt.s32.totalorder %s191, 15
          %s193 = scalar_select %p192, %s191, 15
          %p194 = scmp.lt.s32.totalorder %s21, 0
          %s195 = scalar_select %p194, %s21, 0
          %s196 = sadd.s32 %s195, %s193
          %s197 = smul.addr %s196, 4
          %s198 = scalar_lea.vmem %s3, %s197
          %s199 = smul.u32 16, %s20
        $region20: #{_lambda_.15} parent=11 // pred_fallthru
          _
      $region12: #{_lambda_.15} parent=5 // pred_fallthru
        _
      %p200 = scmp.lt.s32.totalorder %s10, 5
      // Predicated region
      $region21: #{_lambda_.15} parent=5 // pred_check
        %p201 = pneg %p200
      $region22: #{_lambda_.15} parent=5 // pred_check_branch
        %203 = sbr.rel (%p201) target = $region24
      $region23: #{_lambda_.15} parent=5 // pred_region
        // Predicated region
        $region25: #{_lambda_.15} parent=23 // pred_check
          %p204 = pneg %p51
        $region26: #{_lambda_.15} parent=23 // pred_check_branch
          %206 = sbr.rel (%p204) target = $region28
        $region27: #{_lambda_.15} parent=23 // pred_region
          %s207 = sand.u32 %s41, 1
          %s208 = sand.u32 %s41, 1
          %s209 = smul.addr %s208, 64
          %s210 = scalar_lea.vmem [#allocation3], %s209
          %s211 = smul.u32 16, %s17
          %s212 = smul.addr %s211, 5
          %s213 = sadd.s32 %s19, %s212
          %s214 = smul.addr %s213, 4
          %s215 = scalar_lea.vmem %s0, %s214
          // Predicated region
          $region29: #{_lambda_.15} parent=27 // pred_check
            _
          $region30: #{_lambda_.15} parent=27 // pred_check_branch
            %217 = sbr.rel (0) target = $region32
          $region31: #{_lambda_.15} parent=27 // pred_region
            // Predicated region
            $region33: #{_lambda_.15} parent=31 // pred_check
              _
            $region34: #{_lambda_.15} parent=31 // pred_check_branch
              %219 = sbr.rel target = $region36
            $region35: #{_lambda_.15} parent=31 // pred_region
              // Predicated region
              $region48: #{_lambda_.15} parent=35 // pred_check
                _
              $region49: #{_lambda_.15} parent=35 // pred_check_branch
                %265 = sbr.rel (0) target = $region51
              $region50: #{_lambda_.15} parent=35 // pred_region
                loop: start=0, step=1, limit=1
                $region52: #{_lambda_.15} parent=50 // loop_pre_header
                  _
                $region53: #{_lambda_.15} parent=50 // loop_header
                  %s267 = sphi 0, %s271
                  %p268 = scmp.ge.s32.totalorder %s267, 1
                  %s272 = sphi %s215, %s215
                  %s273 = sphi %s210, %s210
                $region54: #{_lambda_.15} parent=50 // loop_header_branch
                  %270 = sbr.rel (%p268) target = $region58
                $region55: #{_lambda_.15} parent=50 // loop_body
                  _
                $region56: #{_lambda_.15} parent=50 // loop_footer
                  %s271 = sadd.s32 1, %s267
                $region57: #{_lambda_.15} parent=50 // loop_footer_branch
                  %266 = sbr.rel target = $region53
                $region58: #{_lambda_.15} parent=50 // loop_exit
                  _
                %s275 = ssub.s32 16, 1
                loop: start=0, step=1, limit=1
                $region59: #{_lambda_.15} parent=50 // loop_pre_header
                  _
                $region60: #{_lambda_.15} parent=50 // loop_header
                  %s277 = sphi 0, %s281
                  %p278 = scmp.ge.s32.totalorder %s277, 1
                  %s282 = sphi %s215, %s215
                  %s283 = sphi %s210, %s210
                $region61: #{_lambda_.15} parent=50 // loop_header_branch
                  %280 = sbr.rel (%p278) target = $region65
                $region62: #{_lambda_.15} parent=50 // loop_body
                  %v284 = vld [vmem:[%s282] sm:%s275]
                  %285 = vst [vmem:[%s283] sm:%s275] %v284
                  %v286 = vld [vmem:[%s282 + $0x14] sm:%s275]
                  %287 = vst [vmem:[%s283 + $0x4] sm:%s275] %v286
                  %v288 = vld [vmem:[%s282 + $0x28] sm:%s275]
                  %289 = vst [vmem:[%s283 + $0x8] sm:%s275] %v288
                  %v290 = vld [vmem:[%s282 + $0x3c] sm:%s275]
                  %291 = vst [vmem:[%s283 + $0xc] sm:%s275] %v290
                  %v292 = vld [vmem:[%s282 + $0x50] sm:%s275]
                  %293 = vst [vmem:[%s283 + $0x10] sm:%s275] %v292
                  %v294 = vld [vmem:[%s282 + $0x64] sm:%s275]
                  %295 = vst [vmem:[%s283 + $0x14] sm:%s275] %v294
                  %v296 = vld [vmem:[%s282 + $0x78] sm:%s275]
                  %297 = vst [vmem:[%s283 + $0x18] sm:%s275] %v296
                  %v298 = vld [vmem:[%s282 + $0x8c] sm:%s275]
                  %299 = vst [vmem:[%s283 + $0x1c] sm:%s275] %v298
                  %v300 = vld [vmem:[%s282 + $0xa0] sm:%s275]
                  %301 = vst [vmem:[%s283 + $0x20] sm:%s275] %v300
                  %v302 = vld [vmem:[%s282 + $0xb4] sm:%s275]
                  %303 = vst [vmem:[%s283 + $0x24] sm:%s275] %v302
                  %v304 = vld [vmem:[%s282 + $0xc8] sm:%s275]
                  %305 = vst [vmem:[%s283 + $0x28] sm:%s275] %v304
                  %v306 = vld [vmem:[%s282 + $0xdc] sm:%s275]
                  %307 = vst [vmem:[%s283 + $0x2c] sm:%s275] %v306
                  %v308 = vld [vmem:[%s282 + $0xf0] sm:%s275]
                  %309 = vst [vmem:[%s283 + $0x30] sm:%s275] %v308
                  %v310 = vld [vmem:[%s282 + $0x104] sm:%s275]
                  %311 = vst [vmem:[%s283 + $0x34] sm:%s275] %v310
                  %v312 = vld [vmem:[%s282 + $0x118] sm:%s275]
                  %313 = vst [vmem:[%s283 + $0x38] sm:%s275] %v312
                  %v314 = vld [vmem:[%s282 + $0x12c] sm:%s275]
                  %315 = vst [vmem:[%s283 + $0x3c] sm:%s275] %v314
                $region63: #{_lambda_.15} parent=50 // loop_footer
                  %s281 = sadd.s32 1, %s277
                $region64: #{_lambda_.15} parent=50 // loop_footer_branch
                  %276 = sbr.rel target = $region60
                $region65: #{_lambda_.15} parent=50 // loop_exit
                  _
              $region51: #{_lambda_.15} parent=35 // pred_fallthru
                _
            $region36: #{_lambda_.15} parent=31 // pred_fallthru
              _
            // Predicated region
            $region37: #{_lambda_.15} parent=31 // pred_check
              _
            $region38: #{_lambda_.15} parent=31 // pred_check_branch
              %221 = sbr.rel (0) target = $region40
            $region39: #{_lambda_.15} parent=31 // pred_region
              %s223 = ssub.s32 16, 1
              loop: start=0, step=1, limit=1
              $region41: #{_lambda_.15} parent=39 // loop_pre_header
                _
              $region42: #{_lambda_.15} parent=39 // loop_header
                %s225 = sphi 0, %s229
                %p226 = scmp.ge.s32.totalorder %s225, 1
                %s230 = sphi %s215, %s215
                %s231 = sphi %s210, %s210
              $region43: #{_lambda_.15} parent=39 // loop_header_branch
                %228 = sbr.rel (%p226) target = $region47
              $region44: #{_lambda_.15} parent=39 // loop_body
                %v232 = vld [vmem:[%s230] sm:%s223]
                %233 = vst [vmem:[%s231] sm:%s223] %v232
                %v234 = vld [vmem:[%s230 + $0x14] sm:%s223]
                %235 = vst [vmem:[%s231 + $0x4] sm:%s223] %v234
                %v236 = vld [vmem:[%s230 + $0x28] sm:%s223]
                %237 = vst [vmem:[%s231 + $0x8] sm:%s223] %v236
                %v238 = vld [vmem:[%s230 + $0x3c] sm:%s223]
                %239 = vst [vmem:[%s231 + $0xc] sm:%s223] %v238
                %v240 = vld [vmem:[%s230 + $0x50] sm:%s223]
                %241 = vst [vmem:[%s231 + $0x10] sm:%s223] %v240
                %v242 = vld [vmem:[%s230 + $0x64] sm:%s223]
                %243 = vst [vmem:[%s231 + $0x14] sm:%s223] %v242
                %v244 = vld [vmem:[%s230 + $0x78] sm:%s223]
                %245 = vst [vmem:[%s231 + $0x18] sm:%s223] %v244
                %v246 = vld [vmem:[%s230 + $0x8c] sm:%s223]
                %247 = vst [vmem:[%s231 + $0x1c] sm:%s223] %v246
                %v248 = vld [vmem:[%s230 + $0xa0] sm:%s223]
                %249 = vst [vmem:[%s231 + $0x20] sm:%s223] %v248
                %v250 = vld [vmem:[%s230 + $0xb4] sm:%s223]
                %251 = vst [vmem:[%s231 + $0x24] sm:%s223] %v250
                %v252 = vld [vmem:[%s230 + $0xc8] sm:%s223]
                %253 = vst [vmem:[%s231 + $0x28] sm:%s223] %v252
                %v254 = vld [vmem:[%s230 + $0xdc] sm:%s223]
                %255 = vst [vmem:[%s231 + $0x2c] sm:%s223] %v254
                %v256 = vld [vmem:[%s230 + $0xf0] sm:%s223]
                %257 = vst [vmem:[%s231 + $0x30] sm:%s223] %v256
                %v258 = vld [vmem:[%s230 + $0x104] sm:%s223]
                %259 = vst [vmem:[%s231 + $0x34] sm:%s223] %v258
                %v260 = vld [vmem:[%s230 + $0x118] sm:%s223]
                %261 = vst [vmem:[%s231 + $0x38] sm:%s223] %v260
                %v262 = vld [vmem:[%s230 + $0x12c] sm:%s223]
                %263 = vst [vmem:[%s231 + $0x3c] sm:%s223] %v262
              $region45: #{_lambda_.15} parent=39 // loop_footer
                %s229 = sadd.s32 1, %s225
              $region46: #{_lambda_.15} parent=39 // loop_footer_branch
                %224 = sbr.rel target = $region42
              $region47: #{_lambda_.15} parent=39 // loop_exit
                _
            $region40: #{_lambda_.15} parent=31 // pred_fallthru
              _
          $region32: #{_lambda_.15} parent=27 // pred_fallthru
            _
          %316 = vnop
        $region28: #{_lambda_.15} parent=23 // pred_fallthru
          _
        // Predicated region
        $region66: #{_lambda_.15} parent=23 // pred_check
          %p317 = pneg %p79
        $region67: #{_lambda_.15} parent=23 // pred_check_branch
          %319 = sbr.rel (%p317) target = $region69
        $region68: #{_lambda_.15} parent=23 // pred_region
          %s320 = smul.u32 16, %s19
          %p321 = scmp.lt.s32.totalorder %s320, 79
          %s322 = scalar_select %p321, %s320, 79
          %p323 = scmp.lt.s32.totalorder %s18, 0
          %s324 = scalar_select %p323, %s18, 0
          %s325 = sadd.s32 %s324, %s322
          %s326 = smul.addr %s325, 4
          %s327 = scalar_lea.vmem %s1, %s326
          %s328 = smul.u32 16, %s19
        $region69: #{_lambda_.15} parent=23 // pred_fallthru
          _
      $region24: #{_lambda_.15} parent=5 // pred_fallthru
        _
      %p329 = scmp.le.s32.totalorder 1, %s10
      %p330 = scmp.lt.s32.totalorder %s10, 6
      %p331 = pnand %p329, %p330
      %p332 = pneg %p331
      // Predicated region
      $region70: #{_lambda_.15} parent=5 // pred_check
        _
      $region71: #{_lambda_.15} parent=5 // pred_check_branch
        %334 = sbr.rel (%p331) target = $region73
      $region72: #{_lambda_.15} parent=5 // pred_region
        %s335 = ssub.s32 %s10, 1
        %s336 = sand.u32 %s44, 1
        %s337 = sand.u32 %s44, 1
        %s338 = smul.addr %s337, 64
        %s339 = scalar_lea.vmem [#allocation3], %s338
        // Predicated region
        $region74: #{_lambda_.15} parent=72 // pred_check
          %p340 = pneg %p57
        $region75: #{_lambda_.15} parent=72 // pred_check_branch
          %342 = sbr.rel (%p340) target = $region77
        $region76: #{_lambda_.15} parent=72 // pred_region
          _
        $region77: #{_lambda_.15} parent=72 // pred_fallthru
          _
        %s343 = sand.u32 %s44, 1
        %s344 = sand.u32 %s44, 1
        %s345 = smul.addr %s344, 64
        %s346 = scalar_lea.vmem [#allocation3], %s345
        %p347 = pneg %p57
        %p348 = pneg %p54
        %s349 = smul.u32 16, %s22
        %p350 = scmp.lt.s32.totalorder %s349, 79
        %s351 = scalar_select %p350, %s349, 79
        %p352 = scmp.lt.s32.totalorder %s21, 0
        %s353 = scalar_select %p352, %s21, 0
        %s354 = sadd.s32 %s353, %s351
        %s355 = smul.addr %s354, 4
        %s356 = scalar_lea.vmem %s1, %s355
        %p357 = pneg %p85
        %p358 = pneg %p82
        %p359 = scmp.lt.s32.totalorder %s21, 0
        %s360 = scalar_select %p359, %s21, 0
        %s361 = scalar_lea.vmem %s2, %s360
        %p362 = pneg %p111
        %p363 = pneg %p108
        %s364 = smul.u32 16, %s20
        %p365 = scmp.lt.s32.totalorder %s364, 15
        %s366 = scalar_select %p365, %s364, 15
        %p367 = scmp.lt.s32.totalorder %s21, 0
        %s368 = scalar_select %p367, %s21, 0
        %s369 = sadd.s32 %s368, %s366
        %s370 = smul.addr %s369, 4
        %s371 = scalar_lea.vmem %s3, %s370
        %p372 = pneg %p139
        %p373 = pneg %p136
        %p374 = pneg %p167
        %p375 = pneg %p164
        %s376 = smul.u32 16, %s20
        %p377 = scmp.lt.s32.totalorder %s376, 15
        %s378 = scalar_select %p377, %s376, 15
        %p379 = scmp.lt.s32.totalorder %s21, 0
        %s380 = scalar_select %p379, %s21, 0
        %s381 = sadd.s32 %s380, %s378
        %s382 = smul.addr %s381, 4
        %s383 = scalar_lea.vmem %s4, %s382
        %s384 = smul.u32 16, %s20
        %s385 = smul.u32 16, %s22
        %p386 = scmp.lt.s32.totalorder %s385, 79
        %s387 = scalar_select %p386, %s385, 79
        %p388 = scmp.lt.s32.totalorder %s21, 0
        %s389 = scalar_select %p388, %s21, 0
        %s390 = sadd.s32 %s389, %s387
        %s391 = smul.addr %s390, 4
        %s392 = scalar_lea.vmem %s1, %s391
        %s393 = smul.u32 16, %s22
        %p394 = scmp.lt.s32.totalorder %s21, 0
        %s395 = scalar_select %p394, %s21, 0
        %s396 = scalar_lea.vmem %s2, %s395
        %s397 = smul.u32 16, %s20
        %p398 = scmp.lt.s32.totalorder %s397, 15
        %s399 = scalar_select %p398, %s397, 15
        %p400 = scmp.lt.s32.totalorder %s21, 0
        %s401 = scalar_select %p400, %s21, 0
        %s402 = sadd.s32 %s401, %s399
        %s403 = smul.addr %s402, 4
        %s404 = scalar_lea.vmem %s3, %s403
        %s405 = smul.u32 16, %s20
        %s406 = smul.u32 16, %s20
        %p407 = scmp.lt.s32.totalorder %s406, 15
        %s408 = scalar_select %p407, %s406, 15
        %p409 = scmp.lt.s32.totalorder %s21, 0
        %s410 = scalar_select %p409, %s21, 0
        %s411 = sadd.s32 %s410, %s408
        %s412 = smul.addr %s411, 4
        %s413 = scalar_lea.vmem %s4, %s412
        %s414 = smul.u32 16, %s20
        %p416 = scmp.eq.s32.totalorder %s22, 0
        // Predicated region
        $region78: #{_lambda_.15} parent=72 // pred_check
          %p417 = pneg %p416
        $region79: #{_lambda_.15} parent=72 // pred_check_branch
          %419 = sbr.rel (%p417) target = $region81
        $region80: #{_lambda_.15} parent=72 // pred_region
          %420 = vst [vmem:[#allocation2] sm:$0xff] 0.0
          %421 = vst [vmem:[#allocation2 + $0x8] sm:$0xff] 0.0
          %422 = vst [vmem:[#allocation2 + $0x10] sm:$0xff] 0.0
          %423 = vst [vmem:[#allocation2 + $0x18] sm:$0xff] 0.0
          %424 = vst [vmem:[#allocation2 + $0x20] sm:$0xff] 0.0
          %425 = vst [vmem:[#allocation2 + $0x28] sm:$0xff] 0.0
          %426 = vst [vmem:[#allocation2 + $0x30] sm:$0xff] 0.0
          %427 = vst [vmem:[#allocation2 + $0x38] sm:$0xff] 0.0
          %428 = vst [vmem:[#allocation2 + $0x40] sm:$0xff] 0.0
          %429 = vst [vmem:[#allocation2 + $0x48] sm:$0xff] 0.0
          %430 = vst [vmem:[#allocation2 + $0x50] sm:$0xff] 0.0
          %431 = vst [vmem:[#allocation2 + $0x58] sm:$0xff] 0.0
          %432 = vst [vmem:[#allocation2 + $0x60] sm:$0xff] 0.0
          %433 = vst [vmem:[#allocation2 + $0x68] sm:$0xff] 0.0
          %434 = vst [vmem:[#allocation2 + $0x70] sm:$0xff] 0.0
          %435 = vst [vmem:[#allocation2 + $0x78] sm:$0xff] 0.0
        $region81: #{_lambda_.15} parent=72 // pred_fallthru
          _
        %v436 = vld [vmem:[#allocation2] sm:$0xff]
        %v437 = vld [vmem:[#allocation2 + $0x8] sm:$0xff]
        %v438 = vld [vmem:[#allocation2 + $0x10] sm:$0xff]
        %v439 = vld [vmem:[#allocation2 + $0x18] sm:$0xff]
        %v440 = vld [vmem:[#allocation2 + $0x20] sm:$0xff]
        %v441 = vld [vmem:[#allocation2 + $0x28] sm:$0xff]
        %v442 = vld [vmem:[#allocation2 + $0x30] sm:$0xff]
        %v443 = vld [vmem:[#allocation2 + $0x38] sm:$0xff]
        %v444 = vld [vmem:[#allocation2 + $0x40] sm:$0xff]
        %v445 = vld [vmem:[#allocation2 + $0x48] sm:$0xff]
        %v446 = vld [vmem:[#allocation2 + $0x50] sm:$0xff]
        %v447 = vld [vmem:[#allocation2 + $0x58] sm:$0xff]
        %v448 = vld [vmem:[#allocation2 + $0x60] sm:$0xff]
        %v449 = vld [vmem:[#allocation2 + $0x68] sm:$0xff]
        %v450 = vld [vmem:[#allocation2 + $0x70] sm:$0xff]
        %v451 = vld [vmem:[#allocation2 + $0x78] sm:$0xff]
        %v452 = vld [vmem:[%s339] sm:$0xf]
        %v453 = vld [vmem:[%s339 + $0x4] sm:$0xf]
        %v454 = vld [vmem:[%s339 + $0x8] sm:$0xf]
        %v455 = vld [vmem:[%s339 + $0xc] sm:$0xf]
        %v456 = vld [vmem:[%s339 + $0x10] sm:$0xf]
        %v457 = vld [vmem:[%s339 + $0x14] sm:$0xf]
        %v458 = vld [vmem:[%s339 + $0x18] sm:$0xf]
        %v459 = vld [vmem:[%s339 + $0x1c] sm:$0xf]
        %v460 = vld [vmem:[%s339 + $0x20] sm:$0xf]
        %v461 = vld [vmem:[%s339 + $0x24] sm:$0xf]
        %v462 = vld [vmem:[%s339 + $0x28] sm:$0xf]
        %v463 = vld [vmem:[%s339 + $0x2c] sm:$0xf]
        %v464 = vld [vmem:[%s339 + $0x30] sm:$0xf]
        %v465 = vld [vmem:[%s339 + $0x34] sm:$0xf]
        %v466 = vld [vmem:[%s339 + $0x38] sm:$0xf]
        %v467 = vld [vmem:[%s339 + $0x3c] sm:$0xf]
        %v468 = vld [vmem:[%s392] sm:$0xf]
        %v469 = vld [vmem:[%s392 + $0x4] sm:$0xf]
        %v470 = vld [vmem:[%s392 + $0x8] sm:$0xf]
        %v471 = vld [vmem:[%s392 + $0xc] sm:$0xf]
        %v472 = vld [vmem:[%s392 + $0x10] sm:$0xf]
        %v473 = vld [vmem:[%s392 + $0x14] sm:$0xf]
        %v474 = vld [vmem:[%s392 + $0x18] sm:$0xf]
        %v475 = vld [vmem:[%s392 + $0x1c] sm:$0xf]
        %v476 = vld [vmem:[%s392 + $0x20] sm:$0xf]
        %v477 = vld [vmem:[%s392 + $0x24] sm:$0xf]
        %v478 = vld [vmem:[%s392 + $0x28] sm:$0xf]
        %v479 = vld [vmem:[%s392 + $0x2c] sm:$0xf]
        %v480 = vld [vmem:[%s392 + $0x30] sm:$0xf]
        %v481 = vld [vmem:[%s392 + $0x34] sm:$0xf]
        %v482 = vld [vmem:[%s392 + $0x38] sm:$0xf]
        %v483 = vld [vmem:[%s392 + $0x3c] sm:$0xf]
        %v500 = vunpack.c.l.b16 %v452
        %v501 = vunpack.c.l.b16 %v453
        %v502 = vunpack.c.l.b16 %v454
        %v503 = vunpack.c.l.b16 %v455
        %v504 = vunpack.c.l.b16 %v456
        %v505 = vunpack.c.l.b16 %v457
        %v506 = vunpack.c.l.b16 %v458
        %v507 = vunpack.c.l.b16 %v459
        %v508 = vunpack.c.l.b16 %v460
        %v509 = vunpack.c.l.b16 %v461
        %v510 = vunpack.c.l.b16 %v462
        %v511 = vunpack.c.l.b16 %v463
        %v512 = vunpack.c.l.b16 %v464
        %v513 = vunpack.c.l.b16 %v465
        %v514 = vunpack.c.l.b16 %v466
        %v515 = vunpack.c.l.b16 %v467
        %v516 = vpack.c.b16 %v501, %v500
        %v517 = vpack.c.b16 %v503, %v502
        %v518 = vpack.c.b16 %v505, %v504
        %v519 = vpack.c.b16 %v507, %v506
        %v520 = vpack.c.b16 %v509, %v508
        %v521 = vpack.c.b16 %v511, %v510
        %v522 = vpack.c.b16 %v513, %v512
        %v523 = vpack.c.b16 %v515, %v514
        %v548 = vunpack.c.l.b16 %v468
        %v549 = vunpack.c.l.b16 %v469
        %v550 = vunpack.c.l.b16 %v470
        %v551 = vunpack.c.l.b16 %v471
        %v552 = vunpack.c.l.b16 %v472
        %v553 = vunpack.c.l.b16 %v473
        %v554 = vunpack.c.l.b16 %v474
        %v555 = vunpack.c.l.b16 %v475
        %v556 = vunpack.c.l.b16 %v476
        %v557 = vunpack.c.l.b16 %v477
        %v558 = vunpack.c.l.b16 %v478
        %v559 = vunpack.c.l.b16 %v479
        %v560 = vunpack.c.l.b16 %v480
        %v561 = vunpack.c.l.b16 %v481
        %v562 = vunpack.c.l.b16 %v482
        %v563 = vunpack.c.l.b16 %v483
        %v564 = vpack.c.b16 %v549, %v548
        %v565 = vpack.c.b16 %v551, %v550
        %v566 = vpack.c.b16 %v553, %v552
        %v567 = vpack.c.b16 %v555, %v554
        %v568 = vpack.c.b16 %v557, %v556
        %v569 = vpack.c.b16 %v559, %v558
        %v570 = vpack.c.b16 %v561, %v560
        %v571 = vpack.c.b16 %v563, %v562
        %580 = vmatprep.subr.bf16.mxu0 0
        %581 = vmatpush1.bf16.msra.mxu0 %v571
        %582 = vmatprep.subr.bf16.mxu0 0
        %583 = vmatpush1.bf16.msra.mxu0 %v570
        %584 = vmatprep.subr.bf16.mxu0 0
        %585 = vmatpush1.bf16.msra.mxu0 %v569
        %586 = vmatprep.subr.bf16.mxu0 0
        %587 = vmatpush1.bf16.msra.mxu0 %v568
        %588 = vmatprep.subr.bf16.mxu0 0
        %589 = vmatpush1.bf16.msra.mxu0 %v567
        %590 = vmatprep.subr.bf16.mxu0 0
        %591 = vmatpush1.bf16.msra.mxu0 %v566
        %592 = vmatprep.subr.bf16.mxu0 0
        %593 = vmatpush1.bf16.msra.mxu0 %v565
        %594 = vmatprep.subr.bf16.mxu0 0
        %595 = vmatpush1.bf16.msra.mxu0 %v564
        %596 = vmatprep.subr.bf16.mxu0 0
        %597 = vmatpush2.bf16.msra.mxu0 0
        %598 = vmatprep.subr.bf16.mxu0 0
        %599 = vmatpush2.bf16.msra.mxu0 0
        %600 = vmatprep.subr.bf16.mxu0 0
        %601 = vmatpush2.bf16.msra.mxu0 0
        %602 = vmatprep.subr.bf16.mxu0 0
        %603 = vmatpush2.bf16.msra.mxu0 0
        %604 = vmatprep.subr.bf16.mxu0 0
        %605 = vmatpush2.bf16.msra.mxu0 0
        %606 = vmatprep.subr.bf16.mxu0 0
        %607 = vmatpush2.bf16.msra.mxu0 0
        %608 = vmatprep.subr.bf16.mxu0 0
        %609 = vmatpush2.bf16.msra.mxu0 0
        %610 = vmatprep.subr.bf16.mxu0 0
        %611 = vmatpush2.bf16.msra.mxu0 0
        %612 = vmatprep.mubr.bf16.mxu0 0
        %613 = vmatmul.mubr.bf16.gmra.mxu0 %v516
        %v614 = vpop.f32.mrf.mxu0
        %v615 = vadd.f32 0.0, %v614
        %v616 = vpop.f32.mrf.mxu0
        %v617 = vpop.f32.mrf.mxu0
        %v618 = vadd.f32 0.0, %v617
        %v619 = vpop.f32.mrf.mxu0
        %620 = vmatprep.mubr.bf16.mxu0 0
        %621 = vmatmul.mubr.bf16.gmra.mxu0 %v517
        %v622 = vpop.f32.mrf.mxu0
        %v623 = vadd.f32 0.0, %v622
        %v624 = vpop.f32.mrf.mxu0
        %v625 = vpop.f32.mrf.mxu0
        %v626 = vadd.f32 0.0, %v625
        %v627 = vpop.f32.mrf.mxu0
        %628 = vmatprep.mubr.bf16.mxu0 0
        %629 = vmatmul.mubr.bf16.gmra.mxu0 %v518
        %v630 = vpop.f32.mrf.mxu0
        %v631 = vadd.f32 0.0, %v630
        %v632 = vpop.f32.mrf.mxu0
        %v633 = vpop.f32.mrf.mxu0
        %v634 = vadd.f32 0.0, %v633
        %v635 = vpop.f32.mrf.mxu0
        %636 = vmatprep.mubr.bf16.mxu0 0
        %637 = vmatmul.mubr.bf16.gmra.mxu0 %v519
        %v638 = vpop.f32.mrf.mxu0
        %v639 = vadd.f32 0.0, %v638
        %v640 = vpop.f32.mrf.mxu0
        %v641 = vpop.f32.mrf.mxu0
        %v642 = vadd.f32 0.0, %v641
        %v643 = vpop.f32.mrf.mxu0
        %644 = vmatprep.mubr.bf16.mxu0 0
        %645 = vmatmul.mubr.bf16.gmra.mxu0 %v520
        %v646 = vpop.f32.mrf.mxu0
        %v647 = vadd.f32 0.0, %v646
        %v648 = vpop.f32.mrf.mxu0
        %v649 = vpop.f32.mrf.mxu0
        %v650 = vadd.f32 0.0, %v649
        %v651 = vpop.f32.mrf.mxu0
        %652 = vmatprep.mubr.bf16.mxu0 0
        %653 = vmatmul.mubr.bf16.gmra.mxu0 %v521
        %v654 = vpop.f32.mrf.mxu0
        %v655 = vadd.f32 0.0, %v654
        %v656 = vpop.f32.mrf.mxu0
        %v657 = vpop.f32.mrf.mxu0
        %v658 = vadd.f32 0.0, %v657
        %v659 = vpop.f32.mrf.mxu0
        %660 = vmatprep.mubr.bf16.mxu0 0
        %661 = vmatmul.mubr.bf16.gmra.mxu0 %v522
        %v662 = vpop.f32.mrf.mxu0
        %v663 = vadd.f32 0.0, %v662
        %v664 = vpop.f32.mrf.mxu0
        %v665 = vpop.f32.mrf.mxu0
        %v666 = vadd.f32 0.0, %v665
        %v667 = vpop.f32.mrf.mxu0
        %668 = vmatprep.mubr.bf16.mxu0 0
        %669 = vmatmul.mubr.bf16.gmra.mxu0 %v523
        %v670 = vpop.f32.mrf.mxu0
        %v671 = vadd.f32 0.0, %v670
        %v672 = vpop.f32.mrf.mxu0
        %v673 = vpop.f32.mrf.mxu0
        %v674 = vadd.f32 0.0, %v673
        %v675 = vpop.f32.mrf.mxu0
        %676 = vdwg.mxu0
        %v677 = vadd.f32 %v436, %v615
        %v678 = vadd.f32 %v437, %v618
        %v679 = vadd.f32 %v438, %v623
        %v680 = vadd.f32 %v439, %v626
        %v681 = vadd.f32 %v440, %v631
        %v682 = vadd.f32 %v441, %v634
        %v683 = vadd.f32 %v442, %v639
        %v684 = vadd.f32 %v443, %v642
        %v685 = vadd.f32 %v444, %v647
        %v686 = vadd.f32 %v445, %v650
        %v687 = vadd.f32 %v446, %v655
        %v688 = vadd.f32 %v447, %v658
        %v689 = vadd.f32 %v448, %v663
        %v690 = vadd.f32 %v449, %v666
        %v691 = vadd.f32 %v450, %v671
        %v692 = vadd.f32 %v451, %v674
        %693 = vst [vmem:[#allocation2] sm:$0xff] %v677
        %694 = vst [vmem:[#allocation2 + $0x8] sm:$0xff] %v678
        %695 = vst [vmem:[#allocation2 + $0x10] sm:$0xff] %v679
        %696 = vst [vmem:[#allocation2 + $0x18] sm:$0xff] %v680
        %697 = vst [vmem:[#allocation2 + $0x20] sm:$0xff] %v681
        %698 = vst [vmem:[#allocation2 + $0x28] sm:$0xff] %v682
        %699 = vst [vmem:[#allocation2 + $0x30] sm:$0xff] %v683
        %700 = vst [vmem:[#allocation2 + $0x38] sm:$0xff] %v684
        %701 = vst [vmem:[#allocation2 + $0x40] sm:$0xff] %v685
        %702 = vst [vmem:[#allocation2 + $0x48] sm:$0xff] %v686
        %703 = vst [vmem:[#allocation2 + $0x50] sm:$0xff] %v687
        %704 = vst [vmem:[#allocation2 + $0x58] sm:$0xff] %v688
        %705 = vst [vmem:[#allocation2 + $0x60] sm:$0xff] %v689
        %706 = vst [vmem:[#allocation2 + $0x68] sm:$0xff] %v690
        %707 = vst [vmem:[#allocation2 + $0x70] sm:$0xff] %v691
        %708 = vst [vmem:[#allocation2 + $0x78] sm:$0xff] %v692
        %p709 = scmp.eq.s32.totalorder %s22, 4
        // Predicated region
        $region82: #{_lambda_.15} parent=72 // pred_check
          %p710 = pneg %p709
        $region83: #{_lambda_.15} parent=72 // pred_check_branch
          %712 = sbr.rel (%p710) target = $region85
        $region84: #{_lambda_.15} parent=72 // pred_region
          %v713 = vld [vmem:[#allocation2] sm:$0xff]
          %v714 = vld [vmem:[#allocation2 + $0x8] sm:$0xff]
          %v715 = vld [vmem:[#allocation2 + $0x10] sm:$0xff]
          %v716 = vld [vmem:[#allocation2 + $0x18] sm:$0xff]
          %v717 = vld [vmem:[#allocation2 + $0x20] sm:$0xff]
          %v718 = vld [vmem:[#allocation2 + $0x28] sm:$0xff]
          %v719 = vld [vmem:[#allocation2 + $0x30] sm:$0xff]
          %v720 = vld [vmem:[#allocation2 + $0x38] sm:$0xff]
          %v721 = vld [vmem:[#allocation2 + $0x40] sm:$0xff]
          %v722 = vld [vmem:[#allocation2 + $0x48] sm:$0xff]
          %v723 = vld [vmem:[#allocation2 + $0x50] sm:$0xff]
          %v724 = vld [vmem:[#allocation2 + $0x58] sm:$0xff]
          %v725 = vld [vmem:[#allocation2 + $0x60] sm:$0xff]
          %v726 = vld [vmem:[#allocation2 + $0x68] sm:$0xff]
          %v727 = vld [vmem:[#allocation2 + $0x70] sm:$0xff]
          %v728 = vld [vmem:[#allocation2 + $0x78] sm:$0xff]
          %v729 = vld [vmem:[%s396] sm:$0x1]
          %v731 = vlaneseq
          %v732 = vshrl.u32 %v731, 7
          %v733 = vsub.s32 0, %v732
          %v734 = vrot.slane %v729, %v733
          %v736 = vadd.f32 %v713, %v734
          %v737 = vadd.f32 %v714, %v734
          %v738 = vadd.f32 %v715, %v734
          %v739 = vadd.f32 %v716, %v734
          %v740 = vadd.f32 %v717, %v734
          %v741 = vadd.f32 %v718, %v734
          %v742 = vadd.f32 %v719, %v734
          %v743 = vadd.f32 %v720, %v734
          %v744 = vadd.f32 %v721, %v734
          %v745 = vadd.f32 %v722, %v734
          %v746 = vadd.f32 %v723, %v734
          %v747 = vadd.f32 %v724, %v734
          %v748 = vadd.f32 %v725, %v734
          %v749 = vadd.f32 %v726, %v734
          %v750 = vadd.f32 %v727, %v734
          %v751 = vadd.f32 %v728, %v734
          %v752 = vld [vmem:[%s404] sm:$0xf]
          %v753 = vld [vmem:[%s404 + $0x4] sm:$0xf]
          %v754 = vld [vmem:[%s404 + $0x8] sm:$0xf]
          %v755 = vld [vmem:[%s404 + $0xc] sm:$0xf]
          %v756 = vld [vmem:[%s404 + $0x10] sm:$0xf]
          %v757 = vld [vmem:[%s404 + $0x14] sm:$0xf]
          %v758 = vld [vmem:[%s404 + $0x18] sm:$0xf]
          %v759 = vld [vmem:[%s404 + $0x1c] sm:$0xf]
          %v760 = vld [vmem:[%s404 + $0x20] sm:$0xf]
          %v761 = vld [vmem:[%s404 + $0x24] sm:$0xf]
          %v762 = vld [vmem:[%s404 + $0x28] sm:$0xf]
          %v763 = vld [vmem:[%s404 + $0x2c] sm:$0xf]
          %v764 = vld [vmem:[%s404 + $0x30] sm:$0xf]
          %v765 = vld [vmem:[%s404 + $0x34] sm:$0xf]
          %v766 = vld [vmem:[%s404 + $0x38] sm:$0xf]
          %v767 = vld [vmem:[%s404 + $0x3c] sm:$0xf]
          %v768 = vunpack.c.l.bf16 %v752
          %v769 = vunpack.c.l.bf16 %v753
          %v770 = vunpack.c.l.bf16 %v754
          %v771 = vunpack.c.l.bf16 %v755
          %v772 = vunpack.c.l.bf16 %v756
          %v773 = vunpack.c.l.bf16 %v757
          %v774 = vunpack.c.l.bf16 %v758
          %v775 = vunpack.c.l.bf16 %v759
          %v776 = vunpack.c.l.bf16 %v760
          %v777 = vunpack.c.l.bf16 %v761
          %v778 = vunpack.c.l.bf16 %v762
          %v779 = vunpack.c.l.bf16 %v763
          %v780 = vunpack.c.l.bf16 %v764
          %v781 = vunpack.c.l.bf16 %v765
          %v782 = vunpack.c.l.bf16 %v766
          %v783 = vunpack.c.l.bf16 %v767
          %v784 = vadd.f32 %v736, %v768
          %v785 = vadd.f32 %v737, %v769
          %v786 = vadd.f32 %v738, %v770
          %v787 = vadd.f32 %v739, %v771
          %v788 = vadd.f32 %v740, %v772
          %v789 = vadd.f32 %v741, %v773
          %v790 = vadd.f32 %v742, %v774
          %v791 = vadd.f32 %v743, %v775
          %v792 = vadd.f32 %v744, %v776
          %v793 = vadd.f32 %v745, %v777
          %v794 = vadd.f32 %v746, %v778
          %v795 = vadd.f32 %v747, %v779
          %v796 = vadd.f32 %v748, %v780
          %v797 = vadd.f32 %v749, %v781
          %v798 = vadd.f32 %v750, %v782
          %v799 = vadd.f32 %v751, %v783
          %v800 = vmax.f32 %v784, 0.0
          %v801 = vmax.f32 %v785, 0.0
          %v802 = vmax.f32 %v786, 0.0
          %v803 = vmax.f32 %v787, 0.0
          %v804 = vmax.f32 %v788, 0.0
          %v805 = vmax.f32 %v789, 0.0
          %v806 = vmax.f32 %v790, 0.0
          %v807 = vmax.f32 %v791, 0.0
          %v808 = vmax.f32 %v792, 0.0
          %v809 = vmax.f32 %v793, 0.0
          %v810 = vmax.f32 %v794, 0.0
          %v811 = vmax.f32 %v795, 0.0
          %v812 = vmax.f32 %v796, 0.0
          %v813 = vmax.f32 %v797, 0.0
          %v814 = vmax.f32 %v798, 0.0
          %v815 = vmax.f32 %v799, 0.0
          %v816 = vpack.c.bf16 %v801, %v800
          %v817 = vpack.c.bf16 %v803, %v802
          %v818 = vpack.c.bf16 %v805, %v804
          %v819 = vpack.c.bf16 %v807, %v806
          %v820 = vpack.c.bf16 %v809, %v808
          %v821 = vpack.c.bf16 %v811, %v810
          %v822 = vpack.c.bf16 %v813, %v812
          %v823 = vpack.c.bf16 %v815, %v814
          %v832 = vunpack.c.l.b16 %v816
          %v833 = vunpack.c.h.b16 %v816
          %v834 = vunpack.c.l.b16 %v817
          %v835 = vunpack.c.h.b16 %v817
          %v836 = vunpack.c.l.b16 %v818
          %v837 = vunpack.c.h.b16 %v818
          %v838 = vunpack.c.l.b16 %v819
          %v839 = vunpack.c.h.b16 %v819
          %v840 = vunpack.c.l.b16 %v820
          %v841 = vunpack.c.h.b16 %v820
          %v842 = vunpack.c.l.b16 %v821
          %v843 = vunpack.c.h.b16 %v821
          %v844 = vunpack.c.l.b16 %v822
          %v845 = vunpack.c.h.b16 %v822
          %v846 = vunpack.c.l.b16 %v823
          %v847 = vunpack.c.h.b16 %v823
          %v848 = vpack.c.b16 %v832, %v832
          %v849 = vpack.c.b16 %v833, %v833
          %v850 = vpack.c.b16 %v834, %v834
          %v851 = vpack.c.b16 %v835, %v835
          %v852 = vpack.c.b16 %v836, %v836
          %v853 = vpack.c.b16 %v837, %v837
          %v854 = vpack.c.b16 %v838, %v838
          %v855 = vpack.c.b16 %v839, %v839
          %v856 = vpack.c.b16 %v840, %v840
          %v857 = vpack.c.b16 %v841, %v841
          %v858 = vpack.c.b16 %v842, %v842
          %v859 = vpack.c.b16 %v843, %v843
          %v860 = vpack.c.b16 %v844, %v844
          %v861 = vpack.c.b16 %v845, %v845
          %v862 = vpack.c.b16 %v846, %v846
          %v863 = vpack.c.b16 %v847, %v847
          %880 = vst [vmem:[%s413] sm:$0xf] %v848
          %881 = vst [vmem:[%s413 + $0x4] sm:$0xf] %v849
          %882 = vst [vmem:[%s413 + $0x8] sm:$0xf] %v850
          %883 = vst [vmem:[%s413 + $0xc] sm:$0xf] %v851
          %884 = vst [vmem:[%s413 + $0x10] sm:$0xf] %v852
          %885 = vst [vmem:[%s413 + $0x14] sm:$0xf] %v853
          %886 = vst [vmem:[%s413 + $0x18] sm:$0xf] %v854
          %887 = vst [vmem:[%s413 + $0x1c] sm:$0xf] %v855
          %888 = vst [vmem:[%s413 + $0x20] sm:$0xf] %v856
          %889 = vst [vmem:[%s413 + $0x24] sm:$0xf] %v857
          %890 = vst [vmem:[%s413 + $0x28] sm:$0xf] %v858
          %891 = vst [vmem:[%s413 + $0x2c] sm:$0xf] %v859
          %892 = vst [vmem:[%s413 + $0x30] sm:$0xf] %v860
          %893 = vst [vmem:[%s413 + $0x34] sm:$0xf] %v861
          %894 = vst [vmem:[%s413 + $0x38] sm:$0xf] %v862
          %895 = vst [vmem:[%s413 + $0x3c] sm:$0xf] %v863
        $region85: #{_lambda_.15} parent=72 // pred_fallthru
          _
        %s896 = smul.u32 16, %s20
        %p897 = scmp.lt.s32.totalorder %s896, 15
        %s898 = scalar_select %p897, %s896, 15
        %p899 = scmp.lt.s32.totalorder %s21, 0
        %s900 = scalar_select %p899, %s21, 0
        %s901 = sadd.s32 %s900, %s898
        %s902 = smul.addr %s901, 4
        %s903 = scalar_lea.vmem %s4, %s902
        // Predicated region
        $region86: #{_lambda_.15} parent=72 // pred_check
          %p904 = pneg %p164
        $region87: #{_lambda_.15} parent=72 // pred_check_branch
          %906 = sbr.rel (%p904) target = $region89
        $region88: #{_lambda_.15} parent=72 // pred_region
          %s907 = smul.u32 16, %s20
        $region89: #{_lambda_.15} parent=72 // pred_fallthru
          _
        // Predicated region
        $region90: #{_lambda_.15} parent=72 // pred_check
          %p908 = pneg %p164
        $region91: #{_lambda_.15} parent=72 // pred_check_branch
          %910 = sbr.rel (%p908) target = $region93
        $region92: #{_lambda_.15} parent=72 // pred_region
          %s911 = smul.u32 16, %s20
          %p912 = scmp.lt.s32.totalorder %s911, 15
          %s913 = scalar_select %p912, %s911, 15
          %p914 = scmp.lt.s32.totalorder %s21, 0
          %s915 = scalar_select %p914, %s21, 0
          %s916 = sadd.s32 %s915, %s913
          %s917 = smul.addr %s916, 4
          %s918 = scalar_lea.vmem %s4, %s917
        $region93: #{_lambda_.15} parent=72 // pred_fallthru
          _
      $region73: #{_lambda_.15} parent=5 // pred_fallthru
        _
      %p919 = scmp.le.s32.totalorder 2, %s10
      // Predicated region
      $region94: #{_lambda_.15} parent=5 // pred_check
        %p920 = pneg %p919
      $region95: #{_lambda_.15} parent=5 // pred_check_branch
        %922 = sbr.rel (%p920) target = $region97
      $region96: #{_lambda_.15} parent=5 // pred_region
        %s923 = ssub.s32 %s10, 2
      $region97: #{_lambda_.15} parent=5 // pred_fallthru
        _
    $region6: #{_lambda_.15} parent=1 // loop_footer
      %s14 = sadd.s32 1, %s10
    $region7: #{_lambda_.15} parent=1 // loop_footer_branch
      %9 = sbr.rel target = $region3
    $region8: #{_lambda_.15} parent=1 // loop_exit
      _

// kernel: _lambda_.13
$region0: #{_lambda_.13}
  #allocation0 [shape = 'u32[]', space=smem, size = 0x4, offset = 0x4, fixed_abs, tag = 'smem constant byte address 0x4 - core index']
  #allocation1 [shape = 'u32[144,128]{1,0:T(1,128)}', space=vmem, size = 0x12000, scoped, tag = 'internal scratch']
  #allocation2 [shape = 'f32[128,128]{1,0:T(8,128)}', space=vmem, size = 0x10000, scoped, tag = 'scratch operand']
  %s0 = inlined_call_operand.vmem [shape: bf16[128,256], index: 0, kind: input, shape index: {}]
  %s1 = inlined_call_operand.vmem [shape: bf16[256,128], index: 1, kind: input, shape index: {}]
  %s2 = inlined_call_operand.vmem [shape: f32[1,128], index: 2, kind: input, shape index: {}]
  %s3 = inlined_call_operand.vmem [shape: bf16[128,128], index: 3, kind: output, shape index: {}]
  %s4 = sld [smem:[#allocation0]]
  $region30: #{_lambda_.13} parent=0
    _
  %s6 = ssub.s32 1, %s4
  %s7 = scalar_select 0, %s6, %s4
  // Predicated region
  $region2: #{_lambda_.13} parent=0 // pred_check
    _
  $region3: #{_lambda_.13} parent=0 // pred_check_branch
    %9 = sbr.rel (0) target = $region5
  $region4: #{_lambda_.13} parent=0 // pred_region
    _
  $region5: #{_lambda_.13} parent=0 // pred_fallthru
    _
  // Predicated region
  $region6: #{_lambda_.13} parent=0 // pred_check
    _
  $region7: #{_lambda_.13} parent=0 // pred_check_branch
    %11 = sbr.rel (0) target = $region9
  $region8: #{_lambda_.13} parent=0 // pred_region
    _
  $region9: #{_lambda_.13} parent=0 // pred_fallthru
    _
  // Predicated region
  $region10: #{_lambda_.13} parent=0 // pred_check
    _
  $region11: #{_lambda_.13} parent=0 // pred_check_branch
    %13 = sbr.rel (0) target = $region13
  $region12: #{_lambda_.13} parent=0 // pred_region
    _
  $region13: #{_lambda_.13} parent=0 // pred_fallthru
    _
  %p15 = scmp.eq.s32.totalorder 0, 0
  // Predicated region
  $region14: #{_lambda_.13} parent=0 // pred_check
    %p16 = pneg %p15
  $region15: #{_lambda_.13} parent=0 // pred_check_branch
    %18 = sbr.rel (%p16) target = $region17
  $region16: #{_lambda_.13} parent=0 // pred_region
    %19 = vst [vmem:[#allocation2] sm:$0xff] 0.0
    %20 = vst [vmem:[#allocation2 + $0x8] sm:$0xff] 0.0
    %21 = vst [vmem:[#allocation2 + $0x10] sm:$0xff] 0.0
    %22 = vst [vmem:[#allocation2 + $0x18] sm:$0xff] 0.0
    %23 = vst [vmem:[#allocation2 + $0x20] sm:$0xff] 0.0
    %24 = vst [vmem:[#allocation2 + $0x28] sm:$0xff] 0.0
    %25 = vst [vmem:[#allocation2 + $0x30] sm:$0xff] 0.0
    %26 = vst [vmem:[#allocation2 + $0x38] sm:$0xff] 0.0
    %27 = vst [vmem:[#allocation2 + $0x40] sm:$0xff] 0.0
    %28 = vst [vmem:[#allocation2 + $0x48] sm:$0xff] 0.0
    %29 = vst [vmem:[#allocation2 + $0x50] sm:$0xff] 0.0
    %30 = vst [vmem:[#allocation2 + $0x58] sm:$0xff] 0.0
    %31 = vst [vmem:[#allocation2 + $0x60] sm:$0xff] 0.0
    %32 = vst [vmem:[#allocation2 + $0x68] sm:$0xff] 0.0
    %33 = vst [vmem:[#allocation2 + $0x70] sm:$0xff] 0.0
    %34 = vst [vmem:[#allocation2 + $0x78] sm:$0xff] 0.0
  $region17: #{_lambda_.13} parent=0 // pred_fallthru
    _
  %v35 = vld [vmem:[#allocation2] sm:$0xff]
  %v36 = vld [vmem:[#allocation2 + $0x8] sm:$0xff]
  %v37 = vld [vmem:[#allocation2 + $0x10] sm:$0xff]
  %v38 = vld [vmem:[#allocation2 + $0x18] sm:$0xff]
  %v39 = vld [vmem:[#allocation2 + $0x20] sm:$0xff]
  %v40 = vld [vmem:[#allocation2 + $0x28] sm:$0xff]
  %v41 = vld [vmem:[#allocation2 + $0x30] sm:$0xff]
  %v42 = vld [vmem:[#allocation2 + $0x38] sm:$0xff]
  %v43 = vld [vmem:[#allocation2 + $0x40] sm:$0xff]
  %v44 = vld [vmem:[#allocation2 + $0x48] sm:$0xff]
  %v45 = vld [vmem:[#allocation2 + $0x50] sm:$0xff]
  %v46 = vld [vmem:[#allocation2 + $0x58] sm:$0xff]
  %v47 = vld [vmem:[#allocation2 + $0x60] sm:$0xff]
  %v48 = vld [vmem:[#allocation2 + $0x68] sm:$0xff]
  %v49 = vld [vmem:[#allocation2 + $0x70] sm:$0xff]
  %v50 = vld [vmem:[#allocation2 + $0x78] sm:$0xff]
  %v51 = vld [vmem:[%s0] sm:$0xff]
  %v52 = vld [vmem:[%s0 + $0x8] sm:$0xff]
  %v53 = vld [vmem:[%s0 + $0x10] sm:$0xff]
  %v54 = vld [vmem:[%s0 + $0x18] sm:$0xff]
  %v55 = vld [vmem:[%s0 + $0x20] sm:$0xff]
  %v56 = vld [vmem:[%s0 + $0x28] sm:$0xff]
  %v57 = vld [vmem:[%s0 + $0x30] sm:$0xff]
  %v58 = vld [vmem:[%s0 + $0x38] sm:$0xff]
  %v59 = vld [vmem:[%s0 + $0x40] sm:$0xff]
  %v60 = vld [vmem:[%s0 + $0x48] sm:$0xff]
  %v61 = vld [vmem:[%s0 + $0x50] sm:$0xff]
  %v62 = vld [vmem:[%s0 + $0x58] sm:$0xff]
  %v63 = vld [vmem:[%s0 + $0x60] sm:$0xff]
  %v64 = vld [vmem:[%s0 + $0x68] sm:$0xff]
  %v65 = vld [vmem:[%s0 + $0x70] sm:$0xff]
  %v66 = vld [vmem:[%s0 + $0x78] sm:$0xff]
  %v67 = vld [vmem:[%s1] sm:$0xf]
  %v68 = vld [vmem:[%s1 + $0x4] sm:$0xf]
  %v69 = vld [vmem:[%s1 + $0x8] sm:$0xf]
  %v70 = vld [vmem:[%s1 + $0xc] sm:$0xf]
  %v71 = vld [vmem:[%s1 + $0x10] sm:$0xf]
  %v72 = vld [vmem:[%s1 + $0x14] sm:$0xf]
  %v73 = vld [vmem:[%s1 + $0x18] sm:$0xf]
  %v74 = vld [vmem:[%s1 + $0x1c] sm:$0xf]
  %v75 = vld [vmem:[%s1 + $0x20] sm:$0xf]
  %v76 = vld [vmem:[%s1 + $0x24] sm:$0xf]
  %v77 = vld [vmem:[%s1 + $0x28] sm:$0xf]
  %v78 = vld [vmem:[%s1 + $0x2c] sm:$0xf]
  %v79 = vld [vmem:[%s1 + $0x30] sm:$0xf]
  %v80 = vld [vmem:[%s1 + $0x34] sm:$0xf]
  %v81 = vld [vmem:[%s1 + $0x38] sm:$0xf]
  %v82 = vld [vmem:[%s1 + $0x3c] sm:$0xf]
  %v83 = vld [vmem:[%s1 + $0x40] sm:$0xf]
  %v84 = vld [vmem:[%s1 + $0x44] sm:$0xf]
  %v85 = vld [vmem:[%s1 + $0x48] sm:$0xf]
  %v86 = vld [vmem:[%s1 + $0x4c] sm:$0xf]
  %v87 = vld [vmem:[%s1 + $0x50] sm:$0xf]
  %v88 = vld [vmem:[%s1 + $0x54] sm:$0xf]
  %v89 = vld [vmem:[%s1 + $0x58] sm:$0xf]
  %v90 = vld [vmem:[%s1 + $0x5c] sm:$0xf]
  %v91 = vld [vmem:[%s1 + $0x60] sm:$0xf]
  %v92 = vld [vmem:[%s1 + $0x64] sm:$0xf]
  %v93 = vld [vmem:[%s1 + $0x68] sm:$0xf]
  %v94 = vld [vmem:[%s1 + $0x6c] sm:$0xf]
  %v95 = vld [vmem:[%s1 + $0x70] sm:$0xf]
  %v96 = vld [vmem:[%s1 + $0x74] sm:$0xf]
  %v97 = vld [vmem:[%s1 + $0x78] sm:$0xf]
  %v98 = vld [vmem:[%s1 + $0x7c] sm:$0xf]
  %v115 = vunpack.c.l.b16 %v51
  %v116 = vunpack.c.h.b16 %v51
  %v117 = vunpack.c.l.b16 %v52
  %v118 = vunpack.c.h.b16 %v52
  %v119 = vunpack.c.l.b16 %v53
  %v120 = vunpack.c.h.b16 %v53
  %v121 = vunpack.c.l.b16 %v54
  %v122 = vunpack.c.h.b16 %v54
  %v123 = vunpack.c.l.b16 %v55
  %v124 = vunpack.c.h.b16 %v55
  %v125 = vunpack.c.l.b16 %v56
  %v126 = vunpack.c.h.b16 %v56
  %v127 = vunpack.c.l.b16 %v57
  %v128 = vunpack.c.h.b16 %v57
  %v129 = vunpack.c.l.b16 %v58
  %v130 = vunpack.c.h.b16 %v58
  %v131 = vunpack.c.l.b16 %v59
  %v132 = vunpack.c.h.b16 %v59
  %v133 = vunpack.c.l.b16 %v60
  %v134 = vunpack.c.h.b16 %v60
  %v135 = vunpack.c.l.b16 %v61
  %v136 = vunpack.c.h.b16 %v61
  %v137 = vunpack.c.l.b16 %v62
  %v138 = vunpack.c.h.b16 %v62
  %v139 = vunpack.c.l.b16 %v63
  %v140 = vunpack.c.h.b16 %v63
  %v141 = vunpack.c.l.b16 %v64
  %v142 = vunpack.c.h.b16 %v64
  %v143 = vunpack.c.l.b16 %v65
  %v144 = vunpack.c.h.b16 %v65
  %v145 = vunpack.c.l.b16 %v66
  %v146 = vunpack.c.h.b16 %v66
  %v147 = vpack.c.b16 %v117, %v115
  %v148 = vpack.c.b16 %v118, %v116
  %v149 = vpack.c.b16 %v121, %v119
  %v150 = vpack.c.b16 %v122, %v120
  %v151 = vpack.c.b16 %v125, %v123
  %v152 = vpack.c.b16 %v126, %v124
  %v153 = vpack.c.b16 %v129, %v127
  %v154 = vpack.c.b16 %v130, %v128
  %v155 = vpack.c.b16 %v133, %v131
  %v156 = vpack.c.b16 %v134, %v132
  %v157 = vpack.c.b16 %v137, %v135
  %v158 = vpack.c.b16 %v138, %v136
  %v159 = vpack.c.b16 %v141, %v139
  %v160 = vpack.c.b16 %v142, %v140
  %v161 = vpack.c.b16 %v145, %v143
  %v162 = vpack.c.b16 %v146, %v144
  %v211 = vunpack.c.l.b16 %v67
  %v212 = vunpack.c.l.b16 %v68
  %v213 = vunpack.c.l.b16 %v69
  %v214 = vunpack.c.l.b16 %v70
  %v215 = vunpack.c.l.b16 %v71
  %v216 = vunpack.c.l.b16 %v72
  %v217 = vunpack.c.l.b16 %v73
  %v218 = vunpack.c.l.b16 %v74
  %v219 = vunpack.c.l.b16 %v75
  %v220 = vunpack.c.l.b16 %v76
  %v221 = vunpack.c.l.b16 %v77
  %v222 = vunpack.c.l.b16 %v78
  %v223 = vunpack.c.l.b16 %v79
  %v224 = vunpack.c.l.b16 %v80
  %v225 = vunpack.c.l.b16 %v81
  %v226 = vunpack.c.l.b16 %v82
  %v227 = vunpack.c.l.b16 %v83
  %v228 = vunpack.c.l.b16 %v84
  %v229 = vunpack.c.l.b16 %v85
  %v230 = vunpack.c.l.b16 %v86
  %v231 = vunpack.c.l.b16 %v87
  %v232 = vunpack.c.l.b16 %v88
  %v233 = vunpack.c.l.b16 %v89
  %v234 = vunpack.c.l.b16 %v90
  %v235 = vunpack.c.l.b16 %v91
  %v236 = vunpack.c.l.b16 %v92
  %v237 = vunpack.c.l.b16 %v93
  %v238 = vunpack.c.l.b16 %v94
  %v239 = vunpack.c.l.b16 %v95
  %v240 = vunpack.c.l.b16 %v96
  %v241 = vunpack.c.l.b16 %v97
  %v242 = vunpack.c.l.b16 %v98
  %v243 = vpack.c.b16 %v212, %v211
  %v244 = vpack.c.b16 %v214, %v213
  %v245 = vpack.c.b16 %v216, %v215
  %v246 = vpack.c.b16 %v218, %v217
  %v247 = vpack.c.b16 %v220, %v219
  %v248 = vpack.c.b16 %v222, %v221
  %v249 = vpack.c.b16 %v224, %v223
  %v250 = vpack.c.b16 %v226, %v225
  %v251 = vpack.c.b16 %v228, %v227
  %v252 = vpack.c.b16 %v230, %v229
  %v253 = vpack.c.b16 %v232, %v231
  %v254 = vpack.c.b16 %v234, %v233
  %v255 = vpack.c.b16 %v236, %v235
  %v256 = vpack.c.b16 %v238, %v237
  %v257 = vpack.c.b16 %v240, %v239
  %v258 = vpack.c.b16 %v242, %v241
  %275 = vmatprep.subr.bf16.mxu0 0
  %276 = vmatpush1.bf16.msra.mxu0 %v250
  %277 = vmatprep.subr.bf16.mxu0 0
  %278 = vmatpush1.bf16.msra.mxu0 %v249
  %279 = vmatprep.subr.bf16.mxu0 0
  %280 = vmatpush1.bf16.msra.mxu0 %v248
  %281 = vmatprep.subr.bf16.mxu0 0
  %282 = vmatpush1.bf16.msra.mxu0 %v247
  %283 = vmatprep.subr.bf16.mxu0 0
  %284 = vmatpush1.bf16.msra.mxu0 %v246
  %285 = vmatprep.subr.bf16.mxu0 0
  %286 = vmatpush1.bf16.msra.mxu0 %v245
  %287 = vmatprep.subr.bf16.mxu0 0
  %288 = vmatpush1.bf16.msra.mxu0 %v244
  %289 = vmatprep.subr.bf16.mxu0 0
  %290 = vmatpush1.bf16.msra.mxu0 %v243
  %291 = vmatprep.subr.bf16.mxu0 0
  %292 = vmatpush2.bf16.msra.mxu0 %v258
  %293 = vmatprep.subr.bf16.mxu0 0
  %294 = vmatpush2.bf16.msra.mxu0 %v257
  %295 = vmatprep.subr.bf16.mxu0 0
  %296 = vmatpush2.bf16.msra.mxu0 %v256
  %297 = vmatprep.subr.bf16.mxu0 0
  %298 = vmatpush2.bf16.msra.mxu0 %v255
  %299 = vmatprep.subr.bf16.mxu0 0
  %300 = vmatpush2.bf16.msra.mxu0 %v254
  %301 = vmatprep.subr.bf16.mxu0 0
  %302 = vmatpush2.bf16.msra.mxu0 %v253
  %303 = vmatprep.subr.bf16.mxu0 0
  %304 = vmatpush2.bf16.msra.mxu0 %v252
  %305 = vmatprep.subr.bf16.mxu0 0
  %306 = vmatpush2.bf16.msra.mxu0 %v251
  %307 = vmatprep.mubr.bf16.mxu0 %v148
  %308 = vmatmul.mubr.bf16.gmra.mxu0 %v147
  %v309 = vpop.f32.mrf.mxu0
  %v310 = vadd.f32 0.0, %v309
  %v311 = vpop.f32.mrf.mxu0
  %v312 = vpop.f32.mrf.mxu0
  %v313 = vadd.f32 0.0, %v312
  %v314 = vpop.f32.mrf.mxu0
  %315 = vmatprep.mubr.bf16.mxu0 %v150
  %316 = vmatmul.mubr.bf16.gmra.mxu0 %v149
  %v317 = vpop.f32.mrf.mxu0
  %v318 = vadd.f32 0.0, %v317
  %v319 = vpop.f32.mrf.mxu0
  %v320 = vpop.f32.mrf.mxu0
  %v321 = vadd.f32 0.0, %v320
  %v322 = vpop.f32.mrf.mxu0
  %323 = vmatprep.mubr.bf16.mxu0 %v152
  %324 = vmatmul.mubr.bf16.gmra.mxu0 %v151
  %v325 = vpop.f32.mrf.mxu0
  %v326 = vadd.f32 0.0, %v325
  %v327 = vpop.f32.mrf.mxu0
  %v328 = vpop.f32.mrf.mxu0
  %v329 = vadd.f32 0.0, %v328
  %v330 = vpop.f32.mrf.mxu0
  %331 = vmatprep.mubr.bf16.mxu0 %v154
  %332 = vmatmul.mubr.bf16.gmra.mxu0 %v153
  %v333 = vpop.f32.mrf.mxu0
  %v334 = vadd.f32 0.0, %v333
  %v335 = vpop.f32.mrf.mxu0
  %v336 = vpop.f32.mrf.mxu0
  %v337 = vadd.f32 0.0, %v336
  %v338 = vpop.f32.mrf.mxu0
  %339 = vmatprep.mubr.bf16.mxu0 %v156
  %340 = vmatmul.mubr.bf16.gmra.mxu0 %v155
  %v341 = vpop.f32.mrf.mxu0
  %v342 = vadd.f32 0.0, %v341
  %v343 = vpop.f32.mrf.mxu0
  %v344 = vpop.f32.mrf.mxu0
  %v345 = vadd.f32 0.0, %v344
  %v346 = vpop.f32.mrf.mxu0
  %347 = vmatprep.mubr.bf16.mxu0 %v158
  %348 = vmatmul.mubr.bf16.gmra.mxu0 %v157
  %v349 = vpop.f32.mrf.mxu0
  %v350 = vadd.f32 0.0, %v349
  %v351 = vpop.f32.mrf.mxu0
  %v352 = vpop.f32.mrf.mxu0
  %v353 = vadd.f32 0.0, %v352
  %v354 = vpop.f32.mrf.mxu0
  %355 = vmatprep.mubr.bf16.mxu0 %v160
  %356 = vmatmul.mubr.bf16.gmra.mxu0 %v159
  %v357 = vpop.f32.mrf.mxu0
  %v358 = vadd.f32 0.0, %v357
  %v359 = vpop.f32.mrf.mxu0
  %v360 = vpop.f32.mrf.mxu0
  %v361 = vadd.f32 0.0, %v360
  %v362 = vpop.f32.mrf.mxu0
  %363 = vmatprep.mubr.bf16.mxu0 %v162
  %364 = vmatmul.mubr.bf16.gmra.mxu0 %v161
  %v365 = vpop.f32.mrf.mxu0
  %v366 = vadd.f32 0.0, %v365
  %v367 = vpop.f32.mrf.mxu0
  %v368 = vpop.f32.mrf.mxu0
  %v369 = vadd.f32 0.0, %v368
  %v370 = vpop.f32.mrf.mxu0
  %371 = vdwg.mxu0
  %v372 = vadd.f32 %v35, %v310
  %v373 = vadd.f32 %v36, %v313
  %v374 = vadd.f32 %v37, %v318
  %v375 = vadd.f32 %v38, %v321
  %v376 = vadd.f32 %v39, %v326
  %v377 = vadd.f32 %v40, %v329
  %v378 = vadd.f32 %v41, %v334
  %v379 = vadd.f32 %v42, %v337
  %v380 = vadd.f32 %v43, %v342
  %v381 = vadd.f32 %v44, %v345
  %v382 = vadd.f32 %v45, %v350
  %v383 = vadd.f32 %v46, %v353
  %v384 = vadd.f32 %v47, %v358
  %v385 = vadd.f32 %v48, %v361
  %v386 = vadd.f32 %v49, %v366
  %v387 = vadd.f32 %v50, %v369
  %388 = vst [vmem:[#allocation2] sm:$0xff] %v372
  %389 = vst [vmem:[#allocation2 + $0x8] sm:$0xff] %v373
  %390 = vst [vmem:[#allocation2 + $0x10] sm:$0xff] %v374
  %391 = vst [vmem:[#allocation2 + $0x18] sm:$0xff] %v375
  %392 = vst [vmem:[#allocation2 + $0x20] sm:$0xff] %v376
  %393 = vst [vmem:[#allocation2 + $0x28] sm:$0xff] %v377
  %394 = vst [vmem:[#allocation2 + $0x30] sm:$0xff] %v378
  %395 = vst [vmem:[#allocation2 + $0x38] sm:$0xff] %v379
  %396 = vst [vmem:[#allocation2 + $0x40] sm:$0xff] %v380
  %397 = vst [vmem:[#allocation2 + $0x48] sm:$0xff] %v381
  %398 = vst [vmem:[#allocation2 + $0x50] sm:$0xff] %v382
  %399 = vst [vmem:[#allocation2 + $0x58] sm:$0xff] %v383
  %400 = vst [vmem:[#allocation2 + $0x60] sm:$0xff] %v384
  %401 = vst [vmem:[#allocation2 + $0x68] sm:$0xff] %v385
  %402 = vst [vmem:[#allocation2 + $0x70] sm:$0xff] %v386
  %403 = vst [vmem:[#allocation2 + $0x78] sm:$0xff] %v387
  // Predicated region
  $region18: #{_lambda_.13} parent=0 // pred_check
    %p404 = pneg %p15
  $region19: #{_lambda_.13} parent=0 // pred_check_branch
    %406 = sbr.rel (%p404) target = $region21
  $region20: #{_lambda_.13} parent=0 // pred_region
    %v407 = vld [vmem:[#allocation2] sm:$0xff]
    %v408 = vld [vmem:[#allocation2 + $0x8] sm:$0xff]
    %v409 = vld [vmem:[#allocation2 + $0x10] sm:$0xff]
    %v410 = vld [vmem:[#allocation2 + $0x18] sm:$0xff]
    %v411 = vld [vmem:[#allocation2 + $0x20] sm:$0xff]
    %v412 = vld [vmem:[#allocation2 + $0x28] sm:$0xff]
    %v413 = vld [vmem:[#allocation2 + $0x30] sm:$0xff]
    %v414 = vld [vmem:[#allocation2 + $0x38] sm:$0xff]
    %v415 = vld [vmem:[#allocation2 + $0x40] sm:$0xff]
    %v416 = vld [vmem:[#allocation2 + $0x48] sm:$0xff]
    %v417 = vld [vmem:[#allocation2 + $0x50] sm:$0xff]
    %v418 = vld [vmem:[#allocation2 + $0x58] sm:$0xff]
    %v419 = vld [vmem:[#allocation2 + $0x60] sm:$0xff]
    %v420 = vld [vmem:[#allocation2 + $0x68] sm:$0xff]
    %v421 = vld [vmem:[#allocation2 + $0x70] sm:$0xff]
    %v422 = vld [vmem:[#allocation2 + $0x78] sm:$0xff]
    %v423 = vld [vmem:[%s2] sm:$0x1]
    %v425 = vlaneseq
    %v426 = vshrl.u32 %v425, 7
    %v427 = vsub.s32 0, %v426
    %v428 = vrot.slane %v423, %v427
    %v430 = vadd.f32 %v407, %v428
    %v431 = vadd.f32 %v408, %v428
    %v432 = vadd.f32 %v409, %v428
    %v433 = vadd.f32 %v410, %v428
    %v434 = vadd.f32 %v411, %v428
    %v435 = vadd.f32 %v412, %v428
    %v436 = vadd.f32 %v413, %v428
    %v437 = vadd.f32 %v414, %v428
    %v438 = vadd.f32 %v415, %v428
    %v439 = vadd.f32 %v416, %v428
    %v440 = vadd.f32 %v417, %v428
    %v441 = vadd.f32 %v418, %v428
    %v442 = vadd.f32 %v419, %v428
    %v443 = vadd.f32 %v420, %v428
    %v444 = vadd.f32 %v421, %v428
    %v445 = vadd.f32 %v422, %v428
    %v446 = vmax.f32 %v430, 0.0
    %v447 = vmax.f32 %v431, 0.0
    %v448 = vmax.f32 %v432, 0.0
    %v449 = vmax.f32 %v433, 0.0
    %v450 = vmax.f32 %v434, 0.0
    %v451 = vmax.f32 %v435, 0.0
    %v452 = vmax.f32 %v436, 0.0
    %v453 = vmax.f32 %v437, 0.0
    %v454 = vmax.f32 %v438, 0.0
    %v455 = vmax.f32 %v439, 0.0
    %v456 = vmax.f32 %v440, 0.0
    %v457 = vmax.f32 %v441, 0.0
    %v458 = vmax.f32 %v442, 0.0
    %v459 = vmax.f32 %v443, 0.0
    %v460 = vmax.f32 %v444, 0.0
    %v461 = vmax.f32 %v445, 0.0
    %v462 = vpack.c.bf16 %v447, %v446
    %v463 = vpack.c.bf16 %v449, %v448
    %v464 = vpack.c.bf16 %v451, %v450
    %v465 = vpack.c.bf16 %v453, %v452
    %v466 = vpack.c.bf16 %v455, %v454
    %v467 = vpack.c.bf16 %v457, %v456
    %v468 = vpack.c.bf16 %v459, %v458
    %v469 = vpack.c.bf16 %v461, %v460
    %v478 = vunpack.c.l.b16 %v462
    %v479 = vunpack.c.h.b16 %v462
    %v480 = vunpack.c.l.b16 %v463
    %v481 = vunpack.c.h.b16 %v463
    %v482 = vunpack.c.l.b16 %v464
    %v483 = vunpack.c.h.b16 %v464
    %v484 = vunpack.c.l.b16 %v465
    %v485 = vunpack.c.h.b16 %v465
    %v486 = vunpack.c.l.b16 %v466
    %v487 = vunpack.c.h.b16 %v466
    %v488 = vunpack.c.l.b16 %v467
    %v489 = vunpack.c.h.b16 %v467
    %v490 = vunpack.c.l.b16 %v468
    %v491 = vunpack.c.h.b16 %v468
    %v492 = vunpack.c.l.b16 %v469
    %v493 = vunpack.c.h.b16 %v469
    %v494 = vpack.c.b16 %v478, %v478
    %v495 = vpack.c.b16 %v479, %v479
    %v496 = vpack.c.b16 %v480, %v480
    %v497 = vpack.c.b16 %v481, %v481
    %v498 = vpack.c.b16 %v482, %v482
    %v499 = vpack.c.b16 %v483, %v483
    %v500 = vpack.c.b16 %v484, %v484
    %v501 = vpack.c.b16 %v485, %v485
    %v502 = vpack.c.b16 %v486, %v486
    %v503 = vpack.c.b16 %v487, %v487
    %v504 = vpack.c.b16 %v488, %v488
    %v505 = vpack.c.b16 %v489, %v489
    %v506 = vpack.c.b16 %v490, %v490
    %v507 = vpack.c.b16 %v491, %v491
    %v508 = vpack.c.b16 %v492, %v492
    %v509 = vpack.c.b16 %v493, %v493
    %526 = vst [vmem:[%s3] sm:$0xf] %v494
    %527 = vst [vmem:[%s3 + $0x4] sm:$0xf] %v495
    %528 = vst [vmem:[%s3 + $0x8] sm:$0xf] %v496
    %529 = vst [vmem:[%s3 + $0xc] sm:$0xf] %v497
    %530 = vst [vmem:[%s3 + $0x10] sm:$0xf] %v498
    %531 = vst [vmem:[%s3 + $0x14] sm:$0xf] %v499
    %532 = vst [vmem:[%s3 + $0x18] sm:$0xf] %v500
    %533 = vst [vmem:[%s3 + $0x1c] sm:$0xf] %v501
    %534 = vst [vmem:[%s3 + $0x20] sm:$0xf] %v502
    %535 = vst [vmem:[%s3 + $0x24] sm:$0xf] %v503
    %536 = vst [vmem:[%s3 + $0x28] sm:$0xf] %v504
    %537 = vst [vmem:[%s3 + $0x2c] sm:$0xf] %v505
    %538 = vst [vmem:[%s3 + $0x30] sm:$0xf] %v506
    %539 = vst [vmem:[%s3 + $0x34] sm:$0xf] %v507
    %540 = vst [vmem:[%s3 + $0x38] sm:$0xf] %v508
    %541 = vst [vmem:[%s3 + $0x3c] sm:$0xf] %v509
  $region21: #{_lambda_.13} parent=0 // pred_fallthru
    _
  // Predicated region
  $region22: #{_lambda_.13} parent=0 // pred_check
    _
  $region23: #{_lambda_.13} parent=0 // pred_check_branch
    %543 = sbr.rel (0) target = $region25
  $region24: #{_lambda_.13} parent=0 // pred_region
    _
  $region25: #{_lambda_.13} parent=0 // pred_fallthru
    _
  // Predicated region
  $region26: #{_lambda_.13} parent=0 // pred_check
    _
  $region27: #{_lambda_.13} parent=0 // pred_check_branch
    %545 = sbr.rel (0) target = $region29
  $region28: #{_lambda_.13} parent=0 // pred_region
    _
  $region29: #{_lambda_.13} parent=0 // pred_fallthru
    _

// kernel: _lambda_.14
$region0: #{_lambda_.14}
  #allocation0 [shape = 'u32[]', space=smem, size = 0x4, offset = 0x4, fixed_abs, tag = 'smem constant byte address 0x4 - core index']
  #allocation1 [shape = 'u32[144,128]{1,0:T(1,128)}', space=vmem, size = 0x12000, scoped, tag = 'internal scratch']
  #allocation2 [shape = 'f32[128,128]{1,0:T(8,128)}', space=vmem, size = 0x10000, scoped, tag = 'scratch operand']
  %s0 = inlined_call_operand.vmem [shape: bf16[128,640], index: 0, kind: input, shape index: {}]
  %s1 = inlined_call_operand.vmem [shape: bf16[640,128], index: 1, kind: input, shape index: {}]
  %s2 = inlined_call_operand.vmem [shape: f32[1,128], index: 2, kind: input, shape index: {}]
  %s3 = inlined_call_operand.vmem [shape: bf16[128,128], index: 3, kind: output, shape index: {}]
  %s4 = sld [smem:[#allocation0]]
  $region94: #{_lambda_.14} parent=0
    _
  %s6 = ssub.s32 1, %s4
  %s7 = scalar_select 0, %s6, %s4
  $region1: #{_lambda_.14} parent=0
    #allocation3 [shape = 'u8[65536]{0}', space=vmem, size = 0x10000, scoped, tag = 'input window, operand 0']
    loop: start=0, step=1, limit=7
    $region2: #{_lambda_.14} parent=1 // loop_pre_header
      _
    $region3: #{_lambda_.14} parent=1 // loop_header
      %s9 = sphi 0, %s13
      %p10 = scmp.ge.s32.totalorder %s9, 7
      %s16 = sphi 0, %s35
      %s17 = sphi 0, %s31
      %s18 = sphi 0, %s27
      %s19 = sphi 0, %s16
      %s20 = sphi 0, %s17
      %s21 = sphi 0, %s18
      %s22 = sphi 0, %s19
      %s23 = sphi 0, %s20
      %s24 = sphi 0, %s21
      %s40 = sphi 0, %s42
      %s43 = sphi 0, %s40
      %s44 = sphi 0, %s43
      %s60 = sphi 0, %s44
      %s68 = sphi 0, %s70
      %s71 = sphi 0, %s68
      %s72 = sphi 0, %s71
      %s88 = sphi 0, %s72
      %s94 = sphi 0, %s96
      %s97 = sphi 0, %s94
      %s98 = sphi 0, %s97
      %s114 = sphi 0, %s98
      %s122 = sphi 0, %s124
      %s125 = sphi 0, %s122
      %s126 = sphi 0, %s125
      %s142 = sphi 0, %s126
    $region4: #{_lambda_.14} parent=1 // loop_header_branch
      %12 = sbr.rel (%p10) target = $region8
    $region5: #{_lambda_.14} parent=1 // loop_body
      %s14 = ssub.s32 %s9, 1
      %s15 = ssub.s32 %s9, 2
      %s25 = sadd.s32 1, %s18
      %p26 = scmp.ge.s32.totalorder %s25, 5
      %s27 = scalar_select %p26, 0, %s25
      %s28 = sadd.s32 1, %s17
      %s29 = scalar_select %p26, %s28, %s17
      %p30 = scmp.ge.s32.totalorder %s29, 1
      %s31 = scalar_select %p30, 0, %s29
      %s32 = sadd.s32 1, %s16
      %s33 = scalar_select %p30, %s32, %s16
      %p34 = scmp.ge.s32.totalorder %s33, 1
      %s35 = scalar_select %p34, 0, %s33
      %s36 = ssub.s32 %s16, %s35
      %s37 = ssub.s32 %s18, %s27
      %s38 = sor.u32 %s36, %s37
      %p39 = scmp.eq.s32.totalorder %s38, 0
      %s41 = sadd.s32 %s40, 1
      %s42 = scalar_select %p39, %s40, %s41
      %p45 = pneg %p39
      %p46 = scmp.eq.s32.totalorder %s9, 4
      %p47 = por %p45, %p46
      %p48 = scmp.ne.s32.totalorder %s40, %s43
      %p49 = scmp.eq.s32.totalorder %s9, 0
      %p50 = por %p48, %p49
      %p51 = scmp.ne.s32.totalorder %s40, %s43
      %p52 = scmp.eq.s32.totalorder %s14, 4
      %p53 = por %p51, %p52
      %p54 = scmp.ne.s32.totalorder %s43, %s44
      %p55 = scmp.eq.s32.totalorder %s14, 0
      %p56 = por %p54, %p55
      %p57 = scmp.ne.s32.totalorder %s43, %s44
      %p58 = scmp.eq.s32.totalorder %s15, 4
      %p59 = por %p57, %p58
      %p61 = scmp.ne.s32.totalorder %s44, %s60
      %p62 = scmp.eq.s32.totalorder %s15, 0
      %p63 = por %p61, %p62
      %s64 = ssub.s32 %s18, %s27
      %s65 = ssub.s32 %s17, %s31
      %s66 = sor.u32 %s64, %s65
      %p67 = scmp.eq.s32.totalorder %s66, 0
      %s69 = sadd.s32 %s68, 1
      %s70 = scalar_select %p67, %s68, %s69
      %p73 = pneg %p67
      %p74 = scmp.eq.s32.totalorder %s9, 4
      %p75 = por %p73, %p74
      %p76 = scmp.ne.s32.totalorder %s68, %s71
      %p77 = scmp.eq.s32.totalorder %s9, 0
      %p78 = por %p76, %p77
      %p79 = scmp.ne.s32.totalorder %s68, %s71
      %p80 = scmp.eq.s32.totalorder %s14, 4
      %p81 = por %p79, %p80
      %p82 = scmp.ne.s32.totalorder %s71, %s72
      %p83 = scmp.eq.s32.totalorder %s14, 0
      %p84 = por %p82, %p83
      %p85 = scmp.ne.s32.totalorder %s71, %s72
      %p86 = scmp.eq.s32.totalorder %s15, 4
      %p87 = por %p85, %p86
      %p89 = scmp.ne.s32.totalorder %s72, %s88
      %p90 = scmp.eq.s32.totalorder %s15, 0
      %p91 = por %p89, %p90
      %s92 = ssub.s32 %s17, %s31
      %p93 = scmp.eq.s32.totalorder %s92, 0
      %s95 = sadd.s32 %s94, 1
      %s96 = scalar_select %p93, %s94, %s95
      %p99 = pneg %p93
      %p100 = scmp.eq.s32.totalorder %s9, 4
      %p101 = por %p99, %p100
      %p102 = scmp.ne.s32.totalorder %s94, %s97
      %p103 = scmp.eq.s32.totalorder %s9, 0
      %p104 = por %p102, %p103
      %p105 = scmp.ne.s32.totalorder %s94, %s97
      %p106 = scmp.eq.s32.totalorder %s14, 4
      %p107 = por %p105, %p106
      %p108 = scmp.ne.s32.totalorder %s97, %s98
      %p109 = scmp.eq.s32.totalorder %s14, 0
      %p110 = por %p108, %p109
      %p111 = scmp.ne.s32.totalorder %s97, %s98
      %p112 = scmp.eq.s32.totalorder %s15, 4
      %p113 = por %p111, %p112
      %p115 = scmp.ne.s32.totalorder %s98, %s114
      %p116 = scmp.eq.s32.totalorder %s15, 0
      %p117 = por %p115, %p116
      %s118 = ssub.s32 %s16, %s35
      %s119 = ssub.s32 %s17, %s31
      %s120 = sor.u32 %s118, %s119
      %p121 = scmp.eq.s32.totalorder %s120, 0
      %s123 = sadd.s32 %s122, 1
      %s124 = scalar_select %p121, %s122, %s123
      %p127 = pneg %p121
      %p128 = scmp.eq.s32.totalorder %s9, 4
      %p129 = por %p127, %p128
      %p130 = scmp.ne.s32.totalorder %s122, %s125
      %p131 = scmp.eq.s32.totalorder %s9, 0
      %p132 = por %p130, %p131
      %p133 = scmp.ne.s32.totalorder %s122, %s125
      %p134 = scmp.eq.s32.totalorder %s14, 4
      %p135 = por %p133, %p134
      %p136 = scmp.ne.s32.totalorder %s125, %s126
      %p137 = scmp.eq.s32.totalorder %s14, 0
      %p138 = por %p136, %p137
      %p139 = scmp.ne.s32.totalorder %s125, %s126
      %p140 = scmp.eq.s32.totalorder %s15, 4
      %p141 = por %p139, %p140
      %p143 = scmp.ne.s32.totalorder %s126, %s142
      %p144 = scmp.eq.s32.totalorder %s15, 0
      %p145 = por %p143, %p144
      %p146 = scmp.le.s32.totalorder 1, %s9
      %p147 = scmp.lt.s32.totalorder %s9, 6
      %p148 = pnand %p146, %p147
      %p149 = pneg %p148
      // Predicated region
      $region9: #{_lambda_.14} parent=5 // pred_check
        _
      $region10: #{_lambda_.14} parent=5 // pred_check_branch
        %151 = sbr.rel (%p148) target = $region12
      $region11: #{_lambda_.14} parent=5 // pred_region
        %s152 = ssub.s32 %s9, 1
        // Predicated region
        $region13: #{_lambda_.14} parent=11 // pred_check
          %p153 = pneg %p110
        $region14: #{_lambda_.14} parent=11 // pred_check_branch
          %155 = sbr.rel (%p153) target = $region16
        $region15: #{_lambda_.14} parent=11 // pred_region
          %p156 = scmp.lt.s32.totalorder %s20, 0
          %s157 = scalar_select %p156, %s20, 0
          %s158 = scalar_lea.vmem %s2, %s157
        $region16: #{_lambda_.14} parent=11 // pred_fallthru
          _
      $region12: #{_lambda_.14} parent=5 // pred_fallthru
        _
      %p159 = scmp.lt.s32.totalorder %s9, 5
      // Predicated region
      $region17: #{_lambda_.14} parent=5 // pred_check
        %p160 = pneg %p159
      $region18: #{_lambda_.14} parent=5 // pred_check_branch
        %162 = sbr.rel (%p160) target = $region20
      $region19: #{_lambda_.14} parent=5 // pred_region
        // Predicated region
        $region21: #{_lambda_.14} parent=19 // pred_check
          %p163 = pneg %p50
        $region22: #{_lambda_.14} parent=19 // pred_check_branch
          %165 = sbr.rel (%p163) target = $region24
        $region23: #{_lambda_.14} parent=19 // pred_region
          %s166 = sand.u32 %s40, 1
          %s167 = sand.u32 %s40, 1
          %s168 = smul.addr %s167, 64
          %s169 = scalar_lea.vmem [#allocation3], %s168
          %s170 = smul.u32 16, %s16
          %s171 = smul.addr %s170, 5
          %s172 = sadd.s32 %s18, %s171
          %s173 = smul.addr %s172, 4
          %s174 = scalar_lea.vmem %s0, %s173
          // Predicated region
          $region25: #{_lambda_.14} parent=23 // pred_check
            _
          $region26: #{_lambda_.14} parent=23 // pred_check_branch
            %176 = sbr.rel (0) target = $region28
          $region27: #{_lambda_.14} parent=23 // pred_region
            // Predicated region
            $region29: #{_lambda_.14} parent=27 // pred_check
              _
            $region30: #{_lambda_.14} parent=27 // pred_check_branch
              %178 = sbr.rel target = $region32
            $region31: #{_lambda_.14} parent=27 // pred_region
              // Predicated region
              $region44: #{_lambda_.14} parent=31 // pred_check
                _
              $region45: #{_lambda_.14} parent=31 // pred_check_branch
                %224 = sbr.rel (0) target = $region47
              $region46: #{_lambda_.14} parent=31 // pred_region
                loop: start=0, step=1, limit=1
                $region48: #{_lambda_.14} parent=46 // loop_pre_header
                  _
                $region49: #{_lambda_.14} parent=46 // loop_header
                  %s226 = sphi 0, %s230
                  %p227 = scmp.ge.s32.totalorder %s226, 1
                  %s231 = sphi %s174, %s174
                  %s232 = sphi %s169, %s169
                $region50: #{_lambda_.14} parent=46 // loop_header_branch
                  %229 = sbr.rel (%p227) target = $region54
                $region51: #{_lambda_.14} parent=46 // loop_body
                  _
                $region52: #{_lambda_.14} parent=46 // loop_footer
                  %s230 = sadd.s32 1, %s226
                $region53: #{_lambda_.14} parent=46 // loop_footer_branch
                  %225 = sbr.rel target = $region49
                $region54: #{_lambda_.14} parent=46 // loop_exit
                  _
                %s234 = ssub.s32 16, 1
                loop: start=0, step=1, limit=1
                $region55: #{_lambda_.14} parent=46 // loop_pre_header
                  _
                $region56: #{_lambda_.14} parent=46 // loop_header
                  %s236 = sphi 0, %s240
                  %p237 = scmp.ge.s32.totalorder %s236, 1
                  %s241 = sphi %s174, %s174
                  %s242 = sphi %s169, %s169
                $region57: #{_lambda_.14} parent=46 // loop_header_branch
                  %239 = sbr.rel (%p237) target = $region61
                $region58: #{_lambda_.14} parent=46 // loop_body
                  %v243 = vld [vmem:[%s241] sm:%s234]
                  %244 = vst [vmem:[%s242] sm:%s234] %v243
                  %v245 = vld [vmem:[%s241 + $0x14] sm:%s234]
                  %246 = vst [vmem:[%s242 + $0x4] sm:%s234] %v245
                  %v247 = vld [vmem:[%s241 + $0x28] sm:%s234]
                  %248 = vst [vmem:[%s242 + $0x8] sm:%s234] %v247
                  %v249 = vld [vmem:[%s241 + $0x3c] sm:%s234]
                  %250 = vst [vmem:[%s242 + $0xc] sm:%s234] %v249
                  %v251 = vld [vmem:[%s241 + $0x50] sm:%s234]
                  %252 = vst [vmem:[%s242 + $0x10] sm:%s234] %v251
                  %v253 = vld [vmem:[%s241 + $0x64] sm:%s234]
                  %254 = vst [vmem:[%s242 + $0x14] sm:%s234] %v253
                  %v255 = vld [vmem:[%s241 + $0x78] sm:%s234]
                  %256 = vst [vmem:[%s242 + $0x18] sm:%s234] %v255
                  %v257 = vld [vmem:[%s241 + $0x8c] sm:%s234]
                  %258 = vst [vmem:[%s242 + $0x1c] sm:%s234] %v257
                  %v259 = vld [vmem:[%s241 + $0xa0] sm:%s234]
                  %260 = vst [vmem:[%s242 + $0x20] sm:%s234] %v259
                  %v261 = vld [vmem:[%s241 + $0xb4] sm:%s234]
                  %262 = vst [vmem:[%s242 + $0x24] sm:%s234] %v261
                  %v263 = vld [vmem:[%s241 + $0xc8] sm:%s234]
                  %264 = vst [vmem:[%s242 + $0x28] sm:%s234] %v263
                  %v265 = vld [vmem:[%s241 + $0xdc] sm:%s234]
                  %266 = vst [vmem:[%s242 + $0x2c] sm:%s234] %v265
                  %v267 = vld [vmem:[%s241 + $0xf0] sm:%s234]
                  %268 = vst [vmem:[%s242 + $0x30] sm:%s234] %v267
                  %v269 = vld [vmem:[%s241 + $0x104] sm:%s234]
                  %270 = vst [vmem:[%s242 + $0x34] sm:%s234] %v269
                  %v271 = vld [vmem:[%s241 + $0x118] sm:%s234]
                  %272 = vst [vmem:[%s242 + $0x38] sm:%s234] %v271
                  %v273 = vld [vmem:[%s241 + $0x12c] sm:%s234]
                  %274 = vst [vmem:[%s242 + $0x3c] sm:%s234] %v273
                $region59: #{_lambda_.14} parent=46 // loop_footer
                  %s240 = sadd.s32 1, %s236
                $region60: #{_lambda_.14} parent=46 // loop_footer_branch
                  %235 = sbr.rel target = $region56
                $region61: #{_lambda_.14} parent=46 // loop_exit
                  _
              $region47: #{_lambda_.14} parent=31 // pred_fallthru
                _
            $region32: #{_lambda_.14} parent=27 // pred_fallthru
              _
            // Predicated region
            $region33: #{_lambda_.14} parent=27 // pred_check
              _
            $region34: #{_lambda_.14} parent=27 // pred_check_branch
              %180 = sbr.rel (0) target = $region36
            $region35: #{_lambda_.14} parent=27 // pred_region
              %s182 = ssub.s32 16, 1
              loop: start=0, step=1, limit=1
              $region37: #{_lambda_.14} parent=35 // loop_pre_header
                _
              $region38: #{_lambda_.14} parent=35 // loop_header
                %s184 = sphi 0, %s188
                %p185 = scmp.ge.s32.totalorder %s184, 1
                %s189 = sphi %s174, %s174
                %s190 = sphi %s169, %s169
              $region39: #{_lambda_.14} parent=35 // loop_header_branch
                %187 = sbr.rel (%p185) target = $region43
              $region40: #{_lambda_.14} parent=35 // loop_body
                %v191 = vld [vmem:[%s189] sm:%s182]
                %192 = vst [vmem:[%s190] sm:%s182] %v191
                %v193 = vld [vmem:[%s189 + $0x14] sm:%s182]
                %194 = vst [vmem:[%s190 + $0x4] sm:%s182] %v193
                %v195 = vld [vmem:[%s189 + $0x28] sm:%s182]
                %196 = vst [vmem:[%s190 + $0x8] sm:%s182] %v195
                %v197 = vld [vmem:[%s189 + $0x3c] sm:%s182]
                %198 = vst [vmem:[%s190 + $0xc] sm:%s182] %v197
                %v199 = vld [vmem:[%s189 + $0x50] sm:%s182]
                %200 = vst [vmem:[%s190 + $0x10] sm:%s182] %v199
                %v201 = vld [vmem:[%s189 + $0x64] sm:%s182]
                %202 = vst [vmem:[%s190 + $0x14] sm:%s182] %v201
                %v203 = vld [vmem:[%s189 + $0x78] sm:%s182]
                %204 = vst [vmem:[%s190 + $0x18] sm:%s182] %v203
                %v205 = vld [vmem:[%s189 + $0x8c] sm:%s182]
                %206 = vst [vmem:[%s190 + $0x1c] sm:%s182] %v205
                %v207 = vld [vmem:[%s189 + $0xa0] sm:%s182]
                %208 = vst [vmem:[%s190 + $0x20] sm:%s182] %v207
                %v209 = vld [vmem:[%s189 + $0xb4] sm:%s182]
                %210 = vst [vmem:[%s190 + $0x24] sm:%s182] %v209
                %v211 = vld [vmem:[%s189 + $0xc8] sm:%s182]
                %212 = vst [vmem:[%s190 + $0x28] sm:%s182] %v211
                %v213 = vld [vmem:[%s189 + $0xdc] sm:%s182]
                %214 = vst [vmem:[%s190 + $0x2c] sm:%s182] %v213
                %v215 = vld [vmem:[%s189 + $0xf0] sm:%s182]
                %216 = vst [vmem:[%s190 + $0x30] sm:%s182] %v215
                %v217 = vld [vmem:[%s189 + $0x104] sm:%s182]
                %218 = vst [vmem:[%s190 + $0x34] sm:%s182] %v217
                %v219 = vld [vmem:[%s189 + $0x118] sm:%s182]
                %220 = vst [vmem:[%s190 + $0x38] sm:%s182] %v219
                %v221 = vld [vmem:[%s189 + $0x12c] sm:%s182]
                %222 = vst [vmem:[%s190 + $0x3c] sm:%s182] %v221
              $region41: #{_lambda_.14} parent=35 // loop_footer
                %s188 = sadd.s32 1, %s184
              $region42: #{_lambda_.14} parent=35 // loop_footer_branch
                %183 = sbr.rel target = $region38
              $region43: #{_lambda_.14} parent=35 // loop_exit
                _
            $region36: #{_lambda_.14} parent=27 // pred_fallthru
              _
          $region28: #{_lambda_.14} parent=23 // pred_fallthru
            _
          %275 = vnop
        $region24: #{_lambda_.14} parent=19 // pred_fallthru
          _
        // Predicated region
        $region62: #{_lambda_.14} parent=19 // pred_check
          %p276 = pneg %p78
        $region63: #{_lambda_.14} parent=19 // pred_check_branch
          %278 = sbr.rel (%p276) target = $region65
        $region64: #{_lambda_.14} parent=19 // pred_region
          %s279 = smul.u32 16, %s18
          %p280 = scmp.lt.s32.totalorder %s279, 79
          %s281 = scalar_select %p280, %s279, 79
          %p282 = scmp.lt.s32.totalorder %s17, 0
          %s283 = scalar_select %p282, %s17, 0
          %s284 = sadd.s32 %s283, %s281
          %s285 = smul.addr %s284, 4
          %s286 = scalar_lea.vmem %s1, %s285
          %s287 = smul.u32 16, %s18
        $region65: #{_lambda_.14} parent=19 // pred_fallthru
          _
      $region20: #{_lambda_.14} parent=5 // pred_fallthru
        _
      %p288 = scmp.le.s32.totalorder 1, %s9
      %p289 = scmp.lt.s32.totalorder %s9, 6
      %p290 = pnand %p288, %p289
      %p291 = pneg %p290
      // Predicated region
      $region66: #{_lambda_.14} parent=5 // pred_check
        _
      $region67: #{_lambda_.14} parent=5 // pred_check_branch
        %293 = sbr.rel (%p290) target = $region69
      $region68: #{_lambda_.14} parent=5 // pred_region
        %s294 = ssub.s32 %s9, 1
        %s295 = sand.u32 %s43, 1
        %s296 = sand.u32 %s43, 1
        %s297 = smul.addr %s296, 64
        %s298 = scalar_lea.vmem [#allocation3], %s297
        // Predicated region
        $region70: #{_lambda_.14} parent=68 // pred_check
          %p299 = pneg %p56
        $region71: #{_lambda_.14} parent=68 // pred_check_branch
          %301 = sbr.rel (%p299) target = $region73
        $region72: #{_lambda_.14} parent=68 // pred_region
          _
        $region73: #{_lambda_.14} parent=68 // pred_fallthru
          _
        %s302 = sand.u32 %s43, 1
        %s303 = sand.u32 %s43, 1
        %s304 = smul.addr %s303, 64
        %s305 = scalar_lea.vmem [#allocation3], %s304
        %p306 = pneg %p56
        %p307 = pneg %p53
        %s308 = smul.u32 16, %s21
        %p309 = scmp.lt.s32.totalorder %s308, 79
        %s310 = scalar_select %p309, %s308, 79
        %p311 = scmp.lt.s32.totalorder %s20, 0
        %s312 = scalar_select %p311, %s20, 0
        %s313 = sadd.s32 %s312, %s310
        %s314 = smul.addr %s313, 4
        %s315 = scalar_lea.vmem %s1, %s314
        %p316 = pneg %p84
        %p317 = pneg %p81
        %p318 = scmp.lt.s32.totalorder %s20, 0
        %s319 = scalar_select %p318, %s20, 0
        %s320 = scalar_lea.vmem %s2, %s319
        %p321 = pneg %p110
        %p322 = pneg %p107
        %p323 = pneg %p138
        %p324 = pneg %p135
        %s325 = smul.u32 16, %s19
        %p326 = scmp.lt.s32.totalorder %s325, 15
        %s327 = scalar_select %p326, %s325, 15
        %p328 = scmp.lt.s32.totalorder %s20, 0
        %s329 = scalar_select %p328, %s20, 0
        %s330 = sadd.s32 %s329, %s327
        %s331 = smul.addr %s330, 4
        %s332 = scalar_lea.vmem %s3, %s331
        %s333 = smul.u32 16, %s19
        %s334 = smul.u32 16, %s21
        %p335 = scmp.lt.s32.totalorder %s334, 79
        %s336 = scalar_select %p335, %s334, 79
        %p337 = scmp.lt.s32.totalorder %s20, 0
        %s338 = scalar_select %p337, %s20, 0
        %s339 = sadd.s32 %s338, %s336
        %s340 = smul.addr %s339, 4
        %s341 = scalar_lea.vmem %s1, %s340
        %s342 = smul.u32 16, %s21
        %p343 = scmp.lt.s32.totalorder %s20, 0
        %s344 = scalar_select %p343, %s20, 0
        %s345 = scalar_lea.vmem %s2, %s344
        %s346 = smul.u32 16, %s19
        %p347 = scmp.lt.s32.totalorder %s346, 15
        %s348 = scalar_select %p347, %s346, 15
        %p349 = scmp.lt.s32.totalorder %s20, 0
        %s350 = scalar_select %p349, %s20, 0
        %s351 = sadd.s32 %s350, %s348
        %s352 = smul.addr %s351, 4
        %s353 = scalar_lea.vmem %s3, %s352
        %s354 = smul.u32 16, %s19
        %p356 = scmp.eq.s32.totalorder %s21, 0
        // Predicated region
        $region74: #{_lambda_.14} parent=68 // pred_check
          %p357 = pneg %p356
        $region75: #{_lambda_.14} parent=68 // pred_check_branch
          %359 = sbr.rel (%p357) target = $region77
        $region76: #{_lambda_.14} parent=68 // pred_region
          %360 = vst [vmem:[#allocation2] sm:$0xff] 0.0
          %361 = vst [vmem:[#allocation2 + $0x8] sm:$0xff] 0.0
          %362 = vst [vmem:[#allocation2 + $0x10] sm:$0xff] 0.0
          %363 = vst [vmem:[#allocation2 + $0x18] sm:$0xff] 0.0
          %364 = vst [vmem:[#allocation2 + $0x20] sm:$0xff] 0.0
          %365 = vst [vmem:[#allocation2 + $0x28] sm:$0xff] 0.0
          %366 = vst [vmem:[#allocation2 + $0x30] sm:$0xff] 0.0
          %367 = vst [vmem:[#allocation2 + $0x38] sm:$0xff] 0.0
          %368 = vst [vmem:[#allocation2 + $0x40] sm:$0xff] 0.0
          %369 = vst [vmem:[#allocation2 + $0x48] sm:$0xff] 0.0
          %370 = vst [vmem:[#allocation2 + $0x50] sm:$0xff] 0.0
          %371 = vst [vmem:[#allocation2 + $0x58] sm:$0xff] 0.0
          %372 = vst [vmem:[#allocation2 + $0x60] sm:$0xff] 0.0
          %373 = vst [vmem:[#allocation2 + $0x68] sm:$0xff] 0.0
          %374 = vst [vmem:[#allocation2 + $0x70] sm:$0xff] 0.0
          %375 = vst [vmem:[#allocation2 + $0x78] sm:$0xff] 0.0
        $region77: #{_lambda_.14} parent=68 // pred_fallthru
          _
        %v376 = vld [vmem:[#allocation2] sm:$0xff]
        %v377 = vld [vmem:[#allocation2 + $0x8] sm:$0xff]
        %v378 = vld [vmem:[#allocation2 + $0x10] sm:$0xff]
        %v379 = vld [vmem:[#allocation2 + $0x18] sm:$0xff]
        %v380 = vld [vmem:[#allocation2 + $0x20] sm:$0xff]
        %v381 = vld [vmem:[#allocation2 + $0x28] sm:$0xff]
        %v382 = vld [vmem:[#allocation2 + $0x30] sm:$0xff]
        %v383 = vld [vmem:[#allocation2 + $0x38] sm:$0xff]
        %v384 = vld [vmem:[#allocation2 + $0x40] sm:$0xff]
        %v385 = vld [vmem:[#allocation2 + $0x48] sm:$0xff]
        %v386 = vld [vmem:[#allocation2 + $0x50] sm:$0xff]
        %v387 = vld [vmem:[#allocation2 + $0x58] sm:$0xff]
        %v388 = vld [vmem:[#allocation2 + $0x60] sm:$0xff]
        %v389 = vld [vmem:[#allocation2 + $0x68] sm:$0xff]
        %v390 = vld [vmem:[#allocation2 + $0x70] sm:$0xff]
        %v391 = vld [vmem:[#allocation2 + $0x78] sm:$0xff]
        %v392 = vld [vmem:[%s298] sm:$0xf]
        %v393 = vld [vmem:[%s298 + $0x4] sm:$0xf]
        %v394 = vld [vmem:[%s298 + $0x8] sm:$0xf]
        %v395 = vld [vmem:[%s298 + $0xc] sm:$0xf]
        %v396 = vld [vmem:[%s298 + $0x10] sm:$0xf]
        %v397 = vld [vmem:[%s298 + $0x14] sm:$0xf]
        %v398 = vld [vmem:[%s298 + $0x18] sm:$0xf]
        %v399 = vld [vmem:[%s298 + $0x1c] sm:$0xf]
        %v400 = vld [vmem:[%s298 + $0x20] sm:$0xf]
        %v401 = vld [vmem:[%s298 + $0x24] sm:$0xf]
        %v402 = vld [vmem:[%s298 + $0x28] sm:$0xf]
        %v403 = vld [vmem:[%s298 + $0x2c] sm:$0xf]
        %v404 = vld [vmem:[%s298 + $0x30] sm:$0xf]
        %v405 = vld [vmem:[%s298 + $0x34] sm:$0xf]
        %v406 = vld [vmem:[%s298 + $0x38] sm:$0xf]
        %v407 = vld [vmem:[%s298 + $0x3c] sm:$0xf]
        %v408 = vld [vmem:[%s341] sm:$0xf]
        %v409 = vld [vmem:[%s341 + $0x4] sm:$0xf]
        %v410 = vld [vmem:[%s341 + $0x8] sm:$0xf]
        %v411 = vld [vmem:[%s341 + $0xc] sm:$0xf]
        %v412 = vld [vmem:[%s341 + $0x10] sm:$0xf]
        %v413 = vld [vmem:[%s341 + $0x14] sm:$0xf]
        %v414 = vld [vmem:[%s341 + $0x18] sm:$0xf]
        %v415 = vld [vmem:[%s341 + $0x1c] sm:$0xf]
        %v416 = vld [vmem:[%s341 + $0x20] sm:$0xf]
        %v417 = vld [vmem:[%s341 + $0x24] sm:$0xf]
        %v418 = vld [vmem:[%s341 + $0x28] sm:$0xf]
        %v419 = vld [vmem:[%s341 + $0x2c] sm:$0xf]
        %v420 = vld [vmem:[%s341 + $0x30] sm:$0xf]
        %v421 = vld [vmem:[%s341 + $0x34] sm:$0xf]
        %v422 = vld [vmem:[%s341 + $0x38] sm:$0xf]
        %v423 = vld [vmem:[%s341 + $0x3c] sm:$0xf]
        %v440 = vunpack.c.l.b16 %v392
        %v441 = vunpack.c.l.b16 %v393
        %v442 = vunpack.c.l.b16 %v394
        %v443 = vunpack.c.l.b16 %v395
        %v444 = vunpack.c.l.b16 %v396
        %v445 = vunpack.c.l.b16 %v397
        %v446 = vunpack.c.l.b16 %v398
        %v447 = vunpack.c.l.b16 %v399
        %v448 = vunpack.c.l.b16 %v400
        %v449 = vunpack.c.l.b16 %v401
        %v450 = vunpack.c.l.b16 %v402
        %v451 = vunpack.c.l.b16 %v403
        %v452 = vunpack.c.l.b16 %v404
        %v453 = vunpack.c.l.b16 %v405
        %v454 = vunpack.c.l.b16 %v406
        %v455 = vunpack.c.l.b16 %v407
        %v456 = vpack.c.b16 %v441, %v440
        %v457 = vpack.c.b16 %v443, %v442
        %v458 = vpack.c.b16 %v445, %v444
        %v459 = vpack.c.b16 %v447, %v446
        %v460 = vpack.c.b16 %v449, %v448
        %v461 = vpack.c.b16 %v451, %v450
        %v462 = vpack.c.b16 %v453, %v452
        %v463 = vpack.c.b16 %v455, %v454
        %v488 = vunpack.c.l.b16 %v408
        %v489 = vunpack.c.l.b16 %v409
        %v490 = vunpack.c.l.b16 %v410
        %v491 = vunpack.c.l.b16 %v411
        %v492 = vunpack.c.l.b16 %v412
        %v493 = vunpack.c.l.b16 %v413
        %v494 = vunpack.c.l.b16 %v414
        %v495 = vunpack.c.l.b16 %v415
        %v496 = vunpack.c.l.b16 %v416
        %v497 = vunpack.c.l.b16 %v417
        %v498 = vunpack.c.l.b16 %v418
        %v499 = vunpack.c.l.b16 %v419
        %v500 = vunpack.c.l.b16 %v420
        %v501 = vunpack.c.l.b16 %v421
        %v502 = vunpack.c.l.b16 %v422
        %v503 = vunpack.c.l.b16 %v423
        %v504 = vpack.c.b16 %v489, %v488
        %v505 = vpack.c.b16 %v491, %v490
        %v506 = vpack.c.b16 %v493, %v492
        %v507 = vpack.c.b16 %v495, %v494
        %v508 = vpack.c.b16 %v497, %v496
        %v509 = vpack.c.b16 %v499, %v498
        %v510 = vpack.c.b16 %v501, %v500
        %v511 = vpack.c.b16 %v503, %v502
        %520 = vmatprep.subr.bf16.mxu0 0
        %521 = vmatpush1.bf16.msra.mxu0 %v511
        %522 = vmatprep.subr.bf16.mxu0 0
        %523 = vmatpush1.bf16.msra.mxu0 %v510
        %524 = vmatprep.subr.bf16.mxu0 0
        %525 = vmatpush1.bf16.msra.mxu0 %v509
        %526 = vmatprep.subr.bf16.mxu0 0
        %527 = vmatpush1.bf16.msra.mxu0 %v508
        %528 = vmatprep.subr.bf16.mxu0 0
        %529 = vmatpush1.bf16.msra.mxu0 %v507
        %530 = vmatprep.subr.bf16.mxu0 0
        %531 = vmatpush1.bf16.msra.mxu0 %v506
        %532 = vmatprep.subr.bf16.mxu0 0
        %533 = vmatpush1.bf16.msra.mxu0 %v505
        %534 = vmatprep.subr.bf16.mxu0 0
        %535 = vmatpush1.bf16.msra.mxu0 %v504
        %536 = vmatprep.subr.bf16.mxu0 0
        %537 = vmatpush2.bf16.msra.mxu0 0
        %538 = vmatprep.subr.bf16.mxu0 0
        %539 = vmatpush2.bf16.msra.mxu0 0
        %540 = vmatprep.subr.bf16.mxu0 0
        %541 = vmatpush2.bf16.msra.mxu0 0
        %542 = vmatprep.subr.bf16.mxu0 0
        %543 = vmatpush2.bf16.msra.mxu0 0
        %544 = vmatprep.subr.bf16.mxu0 0
        %545 = vmatpush2.bf16.msra.mxu0 0
        %546 = vmatprep.subr.bf16.mxu0 0
        %547 = vmatpush2.bf16.msra.mxu0 0
        %548 = vmatprep.subr.bf16.mxu0 0
        %549 = vmatpush2.bf16.msra.mxu0 0
        %550 = vmatprep.subr.bf16.mxu0 0
        %551 = vmatpush2.bf16.msra.mxu0 0
        %552 = vmatprep.mubr.bf16.mxu0 0
        %553 = vmatmul.mubr.bf16.gmra.mxu0 %v456
        %v554 = vpop.f32.mrf.mxu0
        %v555 = vadd.f32 0.0, %v554
        %v556 = vpop.f32.mrf.mxu0
        %v557 = vpop.f32.mrf.mxu0
        %v558 = vadd.f32 0.0, %v557
        %v559 = vpop.f32.mrf.mxu0
        %560 = vmatprep.mubr.bf16.mxu0 0
        %561 = vmatmul.mubr.bf16.gmra.mxu0 %v457
        %v562 = vpop.f32.mrf.mxu0
        %v563 = vadd.f32 0.0, %v562
        %v564 = vpop.f32.mrf.mxu0
        %v565 = vpop.f32.mrf.mxu0
        %v566 = vadd.f32 0.0, %v565
        %v567 = vpop.f32.mrf.mxu0
        %568 = vmatprep.mubr.bf16.mxu0 0
        %569 = vmatmul.mubr.bf16.gmra.mxu0 %v458
        %v570 = vpop.f32.mrf.mxu0
        %v571 = vadd.f32 0.0, %v570
        %v572 = vpop.f32.mrf.mxu0
        %v573 = vpop.f32.mrf.mxu0
        %v574 = vadd.f32 0.0, %v573
        %v575 = vpop.f32.mrf.mxu0
        %576 = vmatprep.mubr.bf16.mxu0 0
        %577 = vmatmul.mubr.bf16.gmra.mxu0 %v459
        %v578 = vpop.f32.mrf.mxu0
        %v579 = vadd.f32 0.0, %v578
        %v580 = vpop.f32.mrf.mxu0
        %v581 = vpop.f32.mrf.mxu0
        %v582 = vadd.f32 0.0, %v581
        %v583 = vpop.f32.mrf.mxu0
        %584 = vmatprep.mubr.bf16.mxu0 0
        %585 = vmatmul.mubr.bf16.gmra.mxu0 %v460
        %v586 = vpop.f32.mrf.mxu0
        %v587 = vadd.f32 0.0, %v586
        %v588 = vpop.f32.mrf.mxu0
        %v589 = vpop.f32.mrf.mxu0
        %v590 = vadd.f32 0.0, %v589
        %v591 = vpop.f32.mrf.mxu0
        %592 = vmatprep.mubr.bf16.mxu0 0
        %593 = vmatmul.mubr.bf16.gmra.mxu0 %v461
        %v594 = vpop.f32.mrf.mxu0
        %v595 = vadd.f32 0.0, %v594
        %v596 = vpop.f32.mrf.mxu0
        %v597 = vpop.f32.mrf.mxu0
        %v598 = vadd.f32 0.0, %v597
        %v599 = vpop.f32.mrf.mxu0
        %600 = vmatprep.mubr.bf16.mxu0 0
        %601 = vmatmul.mubr.bf16.gmra.mxu0 %v462
        %v602 = vpop.f32.mrf.mxu0
        %v603 = vadd.f32 0.0, %v602
        %v604 = vpop.f32.mrf.mxu0
        %v605 = vpop.f32.mrf.mxu0
        %v606 = vadd.f32 0.0, %v605
        %v607 = vpop.f32.mrf.mxu0
        %608 = vmatprep.mubr.bf16.mxu0 0
        %609 = vmatmul.mubr.bf16.gmra.mxu0 %v463
        %v610 = vpop.f32.mrf.mxu0
        %v611 = vadd.f32 0.0, %v610
        %v612 = vpop.f32.mrf.mxu0
        %v613 = vpop.f32.mrf.mxu0
        %v614 = vadd.f32 0.0, %v613
        %v615 = vpop.f32.mrf.mxu0
        %616 = vdwg.mxu0
        %v617 = vadd.f32 %v376, %v555
        %v618 = vadd.f32 %v377, %v558
        %v619 = vadd.f32 %v378, %v563
        %v620 = vadd.f32 %v379, %v566
        %v621 = vadd.f32 %v380, %v571
        %v622 = vadd.f32 %v381, %v574
        %v623 = vadd.f32 %v382, %v579
        %v624 = vadd.f32 %v383, %v582
        %v625 = vadd.f32 %v384, %v587
        %v626 = vadd.f32 %v385, %v590
        %v627 = vadd.f32 %v386, %v595
        %v628 = vadd.f32 %v387, %v598
        %v629 = vadd.f32 %v388, %v603
        %v630 = vadd.f32 %v389, %v606
        %v631 = vadd.f32 %v390, %v611
        %v632 = vadd.f32 %v391, %v614
        %633 = vst [vmem:[#allocation2] sm:$0xff] %v617
        %634 = vst [vmem:[#allocation2 + $0x8] sm:$0xff] %v618
        %635 = vst [vmem:[#allocation2 + $0x10] sm:$0xff] %v619
        %636 = vst [vmem:[#allocation2 + $0x18] sm:$0xff] %v620
        %637 = vst [vmem:[#allocation2 + $0x20] sm:$0xff] %v621
        %638 = vst [vmem:[#allocation2 + $0x28] sm:$0xff] %v622
        %639 = vst [vmem:[#allocation2 + $0x30] sm:$0xff] %v623
        %640 = vst [vmem:[#allocation2 + $0x38] sm:$0xff] %v624
        %641 = vst [vmem:[#allocation2 + $0x40] sm:$0xff] %v625
        %642 = vst [vmem:[#allocation2 + $0x48] sm:$0xff] %v626
        %643 = vst [vmem:[#allocation2 + $0x50] sm:$0xff] %v627
        %644 = vst [vmem:[#allocation2 + $0x58] sm:$0xff] %v628
        %645 = vst [vmem:[#allocation2 + $0x60] sm:$0xff] %v629
        %646 = vst [vmem:[#allocation2 + $0x68] sm:$0xff] %v630
        %647 = vst [vmem:[#allocation2 + $0x70] sm:$0xff] %v631
        %648 = vst [vmem:[#allocation2 + $0x78] sm:$0xff] %v632
        %p649 = scmp.eq.s32.totalorder %s21, 4
        // Predicated region
        $region78: #{_lambda_.14} parent=68 // pred_check
          %p650 = pneg %p649
        $region79: #{_lambda_.14} parent=68 // pred_check_branch
          %652 = sbr.rel (%p650) target = $region81
        $region80: #{_lambda_.14} parent=68 // pred_region
          %v653 = vld [vmem:[#allocation2] sm:$0xff]
          %v654 = vld [vmem:[#allocation2 + $0x8] sm:$0xff]
          %v655 = vld [vmem:[#allocation2 + $0x10] sm:$0xff]
          %v656 = vld [vmem:[#allocation2 + $0x18] sm:$0xff]
          %v657 = vld [vmem:[#allocation2 + $0x20] sm:$0xff]
          %v658 = vld [vmem:[#allocation2 + $0x28] sm:$0xff]
          %v659 = vld [vmem:[#allocation2 + $0x30] sm:$0xff]
          %v660 = vld [vmem:[#allocation2 + $0x38] sm:$0xff]
          %v661 = vld [vmem:[#allocation2 + $0x40] sm:$0xff]
          %v662 = vld [vmem:[#allocation2 + $0x48] sm:$0xff]
          %v663 = vld [vmem:[#allocation2 + $0x50] sm:$0xff]
          %v664 = vld [vmem:[#allocation2 + $0x58] sm:$0xff]
          %v665 = vld [vmem:[#allocation2 + $0x60] sm:$0xff]
          %v666 = vld [vmem:[#allocation2 + $0x68] sm:$0xff]
          %v667 = vld [vmem:[#allocation2 + $0x70] sm:$0xff]
          %v668 = vld [vmem:[#allocation2 + $0x78] sm:$0xff]
          %v669 = vld [vmem:[%s345] sm:$0x1]
          %v671 = vlaneseq
          %v672 = vshrl.u32 %v671, 7
          %v673 = vsub.s32 0, %v672
          %v674 = vrot.slane %v669, %v673
          %v676 = vadd.f32 %v653, %v674
          %v677 = vadd.f32 %v654, %v674
          %v678 = vadd.f32 %v655, %v674
          %v679 = vadd.f32 %v656, %v674
          %v680 = vadd.f32 %v657, %v674
          %v681 = vadd.f32 %v658, %v674
          %v682 = vadd.f32 %v659, %v674
          %v683 = vadd.f32 %v660, %v674
          %v684 = vadd.f32 %v661, %v674
          %v685 = vadd.f32 %v662, %v674
          %v686 = vadd.f32 %v663, %v674
          %v687 = vadd.f32 %v664, %v674
          %v688 = vadd.f32 %v665, %v674
          %v689 = vadd.f32 %v666, %v674
          %v690 = vadd.f32 %v667, %v674
          %v691 = vadd.f32 %v668, %v674
          %v692 = vmax.f32 %v676, 0.0
          %v693 = vmax.f32 %v677, 0.0
          %v694 = vmax.f32 %v678, 0.0
          %v695 = vmax.f32 %v679, 0.0
          %v696 = vmax.f32 %v680, 0.0
          %v697 = vmax.f32 %v681, 0.0
          %v698 = vmax.f32 %v682, 0.0
          %v699 = vmax.f32 %v683, 0.0
          %v700 = vmax.f32 %v684, 0.0
          %v701 = vmax.f32 %v685, 0.0
          %v702 = vmax.f32 %v686, 0.0
          %v703 = vmax.f32 %v687, 0.0
          %v704 = vmax.f32 %v688, 0.0
          %v705 = vmax.f32 %v689, 0.0
          %v706 = vmax.f32 %v690, 0.0
          %v707 = vmax.f32 %v691, 0.0
          %v708 = vpack.c.bf16 %v693, %v692
          %v709 = vpack.c.bf16 %v695, %v694
          %v710 = vpack.c.bf16 %v697, %v696
          %v711 = vpack.c.bf16 %v699, %v698
          %v712 = vpack.c.bf16 %v701, %v700
          %v713 = vpack.c.bf16 %v703, %v702
          %v714 = vpack.c.bf16 %v705, %v704
          %v715 = vpack.c.bf16 %v707, %v706
          %v724 = vunpack.c.l.b16 %v708
          %v725 = vunpack.c.h.b16 %v708
          %v726 = vunpack.c.l.b16 %v709
          %v727 = vunpack.c.h.b16 %v709
          %v728 = vunpack.c.l.b16 %v710
          %v729 = vunpack.c.h.b16 %v710
          %v730 = vunpack.c.l.b16 %v711
          %v731 = vunpack.c.h.b16 %v711
          %v732 = vunpack.c.l.b16 %v712
          %v733 = vunpack.c.h.b16 %v712
          %v734 = vunpack.c.l.b16 %v713
          %v735 = vunpack.c.h.b16 %v713
          %v736 = vunpack.c.l.b16 %v714
          %v737 = vunpack.c.h.b16 %v714
          %v738 = vunpack.c.l.b16 %v715
          %v739 = vunpack.c.h.b16 %v715
          %v740 = vpack.c.b16 %v724, %v724
          %v741 = vpack.c.b16 %v725, %v725
          %v742 = vpack.c.b16 %v726, %v726
          %v743 = vpack.c.b16 %v727, %v727
          %v744 = vpack.c.b16 %v728, %v728
          %v745 = vpack.c.b16 %v729, %v729
          %v746 = vpack.c.b16 %v730, %v730
          %v747 = vpack.c.b16 %v731, %v731
          %v748 = vpack.c.b16 %v732, %v732
          %v749 = vpack.c.b16 %v733, %v733
          %v750 = vpack.c.b16 %v734, %v734
          %v751 = vpack.c.b16 %v735, %v735
          %v752 = vpack.c.b16 %v736, %v736
          %v753 = vpack.c.b16 %v737, %v737
          %v754 = vpack.c.b16 %v738, %v738
          %v755 = vpack.c.b16 %v739, %v739
          %772 = vst [vmem:[%s353] sm:$0xf] %v740
          %773 = vst [vmem:[%s353 + $0x4] sm:$0xf] %v741
          %774 = vst [vmem:[%s353 + $0x8] sm:$0xf] %v742
          %775 = vst [vmem:[%s353 + $0xc] sm:$0xf] %v743
          %776 = vst [vmem:[%s353 + $0x10] sm:$0xf] %v744
          %777 = vst [vmem:[%s353 + $0x14] sm:$0xf] %v745
          %778 = vst [vmem:[%s353 + $0x18] sm:$0xf] %v746
          %779 = vst [vmem:[%s353 + $0x1c] sm:$0xf] %v747
          %780 = vst [vmem:[%s353 + $0x20] sm:$0xf] %v748
          %781 = vst [vmem:[%s353 + $0x24] sm:$0xf] %v749
          %782 = vst [vmem:[%s353 + $0x28] sm:$0xf] %v750
          %783 = vst [vmem:[%s353 + $0x2c] sm:$0xf] %v751
          %784 = vst [vmem:[%s353 + $0x30] sm:$0xf] %v752
          %785 = vst [vmem:[%s353 + $0x34] sm:$0xf] %v753
          %786 = vst [vmem:[%s353 + $0x38] sm:$0xf] %v754
          %787 = vst [vmem:[%s353 + $0x3c] sm:$0xf] %v755
        $region81: #{_lambda_.14} parent=68 // pred_fallthru
          _
        %s788 = smul.u32 16, %s19
        %p789 = scmp.lt.s32.totalorder %s788, 15
        %s790 = scalar_select %p789, %s788, 15
        %p791 = scmp.lt.s32.totalorder %s20, 0
        %s792 = scalar_select %p791, %s20, 0
        %s793 = sadd.s32 %s792, %s790
        %s794 = smul.addr %s793, 4
        %s795 = scalar_lea.vmem %s3, %s794
        // Predicated region
        $region82: #{_lambda_.14} parent=68 // pred_check
          %p796 = pneg %p135
        $region83: #{_lambda_.14} parent=68 // pred_check_branch
          %798 = sbr.rel (%p796) target = $region85
        $region84: #{_lambda_.14} parent=68 // pred_region
          %s799 = smul.u32 16, %s19
        $region85: #{_lambda_.14} parent=68 // pred_fallthru
          _
        // Predicated region
        $region86: #{_lambda_.14} parent=68 // pred_check
          %p800 = pneg %p135
        $region87: #{_lambda_.14} parent=68 // pred_check_branch
          %802 = sbr.rel (%p800) target = $region89
        $region88: #{_lambda_.14} parent=68 // pred_region
          %s803 = smul.u32 16, %s19
          %p804 = scmp.lt.s32.totalorder %s803, 15
          %s805 = scalar_select %p804, %s803, 15
          %p806 = scmp.lt.s32.totalorder %s20, 0
          %s807 = scalar_select %p806, %s20, 0
          %s808 = sadd.s32 %s807, %s805
          %s809 = smul.addr %s808, 4
          %s810 = scalar_lea.vmem %s3, %s809
        $region89: #{_lambda_.14} parent=68 // pred_fallthru
          _
      $region69: #{_lambda_.14} parent=5 // pred_fallthru
        _
      %p811 = scmp.le.s32.totalorder 2, %s9
      // Predicated region
      $region90: #{_lambda_.14} parent=5 // pred_check
        %p812 = pneg %p811
      $region91: #{_lambda_.14} parent=5 // pred_check_branch
        %814 = sbr.rel (%p812) target = $region93
      $region92: #{_lambda_.14} parent=5 // pred_region
        %s815 = ssub.s32 %s9, 2
      $region93: #{_lambda_.14} parent=5 // pred_fallthru
        _
    $region6: #{_lambda_.14} parent=1 // loop_footer
      %s13 = sadd.s32 1, %s9
    $region7: #{_lambda_.14} parent=1 // loop_footer_branch
      %8 = sbr.rel target = $region3
    $region8: #{_lambda_.14} parent=1 // loop_exit
      _

// kernel: _lambda_.16
$region0: #{_lambda_.16}
  #allocation0 [shape = 'u32[]', space=smem, size = 0x4, offset = 0x4, fixed_abs, tag = 'smem constant byte address 0x4 - core index']
  #allocation1 [shape = 'u32[144,128]{1,0:T(1,128)}', space=vmem, size = 0x12000, scoped, tag = 'internal scratch']
  #allocation2 [shape = 'f32[32,128]{1,0:T(8,128)}', space=vmem, size = 0x4000, scoped, tag = 'scratch operand']
  %s0 = inlined_call_operand.vmem [shape: bf16[32,640], index: 0, kind: input, shape index: {}]
  %s1 = inlined_call_operand.vmem [shape: bf16[640,128], index: 1, kind: input, shape index: {}]
  %s2 = inlined_call_operand.vmem [shape: f32[1,128], index: 2, kind: input, shape index: {}]
  %s3 = inlined_call_operand.vmem [shape: bf16[32,128], index: 3, kind: output, shape index: {}]
  %s4 = sld [smem:[#allocation0]]
  $region94: #{_lambda_.16} parent=0
    _
  %s6 = ssub.s32 1, %s4
  %s7 = scalar_select 0, %s6, %s4
  $region1: #{_lambda_.16} parent=0
    #allocation3 [shape = 'u8[16384]{0}', space=vmem, size = 0x4000, scoped, tag = 'input window, operand 0']
    loop: start=0, step=1, limit=7
    $region2: #{_lambda_.16} parent=1 // loop_pre_header
      _
    $region3: #{_lambda_.16} parent=1 // loop_header
      %s9 = sphi 0, %s13
      %p10 = scmp.ge.s32.totalorder %s9, 7
      %s16 = sphi 0, %s35
      %s17 = sphi 0, %s31
      %s18 = sphi 0, %s27
      %s19 = sphi 0, %s16
      %s20 = sphi 0, %s17
      %s21 = sphi 0, %s18
      %s22 = sphi 0, %s19
      %s23 = sphi 0, %s20
      %s24 = sphi 0, %s21
      %s40 = sphi 0, %s42
      %s43 = sphi 0, %s40
      %s44 = sphi 0, %s43
      %s60 = sphi 0, %s44
      %s68 = sphi 0, %s70
      %s71 = sphi 0, %s68
      %s72 = sphi 0, %s71
      %s88 = sphi 0, %s72
      %s94 = sphi 0, %s96
      %s97 = sphi 0, %s94
      %s98 = sphi 0, %s97
      %s114 = sphi 0, %s98
      %s122 = sphi 0, %s124
      %s125 = sphi 0, %s122
      %s126 = sphi 0, %s125
      %s142 = sphi 0, %s126
    $region4: #{_lambda_.16} parent=1 // loop_header_branch
      %12 = sbr.rel (%p10) target = $region8
    $region5: #{_lambda_.16} parent=1 // loop_body
      %s14 = ssub.s32 %s9, 1
      %s15 = ssub.s32 %s9, 2
      %s25 = sadd.s32 1, %s18
      %p26 = scmp.ge.s32.totalorder %s25, 5
      %s27 = scalar_select %p26, 0, %s25
      %s28 = sadd.s32 1, %s17
      %s29 = scalar_select %p26, %s28, %s17
      %p30 = scmp.ge.s32.totalorder %s29, 1
      %s31 = scalar_select %p30, 0, %s29
      %s32 = sadd.s32 1, %s16
      %s33 = scalar_select %p30, %s32, %s16
      %p34 = scmp.ge.s32.totalorder %s33, 1
      %s35 = scalar_select %p34, 0, %s33
      %s36 = ssub.s32 %s16, %s35
      %s37 = ssub.s32 %s18, %s27
      %s38 = sor.u32 %s36, %s37
      %p39 = scmp.eq.s32.totalorder %s38, 0
      %s41 = sadd.s32 %s40, 1
      %s42 = scalar_select %p39, %s40, %s41
      %p45 = pneg %p39
      %p46 = scmp.eq.s32.totalorder %s9, 4
      %p47 = por %p45, %p46
      %p48 = scmp.ne.s32.totalorder %s40, %s43
      %p49 = scmp.eq.s32.totalorder %s9, 0
      %p50 = por %p48, %p49
      %p51 = scmp.ne.s32.totalorder %s40, %s43
      %p52 = scmp.eq.s32.totalorder %s14, 4
      %p53 = por %p51, %p52
      %p54 = scmp.ne.s32.totalorder %s43, %s44
      %p55 = scmp.eq.s32.totalorder %s14, 0
      %p56 = por %p54, %p55
      %p57 = scmp.ne.s32.totalorder %s43, %s44
      %p58 = scmp.eq.s32.totalorder %s15, 4
      %p59 = por %p57, %p58
      %p61 = scmp.ne.s32.totalorder %s44, %s60
      %p62 = scmp.eq.s32.totalorder %s15, 0
      %p63 = por %p61, %p62
      %s64 = ssub.s32 %s18, %s27
      %s65 = ssub.s32 %s17, %s31
      %s66 = sor.u32 %s64, %s65
      %p67 = scmp.eq.s32.totalorder %s66, 0
      %s69 = sadd.s32 %s68, 1
      %s70 = scalar_select %p67, %s68, %s69
      %p73 = pneg %p67
      %p74 = scmp.eq.s32.totalorder %s9, 4
      %p75 = por %p73, %p74
      %p76 = scmp.ne.s32.totalorder %s68, %s71
      %p77 = scmp.eq.s32.totalorder %s9, 0
      %p78 = por %p76, %p77
      %p79 = scmp.ne.s32.totalorder %s68, %s71
      %p80 = scmp.eq.s32.totalorder %s14, 4
      %p81 = por %p79, %p80
      %p82 = scmp.ne.s32.totalorder %s71, %s72
      %p83 = scmp.eq.s32.totalorder %s14, 0
      %p84 = por %p82, %p83
      %p85 = scmp.ne.s32.totalorder %s71, %s72
      %p86 = scmp.eq.s32.totalorder %s15, 4
      %p87 = por %p85, %p86
      %p89 = scmp.ne.s32.totalorder %s72, %s88
      %p90 = scmp.eq.s32.totalorder %s15, 0
      %p91 = por %p89, %p90
      %s92 = ssub.s32 %s17, %s31
      %p93 = scmp.eq.s32.totalorder %s92, 0
      %s95 = sadd.s32 %s94, 1
      %s96 = scalar_select %p93, %s94, %s95
      %p99 = pneg %p93
      %p100 = scmp.eq.s32.totalorder %s9, 4
      %p101 = por %p99, %p100
      %p102 = scmp.ne.s32.totalorder %s94, %s97
      %p103 = scmp.eq.s32.totalorder %s9, 0
      %p104 = por %p102, %p103
      %p105 = scmp.ne.s32.totalorder %s94, %s97
      %p106 = scmp.eq.s32.totalorder %s14, 4
      %p107 = por %p105, %p106
      %p108 = scmp.ne.s32.totalorder %s97, %s98
      %p109 = scmp.eq.s32.totalorder %s14, 0
      %p110 = por %p108, %p109
      %p111 = scmp.ne.s32.totalorder %s97, %s98
      %p112 = scmp.eq.s32.totalorder %s15, 4
      %p113 = por %p111, %p112
      %p115 = scmp.ne.s32.totalorder %s98, %s114
      %p116 = scmp.eq.s32.totalorder %s15, 0
      %p117 = por %p115, %p116
      %s118 = ssub.s32 %s16, %s35
      %s119 = ssub.s32 %s17, %s31
      %s120 = sor.u32 %s118, %s119
      %p121 = scmp.eq.s32.totalorder %s120, 0
      %s123 = sadd.s32 %s122, 1
      %s124 = scalar_select %p121, %s122, %s123
      %p127 = pneg %p121
      %p128 = scmp.eq.s32.totalorder %s9, 4
      %p129 = por %p127, %p128
      %p130 = scmp.ne.s32.totalorder %s122, %s125
      %p131 = scmp.eq.s32.totalorder %s9, 0
      %p132 = por %p130, %p131
      %p133 = scmp.ne.s32.totalorder %s122, %s125
      %p134 = scmp.eq.s32.totalorder %s14, 4
      %p135 = por %p133, %p134
      %p136 = scmp.ne.s32.totalorder %s125, %s126
      %p137 = scmp.eq.s32.totalorder %s14, 0
      %p138 = por %p136, %p137
      %p139 = scmp.ne.s32.totalorder %s125, %s126
      %p140 = scmp.eq.s32.totalorder %s15, 4
      %p141 = por %p139, %p140
      %p143 = scmp.ne.s32.totalorder %s126, %s142
      %p144 = scmp.eq.s32.totalorder %s15, 0
      %p145 = por %p143, %p144
      %p146 = scmp.le.s32.totalorder 1, %s9
      %p147 = scmp.lt.s32.totalorder %s9, 6
      %p148 = pnand %p146, %p147
      %p149 = pneg %p148
      // Predicated region
      $region9: #{_lambda_.16} parent=5 // pred_check
        _
      $region10: #{_lambda_.16} parent=5 // pred_check_branch
        %151 = sbr.rel (%p148) target = $region12
      $region11: #{_lambda_.16} parent=5 // pred_region
        %s152 = ssub.s32 %s9, 1
        // Predicated region
        $region13: #{_lambda_.16} parent=11 // pred_check
          %p153 = pneg %p110
        $region14: #{_lambda_.16} parent=11 // pred_check_branch
          %155 = sbr.rel (%p153) target = $region16
        $region15: #{_lambda_.16} parent=11 // pred_region
          %p156 = scmp.lt.s32.totalorder %s20, 0
          %s157 = scalar_select %p156, %s20, 0
          %s158 = scalar_lea.vmem %s2, %s157
        $region16: #{_lambda_.16} parent=11 // pred_fallthru
          _
      $region12: #{_lambda_.16} parent=5 // pred_fallthru
        _
      %p159 = scmp.lt.s32.totalorder %s9, 5
      // Predicated region
      $region17: #{_lambda_.16} parent=5 // pred_check
        %p160 = pneg %p159
      $region18: #{_lambda_.16} parent=5 // pred_check_branch
        %162 = sbr.rel (%p160) target = $region20
      $region19: #{_lambda_.16} parent=5 // pred_region
        // Predicated region
        $region21: #{_lambda_.16} parent=19 // pred_check
          %p163 = pneg %p50
        $region22: #{_lambda_.16} parent=19 // pred_check_branch
          %165 = sbr.rel (%p163) target = $region24
        $region23: #{_lambda_.16} parent=19 // pred_region
          %s166 = sand.u32 %s40, 1
          %s167 = sand.u32 %s40, 1
          %s168 = smul.addr %s167, 16
          %s169 = scalar_lea.vmem [#allocation3], %s168
          %s170 = smul.u32 4, %s16
          %s171 = smul.addr %s170, 5
          %s172 = sadd.s32 %s18, %s171
          %s173 = smul.addr %s172, 4
          %s174 = scalar_lea.vmem %s0, %s173
          // Predicated region
          $region25: #{_lambda_.16} parent=23 // pred_check
            _
          $region26: #{_lambda_.16} parent=23 // pred_check_branch
            %176 = sbr.rel (0) target = $region28
          $region27: #{_lambda_.16} parent=23 // pred_region
            // Predicated region
            $region29: #{_lambda_.16} parent=27 // pred_check
              _
            $region30: #{_lambda_.16} parent=27 // pred_check_branch
              %178 = sbr.rel target = $region32
            $region31: #{_lambda_.16} parent=27 // pred_region
              // Predicated region
              $region44: #{_lambda_.16} parent=31 // pred_check
                _
              $region45: #{_lambda_.16} parent=31 // pred_check_branch
                %200 = sbr.rel (0) target = $region47
              $region46: #{_lambda_.16} parent=31 // pred_region
                loop: start=0, step=1, limit=1
                $region48: #{_lambda_.16} parent=46 // loop_pre_header
                  _
                $region49: #{_lambda_.16} parent=46 // loop_header
                  %s202 = sphi 0, %s206
                  %p203 = scmp.ge.s32.totalorder %s202, 1
                  %s207 = sphi %s174, %s174
                  %s208 = sphi %s169, %s169
                $region50: #{_lambda_.16} parent=46 // loop_header_branch
                  %205 = sbr.rel (%p203) target = $region54
                $region51: #{_lambda_.16} parent=46 // loop_body
                  _
                $region52: #{_lambda_.16} parent=46 // loop_footer
                  %s206 = sadd.s32 1, %s202
                $region53: #{_lambda_.16} parent=46 // loop_footer_branch
                  %201 = sbr.rel target = $region49
                $region54: #{_lambda_.16} parent=46 // loop_exit
                  _
                %s210 = ssub.s32 16, 1
                loop: start=0, step=1, limit=1
                $region55: #{_lambda_.16} parent=46 // loop_pre_header
                  _
                $region56: #{_lambda_.16} parent=46 // loop_header
                  %s212 = sphi 0, %s216
                  %p213 = scmp.ge.s32.totalorder %s212, 1
                  %s217 = sphi %s174, %s174
                  %s218 = sphi %s169, %s169
                $region57: #{_lambda_.16} parent=46 // loop_header_branch
                  %215 = sbr.rel (%p213) target = $region61
                $region58: #{_lambda_.16} parent=46 // loop_body
                  %v219 = vld [vmem:[%s217] sm:%s210]
                  %220 = vst [vmem:[%s218] sm:%s210] %v219
                  %v221 = vld [vmem:[%s217 + $0x14] sm:%s210]
                  %222 = vst [vmem:[%s218 + $0x4] sm:%s210] %v221
                  %v223 = vld [vmem:[%s217 + $0x28] sm:%s210]
                  %224 = vst [vmem:[%s218 + $0x8] sm:%s210] %v223
                  %v225 = vld [vmem:[%s217 + $0x3c] sm:%s210]
                  %226 = vst [vmem:[%s218 + $0xc] sm:%s210] %v225
                $region59: #{_lambda_.16} parent=46 // loop_footer
                  %s216 = sadd.s32 1, %s212
                $region60: #{_lambda_.16} parent=46 // loop_footer_branch
                  %211 = sbr.rel target = $region56
                $region61: #{_lambda_.16} parent=46 // loop_exit
                  _
              $region47: #{_lambda_.16} parent=31 // pred_fallthru
                _
            $region32: #{_lambda_.16} parent=27 // pred_fallthru
              _
            // Predicated region
            $region33: #{_lambda_.16} parent=27 // pred_check
              _
            $region34: #{_lambda_.16} parent=27 // pred_check_branch
              %180 = sbr.rel (0) target = $region36
            $region35: #{_lambda_.16} parent=27 // pred_region
              %s182 = ssub.s32 16, 1
              loop: start=0, step=1, limit=1
              $region37: #{_lambda_.16} parent=35 // loop_pre_header
                _
              $region38: #{_lambda_.16} parent=35 // loop_header
                %s184 = sphi 0, %s188
                %p185 = scmp.ge.s32.totalorder %s184, 1
                %s189 = sphi %s174, %s174
                %s190 = sphi %s169, %s169
              $region39: #{_lambda_.16} parent=35 // loop_header_branch
                %187 = sbr.rel (%p185) target = $region43
              $region40: #{_lambda_.16} parent=35 // loop_body
                %v191 = vld [vmem:[%s189] sm:%s182]
                %192 = vst [vmem:[%s190] sm:%s182] %v191
                %v193 = vld [vmem:[%s189 + $0x14] sm:%s182]
                %194 = vst [vmem:[%s190 + $0x4] sm:%s182] %v193
                %v195 = vld [vmem:[%s189 + $0x28] sm:%s182]
                %196 = vst [vmem:[%s190 + $0x8] sm:%s182] %v195
                %v197 = vld [vmem:[%s189 + $0x3c] sm:%s182]
                %198 = vst [vmem:[%s190 + $0xc] sm:%s182] %v197
              $region41: #{_lambda_.16} parent=35 // loop_footer
                %s188 = sadd.s32 1, %s184
              $region42: #{_lambda_.16} parent=35 // loop_footer_branch
                %183 = sbr.rel target = $region38
              $region43: #{_lambda_.16} parent=35 // loop_exit
                _
            $region36: #{_lambda_.16} parent=27 // pred_fallthru
              _
          $region28: #{_lambda_.16} parent=23 // pred_fallthru
            _
          %227 = vnop
        $region24: #{_lambda_.16} parent=19 // pred_fallthru
          _
        // Predicated region
        $region62: #{_lambda_.16} parent=19 // pred_check
          %p228 = pneg %p78
        $region63: #{_lambda_.16} parent=19 // pred_check_branch
          %230 = sbr.rel (%p228) target = $region65
        $region64: #{_lambda_.16} parent=19 // pred_region
          %s231 = smul.u32 16, %s18
          %p232 = scmp.lt.s32.totalorder %s231, 79
          %s233 = scalar_select %p232, %s231, 79
          %p234 = scmp.lt.s32.totalorder %s17, 0
          %s235 = scalar_select %p234, %s17, 0
          %s236 = sadd.s32 %s235, %s233
          %s237 = smul.addr %s236, 4
          %s238 = scalar_lea.vmem %s1, %s237
          %s239 = smul.u32 16, %s18
        $region65: #{_lambda_.16} parent=19 // pred_fallthru
          _
      $region20: #{_lambda_.16} parent=5 // pred_fallthru
        _
      %p240 = scmp.le.s32.totalorder 1, %s9
      %p241 = scmp.lt.s32.totalorder %s9, 6
      %p242 = pnand %p240, %p241
      %p243 = pneg %p242
      // Predicated region
      $region66: #{_lambda_.16} parent=5 // pred_check
        _
      $region67: #{_lambda_.16} parent=5 // pred_check_branch
        %245 = sbr.rel (%p242) target = $region69
      $region68: #{_lambda_.16} parent=5 // pred_region
        %s246 = ssub.s32 %s9, 1
        %s247 = sand.u32 %s43, 1
        %s248 = sand.u32 %s43, 1
        %s249 = smul.addr %s248, 16
        %s250 = scalar_lea.vmem [#allocation3], %s249
        // Predicated region
        $region70: #{_lambda_.16} parent=68 // pred_check
          %p251 = pneg %p56
        $region71: #{_lambda_.16} parent=68 // pred_check_branch
          %253 = sbr.rel (%p251) target = $region73
        $region72: #{_lambda_.16} parent=68 // pred_region
          _
        $region73: #{_lambda_.16} parent=68 // pred_fallthru
          _
        %s254 = sand.u32 %s43, 1
        %s255 = sand.u32 %s43, 1
        %s256 = smul.addr %s255, 16
        %s257 = scalar_lea.vmem [#allocation3], %s256
        %p258 = pneg %p56
        %p259 = pneg %p53
        %s260 = smul.u32 16, %s21
        %p261 = scmp.lt.s32.totalorder %s260, 79
        %s262 = scalar_select %p261, %s260, 79
        %p263 = scmp.lt.s32.totalorder %s20, 0
        %s264 = scalar_select %p263, %s20, 0
        %s265 = sadd.s32 %s264, %s262
        %s266 = smul.addr %s265, 4
        %s267 = scalar_lea.vmem %s1, %s266
        %p268 = pneg %p84
        %p269 = pneg %p81
        %p270 = scmp.lt.s32.totalorder %s20, 0
        %s271 = scalar_select %p270, %s20, 0
        %s272 = scalar_lea.vmem %s2, %s271
        %p273 = pneg %p110
        %p274 = pneg %p107
        %p275 = pneg %p138
        %p276 = pneg %p135
        %s277 = smul.u32 4, %s19
        %p278 = scmp.lt.s32.totalorder %s277, 3
        %s279 = scalar_select %p278, %s277, 3
        %p280 = scmp.lt.s32.totalorder %s20, 0
        %s281 = scalar_select %p280, %s20, 0
        %s282 = sadd.s32 %s281, %s279
        %s283 = smul.addr %s282, 4
        %s284 = scalar_lea.vmem %s3, %s283
        %s285 = smul.u32 4, %s19
        %s286 = smul.u32 16, %s21
        %p287 = scmp.lt.s32.totalorder %s286, 79
        %s288 = scalar_select %p287, %s286, 79
        %p289 = scmp.lt.s32.totalorder %s20, 0
        %s290 = scalar_select %p289, %s20, 0
        %s291 = sadd.s32 %s290, %s288
        %s292 = smul.addr %s291, 4
        %s293 = scalar_lea.vmem %s1, %s292
        %s294 = smul.u32 16, %s21
        %p295 = scmp.lt.s32.totalorder %s20, 0
        %s296 = scalar_select %p295, %s20, 0
        %s297 = scalar_lea.vmem %s2, %s296
        %s298 = smul.u32 4, %s19
        %p299 = scmp.lt.s32.totalorder %s298, 3
        %s300 = scalar_select %p299, %s298, 3
        %p301 = scmp.lt.s32.totalorder %s20, 0
        %s302 = scalar_select %p301, %s20, 0
        %s303 = sadd.s32 %s302, %s300
        %s304 = smul.addr %s303, 4
        %s305 = scalar_lea.vmem %s3, %s304
        %s306 = smul.u32 4, %s19
        %p308 = scmp.eq.s32.totalorder %s21, 0
        // Predicated region
        $region74: #{_lambda_.16} parent=68 // pred_check
          %p309 = pneg %p308
        $region75: #{_lambda_.16} parent=68 // pred_check_branch
          %311 = sbr.rel (%p309) target = $region77
        $region76: #{_lambda_.16} parent=68 // pred_region
          %312 = vst [vmem:[#allocation2] sm:$0xff] 0.0
          %313 = vst [vmem:[#allocation2 + $0x8] sm:$0xff] 0.0
          %314 = vst [vmem:[#allocation2 + $0x10] sm:$0xff] 0.0
          %315 = vst [vmem:[#allocation2 + $0x18] sm:$0xff] 0.0
        $region77: #{_lambda_.16} parent=68 // pred_fallthru
          _
        %v316 = vld [vmem:[#allocation2] sm:$0xff]
        %v317 = vld [vmem:[#allocation2 + $0x8] sm:$0xff]
        %v318 = vld [vmem:[#allocation2 + $0x10] sm:$0xff]
        %v319 = vld [vmem:[#allocation2 + $0x18] sm:$0xff]
        %v320 = vld [vmem:[%s250] sm:$0xf]
        %v321 = vld [vmem:[%s250 + $0x4] sm:$0xf]
        %v322 = vld [vmem:[%s250 + $0x8] sm:$0xf]
        %v323 = vld [vmem:[%s250 + $0xc] sm:$0xf]
        %v324 = vld [vmem:[%s293] sm:$0xf]
        %v325 = vld [vmem:[%s293 + $0x4] sm:$0xf]
        %v326 = vld [vmem:[%s293 + $0x8] sm:$0xf]
        %v327 = vld [vmem:[%s293 + $0xc] sm:$0xf]
        %v328 = vld [vmem:[%s293 + $0x10] sm:$0xf]
        %v329 = vld [vmem:[%s293 + $0x14] sm:$0xf]
        %v330 = vld [vmem:[%s293 + $0x18] sm:$0xf]
        %v331 = vld [vmem:[%s293 + $0x1c] sm:$0xf]
        %v332 = vld [vmem:[%s293 + $0x20] sm:$0xf]
        %v333 = vld [vmem:[%s293 + $0x24] sm:$0xf]
        %v334 = vld [vmem:[%s293 + $0x28] sm:$0xf]
        %v335 = vld [vmem:[%s293 + $0x2c] sm:$0xf]
        %v336 = vld [vmem:[%s293 + $0x30] sm:$0xf]
        %v337 = vld [vmem:[%s293 + $0x34] sm:$0xf]
        %v338 = vld [vmem:[%s293 + $0x38] sm:$0xf]
        %v339 = vld [vmem:[%s293 + $0x3c] sm:$0xf]
        %v344 = vunpack.c.l.b16 %v320
        %v345 = vunpack.c.l.b16 %v321
        %v346 = vunpack.c.l.b16 %v322
        %v347 = vunpack.c.l.b16 %v323
        %v348 = vpack.c.b16 %v345, %v344
        %v349 = vpack.c.b16 %v347, %v346
        %v368 = vunpack.c.l.b16 %v324
        %v369 = vunpack.c.l.b16 %v325
        %v370 = vunpack.c.l.b16 %v326
        %v371 = vunpack.c.l.b16 %v327
        %v372 = vunpack.c.l.b16 %v328
        %v373 = vunpack.c.l.b16 %v329
        %v374 = vunpack.c.l.b16 %v330
        %v375 = vunpack.c.l.b16 %v331
        %v376 = vunpack.c.l.b16 %v332
        %v377 = vunpack.c.l.b16 %v333
        %v378 = vunpack.c.l.b16 %v334
        %v379 = vunpack.c.l.b16 %v335
        %v380 = vunpack.c.l.b16 %v336
        %v381 = vunpack.c.l.b16 %v337
        %v382 = vunpack.c.l.b16 %v338
        %v383 = vunpack.c.l.b16 %v339
        %v384 = vpack.c.b16 %v369, %v368
        %v385 = vpack.c.b16 %v371, %v370
        %v386 = vpack.c.b16 %v373, %v372
        %v387 = vpack.c.b16 %v375, %v374
        %v388 = vpack.c.b16 %v377, %v376
        %v389 = vpack.c.b16 %v379, %v378
        %v390 = vpack.c.b16 %v381, %v380
        %v391 = vpack.c.b16 %v383, %v382
        %400 = vmatprep.subr.bf16.mxu0 0
        %401 = vmatpush1.bf16.msra.mxu0 %v391
        %402 = vmatprep.subr.bf16.mxu0 0
        %403 = vmatpush1.bf16.msra.mxu0 %v390
        %404 = vmatprep.subr.bf16.mxu0 0
        %405 = vmatpush1.bf16.msra.mxu0 %v389
        %406 = vmatprep.subr.bf16.mxu0 0
        %407 = vmatpush1.bf16.msra.mxu0 %v388
        %408 = vmatprep.subr.bf16.mxu0 0
        %409 = vmatpush1.bf16.msra.mxu0 %v387
        %410 = vmatprep.subr.bf16.mxu0 0
        %411 = vmatpush1.bf16.msra.mxu0 %v386
        %412 = vmatprep.subr.bf16.mxu0 0
        %413 = vmatpush1.bf16.msra.mxu0 %v385
        %414 = vmatprep.subr.bf16.mxu0 0
        %415 = vmatpush1.bf16.msra.mxu0 %v384
        %416 = vmatprep.subr.bf16.mxu0 0
        %417 = vmatpush2.bf16.msra.mxu0 0
        %418 = vmatprep.subr.bf16.mxu0 0
        %419 = vmatpush2.bf16.msra.mxu0 0
        %420 = vmatprep.subr.bf16.mxu0 0
        %421 = vmatpush2.bf16.msra.mxu0 0
        %422 = vmatprep.subr.bf16.mxu0 0
        %423 = vmatpush2.bf16.msra.mxu0 0
        %424 = vmatprep.subr.bf16.mxu0 0
        %425 = vmatpush2.bf16.msra.mxu0 0
        %426 = vmatprep.subr.bf16.mxu0 0
        %427 = vmatpush2.bf16.msra.mxu0 0
        %428 = vmatprep.subr.bf16.mxu0 0
        %429 = vmatpush2.bf16.msra.mxu0 0
        %430 = vmatprep.subr.bf16.mxu0 0
        %431 = vmatpush2.bf16.msra.mxu0 0
        %432 = vmatprep.mubr.bf16.mxu0 0
        %433 = vmatmul.mubr.bf16.gmra.mxu0 %v348
        %v434 = vpop.f32.mrf.mxu0
        %v435 = vadd.f32 0.0, %v434
        %v436 = vpop.f32.mrf.mxu0
        %v437 = vpop.f32.mrf.mxu0
        %v438 = vadd.f32 0.0, %v437
        %v439 = vpop.f32.mrf.mxu0
        %440 = vmatprep.mubr.bf16.mxu0 0
        %441 = vmatmul.mubr.bf16.gmra.mxu0 %v349
        %v442 = vpop.f32.mrf.mxu0
        %v443 = vadd.f32 0.0, %v442
        %v444 = vpop.f32.mrf.mxu0
        %v445 = vpop.f32.mrf.mxu0
        %v446 = vadd.f32 0.0, %v445
        %v447 = vpop.f32.mrf.mxu0
        %448 = vdwg.mxu0
        %v449 = vadd.f32 %v316, %v435
        %v450 = vadd.f32 %v317, %v438
        %v451 = vadd.f32 %v318, %v443
        %v452 = vadd.f32 %v319, %v446
        %453 = vst [vmem:[#allocation2] sm:$0xff] %v449
        %454 = vst [vmem:[#allocation2 + $0x8] sm:$0xff] %v450
        %455 = vst [vmem:[#allocation2 + $0x10] sm:$0xff] %v451
        %456 = vst [vmem:[#allocation2 + $0x18] sm:$0xff] %v452
        %p457 = scmp.eq.s32.totalorder %s21, 4
        // Predicated region
        $region78: #{_lambda_.16} parent=68 // pred_check
          %p458 = pneg %p457
        $region79: #{_lambda_.16} parent=68 // pred_check_branch
          %460 = sbr.rel (%p458) target = $region81
        $region80: #{_lambda_.16} parent=68 // pred_region
          %v461 = vld [vmem:[#allocation2] sm:$0xff]
          %v462 = vld [vmem:[#allocation2 + $0x8] sm:$0xff]
          %v463 = vld [vmem:[#allocation2 + $0x10] sm:$0xff]
          %v464 = vld [vmem:[#allocation2 + $0x18] sm:$0xff]
          %v465 = vld [vmem:[%s297] sm:$0x1]
          %v467 = vlaneseq
          %v468 = vshrl.u32 %v467, 7
          %v469 = vsub.s32 0, %v468
          %v470 = vrot.slane %v465, %v469
          %v472 = vadd.f32 %v461, %v470
          %v473 = vadd.f32 %v462, %v470
          %v474 = vadd.f32 %v463, %v470
          %v475 = vadd.f32 %v464, %v470
          %v476 = vmax.f32 %v472, 0.0
          %v477 = vmax.f32 %v473, 0.0
          %v478 = vmax.f32 %v474, 0.0
          %v479 = vmax.f32 %v475, 0.0
          %v480 = vpack.c.bf16 %v477, %v476
          %v481 = vpack.c.bf16 %v479, %v478
          %v484 = vunpack.c.l.b16 %v480
          %v485 = vunpack.c.h.b16 %v480
          %v486 = vunpack.c.l.b16 %v481
          %v487 = vunpack.c.h.b16 %v481
          %v488 = vpack.c.b16 %v484, %v484
          %v489 = vpack.c.b16 %v485, %v485
          %v490 = vpack.c.b16 %v486, %v486
          %v491 = vpack.c.b16 %v487, %v487
          %496 = vst [vmem:[%s305] sm:$0xf] %v488
          %497 = vst [vmem:[%s305 + $0x4] sm:$0xf] %v489
          %498 = vst [vmem:[%s305 + $0x8] sm:$0xf] %v490
          %499 = vst [vmem:[%s305 + $0xc] sm:$0xf] %v491
        $region81: #{_lambda_.16} parent=68 // pred_fallthru
          _
        %s500 = smul.u32 4, %s19
        %p501 = scmp.lt.s32.totalorder %s500, 3
        %s502 = scalar_select %p501, %s500, 3
        %p503 = scmp.lt.s32.totalorder %s20, 0
        %s504 = scalar_select %p503, %s20, 0
        %s505 = sadd.s32 %s504, %s502
        %s506 = smul.addr %s505, 4
        %s507 = scalar_lea.vmem %s3, %s506
        // Predicated region
        $region82: #{_lambda_.16} parent=68 // pred_check
          %p508 = pneg %p135
        $region83: #{_lambda_.16} parent=68 // pred_check_branch
          %510 = sbr.rel (%p508) target = $region85
        $region84: #{_lambda_.16} parent=68 // pred_region
          %s511 = smul.u32 4, %s19
        $region85: #{_lambda_.16} parent=68 // pred_fallthru
          _
        // Predicated region
        $region86: #{_lambda_.16} parent=68 // pred_check
          %p512 = pneg %p135
        $region87: #{_lambda_.16} parent=68 // pred_check_branch
          %514 = sbr.rel (%p512) target = $region89
        $region88: #{_lambda_.16} parent=68 // pred_region
          %s515 = smul.u32 4, %s19
          %p516 = scmp.lt.s32.totalorder %s515, 3
          %s517 = scalar_select %p516, %s515, 3
          %p518 = scmp.lt.s32.totalorder %s20, 0
          %s519 = scalar_select %p518, %s20, 0
          %s520 = sadd.s32 %s519, %s517
          %s521 = smul.addr %s520, 4
          %s522 = scalar_lea.vmem %s3, %s521
        $region89: #{_lambda_.16} parent=68 // pred_fallthru
          _
      $region69: #{_lambda_.16} parent=5 // pred_fallthru
        _
      %p523 = scmp.le.s32.totalorder 2, %s9
      // Predicated region
      $region90: #{_lambda_.16} parent=5 // pred_check
        %p524 = pneg %p523
      $region91: #{_lambda_.16} parent=5 // pred_check_branch
        %526 = sbr.rel (%p524) target = $region93
      $region92: #{_lambda_.16} parent=5 // pred_region
        %s527 = ssub.s32 %s9, 2
      $region93: #{_lambda_.16} parent=5 // pred_fallthru
        _
    $region6: #{_lambda_.16} parent=1 // loop_footer
      %s13 = sadd.s32 1, %s9
    $region7: #{_lambda_.16} parent=1 // loop_footer_branch
      %8 = sbr.rel target = $region3
    $region8: #{_lambda_.16} parent=1 // loop_exit
      _

// kernel: _lambda_.17
$region0: #{_lambda_.17}
  #allocation0 [shape = 'u32[]', space=smem, size = 0x4, offset = 0x4, fixed_abs, tag = 'smem constant byte address 0x4 - core index']
  #allocation1 [shape = 'u32[144,128]{1,0:T(1,128)}', space=vmem, size = 0x12000, scoped, tag = 'internal scratch']
  #allocation2 [shape = 'f32[32,128]{1,0:T(8,128)}', space=vmem, size = 0x4000, scoped, tag = 'scratch operand']
  %s0 = inlined_call_operand.vmem [shape: bf16[32,128], index: 0, kind: input, shape index: {}]
  %s1 = inlined_call_operand.vmem [shape: bf16[128,128], index: 1, kind: input, shape index: {}]
  %s2 = inlined_call_operand.vmem [shape: f32[1,128], index: 2, kind: input, shape index: {}]
  %s3 = inlined_call_operand.vmem [shape: bf16[32,128], index: 3, kind: output, shape index: {}]
  %s4 = sld [smem:[#allocation0]]
  $region30: #{_lambda_.17} parent=0
    _
  %s6 = ssub.s32 1, %s4
  %s7 = scalar_select 0, %s6, %s4
  // Predicated region
  $region2: #{_lambda_.17} parent=0 // pred_check
    _
  $region3: #{_lambda_.17} parent=0 // pred_check_branch
    %9 = sbr.rel (0) target = $region5
  $region4: #{_lambda_.17} parent=0 // pred_region
    _
  $region5: #{_lambda_.17} parent=0 // pred_fallthru
    _
  // Predicated region
  $region6: #{_lambda_.17} parent=0 // pred_check
    _
  $region7: #{_lambda_.17} parent=0 // pred_check_branch
    %11 = sbr.rel (0) target = $region9
  $region8: #{_lambda_.17} parent=0 // pred_region
    _
  $region9: #{_lambda_.17} parent=0 // pred_fallthru
    _
  // Predicated region
  $region10: #{_lambda_.17} parent=0 // pred_check
    _
  $region11: #{_lambda_.17} parent=0 // pred_check_branch
    %13 = sbr.rel (0) target = $region13
  $region12: #{_lambda_.17} parent=0 // pred_region
    _
  $region13: #{_lambda_.17} parent=0 // pred_fallthru
    _
  %p15 = scmp.eq.s32.totalorder 0, 0
  // Predicated region
  $region14: #{_lambda_.17} parent=0 // pred_check
    %p16 = pneg %p15
  $region15: #{_lambda_.17} parent=0 // pred_check_branch
    %18 = sbr.rel (%p16) target = $region17
  $region16: #{_lambda_.17} parent=0 // pred_region
    %19 = vst [vmem:[#allocation2] sm:$0xff] 0.0
    %20 = vst [vmem:[#allocation2 + $0x8] sm:$0xff] 0.0
    %21 = vst [vmem:[#allocation2 + $0x10] sm:$0xff] 0.0
    %22 = vst [vmem:[#allocation2 + $0x18] sm:$0xff] 0.0
  $region17: #{_lambda_.17} parent=0 // pred_fallthru
    _
  %v23 = vld [vmem:[#allocation2] sm:$0xff]
  %v24 = vld [vmem:[#allocation2 + $0x8] sm:$0xff]
  %v25 = vld [vmem:[#allocation2 + $0x10] sm:$0xff]
  %v26 = vld [vmem:[#allocation2 + $0x18] sm:$0xff]
  %v27 = vld [vmem:[%s0] sm:$0xf]
  %v28 = vld [vmem:[%s0 + $0x4] sm:$0xf]
  %v29 = vld [vmem:[%s0 + $0x8] sm:$0xf]
  %v30 = vld [vmem:[%s0 + $0xc] sm:$0xf]
  %v31 = vld [vmem:[%s1] sm:$0xf]
  %v32 = vld [vmem:[%s1 + $0x4] sm:$0xf]
  %v33 = vld [vmem:[%s1 + $0x8] sm:$0xf]
  %v34 = vld [vmem:[%s1 + $0xc] sm:$0xf]
  %v35 = vld [vmem:[%s1 + $0x10] sm:$0xf]
  %v36 = vld [vmem:[%s1 + $0x14] sm:$0xf]
  %v37 = vld [vmem:[%s1 + $0x18] sm:$0xf]
  %v38 = vld [vmem:[%s1 + $0x1c] sm:$0xf]
  %v39 = vld [vmem:[%s1 + $0x20] sm:$0xf]
  %v40 = vld [vmem:[%s1 + $0x24] sm:$0xf]
  %v41 = vld [vmem:[%s1 + $0x28] sm:$0xf]
  %v42 = vld [vmem:[%s1 + $0x2c] sm:$0xf]
  %v43 = vld [vmem:[%s1 + $0x30] sm:$0xf]
  %v44 = vld [vmem:[%s1 + $0x34] sm:$0xf]
  %v45 = vld [vmem:[%s1 + $0x38] sm:$0xf]
  %v46 = vld [vmem:[%s1 + $0x3c] sm:$0xf]
  %v51 = vunpack.c.l.b16 %v27
  %v52 = vunpack.c.l.b16 %v28
  %v53 = vunpack.c.l.b16 %v29
  %v54 = vunpack.c.l.b16 %v30
  %v55 = vpack.c.b16 %v52, %v51
  %v56 = vpack.c.b16 %v54, %v53
  %v75 = vunpack.c.l.b16 %v31
  %v76 = vunpack.c.l.b16 %v32
  %v77 = vunpack.c.l.b16 %v33
  %v78 = vunpack.c.l.b16 %v34
  %v79 = vunpack.c.l.b16 %v35
  %v80 = vunpack.c.l.b16 %v36
  %v81 = vunpack.c.l.b16 %v37
  %v82 = vunpack.c.l.b16 %v38
  %v83 = vunpack.c.l.b16 %v39
  %v84 = vunpack.c.l.b16 %v40
  %v85 = vunpack.c.l.b16 %v41
  %v86 = vunpack.c.l.b16 %v42
  %v87 = vunpack.c.l.b16 %v43
  %v88 = vunpack.c.l.b16 %v44
  %v89 = vunpack.c.l.b16 %v45
  %v90 = vunpack.c.l.b16 %v46
  %v91 = vpack.c.b16 %v76, %v75
  %v92 = vpack.c.b16 %v78, %v77
  %v93 = vpack.c.b16 %v80, %v79
  %v94 = vpack.c.b16 %v82, %v81
  %v95 = vpack.c.b16 %v84, %v83
  %v96 = vpack.c.b16 %v86, %v85
  %v97 = vpack.c.b16 %v88, %v87
  %v98 = vpack.c.b16 %v90, %v89
  %107 = vmatprep.subr.bf16.mxu0 0
  %108 = vmatpush1.bf16.msra.mxu0 %v98
  %109 = vmatprep.subr.bf16.mxu0 0
  %110 = vmatpush1.bf16.msra.mxu0 %v97
  %111 = vmatprep.subr.bf16.mxu0 0
  %112 = vmatpush1.bf16.msra.mxu0 %v96
  %113 = vmatprep.subr.bf16.mxu0 0
  %114 = vmatpush1.bf16.msra.mxu0 %v95
  %115 = vmatprep.subr.bf16.mxu0 0
  %116 = vmatpush1.bf16.msra.mxu0 %v94
  %117 = vmatprep.subr.bf16.mxu0 0
  %118 = vmatpush1.bf16.msra.mxu0 %v93
  %119 = vmatprep.subr.bf16.mxu0 0
  %120 = vmatpush1.bf16.msra.mxu0 %v92
  %121 = vmatprep.subr.bf16.mxu0 0
  %122 = vmatpush1.bf16.msra.mxu0 %v91
  %123 = vmatprep.subr.bf16.mxu0 0
  %124 = vmatpush2.bf16.msra.mxu0 0
  %125 = vmatprep.subr.bf16.mxu0 0
  %126 = vmatpush2.bf16.msra.mxu0 0
  %127 = vmatprep.subr.bf16.mxu0 0
  %128 = vmatpush2.bf16.msra.mxu0 0
  %129 = vmatprep.subr.bf16.mxu0 0
  %130 = vmatpush2.bf16.msra.mxu0 0
  %131 = vmatprep.subr.bf16.mxu0 0
  %132 = vmatpush2.bf16.msra.mxu0 0
  %133 = vmatprep.subr.bf16.mxu0 0
  %134 = vmatpush2.bf16.msra.mxu0 0
  %135 = vmatprep.subr.bf16.mxu0 0
  %136 = vmatpush2.bf16.msra.mxu0 0
  %137 = vmatprep.subr.bf16.mxu0 0
  %138 = vmatpush2.bf16.msra.mxu0 0
  %139 = vmatprep.mubr.bf16.mxu0 0
  %140 = vmatmul.mubr.bf16.gmra.mxu0 %v55
  %v141 = vpop.f32.mrf.mxu0
  %v142 = vadd.f32 0.0, %v141
  %v143 = vpop.f32.mrf.mxu0
  %v144 = vpop.f32.mrf.mxu0
  %v145 = vadd.f32 0.0, %v144
  %v146 = vpop.f32.mrf.mxu0
  %147 = vmatprep.mubr.bf16.mxu0 0
  %148 = vmatmul.mubr.bf16.gmra.mxu0 %v56
  %v149 = vpop.f32.mrf.mxu0
  %v150 = vadd.f32 0.0, %v149
  %v151 = vpop.f32.mrf.mxu0
  %v152 = vpop.f32.mrf.mxu0
  %v153 = vadd.f32 0.0, %v152
  %v154 = vpop.f32.mrf.mxu0
  %155 = vdwg.mxu0
  %v156 = vadd.f32 %v23, %v142
  %v157 = vadd.f32 %v24, %v145
  %v158 = vadd.f32 %v25, %v150
  %v159 = vadd.f32 %v26, %v153
  %160 = vst [vmem:[#allocation2] sm:$0xff] %v156
  %161 = vst [vmem:[#allocation2 + $0x8] sm:$0xff] %v157
  %162 = vst [vmem:[#allocation2 + $0x10] sm:$0xff] %v158
  %163 = vst [vmem:[#allocation2 + $0x18] sm:$0xff] %v159
  // Predicated region
  $region18: #{_lambda_.17} parent=0 // pred_check
    %p164 = pneg %p15
  $region19: #{_lambda_.17} parent=0 // pred_check_branch
    %166 = sbr.rel (%p164) target = $region21
  $region20: #{_lambda_.17} parent=0 // pred_region
    %v167 = vld [vmem:[#allocation2] sm:$0xff]
    %v168 = vld [vmem:[#allocation2 + $0x8] sm:$0xff]
    %v169 = vld [vmem:[#allocation2 + $0x10] sm:$0xff]
    %v170 = vld [vmem:[#allocation2 + $0x18] sm:$0xff]
    %v171 = vld [vmem:[%s2] sm:$0x1]
    %v173 = vlaneseq
    %v174 = vshrl.u32 %v173, 7
    %v175 = vsub.s32 0, %v174
    %v176 = vrot.slane %v171, %v175
    %v178 = vadd.f32 %v167, %v176
    %v179 = vadd.f32 %v168, %v176
    %v180 = vadd.f32 %v169, %v176
    %v181 = vadd.f32 %v170, %v176
    %v182 = vpack.c.bf16 %v179, %v178
    %v183 = vpack.c.bf16 %v181, %v180
    %v186 = vunpack.c.l.b16 %v182
    %v187 = vunpack.c.h.b16 %v182
    %v188 = vunpack.c.l.b16 %v183
    %v189 = vunpack.c.h.b16 %v183
    %v190 = vpack.c.b16 %v186, %v186
    %v191 = vpack.c.b16 %v187, %v187
    %v192 = vpack.c.b16 %v188, %v188
    %v193 = vpack.c.b16 %v189, %v189
    %198 = vst [vmem:[%s3] sm:$0xf] %v190
    %199 = vst [vmem:[%s3 + $0x4] sm:$0xf] %v191
    %200 = vst [vmem:[%s3 + $0x8] sm:$0xf] %v192
    %201 = vst [vmem:[%s3 + $0xc] sm:$0xf] %v193
  $region21: #{_lambda_.17} parent=0 // pred_fallthru
    _
  // Predicated region
  $region22: #{_lambda_.17} parent=0 // pred_check
    _
  $region23: #{_lambda_.17} parent=0 // pred_check_branch
    %203 = sbr.rel (0) target = $region25
  $region24: #{_lambda_.17} parent=0 // pred_region
    _
  $region25: #{_lambda_.17} parent=0 // pred_fallthru
    _
  // Predicated region
  $region26: #{_lambda_.17} parent=0 // pred_check
    _
  $region27: #{_lambda_.17} parent=0 // pred_check_branch
    %205 = sbr.rel (0) target = $region29
  $region28: #{_lambda_.17} parent=0 // pred_region
    _
  $region29: #{_lambda_.17} parent=0 // pred_fallthru
    _

// kernel: _lambda_.18
$region0: #{_lambda_.18}
  #allocation0 [shape = 'u32[]', space=smem, size = 0x4, offset = 0x4, fixed_abs, tag = 'smem constant byte address 0x4 - core index']
  #allocation1 [shape = 'u32[144,128]{1,0:T(1,128)}', space=vmem, size = 0x12000, scoped, tag = 'internal scratch']
  #allocation2 [shape = 'f32[32,128]{1,0:T(8,128)}', space=vmem, size = 0x4000, scoped, tag = 'scratch operand']
  %s0 = inlined_call_operand.vmem [shape: bf16[32,1152], index: 0, kind: input, shape index: {}]
  %s1 = inlined_call_operand.vmem [shape: bf16[1152,128], index: 1, kind: input, shape index: {}]
  %s2 = inlined_call_operand.vmem [shape: f32[1,128], index: 2, kind: input, shape index: {}]
  %s3 = inlined_call_operand.vmem [shape: bf16[32,128], index: 3, kind: input, shape index: {}]
  %s4 = inlined_call_operand.vmem [shape: bf16[32,128], index: 4, kind: output, shape index: {}]
  %s5 = sld [smem:[#allocation0]]
  $region98: #{_lambda_.18} parent=0
    _
  %s7 = ssub.s32 1, %s5
  %s8 = scalar_select 0, %s7, %s5
  $region1: #{_lambda_.18} parent=0
    #allocation3 [shape = 'u8[16384]{0}', space=vmem, size = 0x4000, scoped, tag = 'input window, operand 0']
    loop: start=0, step=1, limit=11
    $region2: #{_lambda_.18} parent=1 // loop_pre_header
      _
    $region3: #{_lambda_.18} parent=1 // loop_header
      %s10 = sphi 0, %s14
      %p11 = scmp.ge.s32.totalorder %s10, 11
      %s17 = sphi 0, %s36
      %s18 = sphi 0, %s32
      %s19 = sphi 0, %s28
      %s20 = sphi 0, %s17
      %s21 = sphi 0, %s18
      %s22 = sphi 0, %s19
      %s23 = sphi 0, %s20
      %s24 = sphi 0, %s21
      %s25 = sphi 0, %s22
      %s41 = sphi 0, %s43
      %s44 = sphi 0, %s41
      %s45 = sphi 0, %s44
      %s61 = sphi 0, %s45
      %s69 = sphi 0, %s71
      %s72 = sphi 0, %s69
      %s73 = sphi 0, %s72
      %s89 = sphi 0, %s73
      %s95 = sphi 0, %s97
      %s98 = sphi 0, %s95
      %s99 = sphi 0, %s98
      %s115 = sphi 0, %s99
      %s123 = sphi 0, %s125
      %s126 = sphi 0, %s123
      %s127 = sphi 0, %s126
      %s143 = sphi 0, %s127
      %s151 = sphi 0, %s153
      %s154 = sphi 0, %s151
      %s155 = sphi 0, %s154
      %s171 = sphi 0, %s155
    $region4: #{_lambda_.18} parent=1 // loop_header_branch
      %13 = sbr.rel (%p11) target = $region8
    $region5: #{_lambda_.18} parent=1 // loop_body
      %s15 = ssub.s32 %s10, 1
      %s16 = ssub.s32 %s10, 2
      %s26 = sadd.s32 1, %s19
      %p27 = scmp.ge.s32.totalorder %s26, 9
      %s28 = scalar_select %p27, 0, %s26
      %s29 = sadd.s32 1, %s18
      %s30 = scalar_select %p27, %s29, %s18
      %p31 = scmp.ge.s32.totalorder %s30, 1
      %s32 = scalar_select %p31, 0, %s30
      %s33 = sadd.s32 1, %s17
      %s34 = scalar_select %p31, %s33, %s17
      %p35 = scmp.ge.s32.totalorder %s34, 1
      %s36 = scalar_select %p35, 0, %s34
      %s37 = ssub.s32 %s17, %s36
      %s38 = ssub.s32 %s19, %s28
      %s39 = sor.u32 %s37, %s38
      %p40 = scmp.eq.s32.totalorder %s39, 0
      %s42 = sadd.s32 %s41, 1
      %s43 = scalar_select %p40, %s41, %s42
      %p46 = pneg %p40
      %p47 = scmp.eq.s32.totalorder %s10, 8
      %p48 = por %p46, %p47
      %p49 = scmp.ne.s32.totalorder %s41, %s44
      %p50 = scmp.eq.s32.totalorder %s10, 0
      %p51 = por %p49, %p50
      %p52 = scmp.ne.s32.totalorder %s41, %s44
      %p53 = scmp.eq.s32.totalorder %s15, 8
      %p54 = por %p52, %p53
      %p55 = scmp.ne.s32.totalorder %s44, %s45
      %p56 = scmp.eq.s32.totalorder %s15, 0
      %p57 = por %p55, %p56
      %p58 = scmp.ne.s32.totalorder %s44, %s45
      %p59 = scmp.eq.s32.totalorder %s16, 8
      %p60 = por %p58, %p59
      %p62 = scmp.ne.s32.totalorder %s45, %s61
      %p63 = scmp.eq.s32.totalorder %s16, 0
      %p64 = por %p62, %p63
      %s65 = ssub.s32 %s19, %s28
      %s66 = ssub.s32 %s18, %s32
      %s67 = sor.u32 %s65, %s66
      %p68 = scmp.eq.s32.totalorder %s67, 0
      %s70 = sadd.s32 %s69, 1
      %s71 = scalar_select %p68, %s69, %s70
      %p74 = pneg %p68
      %p75 = scmp.eq.s32.totalorder %s10, 8
      %p76 = por %p74, %p75
      %p77 = scmp.ne.s32.totalorder %s69, %s72
      %p78 = scmp.eq.s32.totalorder %s10, 0
      %p79 = por %p77, %p78
      %p80 = scmp.ne.s32.totalorder %s69, %s72
      %p81 = scmp.eq.s32.totalorder %s15, 8
      %p82 = por %p80, %p81
      %p83 = scmp.ne.s32.totalorder %s72, %s73
      %p84 = scmp.eq.s32.totalorder %s15, 0
      %p85 = por %p83, %p84
      %p86 = scmp.ne.s32.totalorder %s72, %s73
      %p87 = scmp.eq.s32.totalorder %s16, 8
      %p88 = por %p86, %p87
      %p90 = scmp.ne.s32.totalorder %s73, %s89
      %p91 = scmp.eq.s32.totalorder %s16, 0
      %p92 = por %p90, %p91
      %s93 = ssub.s32 %s18, %s32
      %p94 = scmp.eq.s32.totalorder %s93, 0
      %s96 = sadd.s32 %s95, 1
      %s97 = scalar_select %p94, %s95, %s96
      %p100 = pneg %p94
      %p101 = scmp.eq.s32.totalorder %s10, 8
      %p102 = por %p100, %p101
      %p103 = scmp.ne.s32.totalorder %s95, %s98
      %p104 = scmp.eq.s32.totalorder %s10, 0
      %p105 = por %p103, %p104
      %p106 = scmp.ne.s32.totalorder %s95, %s98
      %p107 = scmp.eq.s32.totalorder %s15, 8
      %p108 = por %p106, %p107
      %p109 = scmp.ne.s32.totalorder %s98, %s99
      %p110 = scmp.eq.s32.totalorder %s15, 0
      %p111 = por %p109, %p110
      %p112 = scmp.ne.s32.totalorder %s98, %s99
      %p113 = scmp.eq.s32.totalorder %s16, 8
      %p114 = por %p112, %p113
      %p116 = scmp.ne.s32.totalorder %s99, %s115
      %p117 = scmp.eq.s32.totalorder %s16, 0
      %p118 = por %p116, %p117
      %s119 = ssub.s32 %s17, %s36
      %s120 = ssub.s32 %s18, %s32
      %s121 = sor.u32 %s119, %s120
      %p122 = scmp.eq.s32.totalorder %s121, 0
      %s124 = sadd.s32 %s123, 1
      %s125 = scalar_select %p122, %s123, %s124
      %p128 = pneg %p122
      %p129 = scmp.eq.s32.totalorder %s10, 8
      %p130 = por %p128, %p129
      %p131 = scmp.ne.s32.totalorder %s123, %s126
      %p132 = scmp.eq.s32.totalorder %s10, 0
      %p133 = por %p131, %p132
      %p134 = scmp.ne.s32.totalorder %s123, %s126
      %p135 = scmp.eq.s32.totalorder %s15, 8
      %p136 = por %p134, %p135
      %p137 = scmp.ne.s32.totalorder %s126, %s127
      %p138 = scmp.eq.s32.totalorder %s15, 0
      %p139 = por %p137, %p138
      %p140 = scmp.ne.s32.totalorder %s126, %s127
      %p141 = scmp.eq.s32.totalorder %s16, 8
      %p142 = por %p140, %p141
      %p144 = scmp.ne.s32.totalorder %s127, %s143
      %p145 = scmp.eq.s32.totalorder %s16, 0
      %p146 = por %p144, %p145
      %s147 = ssub.s32 %s17, %s36
      %s148 = ssub.s32 %s18, %s32
      %s149 = sor.u32 %s147, %s148
      %p150 = scmp.eq.s32.totalorder %s149, 0
      %s152 = sadd.s32 %s151, 1
      %s153 = scalar_select %p150, %s151, %s152
      %p156 = pneg %p150
      %p157 = scmp.eq.s32.totalorder %s10, 8
      %p158 = por %p156, %p157
      %p159 = scmp.ne.s32.totalorder %s151, %s154
      %p160 = scmp.eq.s32.totalorder %s10, 0
      %p161 = por %p159, %p160
      %p162 = scmp.ne.s32.totalorder %s151, %s154
      %p163 = scmp.eq.s32.totalorder %s15, 8
      %p164 = por %p162, %p163
      %p165 = scmp.ne.s32.totalorder %s154, %s155
      %p166 = scmp.eq.s32.totalorder %s15, 0
      %p167 = por %p165, %p166
      %p168 = scmp.ne.s32.totalorder %s154, %s155
      %p169 = scmp.eq.s32.totalorder %s16, 8
      %p170 = por %p168, %p169
      %p172 = scmp.ne.s32.totalorder %s155, %s171
      %p173 = scmp.eq.s32.totalorder %s16, 0
      %p174 = por %p172, %p173
      %p175 = scmp.le.s32.totalorder 1, %s10
      %p176 = scmp.lt.s32.totalorder %s10, 10
      %p177 = pnand %p175, %p176
      %p178 = pneg %p177
      // Predicated region
      $region9: #{_lambda_.18} parent=5 // pred_check
        _
      $region10: #{_lambda_.18} parent=5 // pred_check_branch
        %180 = sbr.rel (%p177) target = $region12
      $region11: #{_lambda_.18} parent=5 // pred_region
        %s181 = ssub.s32 %s10, 1
        // Predicated region
        $region13: #{_lambda_.18} parent=11 // pred_check
          %p182 = pneg %p111
        $region14: #{_lambda_.18} parent=11 // pred_check_branch
          %184 = sbr.rel (%p182) target = $region16
        $region15: #{_lambda_.18} parent=11 // pred_region
          %p185 = scmp.lt.s32.totalorder %s21, 0
          %s186 = scalar_select %p185, %s21, 0
          %s187 = scalar_lea.vmem %s2, %s186
        $region16: #{_lambda_.18} parent=11 // pred_fallthru
          _
        // Predicated region
        $region17: #{_lambda_.18} parent=11 // pred_check
          %p188 = pneg %p139
        $region18: #{_lambda_.18} parent=11 // pred_check_branch
          %190 = sbr.rel (%p188) target = $region20
        $region19: #{_lambda_.18} parent=11 // pred_region
          %s191 = smul.u32 4, %s20
          %p192 = scmp.lt.s32.totalorder %s191, 3
          %s193 = scalar_select %p192, %s191, 3
          %p194 = scmp.lt.s32.totalorder %s21, 0
          %s195 = scalar_select %p194, %s21, 0
          %s196 = sadd.s32 %s195, %s193
          %s197 = smul.addr %s196, 4
          %s198 = scalar_lea.vmem %s3, %s197
          %s199 = smul.u32 4, %s20
        $region20: #{_lambda_.18} parent=11 // pred_fallthru
          _
      $region12: #{_lambda_.18} parent=5 // pred_fallthru
        _
      %p200 = scmp.lt.s32.totalorder %s10, 9
      // Predicated region
      $region21: #{_lambda_.18} parent=5 // pred_check
        %p201 = pneg %p200
      $region22: #{_lambda_.18} parent=5 // pred_check_branch
        %203 = sbr.rel (%p201) target = $region24
      $region23: #{_lambda_.18} parent=5 // pred_region
        // Predicated region
        $region25: #{_lambda_.18} parent=23 // pred_check
          %p204 = pneg %p51
        $region26: #{_lambda_.18} parent=23 // pred_check_branch
          %206 = sbr.rel (%p204) target = $region28
        $region27: #{_lambda_.18} parent=23 // pred_region
          %s207 = sand.u32 %s41, 1
          %s208 = sand.u32 %s41, 1
          %s209 = smul.addr %s208, 16
          %s210 = scalar_lea.vmem [#allocation3], %s209
          %s211 = smul.u32 4, %s17
          %s212 = smul.addr %s211, 9
          %s213 = sadd.s32 %s19, %s212
          %s214 = smul.addr %s213, 4
          %s215 = scalar_lea.vmem %s0, %s214
          // Predicated region
          $region29: #{_lambda_.18} parent=27 // pred_check
            _
          $region30: #{_lambda_.18} parent=27 // pred_check_branch
            %217 = sbr.rel (0) target = $region32
          $region31: #{_lambda_.18} parent=27 // pred_region
            // Predicated region
            $region33: #{_lambda_.18} parent=31 // pred_check
              _
            $region34: #{_lambda_.18} parent=31 // pred_check_branch
              %219 = sbr.rel target = $region36
            $region35: #{_lambda_.18} parent=31 // pred_region
              // Predicated region
              $region48: #{_lambda_.18} parent=35 // pred_check
                _
              $region49: #{_lambda_.18} parent=35 // pred_check_branch
                %241 = sbr.rel (0) target = $region51
              $region50: #{_lambda_.18} parent=35 // pred_region
                loop: start=0, step=1, limit=1
                $region52: #{_lambda_.18} parent=50 // loop_pre_header
                  _
                $region53: #{_lambda_.18} parent=50 // loop_header
                  %s243 = sphi 0, %s247
                  %p244 = scmp.ge.s32.totalorder %s243, 1
                  %s248 = sphi %s215, %s215
                  %s249 = sphi %s210, %s210
                $region54: #{_lambda_.18} parent=50 // loop_header_branch
                  %246 = sbr.rel (%p244) target = $region58
                $region55: #{_lambda_.18} parent=50 // loop_body
                  _
                $region56: #{_lambda_.18} parent=50 // loop_footer
                  %s247 = sadd.s32 1, %s243
                $region57: #{_lambda_.18} parent=50 // loop_footer_branch
                  %242 = sbr.rel target = $region53
                $region58: #{_lambda_.18} parent=50 // loop_exit
                  _
                %s251 = ssub.s32 16, 1
                loop: start=0, step=1, limit=1
                $region59: #{_lambda_.18} parent=50 // loop_pre_header
                  _
                $region60: #{_lambda_.18} parent=50 // loop_header
                  %s253 = sphi 0, %s257
                  %p254 = scmp.ge.s32.totalorder %s253, 1
                  %s258 = sphi %s215, %s215
                  %s259 = sphi %s210, %s210
                $region61: #{_lambda_.18} parent=50 // loop_header_branch
                  %256 = sbr.rel (%p254) target = $region65
                $region62: #{_lambda_.18} parent=50 // loop_body
                  %v260 = vld [vmem:[%s258] sm:%s251]
                  %261 = vst [vmem:[%s259] sm:%s251] %v260
                  %v262 = vld [vmem:[%s258 + $0x24] sm:%s251]
                  %263 = vst [vmem:[%s259 + $0x4] sm:%s251] %v262
                  %v264 = vld [vmem:[%s258 + $0x48] sm:%s251]
                  %265 = vst [vmem:[%s259 + $0x8] sm:%s251] %v264
                  %v266 = vld [vmem:[%s258 + $0x6c] sm:%s251]
                  %267 = vst [vmem:[%s259 + $0xc] sm:%s251] %v266
                $region63: #{_lambda_.18} parent=50 // loop_footer
                  %s257 = sadd.s32 1, %s253
                $region64: #{_lambda_.18} parent=50 // loop_footer_branch
                  %252 = sbr.rel target = $region60
                $region65: #{_lambda_.18} parent=50 // loop_exit
                  _
              $region51: #{_lambda_.18} parent=35 // pred_fallthru
                _
            $region36: #{_lambda_.18} parent=31 // pred_fallthru
              _
            // Predicated region
            $region37: #{_lambda_.18} parent=31 // pred_check
              _
            $region38: #{_lambda_.18} parent=31 // pred_check_branch
              %221 = sbr.rel (0) target = $region40
            $region39: #{_lambda_.18} parent=31 // pred_region
              %s223 = ssub.s32 16, 1
              loop: start=0, step=1, limit=1
              $region41: #{_lambda_.18} parent=39 // loop_pre_header
                _
              $region42: #{_lambda_.18} parent=39 // loop_header
                %s225 = sphi 0, %s229
                %p226 = scmp.ge.s32.totalorder %s225, 1
                %s230 = sphi %s215, %s215
                %s231 = sphi %s210, %s210
              $region43: #{_lambda_.18} parent=39 // loop_header_branch
                %228 = sbr.rel (%p226) target = $region47
              $region44: #{_lambda_.18} parent=39 // loop_body
                %v232 = vld [vmem:[%s230] sm:%s223]
                %233 = vst [vmem:[%s231] sm:%s223] %v232
                %v234 = vld [vmem:[%s230 + $0x24] sm:%s223]
                %235 = vst [vmem:[%s231 + $0x4] sm:%s223] %v234
                %v236 = vld [vmem:[%s230 + $0x48] sm:%s223]
                %237 = vst [vmem:[%s231 + $0x8] sm:%s223] %v236
                %v238 = vld [vmem:[%s230 + $0x6c] sm:%s223]
                %239 = vst [vmem:[%s231 + $0xc] sm:%s223] %v238
              $region45: #{_lambda_.18} parent=39 // loop_footer
                %s229 = sadd.s32 1, %s225
              $region46: #{_lambda_.18} parent=39 // loop_footer_branch
                %224 = sbr.rel target = $region42
              $region47: #{_lambda_.18} parent=39 // loop_exit
                _
            $region40: #{_lambda_.18} parent=31 // pred_fallthru
              _
          $region32: #{_lambda_.18} parent=27 // pred_fallthru
            _
          %268 = vnop
        $region28: #{_lambda_.18} parent=23 // pred_fallthru
          _
        // Predicated region
        $region66: #{_lambda_.18} parent=23 // pred_check
          %p269 = pneg %p79
        $region67: #{_lambda_.18} parent=23 // pred_check_branch
          %271 = sbr.rel (%p269) target = $region69
        $region68: #{_lambda_.18} parent=23 // pred_region
          %s272 = smul.u32 16, %s19
          %p273 = scmp.lt.s32.totalorder %s272, 143
          %s274 = scalar_select %p273, %s272, 143
          %p275 = scmp.lt.s32.totalorder %s18, 0
          %s276 = scalar_select %p275, %s18, 0
          %s277 = sadd.s32 %s276, %s274
          %s278 = smul.addr %s277, 4
          %s279 = scalar_lea.vmem %s1, %s278
          %s280 = smul.u32 16, %s19
        $region69: #{_lambda_.18} parent=23 // pred_fallthru
          _
      $region24: #{_lambda_.18} parent=5 // pred_fallthru
        _
      %p281 = scmp.le.s32.totalorder 1, %s10
      %p282 = scmp.lt.s32.totalorder %s10, 10
      %p283 = pnand %p281, %p282
      %p284 = pneg %p283
      // Predicated region
      $region70: #{_lambda_.18} parent=5 // pred_check
        _
      $region71: #{_lambda_.18} parent=5 // pred_check_branch
        %286 = sbr.rel (%p283) target = $region73
      $region72: #{_lambda_.18} parent=5 // pred_region
        %s287 = ssub.s32 %s10, 1
        %s288 = sand.u32 %s44, 1
        %s289 = sand.u32 %s44, 1
        %s290 = smul.addr %s289, 16
        %s291 = scalar_lea.vmem [#allocation3], %s290
        // Predicated region
        $region74: #{_lambda_.18} parent=72 // pred_check
          %p292 = pneg %p57
        $region75: #{_lambda_.18} parent=72 // pred_check_branch
          %294 = sbr.rel (%p292) target = $region77
        $region76: #{_lambda_.18} parent=72 // pred_region
          _
        $region77: #{_lambda_.18} parent=72 // pred_fallthru
          _
        %s295 = sand.u32 %s44, 1
        %s296 = sand.u32 %s44, 1
        %s297 = smul.addr %s296, 16
        %s298 = scalar_lea.vmem [#allocation3], %s297
        %p299 = pneg %p57
        %p300 = pneg %p54
        %s301 = smul.u32 16, %s22
        %p302 = scmp.lt.s32.totalorder %s301, 143
        %s303 = scalar_select %p302, %s301, 143
        %p304 = scmp.lt.s32.totalorder %s21, 0
        %s305 = scalar_select %p304, %s21, 0
        %s306 = sadd.s32 %s305, %s303
        %s307 = smul.addr %s306, 4
        %s308 = scalar_lea.vmem %s1, %s307
        %p309 = pneg %p85
        %p310 = pneg %p82
        %p311 = scmp.lt.s32.totalorder %s21, 0
        %s312 = scalar_select %p311, %s21, 0
        %s313 = scalar_lea.vmem %s2, %s312
        %p314 = pneg %p111
        %p315 = pneg %p108
        %s316 = smul.u32 4, %s20
        %p317 = scmp.lt.s32.totalorder %s316, 3
        %s318 = scalar_select %p317, %s316, 3
        %p319 = scmp.lt.s32.totalorder %s21, 0
        %s320 = scalar_select %p319, %s21, 0
        %s321 = sadd.s32 %s320, %s318
        %s322 = smul.addr %s321, 4
        %s323 = scalar_lea.vmem %s3, %s322
        %p324 = pneg %p139
        %p325 = pneg %p136
        %p326 = pneg %p167
        %p327 = pneg %p164
        %s328 = smul.u32 4, %s20
        %p329 = scmp.lt.s32.totalorder %s328, 3
        %s330 = scalar_select %p329, %s328, 3
        %p331 = scmp.lt.s32.totalorder %s21, 0
        %s332 = scalar_select %p331, %s21, 0
        %s333 = sadd.s32 %s332, %s330
        %s334 = smul.addr %s333, 4
        %s335 = scalar_lea.vmem %s4, %s334
        %s336 = smul.u32 4, %s20
        %s337 = smul.u32 16, %s22
        %p338 = scmp.lt.s32.totalorder %s337, 143
        %s339 = scalar_select %p338, %s337, 143
        %p340 = scmp.lt.s32.totalorder %s21, 0
        %s341 = scalar_select %p340, %s21, 0
        %s342 = sadd.s32 %s341, %s339
        %s343 = smul.addr %s342, 4
        %s344 = scalar_lea.vmem %s1, %s343
        %s345 = smul.u32 16, %s22
        %p346 = scmp.lt.s32.totalorder %s21, 0
        %s347 = scalar_select %p346, %s21, 0
        %s348 = scalar_lea.vmem %s2, %s347
        %s349 = smul.u32 4, %s20
        %p350 = scmp.lt.s32.totalorder %s349, 3
        %s351 = scalar_select %p350, %s349, 3
        %p352 = scmp.lt.s32.totalorder %s21, 0
        %s353 = scalar_select %p352, %s21, 0
        %s354 = sadd.s32 %s353, %s351
        %s355 = smul.addr %s354, 4
        %s356 = scalar_lea.vmem %s3, %s355
        %s357 = smul.u32 4, %s20
        %s358 = smul.u32 4, %s20
        %p359 = scmp.lt.s32.totalorder %s358, 3
        %s360 = scalar_select %p359, %s358, 3
        %p361 = scmp.lt.s32.totalorder %s21, 0
        %s362 = scalar_select %p361, %s21, 0
        %s363 = sadd.s32 %s362, %s360
        %s364 = smul.addr %s363, 4
        %s365 = scalar_lea.vmem %s4, %s364
        %s366 = smul.u32 4, %s20
        %p368 = scmp.eq.s32.totalorder %s22, 0
        // Predicated region
        $region78: #{_lambda_.18} parent=72 // pred_check
          %p369 = pneg %p368
        $region79: #{_lambda_.18} parent=72 // pred_check_branch
          %371 = sbr.rel (%p369) target = $region81
        $region80: #{_lambda_.18} parent=72 // pred_region
          %372 = vst [vmem:[#allocation2] sm:$0xff] 0.0
          %373 = vst [vmem:[#allocation2 + $0x8] sm:$0xff] 0.0
          %374 = vst [vmem:[#allocation2 + $0x10] sm:$0xff] 0.0
          %375 = vst [vmem:[#allocation2 + $0x18] sm:$0xff] 0.0
        $region81: #{_lambda_.18} parent=72 // pred_fallthru
          _
        %v376 = vld [vmem:[#allocation2] sm:$0xff]
        %v377 = vld [vmem:[#allocation2 + $0x8] sm:$0xff]
        %v378 = vld [vmem:[#allocation2 + $0x10] sm:$0xff]
        %v379 = vld [vmem:[#allocation2 + $0x18] sm:$0xff]
        %v380 = vld [vmem:[%s291] sm:$0xf]
        %v381 = vld [vmem:[%s291 + $0x4] sm:$0xf]
        %v382 = vld [vmem:[%s291 + $0x8] sm:$0xf]
        %v383 = vld [vmem:[%s291 + $0xc] sm:$0xf]
        %v384 = vld [vmem:[%s344] sm:$0xf]
        %v385 = vld [vmem:[%s344 + $0x4] sm:$0xf]
        %v386 = vld [vmem:[%s344 + $0x8] sm:$0xf]
        %v387 = vld [vmem:[%s344 + $0xc] sm:$0xf]
        %v388 = vld [vmem:[%s344 + $0x10] sm:$0xf]
        %v389 = vld [vmem:[%s344 + $0x14] sm:$0xf]
        %v390 = vld [vmem:[%s344 + $0x18] sm:$0xf]
        %v391 = vld [vmem:[%s344 + $0x1c] sm:$0xf]
        %v392 = vld [vmem:[%s344 + $0x20] sm:$0xf]
        %v393 = vld [vmem:[%s344 + $0x24] sm:$0xf]
        %v394 = vld [vmem:[%s344 + $0x28] sm:$0xf]
        %v395 = vld [vmem:[%s344 + $0x2c] sm:$0xf]
        %v396 = vld [vmem:[%s344 + $0x30] sm:$0xf]
        %v397 = vld [vmem:[%s344 + $0x34] sm:$0xf]
        %v398 = vld [vmem:[%s344 + $0x38] sm:$0xf]
        %v399 = vld [vmem:[%s344 + $0x3c] sm:$0xf]
        %v404 = vunpack.c.l.b16 %v380
        %v405 = vunpack.c.l.b16 %v381
        %v406 = vunpack.c.l.b16 %v382
        %v407 = vunpack.c.l.b16 %v383
        %v408 = vpack.c.b16 %v405, %v404
        %v409 = vpack.c.b16 %v407, %v406
        %v428 = vunpack.c.l.b16 %v384
        %v429 = vunpack.c.l.b16 %v385
        %v430 = vunpack.c.l.b16 %v386
        %v431 = vunpack.c.l.b16 %v387
        %v432 = vunpack.c.l.b16 %v388
        %v433 = vunpack.c.l.b16 %v389
        %v434 = vunpack.c.l.b16 %v390
        %v435 = vunpack.c.l.b16 %v391
        %v436 = vunpack.c.l.b16 %v392
        %v437 = vunpack.c.l.b16 %v393
        %v438 = vunpack.c.l.b16 %v394
        %v439 = vunpack.c.l.b16 %v395
        %v440 = vunpack.c.l.b16 %v396
        %v441 = vunpack.c.l.b16 %v397
        %v442 = vunpack.c.l.b16 %v398
        %v443 = vunpack.c.l.b16 %v399
        %v444 = vpack.c.b16 %v429, %v428
        %v445 = vpack.c.b16 %v431, %v430
        %v446 = vpack.c.b16 %v433, %v432
        %v447 = vpack.c.b16 %v435, %v434
        %v448 = vpack.c.b16 %v437, %v436
        %v449 = vpack.c.b16 %v439, %v438
        %v450 = vpack.c.b16 %v441, %v440
        %v451 = vpack.c.b16 %v443, %v442
        %460 = vmatprep.subr.bf16.mxu0 0
        %461 = vmatpush1.bf16.msra.mxu0 %v451
        %462 = vmatprep.subr.bf16.mxu0 0
        %463 = vmatpush1.bf16.msra.mxu0 %v450
        %464 = vmatprep.subr.bf16.mxu0 0
        %465 = vmatpush1.bf16.msra.mxu0 %v449
        %466 = vmatprep.subr.bf16.mxu0 0
        %467 = vmatpush1.bf16.msra.mxu0 %v448
        %468 = vmatprep.subr.bf16.mxu0 0
        %469 = vmatpush1.bf16.msra.mxu0 %v447
        %470 = vmatprep.subr.bf16.mxu0 0
        %471 = vmatpush1.bf16.msra.mxu0 %v446
        %472 = vmatprep.subr.bf16.mxu0 0
        %473 = vmatpush1.bf16.msra.mxu0 %v445
        %474 = vmatprep.subr.bf16.mxu0 0
        %475 = vmatpush1.bf16.msra.mxu0 %v444
        %476 = vmatprep.subr.bf16.mxu0 0
        %477 = vmatpush2.bf16.msra.mxu0 0
        %478 = vmatprep.subr.bf16.mxu0 0
        %479 = vmatpush2.bf16.msra.mxu0 0
        %480 = vmatprep.subr.bf16.mxu0 0
        %481 = vmatpush2.bf16.msra.mxu0 0
        %482 = vmatprep.subr.bf16.mxu0 0
        %483 = vmatpush2.bf16.msra.mxu0 0
        %484 = vmatprep.subr.bf16.mxu0 0
        %485 = vmatpush2.bf16.msra.mxu0 0
        %486 = vmatprep.subr.bf16.mxu0 0
        %487 = vmatpush2.bf16.msra.mxu0 0
        %488 = vmatprep.subr.bf16.mxu0 0
        %489 = vmatpush2.bf16.msra.mxu0 0
        %490 = vmatprep.subr.bf16.mxu0 0
        %491 = vmatpush2.bf16.msra.mxu0 0
        %492 = vmatprep.mubr.bf16.mxu0 0
        %493 = vmatmul.mubr.bf16.gmra.mxu0 %v408
        %v494 = vpop.f32.mrf.mxu0
        %v495 = vadd.f32 0.0, %v494
        %v496 = vpop.f32.mrf.mxu0
        %v497 = vpop.f32.mrf.mxu0
        %v498 = vadd.f32 0.0, %v497
        %v499 = vpop.f32.mrf.mxu0
        %500 = vmatprep.mubr.bf16.mxu0 0
        %501 = vmatmul.mubr.bf16.gmra.mxu0 %v409
        %v502 = vpop.f32.mrf.mxu0
        %v503 = vadd.f32 0.0, %v502
        %v504 = vpop.f32.mrf.mxu0
        %v505 = vpop.f32.mrf.mxu0
        %v506 = vadd.f32 0.0, %v505
        %v507 = vpop.f32.mrf.mxu0
        %508 = vdwg.mxu0
        %v509 = vadd.f32 %v376, %v495
        %v510 = vadd.f32 %v377, %v498
        %v511 = vadd.f32 %v378, %v503
        %v512 = vadd.f32 %v379, %v506
        %513 = vst [vmem:[#allocation2] sm:$0xff] %v509
        %514 = vst [vmem:[#allocation2 + $0x8] sm:$0xff] %v510
        %515 = vst [vmem:[#allocation2 + $0x10] sm:$0xff] %v511
        %516 = vst [vmem:[#allocation2 + $0x18] sm:$0xff] %v512
        %p517 = scmp.eq.s32.totalorder %s22, 8
        // Predicated region
        $region82: #{_lambda_.18} parent=72 // pred_check
          %p518 = pneg %p517
        $region83: #{_lambda_.18} parent=72 // pred_check_branch
          %520 = sbr.rel (%p518) target = $region85
        $region84: #{_lambda_.18} parent=72 // pred_region
          %v521 = vld [vmem:[#allocation2] sm:$0xff]
          %v522 = vld [vmem:[#allocation2 + $0x8] sm:$0xff]
          %v523 = vld [vmem:[#allocation2 + $0x10] sm:$0xff]
          %v524 = vld [vmem:[#allocation2 + $0x18] sm:$0xff]
          %v525 = vld [vmem:[%s348] sm:$0x1]
          %v527 = vlaneseq
          %v528 = vshrl.u32 %v527, 7
          %v529 = vsub.s32 0, %v528
          %v530 = vrot.slane %v525, %v529
          %v532 = vadd.f32 %v521, %v530
          %v533 = vadd.f32 %v522, %v530
          %v534 = vadd.f32 %v523, %v530
          %v535 = vadd.f32 %v524, %v530
          %v536 = vld [vmem:[%s356] sm:$0xf]
          %v537 = vld [vmem:[%s356 + $0x4] sm:$0xf]
          %v538 = vld [vmem:[%s356 + $0x8] sm:$0xf]
          %v539 = vld [vmem:[%s356 + $0xc] sm:$0xf]
          %v540 = vunpack.c.l.bf16 %v536
          %v541 = vunpack.c.l.bf16 %v537
          %v542 = vunpack.c.l.bf16 %v538
          %v543 = vunpack.c.l.bf16 %v539
          %v544 = vadd.f32 %v532, %v540
          %v545 = vadd.f32 %v533, %v541
          %v546 = vadd.f32 %v534, %v542
          %v547 = vadd.f32 %v535, %v543
          %v548 = vmax.f32 %v544, 0.0
          %v549 = vmax.f32 %v545, 0.0
          %v550 = vmax.f32 %v546, 0.0
          %v551 = vmax.f32 %v547, 0.0
          %v552 = vpack.c.bf16 %v549, %v548
          %v553 = vpack.c.bf16 %v551, %v550
          %v556 = vunpack.c.l.b16 %v552
          %v557 = vunpack.c.h.b16 %v552
          %v558 = vunpack.c.l.b16 %v553
          %v559 = vunpack.c.h.b16 %v553
          %v560 = vpack.c.b16 %v556, %v556
          %v561 = vpack.c.b16 %v557, %v557
          %v562 = vpack.c.b16 %v558, %v558
          %v563 = vpack.c.b16 %v559, %v559
          %568 = vst [vmem:[%s365] sm:$0xf] %v560
          %569 = vst [vmem:[%s365 + $0x4] sm:$0xf] %v561
          %570 = vst [vmem:[%s365 + $0x8] sm:$0xf] %v562
          %571 = vst [vmem:[%s365 + $0xc] sm:$0xf] %v563
        $region85: #{_lambda_.18} parent=72 // pred_fallthru
          _
        %s572 = smul.u32 4, %s20
        %p573 = scmp.lt.s32.totalorder %s572, 3
        %s574 = scalar_select %p573, %s572, 3
        %p575 = scmp.lt.s32.totalorder %s21, 0
        %s576 = scalar_select %p575, %s21, 0
        %s577 = sadd.s32 %s576, %s574
        %s578 = smul.addr %s577, 4
        %s579 = scalar_lea.vmem %s4, %s578
        // Predicated region
        $region86: #{_lambda_.18} parent=72 // pred_check
          %p580 = pneg %p164
        $region87: #{_lambda_.18} parent=72 // pred_check_branch
          %582 = sbr.rel (%p580) target = $region89
        $region88: #{_lambda_.18} parent=72 // pred_region
          %s583 = smul.u32 4, %s20
        $region89: #{_lambda_.18} parent=72 // pred_fallthru
          _
        // Predicated region
        $region90: #{_lambda_.18} parent=72 // pred_check
          %p584 = pneg %p164
        $region91: #{_lambda_.18} parent=72 // pred_check_branch
          %586 = sbr.rel (%p584) target = $region93
        $region92: #{_lambda_.18} parent=72 // pred_region
          %s587 = smul.u32 4, %s20
          %p588 = scmp.lt.s32.totalorder %s587, 3
          %s589 = scalar_select %p588, %s587, 3
          %p590 = scmp.lt.s32.totalorder %s21, 0
          %s591 = scalar_select %p590, %s21, 0
          %s592 = sadd.s32 %s591, %s589
          %s593 = smul.addr %s592, 4
          %s594 = scalar_lea.vmem %s4, %s593
        $region93: #{_lambda_.18} parent=72 // pred_fallthru
          _
      $region73: #{_lambda_.18} parent=5 // pred_fallthru
        _
      %p595 = scmp.le.s32.totalorder 2, %s10
      // Predicated region
      $region94: #{_lambda_.18} parent=5 // pred_check
        %p596 = pneg %p595
      $region95: #{_lambda_.18} parent=5 // pred_check_branch
        %598 = sbr.rel (%p596) target = $region97
      $region96: #{_lambda_.18} parent=5 // pred_region
        %s599 = ssub.s32 %s10, 2
      $region97: #{_lambda_.18} parent=5 // pred_fallthru
        _
    $region6: #{_lambda_.18} parent=1 // loop_footer
      %s14 = sadd.s32 1, %s10
    $region7: #{_lambda_.18} parent=1 // loop_footer_branch
      %9 = sbr.rel target = $region3
    $region8: #{_lambda_.18} parent=1 // loop_exit
      _

// kernel: _lambda_.19
$region0: #{_lambda_.19}
  #allocation0 [shape = 'u32[]', space=smem, size = 0x4, offset = 0x4, fixed_abs, tag = 'smem constant byte address 0x4 - core index']
  #allocation1 [shape = 'u32[144,128]{1,0:T(1,128)}', space=vmem, size = 0x12000, scoped, tag = 'internal scratch']
  #allocation2 [shape = 'f32[16,256]{1,0:T(8,128)}', space=vmem, size = 0x4000, scoped, tag = 'scratch operand']
  %s0 = inlined_call_operand.vmem [shape: bf16[16,1152], index: 0, kind: input, shape index: {}]
  %s1 = inlined_call_operand.vmem [shape: bf16[1152,256], index: 1, kind: input, shape index: {}]
  %s2 = inlined_call_operand.vmem [shape: f32[1,256], index: 2, kind: input, shape index: {}]
  %s3 = inlined_call_operand.vmem [shape: bf16[16,256], index: 3, kind: output, shape index: {}]
  %s4 = sld [smem:[#allocation0]]
  $region94: #{_lambda_.19} parent=0
    _
  %s6 = ssub.s32 1, %s4
  %s7 = scalar_select 0, %s6, %s4
  $region1: #{_lambda_.19} parent=0
    #allocation3 [shape = 'u8[8192]{0}', space=vmem, size = 0x2000, scoped, tag = 'input window, operand 0']
    loop: start=0, step=1, limit=11
    $region2: #{_lambda_.19} parent=1 // loop_pre_header
      _
    $region3: #{_lambda_.19} parent=1 // loop_header
      %s9 = sphi 0, %s13
      %p10 = scmp.ge.s32.totalorder %s9, 11
      %s16 = sphi 0, %s35
      %s17 = sphi 0, %s31
      %s18 = sphi 0, %s27
      %s19 = sphi 0, %s16
      %s20 = sphi 0, %s17
      %s21 = sphi 0, %s18
      %s22 = sphi 0, %s19
      %s23 = sphi 0, %s20
      %s24 = sphi 0, %s21
      %s40 = sphi 0, %s42
      %s43 = sphi 0, %s40
      %s44 = sphi 0, %s43
      %s60 = sphi 0, %s44
      %s68 = sphi 0, %s70
      %s71 = sphi 0, %s68
      %s72 = sphi 0, %s71
      %s88 = sphi 0, %s72
      %s94 = sphi 0, %s96
      %s97 = sphi 0, %s94
      %s98 = sphi 0, %s97
      %s114 = sphi 0, %s98
      %s122 = sphi 0, %s124
      %s125 = sphi 0, %s122
      %s126 = sphi 0, %s125
      %s142 = sphi 0, %s126
    $region4: #{_lambda_.19} parent=1 // loop_header_branch
      %12 = sbr.rel (%p10) target = $region8
    $region5: #{_lambda_.19} parent=1 // loop_body
      %s14 = ssub.s32 %s9, 1
      %s15 = ssub.s32 %s9, 2
      %s25 = sadd.s32 1, %s18
      %p26 = scmp.ge.s32.totalorder %s25, 9
      %s27 = scalar_select %p26, 0, %s25
      %s28 = sadd.s32 1, %s17
      %s29 = scalar_select %p26, %s28, %s17
      %p30 = scmp.ge.s32.totalorder %s29, 1
      %s31 = scalar_select %p30, 0, %s29
      %s32 = sadd.s32 1, %s16
      %s33 = scalar_select %p30, %s32, %s16
      %p34 = scmp.ge.s32.totalorder %s33, 1
      %s35 = scalar_select %p34, 0, %s33
      %s36 = ssub.s32 %s16, %s35
      %s37 = ssub.s32 %s18, %s27
      %s38 = sor.u32 %s36, %s37
      %p39 = scmp.eq.s32.totalorder %s38, 0
      %s41 = sadd.s32 %s40, 1
      %s42 = scalar_select %p39, %s40, %s41
      %p45 = pneg %p39
      %p46 = scmp.eq.s32.totalorder %s9, 8
      %p47 = por %p45, %p46
      %p48 = scmp.ne.s32.totalorder %s40, %s43
      %p49 = scmp.eq.s32.totalorder %s9, 0
      %p50 = por %p48, %p49
      %p51 = scmp.ne.s32.totalorder %s40, %s43
      %p52 = scmp.eq.s32.totalorder %s14, 8
      %p53 = por %p51, %p52
      %p54 = scmp.ne.s32.totalorder %s43, %s44
      %p55 = scmp.eq.s32.totalorder %s14, 0
      %p56 = por %p54, %p55
      %p57 = scmp.ne.s32.totalorder %s43, %s44
      %p58 = scmp.eq.s32.totalorder %s15, 8
      %p59 = por %p57, %p58
      %p61 = scmp.ne.s32.totalorder %s44, %s60
      %p62 = scmp.eq.s32.totalorder %s15, 0
      %p63 = por %p61, %p62
      %s64 = ssub.s32 %s18, %s27
      %s65 = ssub.s32 %s17, %s31
      %s66 = sor.u32 %s64, %s65
      %p67 = scmp.eq.s32.totalorder %s66, 0
      %s69 = sadd.s32 %s68, 1
      %s70 = scalar_select %p67, %s68, %s69
      %p73 = pneg %p67
      %p74 = scmp.eq.s32.totalorder %s9, 8
      %p75 = por %p73, %p74
      %p76 = scmp.ne.s32.totalorder %s68, %s71
      %p77 = scmp.eq.s32.totalorder %s9, 0
      %p78 = por %p76, %p77
      %p79 = scmp.ne.s32.totalorder %s68, %s71
      %p80 = scmp.eq.s32.totalorder %s14, 8
      %p81 = por %p79, %p80
      %p82 = scmp.ne.s32.totalorder %s71, %s72
      %p83 = scmp.eq.s32.totalorder %s14, 0
      %p84 = por %p82, %p83
      %p85 = scmp.ne.s32.totalorder %s71, %s72
      %p86 = scmp.eq.s32.totalorder %s15, 8
      %p87 = por %p85, %p86
      %p89 = scmp.ne.s32.totalorder %s72, %s88
      %p90 = scmp.eq.s32.totalorder %s15, 0
      %p91 = por %p89, %p90
      %s92 = ssub.s32 %s17, %s31
      %p93 = scmp.eq.s32.totalorder %s92, 0
      %s95 = sadd.s32 %s94, 1
      %s96 = scalar_select %p93, %s94, %s95
      %p99 = pneg %p93
      %p100 = scmp.eq.s32.totalorder %s9, 8
      %p101 = por %p99, %p100
      %p102 = scmp.ne.s32.totalorder %s94, %s97
      %p103 = scmp.eq.s32.totalorder %s9, 0
      %p104 = por %p102, %p103
      %p105 = scmp.ne.s32.totalorder %s94, %s97
      %p106 = scmp.eq.s32.totalorder %s14, 8
      %p107 = por %p105, %p106
      %p108 = scmp.ne.s32.totalorder %s97, %s98
      %p109 = scmp.eq.s32.totalorder %s14, 0
      %p110 = por %p108, %p109
      %p111 = scmp.ne.s32.totalorder %s97, %s98
      %p112 = scmp.eq.s32.totalorder %s15, 8
      %p113 = por %p111, %p112
      %p115 = scmp.ne.s32.totalorder %s98, %s114
      %p116 = scmp.eq.s32.totalorder %s15, 0
      %p117 = por %p115, %p116
      %s118 = ssub.s32 %s16, %s35
      %s119 = ssub.s32 %s17, %s31
      %s120 = sor.u32 %s118, %s119
      %p121 = scmp.eq.s32.totalorder %s120, 0
      %s123 = sadd.s32 %s122, 1
      %s124 = scalar_select %p121, %s122, %s123
      %p127 = pneg %p121
      %p128 = scmp.eq.s32.totalorder %s9, 8
      %p129 = por %p127, %p128
      %p130 = scmp.ne.s32.totalorder %s122, %s125
      %p131 = scmp.eq.s32.totalorder %s9, 0
      %p132 = por %p130, %p131
      %p133 = scmp.ne.s32.totalorder %s122, %s125
      %p134 = scmp.eq.s32.totalorder %s14, 8
      %p135 = por %p133, %p134
      %p136 = scmp.ne.s32.totalorder %s125, %s126
      %p137 = scmp.eq.s32.totalorder %s14, 0
      %p138 = por %p136, %p137
      %p139 = scmp.ne.s32.totalorder %s125, %s126
      %p140 = scmp.eq.s32.totalorder %s15, 8
      %p141 = por %p139, %p140
      %p143 = scmp.ne.s32.totalorder %s126, %s142
      %p144 = scmp.eq.s32.totalorder %s15, 0
      %p145 = por %p143, %p144
      %p146 = scmp.le.s32.totalorder 1, %s9
      %p147 = scmp.lt.s32.totalorder %s9, 10
      %p148 = pnand %p146, %p147
      %p149 = pneg %p148
      // Predicated region
      $region9: #{_lambda_.19} parent=5 // pred_check
        _
      $region10: #{_lambda_.19} parent=5 // pred_check_branch
        %151 = sbr.rel (%p148) target = $region12
      $region11: #{_lambda_.19} parent=5 // pred_region
        %s152 = ssub.s32 %s9, 1
        // Predicated region
        $region13: #{_lambda_.19} parent=11 // pred_check
          %p153 = pneg %p110
        $region14: #{_lambda_.19} parent=11 // pred_check_branch
          %155 = sbr.rel (%p153) target = $region16
        $region15: #{_lambda_.19} parent=11 // pred_region
          %s156 = smul.u32 2, %s20
          %p157 = scmp.lt.s32.totalorder %s156, 1
          %s158 = scalar_select %p157, %s156, 1
          %s159 = scalar_lea.vmem %s2, %s158
          %s160 = smul.u32 2, %s20
        $region16: #{_lambda_.19} parent=11 // pred_fallthru
          _
      $region12: #{_lambda_.19} parent=5 // pred_fallthru
        _
      %p161 = scmp.lt.s32.totalorder %s9, 9
      // Predicated region
      $region17: #{_lambda_.19} parent=5 // pred_check
        %p162 = pneg %p161
      $region18: #{_lambda_.19} parent=5 // pred_check_branch
        %164 = sbr.rel (%p162) target = $region20
      $region19: #{_lambda_.19} parent=5 // pred_region
        // Predicated region
        $region21: #{_lambda_.19} parent=19 // pred_check
          %p165 = pneg %p50
        $region22: #{_lambda_.19} parent=19 // pred_check_branch
          %167 = sbr.rel (%p165) target = $region24
        $region23: #{_lambda_.19} parent=19 // pred_region
          %s168 = sand.u32 %s40, 1
          %s169 = sand.u32 %s40, 1
          %s170 = smul.addr %s169, 8
          %s171 = scalar_lea.vmem [#allocation3], %s170
          %s172 = smul.u32 2, %s16
          %s173 = smul.addr %s172, 9
          %s174 = sadd.s32 %s18, %s173
          %s175 = smul.addr %s174, 4
          %s176 = scalar_lea.vmem %s0, %s175
          // Predicated region
          $region25: #{_lambda_.19} parent=23 // pred_check
            _
          $region26: #{_lambda_.19} parent=23 // pred_check_branch
            %178 = sbr.rel (0) target = $region28
          $region27: #{_lambda_.19} parent=23 // pred_region
            // Predicated region
            $region29: #{_lambda_.19} parent=27 // pred_check
              _
            $region30: #{_lambda_.19} parent=27 // pred_check_branch
              %180 = sbr.rel target = $region32
            $region31: #{_lambda_.19} parent=27 // pred_region
              // Predicated region
              $region44: #{_lambda_.19} parent=31 // pred_check
                _
              $region45: #{_lambda_.19} parent=31 // pred_check_branch
                %198 = sbr.rel (0) target = $region47
              $region46: #{_lambda_.19} parent=31 // pred_region
                loop: start=0, step=1, limit=1
                $region48: #{_lambda_.19} parent=46 // loop_pre_header
                  _
                $region49: #{_lambda_.19} parent=46 // loop_header
                  %s200 = sphi 0, %s204
                  %p201 = scmp.ge.s32.totalorder %s200, 1
                  %s205 = sphi %s176, %s176
                  %s206 = sphi %s171, %s171
                $region50: #{_lambda_.19} parent=46 // loop_header_branch
                  %203 = sbr.rel (%p201) target = $region54
                $region51: #{_lambda_.19} parent=46 // loop_body
                  _
                $region52: #{_lambda_.19} parent=46 // loop_footer
                  %s204 = sadd.s32 1, %s200
                $region53: #{_lambda_.19} parent=46 // loop_footer_branch
                  %199 = sbr.rel target = $region49
                $region54: #{_lambda_.19} parent=46 // loop_exit
                  _
                %s208 = ssub.s32 16, 1
                loop: start=0, step=1, limit=1
                $region55: #{_lambda_.19} parent=46 // loop_pre_header
                  _
                $region56: #{_lambda_.19} parent=46 // loop_header
                  %s210 = sphi 0, %s214
                  %p211 = scmp.ge.s32.totalorder %s210, 1
                  %s215 = sphi %s176, %s176
                  %s216 = sphi %s171, %s171
                $region57: #{_lambda_.19} parent=46 // loop_header_branch
                  %213 = sbr.rel (%p211) target = $region61
                $region58: #{_lambda_.19} parent=46 // loop_body
                  %v217 = vld [vmem:[%s215] sm:%s208]
                  %218 = vst [vmem:[%s216] sm:%s208] %v217
                  %v219 = vld [vmem:[%s215 + $0x24] sm:%s208]
                  %220 = vst [vmem:[%s216 + $0x4] sm:%s208] %v219
                $region59: #{_lambda_.19} parent=46 // loop_footer
                  %s214 = sadd.s32 1, %s210
                $region60: #{_lambda_.19} parent=46 // loop_footer_branch
                  %209 = sbr.rel target = $region56
                $region61: #{_lambda_.19} parent=46 // loop_exit
                  _
              $region47: #{_lambda_.19} parent=31 // pred_fallthru
                _
            $region32: #{_lambda_.19} parent=27 // pred_fallthru
              _
            // Predicated region
            $region33: #{_lambda_.19} parent=27 // pred_check
              _
            $region34: #{_lambda_.19} parent=27 // pred_check_branch
              %182 = sbr.rel (0) target = $region36
            $region35: #{_lambda_.19} parent=27 // pred_region
              %s184 = ssub.s32 16, 1
              loop: start=0, step=1, limit=1
              $region37: #{_lambda_.19} parent=35 // loop_pre_header
                _
              $region38: #{_lambda_.19} parent=35 // loop_header
                %s186 = sphi 0, %s190
                %p187 = scmp.ge.s32.totalorder %s186, 1
                %s191 = sphi %s176, %s176
                %s192 = sphi %s171, %s171
              $region39: #{_lambda_.19} parent=35 // loop_header_branch
                %189 = sbr.rel (%p187) target = $region43
              $region40: #{_lambda_.19} parent=35 // loop_body
                %v193 = vld [vmem:[%s191] sm:%s184]
                %194 = vst [vmem:[%s192] sm:%s184] %v193
                %v195 = vld [vmem:[%s191 + $0x24] sm:%s184]
                %196 = vst [vmem:[%s192 + $0x4] sm:%s184] %v195
              $region41: #{_lambda_.19} parent=35 // loop_footer
                %s190 = sadd.s32 1, %s186
              $region42: #{_lambda_.19} parent=35 // loop_footer_branch
                %185 = sbr.rel target = $region38
              $region43: #{_lambda_.19} parent=35 // loop_exit
                _
            $region36: #{_lambda_.19} parent=27 // pred_fallthru
              _
          $region28: #{_lambda_.19} parent=23 // pred_fallthru
            _
          %221 = vnop
        $region24: #{_lambda_.19} parent=19 // pred_fallthru
          _
        // Predicated region
        $region62: #{_lambda_.19} parent=19 // pred_check
          %p222 = pneg %p78
        $region63: #{_lambda_.19} parent=19 // pred_check_branch
          %224 = sbr.rel (%p222) target = $region65
        $region64: #{_lambda_.19} parent=19 // pred_region
          %s225 = smul.u32 16, %s18
          %s226 = smul.u32 2, %s17
          %p227 = scmp.lt.s32.totalorder %s225, 143
          %s228 = scalar_select %p227, %s225, 143
          %p229 = scmp.lt.s32.totalorder %s226, 1
          %s230 = scalar_select %p229, %s226, 1
          %s231 = smul.addr %s228, 2
          %s232 = sadd.s32 %s230, %s231
          %s233 = smul.addr %s232, 4
          %s234 = scalar_lea.vmem %s1, %s233
          %s235 = smul.u32 16, %s18
          %s236 = smul.u32 2, %s17
        $region65: #{_lambda_.19} parent=19 // pred_fallthru
          _
      $region20: #{_lambda_.19} parent=5 // pred_fallthru
        _
      %p237 = scmp.le.s32.totalorder 1, %s9
      %p238 = scmp.lt.s32.totalorder %s9, 10
      %p239 = pnand %p237, %p238
      %p240 = pneg %p239
      // Predicated region
      $region66: #{_lambda_.19} parent=5 // pred_check
        _
      $region67: #{_lambda_.19} parent=5 // pred_check_branch
        %242 = sbr.rel (%p239) target = $region69
      $region68: #{_lambda_.19} parent=5 // pred_region
        %s243 = ssub.s32 %s9, 1
        %s244 = sand.u32 %s43, 1
        %s245 = sand.u32 %s43, 1
        %s246 = smul.addr %s245, 8
        %s247 = scalar_lea.vmem [#allocation3], %s246
        // Predicated region
        $region70: #{_lambda_.19} parent=68 // pred_check
          %p248 = pneg %p56
        $region71: #{_lambda_.19} parent=68 // pred_check_branch
          %250 = sbr.rel (%p248) target = $region73
        $region72: #{_lambda_.19} parent=68 // pred_region
          _
        $region73: #{_lambda_.19} parent=68 // pred_fallthru
          _
        %s251 = sand.u32 %s43, 1
        %s252 = sand.u32 %s43, 1
        %s253 = smul.addr %s252, 8
        %s254 = scalar_lea.vmem [#allocation3], %s253
        %p255 = pneg %p56
        %p256 = pneg %p53
        %s257 = smul.u32 16, %s21
        %s258 = smul.u32 2, %s20
        %p259 = scmp.lt.s32.totalorder %s257, 143
        %s260 = scalar_select %p259, %s257, 143
        %p261 = scmp.lt.s32.totalorder %s258, 1
        %s262 = scalar_select %p261, %s258, 1
        %s263 = smul.addr %s260, 2
        %s264 = sadd.s32 %s262, %s263
        %s265 = smul.addr %s264, 4
        %s266 = scalar_lea.vmem %s1, %s265
        %p267 = pneg %p84
        %p268 = pneg %p81
        %s269 = smul.u32 2, %s20
        %p270 = scmp.lt.s32.totalorder %s269, 1
        %s271 = scalar_select %p270, %s269, 1
        %s272 = scalar_lea.vmem %s2, %s271
        %p273 = pneg %p110
        %p274 = pneg %p107
        %p275 = pneg %p138
        %p276 = pneg %p135
        %s277 = smul.u32 2, %s19
        %s278 = smul.u32 2, %s20
        %p279 = scmp.lt.s32.totalorder %s277, 1
        %s280 = scalar_select %p279, %s277, 1
        %p281 = scmp.lt.s32.totalorder %s278, 1
        %s282 = scalar_select %p281, %s278, 1
        %s283 = smul.addr %s280, 2
        %s284 = sadd.s32 %s282, %s283
        %s285 = smul.addr %s284, 4
        %s286 = scalar_lea.vmem %s3, %s285
        %s287 = smul.u32 2, %s19
        %s288 = smul.u32 16, %s21
        %s289 = smul.u32 2, %s20
        %p290 = scmp.lt.s32.totalorder %s288, 143
        %s291 = scalar_select %p290, %s288, 143
        %p292 = scmp.lt.s32.totalorder %s289, 1
        %s293 = scalar_select %p292, %s289, 1
        %s294 = smul.addr %s291, 2
        %s295 = sadd.s32 %s293, %s294
        %s296 = smul.addr %s295, 4
        %s297 = scalar_lea.vmem %s1, %s296
        %s298 = smul.u32 16, %s21
        %s299 = smul.u32 2, %s20
        %s300 = smul.u32 2, %s20
        %p301 = scmp.lt.s32.totalorder %s300, 1
        %s302 = scalar_select %p301, %s300, 1
        %s303 = scalar_lea.vmem %s2, %s302
        %s304 = smul.u32 2, %s20
        %s305 = smul.u32 2, %s19
        %s306 = smul.u32 2, %s20
        %p307 = scmp.lt.s32.totalorder %s305, 1
        %s308 = scalar_select %p307, %s305, 1
        %p309 = scmp.lt.s32.totalorder %s306, 1
        %s310 = scalar_select %p309, %s306, 1
        %s311 = smul.addr %s308, 2
        %s312 = sadd.s32 %s310, %s311
        %s313 = smul.addr %s312, 4
        %s314 = scalar_lea.vmem %s3, %s313
        %s315 = smul.u32 2, %s19
        %s316 = smul.u32 2, %s20
        %p318 = scmp.eq.s32.totalorder %s21, 0
        // Predicated region
        $region74: #{_lambda_.19} parent=68 // pred_check
          %p319 = pneg %p318
        $region75: #{_lambda_.19} parent=68 // pred_check_branch
          %321 = sbr.rel (%p319) target = $region77
        $region76: #{_lambda_.19} parent=68 // pred_region
          %322 = vst [vmem:[#allocation2] sm:$0xff] 0.0
          %323 = vst [vmem:[#allocation2 + $0x8] sm:$0xff] 0.0
          %324 = vst [vmem:[#allocation2 + $0x10] sm:$0xff] 0.0
          %325 = vst [vmem:[#allocation2 + $0x18] sm:$0xff] 0.0
        $region77: #{_lambda_.19} parent=68 // pred_fallthru
          _
        %v326 = vld [vmem:[#allocation2] sm:$0xff]
        %v327 = vld [vmem:[#allocation2 + $0x8] sm:$0xff]
        %v328 = vld [vmem:[#allocation2 + $0x10] sm:$0xff]
        %v329 = vld [vmem:[#allocation2 + $0x18] sm:$0xff]
        %v330 = vld [vmem:[%s247] sm:$0xf]
        %v331 = vld [vmem:[%s247 + $0x4] sm:$0xf]
        %v332 = vld [vmem:[%s297] sm:$0xff]
        %v333 = vld [vmem:[%s297 + $0x8] sm:$0xff]
        %v334 = vld [vmem:[%s297 + $0x10] sm:$0xff]
        %v335 = vld [vmem:[%s297 + $0x18] sm:$0xff]
        %v336 = vld [vmem:[%s297 + $0x20] sm:$0xff]
        %v337 = vld [vmem:[%s297 + $0x28] sm:$0xff]
        %v338 = vld [vmem:[%s297 + $0x30] sm:$0xff]
        %v339 = vld [vmem:[%s297 + $0x38] sm:$0xff]
        %v340 = vld [vmem:[%s297 + $0x40] sm:$0xff]
        %v341 = vld [vmem:[%s297 + $0x48] sm:$0xff]
        %v342 = vld [vmem:[%s297 + $0x50] sm:$0xff]
        %v343 = vld [vmem:[%s297 + $0x58] sm:$0xff]
        %v344 = vld [vmem:[%s297 + $0x60] sm:$0xff]
        %v345 = vld [vmem:[%s297 + $0x68] sm:$0xff]
        %v346 = vld [vmem:[%s297 + $0x70] sm:$0xff]
        %v347 = vld [vmem:[%s297 + $0x78] sm:$0xff]
        %v350 = vunpack.c.l.b16 %v330
        %v351 = vunpack.c.l.b16 %v331
        %v352 = vpack.c.b16 %v351, %v350
        %v370 = vunpack.c.l.b16 %v332
        %v371 = vunpack.c.h.b16 %v332
        %v372 = vunpack.c.l.b16 %v333
        %v373 = vunpack.c.h.b16 %v333
        %v374 = vunpack.c.l.b16 %v334
        %v375 = vunpack.c.h.b16 %v334
        %v376 = vunpack.c.l.b16 %v335
        %v377 = vunpack.c.h.b16 %v335
        %v378 = vunpack.c.l.b16 %v336
        %v379 = vunpack.c.h.b16 %v336
        %v380 = vunpack.c.l.b16 %v337
        %v381 = vunpack.c.h.b16 %v337
        %v382 = vunpack.c.l.b16 %v338
        %v383 = vunpack.c.h.b16 %v338
        %v384 = vunpack.c.l.b16 %v339
        %v385 = vunpack.c.h.b16 %v339
        %v386 = vunpack.c.l.b16 %v340
        %v387 = vunpack.c.h.b16 %v340
        %v388 = vunpack.c.l.b16 %v341
        %v389 = vunpack.c.h.b16 %v341
        %v390 = vunpack.c.l.b16 %v342
        %v391 = vunpack.c.h.b16 %v342
        %v392 = vunpack.c.l.b16 %v343
        %v393 = vunpack.c.h.b16 %v343
        %v394 = vunpack.c.l.b16 %v344
        %v395 = vunpack.c.h.b16 %v344
        %v396 = vunpack.c.l.b16 %v345
        %v397 = vunpack.c.h.b16 %v345
        %v398 = vunpack.c.l.b16 %v346
        %v399 = vunpack.c.h.b16 %v346
        %v400 = vunpack.c.l.b16 %v347
        %v401 = vunpack.c.h.b16 %v347
        %v402 = vpack.c.b16 %v372, %v370
        %v403 = vpack.c.b16 %v373, %v371
        %v404 = vpack.c.b16 %v376, %v374
        %v405 = vpack.c.b16 %v377, %v375
        %v406 = vpack.c.b16 %v380, %v378
        %v407 = vpack.c.b16 %v381, %v379
        %v408 = vpack.c.b16 %v384, %v382
        %v409 = vpack.c.b16 %v385, %v383
        %v410 = vpack.c.b16 %v388, %v386
        %v411 = vpack.c.b16 %v389, %v387
        %v412 = vpack.c.b16 %v392, %v390
        %v413 = vpack.c.b16 %v393, %v391
        %v414 = vpack.c.b16 %v396, %v394
        %v415 = vpack.c.b16 %v397, %v395
        %v416 = vpack.c.b16 %v400, %v398
        %v417 = vpack.c.b16 %v401, %v399
        %434 = vmatprep.subr.bf16.mxu0 %v417
        %435 = vmatpush1.bf16.msra.mxu0 %v416
        %436 = vmatprep.subr.bf16.mxu0 %v415
        %437 = vmatpush1.bf16.msra.mxu0 %v414
        %438 = vmatprep.subr.bf16.mxu0 %v413
        %439 = vmatpush1.bf16.msra.mxu0 %v412
        %440 = vmatprep.subr.bf16.mxu0 %v411
        %441 = vmatpush1.bf16.msra.mxu0 %v410
        %442 = vmatprep.subr.bf16.mxu0 %v409
        %443 = vmatpush1.bf16.msra.mxu0 %v408
        %444 = vmatprep.subr.bf16.mxu0 %v407
        %445 = vmatpush1.bf16.msra.mxu0 %v406
        %446 = vmatprep.subr.bf16.mxu0 %v405
        %447 = vmatpush1.bf16.msra.mxu0 %v404
        %448 = vmatprep.subr.bf16.mxu0 %v403
        %449 = vmatpush1.bf16.msra.mxu0 %v402
        %450 = vmatprep.subr.bf16.mxu0 0
        %451 = vmatpush2.bf16.msra.mxu0 0
        %452 = vmatprep.subr.bf16.mxu0 0
        %453 = vmatpush2.bf16.msra.mxu0 0
        %454 = vmatprep.subr.bf16.mxu0 0
        %455 = vmatpush2.bf16.msra.mxu0 0
        %456 = vmatprep.subr.bf16.mxu0 0
        %457 = vmatpush2.bf16.msra.mxu0 0
        %458 = vmatprep.subr.bf16.mxu0 0
        %459 = vmatpush2.bf16.msra.mxu0 0
        %460 = vmatprep.subr.bf16.mxu0 0
        %461 = vmatpush2.bf16.msra.mxu0 0
        %462 = vmatprep.subr.bf16.mxu0 0
        %463 = vmatpush2.bf16.msra.mxu0 0
        %464 = vmatprep.subr.bf16.mxu0 0
        %465 = vmatpush2.bf16.msra.mxu0 0
        %466 = vmatprep.mubr.bf16.mxu0 0
        %467 = vmatmul.mubr.bf16.gmra.mxu0 %v352
        %v468 = vpop.f32.mrf.mxu0
        %v469 = vadd.f32 0.0, %v468
        %v470 = vpop.f32.mrf.mxu0
        %v471 = vadd.f32 0.0, %v470
        %v472 = vpop.f32.mrf.mxu0
        %v473 = vadd.f32 0.0, %v472
        %v474 = vpop.f32.mrf.mxu0
        %v475 = vadd.f32 0.0, %v474
        %476 = vdwg.mxu0
        %v477 = vadd.f32 %v326, %v469
        %v478 = vadd.f32 %v327, %v471
        %v479 = vadd.f32 %v328, %v473
        %v480 = vadd.f32 %v329, %v475
        %481 = vst [vmem:[#allocation2] sm:$0xff] %v477
        %482 = vst [vmem:[#allocation2 + $0x8] sm:$0xff] %v478
        %483 = vst [vmem:[#allocation2 + $0x10] sm:$0xff] %v479
        %484 = vst [vmem:[#allocation2 + $0x18] sm:$0xff] %v480
        %p485 = scmp.eq.s32.totalorder %s21, 8
        // Predicated region
        $region78: #{_lambda_.19} parent=68 // pred_check
          %p486 = pneg %p485
        $region79: #{_lambda_.19} parent=68 // pred_check_branch
          %488 = sbr.rel (%p486) target = $region81
        $region80: #{_lambda_.19} parent=68 // pred_region
          %v489 = vld [vmem:[#allocation2] sm:$0xff]
          %v490 = vld [vmem:[#allocation2 + $0x8] sm:$0xff]
          %v491 = vld [vmem:[#allocation2 + $0x10] sm:$0xff]
          %v492 = vld [vmem:[#allocation2 + $0x18] sm:$0xff]
          %v493 = vld [vmem:[%s303] sm:$0x3]
          %v495 = vlaneseq
          %v496 = vshrl.u32 %v495, 7
          %v497 = vsub.s32 0, %v496
          %v498 = vrot.slane %v493, %v497
          %v499 = vlaneseq
          %v500 = vshrl.u32 %v499, 7
          %v501 = vsub.s32 1, %v500
          %v502 = vrot.slane %v493, %v501
          %v505 = vadd.f32 %v489, %v498
          %v506 = vadd.f32 %v490, %v502
          %v507 = vadd.f32 %v491, %v498
          %v508 = vadd.f32 %v492, %v502
          %v509 = vmax.f32 %v505, 0.0
          %v510 = vmax.f32 %v506, 0.0
          %v511 = vmax.f32 %v507, 0.0
          %v512 = vmax.f32 %v508, 0.0
          %v513 = vpack.c.bf16 %v511, %v509
          %v514 = vpack.c.bf16 %v512, %v510
          %v517 = vunpack.c.l.b16 %v513
          %v518 = vunpack.c.l.b16 %v514
          %v519 = vunpack.c.h.b16 %v513
          %v520 = vunpack.c.h.b16 %v514
          %v521 = vpack.c.b16 %v518, %v517
          %v522 = vpack.c.b16 %v520, %v519
          %525 = vst [vmem:[%s314] sm:$0xff] %v521
          %526 = vst [vmem:[%s314 + $0x8] sm:$0xff] %v522
        $region81: #{_lambda_.19} parent=68 // pred_fallthru
          _
        %s527 = smul.u32 2, %s19
        %s528 = smul.u32 2, %s20
        %p529 = scmp.lt.s32.totalorder %s527, 1
        %s530 = scalar_select %p529, %s527, 1
        %p531 = scmp.lt.s32.totalorder %s528, 1
        %s532 = scalar_select %p531, %s528, 1
        %s533 = smul.addr %s530, 2
        %s534 = sadd.s32 %s532, %s533
        %s535 = smul.addr %s534, 4
        %s536 = scalar_lea.vmem %s3, %s535
        // Predicated region
        $region82: #{_lambda_.19} parent=68 // pred_check
          %p537 = pneg %p135
        $region83: #{_lambda_.19} parent=68 // pred_check_branch
          %539 = sbr.rel (%p537) target = $region85
        $region84: #{_lambda_.19} parent=68 // pred_region
          %s540 = smul.u32 2, %s19
          %s541 = smul.u32 2, %s20
        $region85: #{_lambda_.19} parent=68 // pred_fallthru
          _
        // Predicated region
        $region86: #{_lambda_.19} parent=68 // pred_check
          %p542 = pneg %p135
        $region87: #{_lambda_.19} parent=68 // pred_check_branch
          %544 = sbr.rel (%p542) target = $region89
        $region88: #{_lambda_.19} parent=68 // pred_region
          %s545 = smul.u32 2, %s19
          %s546 = smul.u32 2, %s20
          %p547 = scmp.lt.s32.totalorder %s545, 1
          %s548 = scalar_select %p547, %s545, 1
          %p549 = scmp.lt.s32.totalorder %s546, 1
          %s550 = scalar_select %p549, %s546, 1
          %s551 = smul.addr %s548, 2
          %s552 = sadd.s32 %s550, %s551
          %s553 = smul.addr %s552, 4
          %s554 = scalar_lea.vmem %s3, %s553
        $region89: #{_lambda_.19} parent=68 // pred_fallthru
          _
      $region69: #{_lambda_.19} parent=5 // pred_fallthru
        _
      %p555 = scmp.le.s32.totalorder 2, %s9
      // Predicated region
      $region90: #{_lambda_.19} parent=5 // pred_check
        %p556 = pneg %p555
      $region91: #{_lambda_.19} parent=5 // pred_check_branch
        %558 = sbr.rel (%p556) target = $region93
      $region92: #{_lambda_.19} parent=5 // pred_region
        %s559 = ssub.s32 %s9, 2
      $region93: #{_lambda_.19} parent=5 // pred_fallthru
        _
    $region6: #{_lambda_.19} parent=1 // loop_footer
      %s13 = sadd.s32 1, %s9
    $region7: #{_lambda_.19} parent=1 // loop_footer_branch
      %8 = sbr.rel target = $region3
    $region8: #{_lambda_.19} parent=1 // loop_exit
      _

// kernel: _lambda_.20
$region0: #{_lambda_.20}
  #allocation0 [shape = 'u32[]', space=smem, size = 0x4, offset = 0x4, fixed_abs, tag = 'smem constant byte address 0x4 - core index']
  #allocation1 [shape = 'u32[144,128]{1,0:T(1,128)}', space=vmem, size = 0x12000, scoped, tag = 'internal scratch']
  #allocation2 [shape = 'f32[16,256]{1,0:T(8,128)}', space=vmem, size = 0x4000, scoped, tag = 'scratch operand']
  %s0 = inlined_call_operand.vmem [shape: bf16[16,128], index: 0, kind: input, shape index: {}]
  %s1 = inlined_call_operand.vmem [shape: bf16[128,256], index: 1, kind: input, shape index: {}]
  %s2 = inlined_call_operand.vmem [shape: f32[1,256], index: 2, kind: input, shape index: {}]
  %s3 = inlined_call_operand.vmem [shape: bf16[16,256], index: 3, kind: output, shape index: {}]
  %s4 = sld [smem:[#allocation0]]
  $region30: #{_lambda_.20} parent=0
    _
  %s6 = ssub.s32 1, %s4
  %s7 = scalar_select 0, %s6, %s4
  // Predicated region
  $region2: #{_lambda_.20} parent=0 // pred_check
    _
  $region3: #{_lambda_.20} parent=0 // pred_check_branch
    %9 = sbr.rel (0) target = $region5
  $region4: #{_lambda_.20} parent=0 // pred_region
    _
  $region5: #{_lambda_.20} parent=0 // pred_fallthru
    _
  // Predicated region
  $region6: #{_lambda_.20} parent=0 // pred_check
    _
  $region7: #{_lambda_.20} parent=0 // pred_check_branch
    %11 = sbr.rel (0) target = $region9
  $region8: #{_lambda_.20} parent=0 // pred_region
    _
  $region9: #{_lambda_.20} parent=0 // pred_fallthru
    _
  // Predicated region
  $region10: #{_lambda_.20} parent=0 // pred_check
    _
  $region11: #{_lambda_.20} parent=0 // pred_check_branch
    %13 = sbr.rel (0) target = $region13
  $region12: #{_lambda_.20} parent=0 // pred_region
    _
  $region13: #{_lambda_.20} parent=0 // pred_fallthru
    _
  %p15 = scmp.eq.s32.totalorder 0, 0
  // Predicated region
  $region14: #{_lambda_.20} parent=0 // pred_check
    %p16 = pneg %p15
  $region15: #{_lambda_.20} parent=0 // pred_check_branch
    %18 = sbr.rel (%p16) target = $region17
  $region16: #{_lambda_.20} parent=0 // pred_region
    %19 = vst [vmem:[#allocation2] sm:$0xff] 0.0
    %20 = vst [vmem:[#allocation2 + $0x8] sm:$0xff] 0.0
    %21 = vst [vmem:[#allocation2 + $0x10] sm:$0xff] 0.0
    %22 = vst [vmem:[#allocation2 + $0x18] sm:$0xff] 0.0
  $region17: #{_lambda_.20} parent=0 // pred_fallthru
    _
  %v23 = vld [vmem:[#allocation2] sm:$0xff]
  %v24 = vld [vmem:[#allocation2 + $0x8] sm:$0xff]
  %v25 = vld [vmem:[#allocation2 + $0x10] sm:$0xff]
  %v26 = vld [vmem:[#allocation2 + $0x18] sm:$0xff]
  %v27 = vld [vmem:[%s0] sm:$0xf]
  %v28 = vld [vmem:[%s0 + $0x4] sm:$0xf]
  %v29 = vld [vmem:[%s1] sm:$0xff]
  %v30 = vld [vmem:[%s1 + $0x8] sm:$0xff]
  %v31 = vld [vmem:[%s1 + $0x10] sm:$0xff]
  %v32 = vld [vmem:[%s1 + $0x18] sm:$0xff]
  %v33 = vld [vmem:[%s1 + $0x20] sm:$0xff]
  %v34 = vld [vmem:[%s1 + $0x28] sm:$0xff]
  %v35 = vld [vmem:[%s1 + $0x30] sm:$0xff]
  %v36 = vld [vmem:[%s1 + $0x38] sm:$0xff]
  %v37 = vld [vmem:[%s1 + $0x40] sm:$0xff]
  %v38 = vld [vmem:[%s1 + $0x48] sm:$0xff]
  %v39 = vld [vmem:[%s1 + $0x50] sm:$0xff]
  %v40 = vld [vmem:[%s1 + $0x58] sm:$0xff]
  %v41 = vld [vmem:[%s1 + $0x60] sm:$0xff]
  %v42 = vld [vmem:[%s1 + $0x68] sm:$0xff]
  %v43 = vld [vmem:[%s1 + $0x70] sm:$0xff]
  %v44 = vld [vmem:[%s1 + $0x78] sm:$0xff]
  %v47 = vunpack.c.l.b16 %v27
  %v48 = vunpack.c.l.b16 %v28
  %v49 = vpack.c.b16 %v48, %v47
  %v67 = vunpack.c.l.b16 %v29
  %v68 = vunpack.c.h.b16 %v29
  %v69 = vunpack.c.l.b16 %v30
  %v70 = vunpack.c.h.b16 %v30
  %v71 = vunpack.c.l.b16 %v31
  %v72 = vunpack.c.h.b16 %v31
  %v73 = vunpack.c.l.b16 %v32
  %v74 = vunpack.c.h.b16 %v32
  %v75 = vunpack.c.l.b16 %v33
  %v76 = vunpack.c.h.b16 %v33
  %v77 = vunpack.c.l.b16 %v34
  %v78 = vunpack.c.h.b16 %v34
  %v79 = vunpack.c.l.b16 %v35
  %v80 = vunpack.c.h.b16 %v35
  %v81 = vunpack.c.l.b16 %v36
  %v82 = vunpack.c.h.b16 %v36
  %v83 = vunpack.c.l.b16 %v37
  %v84 = vunpack.c.h.b16 %v37
  %v85 = vunpack.c.l.b16 %v38
  %v86 = vunpack.c.h.b16 %v38
  %v87 = vunpack.c.l.b16 %v39
  %v88 = vunpack.c.h.b16 %v39
  %v89 = vunpack.c.l.b16 %v40
  %v90 = vunpack.c.h.b16 %v40
  %v91 = vunpack.c.l.b16 %v41
  %v92 = vunpack.c.h.b16 %v41
  %v93 = vunpack.c.l.b16 %v42
  %v94 = vunpack.c.h.b16 %v42
  %v95 = vunpack.c.l.b16 %v43
  %v96 = vunpack.c.h.b16 %v43
  %v97 = vunpack.c.l.b16 %v44
  %v98 = vunpack.c.h.b16 %v44
  %v99 = vpack.c.b16 %v69, %v67
  %v100 = vpack.c.b16 %v70, %v68
  %v101 = vpack.c.b16 %v73, %v71
  %v102 = vpack.c.b16 %v74, %v72
  %v103 = vpack.c.b16 %v77, %v75
  %v104 = vpack.c.b16 %v78, %v76
  %v105 = vpack.c.b16 %v81, %v79
  %v106 = vpack.c.b16 %v82, %v80
  %v107 = vpack.c.b16 %v85, %v83
  %v108 = vpack.c.b16 %v86, %v84
  %v109 = vpack.c.b16 %v89, %v87
  %v110 = vpack.c.b16 %v90, %v88
  %v111 = vpack.c.b16 %v93, %v91
  %v112 = vpack.c.b16 %v94, %v92
  %v113 = vpack.c.b16 %v97, %v95
  %v114 = vpack.c.b16 %v98, %v96
  %131 = vmatprep.subr.bf16.mxu0 %v114
  %132 = vmatpush1.bf16.msra.mxu0 %v113
  %133 = vmatprep.subr.bf16.mxu0 %v112
  %134 = vmatpush1.bf16.msra.mxu0 %v111
  %135 = vmatprep.subr.bf16.mxu0 %v110
  %136 = vmatpush1.bf16.msra.mxu0 %v109
  %137 = vmatprep.subr.bf16.mxu0 %v108
  %138 = vmatpush1.bf16.msra.mxu0 %v107
  %139 = vmatprep.subr.bf16.mxu0 %v106
  %140 = vmatpush1.bf16.msra.mxu0 %v105
  %141 = vmatprep.subr.bf16.mxu0 %v104
  %142 = vmatpush1.bf16.msra.mxu0 %v103
  %143 = vmatprep.subr.bf16.mxu0 %v102
  %144 = vmatpush1.bf16.msra.mxu0 %v101
  %145 = vmatprep.subr.bf16.mxu0 %v100
  %146 = vmatpush1.bf16.msra.mxu0 %v99
  %147 = vmatprep.subr.bf16.mxu0 0
  %148 = vmatpush2.bf16.msra.mxu0 0
  %149 = vmatprep.subr.bf16.mxu0 0
  %150 = vmatpush2.bf16.msra.mxu0 0
  %151 = vmatprep.subr.bf16.mxu0 0
  %152 = vmatpush2.bf16.msra.mxu0 0
  %153 = vmatprep.subr.bf16.mxu0 0
  %154 = vmatpush2.bf16.msra.mxu0 0
  %155 = vmatprep.subr.bf16.mxu0 0
  %156 = vmatpush2.bf16.msra.mxu0 0
  %157 = vmatprep.subr.bf16.mxu0 0
  %158 = vmatpush2.bf16.msra.mxu0 0
  %159 = vmatprep.subr.bf16.mxu0 0
  %160 = vmatpush2.bf16.msra.mxu0 0
  %161 = vmatprep.subr.bf16.mxu0 0
  %162 = vmatpush2.bf16.msra.mxu0 0
  %163 = vmatprep.mubr.bf16.mxu0 0
  %164 = vmatmul.mubr.bf16.gmra.mxu0 %v49
  %v165 = vpop.f32.mrf.mxu0
  %v166 = vadd.f32 0.0, %v165
  %v167 = vpop.f32.mrf.mxu0
  %v168 = vadd.f32 0.0, %v167
  %v169 = vpop.f32.mrf.mxu0
  %v170 = vadd.f32 0.0, %v169
  %v171 = vpop.f32.mrf.mxu0
  %v172 = vadd.f32 0.0, %v171
  %173 = vdwg.mxu0
  %v174 = vadd.f32 %v23, %v166
  %v175 = vadd.f32 %v24, %v168
  %v176 = vadd.f32 %v25, %v170
  %v177 = vadd.f32 %v26, %v172
  %178 = vst [vmem:[#allocation2] sm:$0xff] %v174
  %179 = vst [vmem:[#allocation2 + $0x8] sm:$0xff] %v175
  %180 = vst [vmem:[#allocation2 + $0x10] sm:$0xff] %v176
  %181 = vst [vmem:[#allocation2 + $0x18] sm:$0xff] %v177
  // Predicated region
  $region18: #{_lambda_.20} parent=0 // pred_check
    %p182 = pneg %p15
  $region19: #{_lambda_.20} parent=0 // pred_check_branch
    %184 = sbr.rel (%p182) target = $region21
  $region20: #{_lambda_.20} parent=0 // pred_region
    %v185 = vld [vmem:[#allocation2] sm:$0xff]
    %v186 = vld [vmem:[#allocation2 + $0x8] sm:$0xff]
    %v187 = vld [vmem:[#allocation2 + $0x10] sm:$0xff]
    %v188 = vld [vmem:[#allocation2 + $0x18] sm:$0xff]
    %v189 = vld [vmem:[%s2] sm:$0x3]
    %v191 = vlaneseq
    %v192 = vshrl.u32 %v191, 7
    %v193 = vsub.s32 0, %v192
    %v194 = vrot.slane %v189, %v193
    %v195 = vlaneseq
    %v196 = vshrl.u32 %v195, 7
    %v197 = vsub.s32 1, %v196
    %v198 = vrot.slane %v189, %v197
    %v201 = vadd.f32 %v185, %v194
    %v202 = vadd.f32 %v186, %v198
    %v203 = vadd.f32 %v187, %v194
    %v204 = vadd.f32 %v188, %v198
    %v205 = vpack.c.bf16 %v203, %v201
    %v206 = vpack.c.bf16 %v204, %v202
    %v209 = vunpack.c.l.b16 %v205
    %v210 = vunpack.c.l.b16 %v206
    %v211 = vunpack.c.h.b16 %v205
    %v212 = vunpack.c.h.b16 %v206
    %v213 = vpack.c.b16 %v210, %v209
    %v214 = vpack.c.b16 %v212, %v211
    %217 = vst [vmem:[%s3] sm:$0xff] %v213
    %218 = vst [vmem:[%s3 + $0x8] sm:$0xff] %v214
  $region21: #{_lambda_.20} parent=0 // pred_fallthru
    _
  // Predicated region
  $region22: #{_lambda_.20} parent=0 // pred_check
    _
  $region23: #{_lambda_.20} parent=0 // pred_check_branch
    %220 = sbr.rel (0) target = $region25
  $region24: #{_lambda_.20} parent=0 // pred_region
    _
  $region25: #{_lambda_.20} parent=0 // pred_fallthru
    _
  // Predicated region
  $region26: #{_lambda_.20} parent=0 // pred_check
    _
  $region27: #{_lambda_.20} parent=0 // pred_check_branch
    %222 = sbr.rel (0) target = $region29
  $region28: #{_lambda_.20} parent=0 // pred_region
    _
  $region29: #{_lambda_.20} parent=0 // pred_fallthru
    _

// kernel: _lambda_.23
$region0: #{_lambda_.23}
  #allocation0 [shape = 'u32[]', space=smem, size = 0x4, offset = 0x4, fixed_abs, tag = 'smem constant byte address 0x4 - core index']
  #allocation1 [shape = 'u32[144,128]{1,0:T(1,128)}', space=vmem, size = 0x12000, scoped, tag = 'internal scratch']
  #allocation2 [shape = 'f32[16,512]{1,0:T(8,128)}', space=vmem, size = 0x8000, scoped, tag = 'scratch operand']
  %s0 = inlined_call_operand.vmem [shape: bf16[16,256], index: 0, kind: input, shape index: {}]
  %s1 = inlined_call_operand.vmem [shape: bf16[256,512], index: 1, kind: input, shape index: {}]
  %s2 = inlined_call_operand.vmem [shape: f32[1,512], index: 2, kind: input, shape index: {}]
  %s3 = inlined_call_operand.vmem [shape: bf16[16,512], index: 3, kind: output, shape index: {}]
  %s4 = sld [smem:[#allocation0]]
  $region30: #{_lambda_.23} parent=0
    _
  %s6 = ssub.s32 1, %s4
  %s7 = scalar_select 0, %s6, %s4
  // Predicated region
  $region2: #{_lambda_.23} parent=0 // pred_check
    _
  $region3: #{_lambda_.23} parent=0 // pred_check_branch
    %9 = sbr.rel (0) target = $region5
  $region4: #{_lambda_.23} parent=0 // pred_region
    _
  $region5: #{_lambda_.23} parent=0 // pred_fallthru
    _
  // Predicated region
  $region6: #{_lambda_.23} parent=0 // pred_check
    _
  $region7: #{_lambda_.23} parent=0 // pred_check_branch
    %11 = sbr.rel (0) target = $region9
  $region8: #{_lambda_.23} parent=0 // pred_region
    _
  $region9: #{_lambda_.23} parent=0 // pred_fallthru
    _
  // Predicated region
  $region10: #{_lambda_.23} parent=0 // pred_check
    _
  $region11: #{_lambda_.23} parent=0 // pred_check_branch
    %13 = sbr.rel (0) target = $region13
  $region12: #{_lambda_.23} parent=0 // pred_region
    _
  $region13: #{_lambda_.23} parent=0 // pred_fallthru
    _
  %p14 = scmp.eq.s32.totalorder 0, 0
  // Predicated region
  $region14: #{_lambda_.23} parent=0 // pred_check
    %p15 = pneg %p14
  $region15: #{_lambda_.23} parent=0 // pred_check_branch
    %17 = sbr.rel (%p15) target = $region17
  $region16: #{_lambda_.23} parent=0 // pred_region
    %18 = vst [vmem:[#allocation2] sm:$0xff] 0.0
    %19 = vst [vmem:[#allocation2 + $0x8] sm:$0xff] 0.0
    %20 = vst [vmem:[#allocation2 + $0x10] sm:$0xff] 0.0
    %21 = vst [vmem:[#allocation2 + $0x18] sm:$0xff] 0.0
    %22 = vst [vmem:[#allocation2 + $0x20] sm:$0xff] 0.0
    %23 = vst [vmem:[#allocation2 + $0x28] sm:$0xff] 0.0
    %24 = vst [vmem:[#allocation2 + $0x30] sm:$0xff] 0.0
    %25 = vst [vmem:[#allocation2 + $0x38] sm:$0xff] 0.0
  $region17: #{_lambda_.23} parent=0 // pred_fallthru
    _
  %v26 = vld [vmem:[#allocation2] sm:$0xff]
  %v27 = vld [vmem:[#allocation2 + $0x8] sm:$0xff]
  %v28 = vld [vmem:[#allocation2 + $0x10] sm:$0xff]
  %v29 = vld [vmem:[#allocation2 + $0x18] sm:$0xff]
  %v30 = vld [vmem:[#allocation2 + $0x20] sm:$0xff]
  %v31 = vld [vmem:[#allocation2 + $0x28] sm:$0xff]
  %v32 = vld [vmem:[#allocation2 + $0x30] sm:$0xff]
  %v33 = vld [vmem:[#allocation2 + $0x38] sm:$0xff]
  %v34 = vld [vmem:[%s0] sm:$0xff]
  %v35 = vld [vmem:[%s0 + $0x8] sm:$0xff]
  %v36 = vld [vmem:[%s1] sm:$0xff]
  %v37 = vld [vmem:[%s1 + $0x8] sm:$0xff]
  %v38 = vld [vmem:[%s1 + $0x10] sm:$0xff]
  %v39 = vld [vmem:[%s1 + $0x18] sm:$0xff]
  %v40 = vld [vmem:[%s1 + $0x20] sm:$0xff]
  %v41 = vld [vmem:[%s1 + $0x28] sm:$0xff]
  %v42 = vld [vmem:[%s1 + $0x30] sm:$0xff]
  %v43 = vld [vmem:[%s1 + $0x38] sm:$0xff]
  %v44 = vld [vmem:[%s1 + $0x40] sm:$0xff]
  %v45 = vld [vmem:[%s1 + $0x48] sm:$0xff]
  %v46 = vld [vmem:[%s1 + $0x50] sm:$0xff]
  %v47 = vld [vmem:[%s1 + $0x58] sm:$0xff]
  %v48 = vld [vmem:[%s1 + $0x60] sm:$0xff]
  %v49 = vld [vmem:[%s1 + $0x68] sm:$0xff]
  %v50 = vld [vmem:[%s1 + $0x70] sm:$0xff]
  %v51 = vld [vmem:[%s1 + $0x78] sm:$0xff]
  %v52 = vld [vmem:[%s1 + $0x80] sm:$0xff]
  %v53 = vld [vmem:[%s1 + $0x88] sm:$0xff]
  %v54 = vld [vmem:[%s1 + $0x90] sm:$0xff]
  %v55 = vld [vmem:[%s1 + $0x98] sm:$0xff]
  %v56 = vld [vmem:[%s1 + $0xa0] sm:$0xff]
  %v57 = vld [vmem:[%s1 + $0xa8] sm:$0xff]
  %v58 = vld [vmem:[%s1 + $0xb0] sm:$0xff]
  %v59 = vld [vmem:[%s1 + $0xb8] sm:$0xff]
  %v60 = vld [vmem:[%s1 + $0xc0] sm:$0xff]
  %v61 = vld [vmem:[%s1 + $0xc8] sm:$0xff]
  %v62 = vld [vmem:[%s1 + $0xd0] sm:$0xff]
  %v63 = vld [vmem:[%s1 + $0xd8] sm:$0xff]
  %v64 = vld [vmem:[%s1 + $0xe0] sm:$0xff]
  %v65 = vld [vmem:[%s1 + $0xe8] sm:$0xff]
  %v66 = vld [vmem:[%s1 + $0xf0] sm:$0xff]
  %v67 = vld [vmem:[%s1 + $0xf8] sm:$0xff]
  %v68 = vld [vmem:[%s1 + $0x100] sm:$0xff]
  %v69 = vld [vmem:[%s1 + $0x108] sm:$0xff]
  %v70 = vld [vmem:[%s1 + $0x110] sm:$0xff]
  %v71 = vld [vmem:[%s1 + $0x118] sm:$0xff]
  %v72 = vld [vmem:[%s1 + $0x120] sm:$0xff]
  %v73 = vld [vmem:[%s1 + $0x128] sm:$0xff]
  %v74 = vld [vmem:[%s1 + $0x130] sm:$0xff]
  %v75 = vld [vmem:[%s1 + $0x138] sm:$0xff]
  %v76 = vld [vmem:[%s1 + $0x140] sm:$0xff]
  %v77 = vld [vmem:[%s1 + $0x148] sm:$0xff]
  %v78 = vld [vmem:[%s1 + $0x150] sm:$0xff]
  %v79 = vld [vmem:[%s1 + $0x158] sm:$0xff]
  %v80 = vld [vmem:[%s1 + $0x160] sm:$0xff]
  %v81 = vld [vmem:[%s1 + $0x168] sm:$0xff]
  %v82 = vld [vmem:[%s1 + $0x170] sm:$0xff]
  %v83 = vld [vmem:[%s1 + $0x178] sm:$0xff]
  %v84 = vld [vmem:[%s1 + $0x180] sm:$0xff]
  %v85 = vld [vmem:[%s1 + $0x188] sm:$0xff]
  %v86 = vld [vmem:[%s1 + $0x190] sm:$0xff]
  %v87 = vld [vmem:[%s1 + $0x198] sm:$0xff]
  %v88 = vld [vmem:[%s1 + $0x1a0] sm:$0xff]
  %v89 = vld [vmem:[%s1 + $0x1a8] sm:$0xff]
  %v90 = vld [vmem:[%s1 + $0x1b0] sm:$0xff]
  %v91 = vld [vmem:[%s1 + $0x1b8] sm:$0xff]
  %v92 = vld [vmem:[%s1 + $0x1c0] sm:$0xff]
  %v93 = vld [vmem:[%s1 + $0x1c8] sm:$0xff]
  %v94 = vld [vmem:[%s1 + $0x1d0] sm:$0xff]
  %v95 = vld [vmem:[%s1 + $0x1d8] sm:$0xff]
  %v96 = vld [vmem:[%s1 + $0x1e0] sm:$0xff]
  %v97 = vld [vmem:[%s1 + $0x1e8] sm:$0xff]
  %v98 = vld [vmem:[%s1 + $0x1f0] sm:$0xff]
  %v99 = vld [vmem:[%s1 + $0x1f8] sm:$0xff]
  %v102 = vunpack.c.l.b16 %v34
  %v103 = vunpack.c.h.b16 %v34
  %v104 = vunpack.c.l.b16 %v35
  %v105 = vunpack.c.h.b16 %v35
  %v106 = vpack.c.b16 %v104, %v102
  %v107 = vpack.c.b16 %v105, %v103
  %v174 = vunpack.c.l.b16 %v36
  %v175 = vunpack.c.h.b16 %v36
  %v176 = vunpack.c.l.b16 %v37
  %v177 = vunpack.c.h.b16 %v37
  %v178 = vunpack.c.l.b16 %v38
  %v179 = vunpack.c.h.b16 %v38
  %v180 = vunpack.c.l.b16 %v39
  %v181 = vunpack.c.h.b16 %v39
  %v182 = vunpack.c.l.b16 %v40
  %v183 = vunpack.c.h.b16 %v40
  %v184 = vunpack.c.l.b16 %v41
  %v185 = vunpack.c.h.b16 %v41
  %v186 = vunpack.c.l.b16 %v42
  %v187 = vunpack.c.h.b16 %v42
  %v188 = vunpack.c.l.b16 %v43
  %v189 = vunpack.c.h.b16 %v43
  %v190 = vunpack.c.l.b16 %v44
  %v191 = vunpack.c.h.b16 %v44
  %v192 = vunpack.c.l.b16 %v45
  %v193 = vunpack.c.h.b16 %v45
  %v194 = vunpack.c.l.b16 %v46
  %v195 = vunpack.c.h.b16 %v46
  %v196 = vunpack.c.l.b16 %v47
  %v197 = vunpack.c.h.b16 %v47
  %v198 = vunpack.c.l.b16 %v48
  %v199 = vunpack.c.h.b16 %v48
  %v200 = vunpack.c.l.b16 %v49
  %v201 = vunpack.c.h.b16 %v49
  %v202 = vunpack.c.l.b16 %v50
  %v203 = vunpack.c.h.b16 %v50
  %v204 = vunpack.c.l.b16 %v51
  %v205 = vunpack.c.h.b16 %v51
  %v206 = vunpack.c.l.b16 %v52
  %v207 = vunpack.c.h.b16 %v52
  %v208 = vunpack.c.l.b16 %v53
  %v209 = vunpack.c.h.b16 %v53
  %v210 = vunpack.c.l.b16 %v54
  %v211 = vunpack.c.h.b16 %v54
  %v212 = vunpack.c.l.b16 %v55
  %v213 = vunpack.c.h.b16 %v55
  %v214 = vunpack.c.l.b16 %v56
  %v215 = vunpack.c.h.b16 %v56
  %v216 = vunpack.c.l.b16 %v57
  %v217 = vunpack.c.h.b16 %v57
  %v218 = vunpack.c.l.b16 %v58
  %v219 = vunpack.c.h.b16 %v58
  %v220 = vunpack.c.l.b16 %v59
  %v221 = vunpack.c.h.b16 %v59
  %v222 = vunpack.c.l.b16 %v60
  %v223 = vunpack.c.h.b16 %v60
  %v224 = vunpack.c.l.b16 %v61
  %v225 = vunpack.c.h.b16 %v61
  %v226 = vunpack.c.l.b16 %v62
  %v227 = vunpack.c.h.b16 %v62
  %v228 = vunpack.c.l.b16 %v63
  %v229 = vunpack.c.h.b16 %v63
  %v230 = vunpack.c.l.b16 %v64
  %v231 = vunpack.c.h.b16 %v64
  %v232 = vunpack.c.l.b16 %v65
  %v233 = vunpack.c.h.b16 %v65
  %v234 = vunpack.c.l.b16 %v66
  %v235 = vunpack.c.h.b16 %v66
  %v236 = vunpack.c.l.b16 %v67
  %v237 = vunpack.c.h.b16 %v67
  %v238 = vunpack.c.l.b16 %v68
  %v239 = vunpack.c.h.b16 %v68
  %v240 = vunpack.c.l.b16 %v69
  %v241 = vunpack.c.h.b16 %v69
  %v242 = vunpack.c.l.b16 %v70
  %v243 = vunpack.c.h.b16 %v70
  %v244 = vunpack.c.l.b16 %v71
  %v245 = vunpack.c.h.b16 %v71
  %v246 = vunpack.c.l.b16 %v72
  %v247 = vunpack.c.h.b16 %v72
  %v248 = vunpack.c.l.b16 %v73
  %v249 = vunpack.c.h.b16 %v73
  %v250 = vunpack.c.l.b16 %v74
  %v251 = vunpack.c.h.b16 %v74
  %v252 = vunpack.c.l.b16 %v75
  %v253 = vunpack.c.h.b16 %v75
  %v254 = vunpack.c.l.b16 %v76
  %v255 = vunpack.c.h.b16 %v76
  %v256 = vunpack.c.l.b16 %v77
  %v257 = vunpack.c.h.b16 %v77
  %v258 = vunpack.c.l.b16 %v78
  %v259 = vunpack.c.h.b16 %v78
  %v260 = vunpack.c.l.b16 %v79
  %v261 = vunpack.c.h.b16 %v79
  %v262 = vunpack.c.l.b16 %v80
  %v263 = vunpack.c.h.b16 %v80
  %v264 = vunpack.c.l.b16 %v81
  %v265 = vunpack.c.h.b16 %v81
  %v266 = vunpack.c.l.b16 %v82
  %v267 = vunpack.c.h.b16 %v82
  %v268 = vunpack.c.l.b16 %v83
  %v269 = vunpack.c.h.b16 %v83
  %v270 = vunpack.c.l.b16 %v84
  %v271 = vunpack.c.h.b16 %v84
  %v272 = vunpack.c.l.b16 %v85
  %v273 = vunpack.c.h.b16 %v85
  %v274 = vunpack.c.l.b16 %v86
  %v275 = vunpack.c.h.b16 %v86
  %v276 = vunpack.c.l.b16 %v87
  %v277 = vunpack.c.h.b16 %v87
  %v278 = vunpack.c.l.b16 %v88
  %v279 = vunpack.c.h.b16 %v88
  %v280 = vunpack.c.l.b16 %v89
  %v281 = vunpack.c.h.b16 %v89
  %v282 = vunpack.c.l.b16 %v90
  %v283 = vunpack.c.h.b16 %v90
  %v284 = vunpack.c.l.b16 %v91
  %v285 = vunpack.c.h.b16 %v91
  %v286 = vunpack.c.l.b16 %v92
  %v287 = vunpack.c.h.b16 %v92
  %v288 = vunpack.c.l.b16 %v93
  %v289 = vunpack.c.h.b16 %v93
  %v290 = vunpack.c.l.b16 %v94
  %v291 = vunpack.c.h.b16 %v94
  %v292 = vunpack.c.l.b16 %v95
  %v293 = vunpack.c.h.b16 %v95
  %v294 = vunpack.c.l.b16 %v96
  %v295 = vunpack.c.h.b16 %v96
  %v296 = vunpack.c.l.b16 %v97
  %v297 = vunpack.c.h.b16 %v97
  %v298 = vunpack.c.l.b16 %v98
  %v299 = vunpack.c.h.b16 %v98
  %v300 = vunpack.c.l.b16 %v99
  %v301 = vunpack.c.h.b16 %v99
  %v302 = vpack.c.b16 %v178, %v174
  %v303 = vpack.c.b16 %v179, %v175
  %v304 = vpack.c.b16 %v180, %v176
  %v305 = vpack.c.b16 %v181, %v177
  %v306 = vpack.c.b16 %v186, %v182
  %v307 = vpack.c.b16 %v187, %v183
  %v308 = vpack.c.b16 %v188, %v184
  %v309 = vpack.c.b16 %v189, %v185
  %v310 = vpack.c.b16 %v194, %v190
  %v311 = vpack.c.b16 %v195, %v191
  %v312 = vpack.c.b16 %v196, %v192
  %v313 = vpack.c.b16 %v197, %v193
  %v314 = vpack.c.b16 %v202, %v198
  %v315 = vpack.c.b16 %v203, %v199
  %v316 = vpack.c.b16 %v204, %v200
  %v317 = vpack.c.b16 %v205, %v201
  %v318 = vpack.c.b16 %v210, %v206
  %v319 = vpack.c.b16 %v211, %v207
  %v320 = vpack.c.b16 %v212, %v208
  %v321 = vpack.c.b16 %v213, %v209
  %v322 = vpack.c.b16 %v218, %v214
  %v323 = vpack.c.b16 %v219, %v215
  %v324 = vpack.c.b16 %v220, %v216
  %v325 = vpack.c.b16 %v221, %v217
  %v326 = vpack.c.b16 %v226, %v222
  %v327 = vpack.c.b16 %v227, %v223
  %v328 = vpack.c.b16 %v228, %v224
  %v329 = vpack.c.b16 %v229, %v225
  %v330 = vpack.c.b16 %v234, %v230
  %v331 = vpack.c.b16 %v235, %v231
  %v332 = vpack.c.b16 %v236, %v232
  %v333 = vpack.c.b16 %v237, %v233
  %v334 = vpack.c.b16 %v242, %v238
  %v335 = vpack.c.b16 %v243, %v239
  %v336 = vpack.c.b16 %v244, %v240
  %v337 = vpack.c.b16 %v245, %v241
  %v338 = vpack.c.b16 %v250, %v246
  %v339 = vpack.c.b16 %v251, %v247
  %v340 = vpack.c.b16 %v252, %v248
  %v341 = vpack.c.b16 %v253, %v249
  %v342 = vpack.c.b16 %v258, %v254
  %v343 = vpack.c.b16 %v259, %v255
  %v344 = vpack.c.b16 %v260, %v256
  %v345 = vpack.c.b16 %v261, %v257
  %v346 = vpack.c.b16 %v266, %v262
  %v347 = vpack.c.b16 %v267, %v263
  %v348 = vpack.c.b16 %v268, %v264
  %v349 = vpack.c.b16 %v269, %v265
  %v350 = vpack.c.b16 %v274, %v270
  %v351 = vpack.c.b16 %v275, %v271
  %v352 = vpack.c.b16 %v276, %v272
  %v353 = vpack.c.b16 %v277, %v273
  %v354 = vpack.c.b16 %v282, %v278
  %v355 = vpack.c.b16 %v283, %v279
  %v356 = vpack.c.b16 %v284, %v280
  %v357 = vpack.c.b16 %v285, %v281
  %v358 = vpack.c.b16 %v290, %v286
  %v359 = vpack.c.b16 %v291, %v287
  %v360 = vpack.c.b16 %v292, %v288
  %v361 = vpack.c.b16 %v293, %v289
  %v362 = vpack.c.b16 %v298, %v294
  %v363 = vpack.c.b16 %v299, %v295
  %v364 = vpack.c.b16 %v300, %v296
  %v365 = vpack.c.b16 %v301, %v297
  %430 = vmatprep.subr.bf16.mxu0 %v331
  %431 = vmatpush1.bf16.msra.mxu0 %v330
  %432 = vmatprep.subr.bf16.mxu0 %v327
  %433 = vmatpush1.bf16.msra.mxu0 %v326
  %434 = vmatprep.subr.bf16.mxu0 %v323
  %435 = vmatpush1.bf16.msra.mxu0 %v322
  %436 = vmatprep.subr.bf16.mxu0 %v319
  %437 = vmatpush1.bf16.msra.mxu0 %v318
  %438 = vmatprep.subr.bf16.mxu0 %v315
  %439 = vmatpush1.bf16.msra.mxu0 %v314
  %440 = vmatprep.subr.bf16.mxu0 %v311
  %441 = vmatpush1.bf16.msra.mxu0 %v310
  %442 = vmatprep.subr.bf16.mxu0 %v307
  %443 = vmatpush1.bf16.msra.mxu0 %v306
  %444 = vmatprep.subr.bf16.mxu0 %v303
  %445 = vmatpush1.bf16.msra.mxu0 %v302
  %446 = vmatprep.subr.bf16.mxu0 %v363
  %447 = vmatpush2.bf16.msra.mxu0 %v362
  %448 = vmatprep.subr.bf16.mxu0 %v359
  %449 = vmatpush2.bf16.msra.mxu0 %v358
  %450 = vmatprep.subr.bf16.mxu0 %v355
  %451 = vmatpush2.bf16.msra.mxu0 %v354
  %452 = vmatprep.subr.bf16.mxu0 %v351
  %453 = vmatpush2.bf16.msra.mxu0 %v350
  %454 = vmatprep.subr.bf16.mxu0 %v347
  %455 = vmatpush2.bf16.msra.mxu0 %v346
  %456 = vmatprep.subr.bf16.mxu0 %v343
  %457 = vmatpush2.bf16.msra.mxu0 %v342
  %458 = vmatprep.subr.bf16.mxu0 %v339
  %459 = vmatpush2.bf16.msra.mxu0 %v338
  %460 = vmatprep.subr.bf16.mxu0 %v335
  %461 = vmatpush2.bf16.msra.mxu0 %v334
  %462 = vmatprep.mubr.bf16.mxu0 %v107
  %463 = vmatmul.mubr.bf16.gmra.mxu0 %v106
  %v464 = vpop.f32.mrf.mxu0
  %v465 = vadd.f32 0.0, %v464
  %v466 = vpop.f32.mrf.mxu0
  %v467 = vadd.f32 0.0, %v466
  %v468 = vpop.f32.mrf.mxu0
  %v469 = vadd.f32 0.0, %v468
  %v470 = vpop.f32.mrf.mxu0
  %v471 = vadd.f32 0.0, %v470
  %472 = vdwg.mxu0
  %473 = vmatprep.subr.bf16.mxu0 %v333
  %474 = vmatpush1.bf16.msra.mxu0 %v332
  %475 = vmatprep.subr.bf16.mxu0 %v329
  %476 = vmatpush1.bf16.msra.mxu0 %v328
  %477 = vmatprep.subr.bf16.mxu0 %v325
  %478 = vmatpush1.bf16.msra.mxu0 %v324
  %479 = vmatprep.subr.bf16.mxu0 %v321
  %480 = vmatpush1.bf16.msra.mxu0 %v320
  %481 = vmatprep.subr.bf16.mxu0 %v317
  %482 = vmatpush1.bf16.msra.mxu0 %v316
  %483 = vmatprep.subr.bf16.mxu0 %v313
  %484 = vmatpush1.bf16.msra.mxu0 %v312
  %485 = vmatprep.subr.bf16.mxu0 %v309
  %486 = vmatpush1.bf16.msra.mxu0 %v308
  %487 = vmatprep.subr.bf16.mxu0 %v305
  %488 = vmatpush1.bf16.msra.mxu0 %v304
  %489 = vmatprep.subr.bf16.mxu0 %v365
  %490 = vmatpush2.bf16.msra.mxu0 %v364
  %491 = vmatprep.subr.bf16.mxu0 %v361
  %492 = vmatpush2.bf16.msra.mxu0 %v360
  %493 = vmatprep.subr.bf16.mxu0 %v357
  %494 = vmatpush2.bf16.msra.mxu0 %v356
  %495 = vmatprep.subr.bf16.mxu0 %v353
  %496 = vmatpush2.bf16.msra.mxu0 %v352
  %497 = vmatprep.subr.bf16.mxu0 %v349
  %498 = vmatpush2.bf16.msra.mxu0 %v348
  %499 = vmatprep.subr.bf16.mxu0 %v345
  %500 = vmatpush2.bf16.msra.mxu0 %v344
  %501 = vmatprep.subr.bf16.mxu0 %v341
  %502 = vmatpush2.bf16.msra.mxu0 %v340
  %503 = vmatprep.subr.bf16.mxu0 %v337
  %504 = vmatpush2.bf16.msra.mxu0 %v336
  %505 = vmatprep.mubr.bf16.mxu0 %v107
  %506 = vmatmul.mubr.bf16.gmra.mxu0 %v106
  %v507 = vpop.f32.mrf.mxu0
  %v508 = vadd.f32 0.0, %v507
  %v509 = vpop.f32.mrf.mxu0
  %v510 = vadd.f32 0.0, %v509
  %v511 = vpop.f32.mrf.mxu0
  %v512 = vadd.f32 0.0, %v511
  %v513 = vpop.f32.mrf.mxu0
  %v514 = vadd.f32 0.0, %v513
  %515 = vdwg.mxu0
  %v516 = vadd.f32 %v26, %v465
  %v517 = vadd.f32 %v27, %v467
  %v518 = vadd.f32 %v28, %v508
  %v519 = vadd.f32 %v29, %v510
  %v520 = vadd.f32 %v30, %v469
  %v521 = vadd.f32 %v31, %v471
  %v522 = vadd.f32 %v32, %v512
  %v523 = vadd.f32 %v33, %v514
  %524 = vst [vmem:[#allocation2] sm:$0xff] %v516
  %525 = vst [vmem:[#allocation2 + $0x8] sm:$0xff] %v517
  %526 = vst [vmem:[#allocation2 + $0x10] sm:$0xff] %v518
  %527 = vst [vmem:[#allocation2 + $0x18] sm:$0xff] %v519
  %528 = vst [vmem:[#allocation2 + $0x20] sm:$0xff] %v520
  %529 = vst [vmem:[#allocation2 + $0x28] sm:$0xff] %v521
  %530 = vst [vmem:[#allocation2 + $0x30] sm:$0xff] %v522
  %531 = vst [vmem:[#allocation2 + $0x38] sm:$0xff] %v523
  // Predicated region
  $region18: #{_lambda_.23} parent=0 // pred_check
    %p532 = pneg %p14
  $region19: #{_lambda_.23} parent=0 // pred_check_branch
    %534 = sbr.rel (%p532) target = $region21
  $region20: #{_lambda_.23} parent=0 // pred_region
    %v535 = vld [vmem:[#allocation2] sm:$0xff]
    %v536 = vld [vmem:[#allocation2 + $0x8] sm:$0xff]
    %v537 = vld [vmem:[#allocation2 + $0x10] sm:$0xff]
    %v538 = vld [vmem:[#allocation2 + $0x18] sm:$0xff]
    %v539 = vld [vmem:[#allocation2 + $0x20] sm:$0xff]
    %v540 = vld [vmem:[#allocation2 + $0x28] sm:$0xff]
    %v541 = vld [vmem:[#allocation2 + $0x30] sm:$0xff]
    %v542 = vld [vmem:[#allocation2 + $0x38] sm:$0xff]
    %v543 = vld [vmem:[%s2] sm:$0xf]
    %v545 = vlaneseq
    %v546 = vshrl.u32 %v545, 7
    %v547 = vsub.s32 0, %v546
    %v548 = vrot.slane %v543, %v547
    %v549 = vlaneseq
    %v550 = vshrl.u32 %v549, 7
    %v551 = vsub.s32 1, %v550
    %v552 = vrot.slane %v543, %v551
    %v553 = vlaneseq
    %v554 = vshrl.u32 %v553, 7
    %v555 = vsub.s32 2, %v554
    %v556 = vrot.slane %v543, %v555
    %v557 = vlaneseq
    %v558 = vshrl.u32 %v557, 7
    %v559 = vsub.s32 3, %v558
    %v560 = vrot.slane %v543, %v559
    %v565 = vadd.f32 %v535, %v548
    %v566 = vadd.f32 %v536, %v552
    %v567 = vadd.f32 %v537, %v556
    %v568 = vadd.f32 %v538, %v560
    %v569 = vadd.f32 %v539, %v548
    %v570 = vadd.f32 %v540, %v552
    %v571 = vadd.f32 %v541, %v556
    %v572 = vadd.f32 %v542, %v560
    %v573 = vpack.c.bf16 %v569, %v565
    %v574 = vpack.c.bf16 %v570, %v566
    %v575 = vpack.c.bf16 %v571, %v567
    %v576 = vpack.c.bf16 %v572, %v568
    %v581 = vunpack.c.l.b16 %v573
    %v582 = vunpack.c.l.b16 %v574
    %v583 = vunpack.c.l.b16 %v575
    %v584 = vunpack.c.l.b16 %v576
    %v585 = vunpack.c.h.b16 %v573
    %v586 = vunpack.c.h.b16 %v574
    %v587 = vunpack.c.h.b16 %v575
    %v588 = vunpack.c.h.b16 %v576
    %v589 = vpack.c.b16 %v582, %v581
    %v590 = vpack.c.b16 %v584, %v583
    %v591 = vpack.c.b16 %v586, %v585
    %v592 = vpack.c.b16 %v588, %v587
    %597 = vst [vmem:[%s3] sm:$0xff] %v589
    %598 = vst [vmem:[%s3 + $0x8] sm:$0xff] %v590
    %599 = vst [vmem:[%s3 + $0x10] sm:$0xff] %v591
    %600 = vst [vmem:[%s3 + $0x18] sm:$0xff] %v592
  $region21: #{_lambda_.23} parent=0 // pred_fallthru
    _
  // Predicated region
  $region22: #{_lambda_.23} parent=0 // pred_check
    _
  $region23: #{_lambda_.23} parent=0 // pred_check_branch
    %602 = sbr.rel (0) target = $region25
  $region24: #{_lambda_.23} parent=0 // pred_region
    _
  $region25: #{_lambda_.23} parent=0 // pred_fallthru
    _
  // Predicated region
  $region26: #{_lambda_.23} parent=0 // pred_check
    _
  $region27: #{_lambda_.23} parent=0 // pred_check_branch
    %604 = sbr.rel (0) target = $region29
  $region28: #{_lambda_.23} parent=0 // pred_region
    _
  $region29: #{_lambda_.23} parent=0 // pred_fallthru
    _

// kernel: _lambda_.22
$region0: #{_lambda_.22}
  #allocation0 [shape = 'u32[]', space=smem, size = 0x4, offset = 0x4, fixed_abs, tag = 'smem constant byte address 0x4 - core index']
  #allocation1 [shape = 'u32[144,128]{1,0:T(1,128)}', space=vmem, size = 0x12000, scoped, tag = 'internal scratch']
  #allocation2 [shape = 'f32[16,512]{1,0:T(8,128)}', space=vmem, size = 0x8000, scoped, tag = 'scratch operand']
  %s0 = inlined_call_operand.vmem [shape: bf16[16,2304], index: 0, kind: input, shape index: {}]
  %s1 = inlined_call_operand.vmem [shape: bf16[2304,512], index: 1, kind: input, shape index: {}]
  %s2 = inlined_call_operand.vmem [shape: f32[1,512], index: 2, kind: input, shape index: {}]
  %s3 = inlined_call_operand.vmem [shape: bf16[16,512], index: 3, kind: output, shape index: {}]
  %s4 = sld [smem:[#allocation0]]
  $region91: #{_lambda_.22} parent=0
    _
  %s6 = ssub.s32 1, %s4
  %s7 = scalar_select 0, %s6, %s4
  $region1: #{_lambda_.22} parent=0
    #allocation3 [shape = 'u8[16384]{0}', space=vmem, size = 0x4000, scoped, tag = 'input window, operand 0']
    loop: start=0, step=1, limit=11
    $region2: #{_lambda_.22} parent=1 // loop_pre_header
      _
    $region3: #{_lambda_.22} parent=1 // loop_header
      %s9 = sphi 0, %s13
      %p10 = scmp.ge.s32.totalorder %s9, 11
      %s16 = sphi 0, %s35
      %s17 = sphi 0, %s31
      %s18 = sphi 0, %s27
      %s19 = sphi 0, %s16
      %s20 = sphi 0, %s17
      %s21 = sphi 0, %s18
      %s22 = sphi 0, %s19
      %s23 = sphi 0, %s20
      %s24 = sphi 0, %s21
      %s40 = sphi 0, %s42
      %s43 = sphi 0, %s40
      %s44 = sphi 0, %s43
      %s60 = sphi 0, %s44
      %s68 = sphi 0, %s70
      %s71 = sphi 0, %s68
      %s72 = sphi 0, %s71
      %s88 = sphi 0, %s72
      %s94 = sphi 0, %s96
      %s97 = sphi 0, %s94
      %s98 = sphi 0, %s97
      %s114 = sphi 0, %s98
      %s122 = sphi 0, %s124
      %s125 = sphi 0, %s122
      %s126 = sphi 0, %s125
      %s142 = sphi 0, %s126
    $region4: #{_lambda_.22} parent=1 // loop_header_branch
      %12 = sbr.rel (%p10) target = $region8
    $region5: #{_lambda_.22} parent=1 // loop_body
      %s14 = ssub.s32 %s9, 1
      %s15 = ssub.s32 %s9, 2
      %s25 = sadd.s32 1, %s18
      %p26 = scmp.ge.s32.totalorder %s25, 9
      %s27 = scalar_select %p26, 0, %s25
      %s28 = sadd.s32 1, %s17
      %s29 = scalar_select %p26, %s28, %s17
      %p30 = scmp.ge.s32.totalorder %s29, 1
      %s31 = scalar_select %p30, 0, %s29
      %s32 = sadd.s32 1, %s16
      %s33 = scalar_select %p30, %s32, %s16
      %p34 = scmp.ge.s32.totalorder %s33, 1
      %s35 = scalar_select %p34, 0, %s33
      %s36 = ssub.s32 %s16, %s35
      %s37 = ssub.s32 %s18, %s27
      %s38 = sor.u32 %s36, %s37
      %p39 = scmp.eq.s32.totalorder %s38, 0
      %s41 = sadd.s32 %s40, 1
      %s42 = scalar_select %p39, %s40, %s41
      %p45 = pneg %p39
      %p46 = scmp.eq.s32.totalorder %s9, 8
      %p47 = por %p45, %p46
      %p48 = scmp.ne.s32.totalorder %s40, %s43
      %p49 = scmp.eq.s32.totalorder %s9, 0
      %p50 = por %p48, %p49
      %p51 = scmp.ne.s32.totalorder %s40, %s43
      %p52 = scmp.eq.s32.totalorder %s14, 8
      %p53 = por %p51, %p52
      %p54 = scmp.ne.s32.totalorder %s43, %s44
      %p55 = scmp.eq.s32.totalorder %s14, 0
      %p56 = por %p54, %p55
      %p57 = scmp.ne.s32.totalorder %s43, %s44
      %p58 = scmp.eq.s32.totalorder %s15, 8
      %p59 = por %p57, %p58
      %p61 = scmp.ne.s32.totalorder %s44, %s60
      %p62 = scmp.eq.s32.totalorder %s15, 0
      %p63 = por %p61, %p62
      %s64 = ssub.s32 %s18, %s27
      %s65 = ssub.s32 %s17, %s31
      %s66 = sor.u32 %s64, %s65
      %p67 = scmp.eq.s32.totalorder %s66, 0
      %s69 = sadd.s32 %s68, 1
      %s70 = scalar_select %p67, %s68, %s69
      %p73 = pneg %p67
      %p74 = scmp.eq.s32.totalorder %s9, 8
      %p75 = por %p73, %p74
      %p76 = scmp.ne.s32.totalorder %s68, %s71
      %p77 = scmp.eq.s32.totalorder %s9, 0
      %p78 = por %p76, %p77
      %p79 = scmp.ne.s32.totalorder %s68, %s71
      %p80 = scmp.eq.s32.totalorder %s14, 8
      %p81 = por %p79, %p80
      %p82 = scmp.ne.s32.totalorder %s71, %s72
      %p83 = scmp.eq.s32.totalorder %s14, 0
      %p84 = por %p82, %p83
      %p85 = scmp.ne.s32.totalorder %s71, %s72
      %p86 = scmp.eq.s32.totalorder %s15, 8
      %p87 = por %p85, %p86
      %p89 = scmp.ne.s32.totalorder %s72, %s88
      %p90 = scmp.eq.s32.totalorder %s15, 0
      %p91 = por %p89, %p90
      %s92 = ssub.s32 %s17, %s31
      %p93 = scmp.eq.s32.totalorder %s92, 0
      %s95 = sadd.s32 %s94, 1
      %s96 = scalar_select %p93, %s94, %s95
      %p99 = pneg %p93
      %p100 = scmp.eq.s32.totalorder %s9, 8
      %p101 = por %p99, %p100
      %p102 = scmp.ne.s32.totalorder %s94, %s97
      %p103 = scmp.eq.s32.totalorder %s9, 0
      %p104 = por %p102, %p103
      %p105 = scmp.ne.s32.totalorder %s94, %s97
      %p106 = scmp.eq.s32.totalorder %s14, 8
      %p107 = por %p105, %p106
      %p108 = scmp.ne.s32.totalorder %s97, %s98
      %p109 = scmp.eq.s32.totalorder %s14, 0
      %p110 = por %p108, %p109
      %p111 = scmp.ne.s32.totalorder %s97, %s98
      %p112 = scmp.eq.s32.totalorder %s15, 8
      %p113 = por %p111, %p112
      %p115 = scmp.ne.s32.totalorder %s98, %s114
      %p116 = scmp.eq.s32.totalorder %s15, 0
      %p117 = por %p115, %p116
      %s118 = ssub.s32 %s16, %s35
      %s119 = ssub.s32 %s17, %s31
      %s120 = sor.u32 %s118, %s119
      %p121 = scmp.eq.s32.totalorder %s120, 0
      %s123 = sadd.s32 %s122, 1
      %s124 = scalar_select %p121, %s122, %s123
      %p127 = pneg %p121
      %p128 = scmp.eq.s32.totalorder %s9, 8
      %p129 = por %p127, %p128
      %p130 = scmp.ne.s32.totalorder %s122, %s125
      %p131 = scmp.eq.s32.totalorder %s9, 0
      %p132 = por %p130, %p131
      %p133 = scmp.ne.s32.totalorder %s122, %s125
      %p134 = scmp.eq.s32.totalorder %s14, 8
      %p135 = por %p133, %p134
      %p136 = scmp.ne.s32.totalorder %s125, %s126
      %p137 = scmp.eq.s32.totalorder %s14, 0
      %p138 = por %p136, %p137
      %p139 = scmp.ne.s32.totalorder %s125, %s126
      %p140 = scmp.eq.s32.totalorder %s15, 8
      %p141 = por %p139, %p140
      %p143 = scmp.ne.s32.totalorder %s126, %s142
      %p144 = scmp.eq.s32.totalorder %s15, 0
      %p145 = por %p143, %p144
      %p146 = scmp.le.s32.totalorder 1, %s9
      %p147 = scmp.lt.s32.totalorder %s9, 10
      %p148 = pnand %p146, %p147
      %p149 = pneg %p148
      // Predicated region
      $region9: #{_lambda_.22} parent=5 // pred_check
        _
      $region10: #{_lambda_.22} parent=5 // pred_check_branch
        %151 = sbr.rel (%p148) target = $region12
      $region11: #{_lambda_.22} parent=5 // pred_region
        %s152 = ssub.s32 %s9, 1
        // Predicated region
        $region13: #{_lambda_.22} parent=11 // pred_check
          %p153 = pneg %p110
        $region14: #{_lambda_.22} parent=11 // pred_check_branch
          %155 = sbr.rel (%p153) target = $region16
        $region15: #{_lambda_.22} parent=11 // pred_region
          %s156 = smul.u32 4, %s20
          %p157 = scmp.lt.s32.totalorder %s156, 3
          %s158 = scalar_select %p157, %s156, 3
          %s159 = scalar_lea.vmem %s2, %s158
          %s160 = smul.u32 4, %s20
        $region16: #{_lambda_.22} parent=11 // pred_fallthru
          _
      $region12: #{_lambda_.22} parent=5 // pred_fallthru
        _
      %p161 = scmp.lt.s32.totalorder %s9, 9
      // Predicated region
      $region17: #{_lambda_.22} parent=5 // pred_check
        %p162 = pneg %p161
      $region18: #{_lambda_.22} parent=5 // pred_check_branch
        %164 = sbr.rel (%p162) target = $region20
      $region19: #{_lambda_.22} parent=5 // pred_region
        // Predicated region
        $region21: #{_lambda_.22} parent=19 // pred_check
          %p165 = pneg %p50
        $region22: #{_lambda_.22} parent=19 // pred_check_branch
          %167 = sbr.rel (%p165) target = $region24
        $region23: #{_lambda_.22} parent=19 // pred_region
          %s168 = sand.u32 %s40, 1
          %s169 = sand.u32 %s40, 1
          %s170 = smul.addr %s169, 16
          %s171 = scalar_lea.vmem [#allocation3], %s170
          %s172 = smul.u32 2, %s16
          %s173 = smul.u32 2, %s18
          %s174 = smul.addr %s172, 18
          %s175 = sadd.s32 %s173, %s174
          %s176 = smul.addr %s175, 4
          %s177 = scalar_lea.vmem %s0, %s176
          // Predicated region
          $region25: #{_lambda_.22} parent=23 // pred_check
            _
          $region26: #{_lambda_.22} parent=23 // pred_check_branch
            %179 = sbr.rel (0) target = $region28
          $region27: #{_lambda_.22} parent=23 // pred_region
            // Predicated region
            $region29: #{_lambda_.22} parent=27 // pred_check
              _
            $region30: #{_lambda_.22} parent=27 // pred_check_branch
              %181 = sbr.rel (0) target = $region32
            $region31: #{_lambda_.22} parent=27 // pred_region
              // Predicated region
              $region44: #{_lambda_.22} parent=31 // pred_check
                _
              $region45: #{_lambda_.22} parent=31 // pred_check_branch
                %199 = sbr.rel (0) target = $region47
              $region46: #{_lambda_.22} parent=31 // pred_region
                loop: start=0, step=1, limit=1
                $region48: #{_lambda_.22} parent=46 // loop_pre_header
                  _
                $region49: #{_lambda_.22} parent=46 // loop_header
                  %s201 = sphi 0, %s205
                  %p202 = scmp.ge.s32.totalorder %s201, 1
                  %s206 = sphi %s177, %s177
                  %s207 = sphi %s171, %s171
                $region50: #{_lambda_.22} parent=46 // loop_header_branch
                  %204 = sbr.rel (%p202) target = $region54
                $region51: #{_lambda_.22} parent=46 // loop_body
                  %v208 = vld [vmem:[%s206] sm:$0xff]
                  %209 = vst [vmem:[%s207] sm:$0xff] %v208
                  %v210 = vld [vmem:[%s206 + $0x48] sm:$0xff]
                  %211 = vst [vmem:[%s207 + $0x8] sm:$0xff] %v210
                $region52: #{_lambda_.22} parent=46 // loop_footer
                  %s205 = sadd.s32 1, %s201
                $region53: #{_lambda_.22} parent=46 // loop_footer_branch
                  %200 = sbr.rel target = $region49
                $region54: #{_lambda_.22} parent=46 // loop_exit
                  _
              $region47: #{_lambda_.22} parent=31 // pred_fallthru
                _
              // Predicated region
              $region55: #{_lambda_.22} parent=31 // pred_check
                _
              $region56: #{_lambda_.22} parent=31 // pred_check_branch
                %213 = sbr.rel target = $region58
              $region57: #{_lambda_.22} parent=31 // pred_region
                _
              $region58: #{_lambda_.22} parent=31 // pred_fallthru
                _
            $region32: #{_lambda_.22} parent=27 // pred_fallthru
              _
            // Predicated region
            $region33: #{_lambda_.22} parent=27 // pred_check
              _
            $region34: #{_lambda_.22} parent=27 // pred_check_branch
              %183 = sbr.rel target = $region36
            $region35: #{_lambda_.22} parent=27 // pred_region
              %s185 = ssub.s32 256, 1
              loop: start=0, step=1, limit=1
              $region37: #{_lambda_.22} parent=35 // loop_pre_header
                _
              $region38: #{_lambda_.22} parent=35 // loop_header
                %s187 = sphi 0, %s191
                %p188 = scmp.ge.s32.totalorder %s187, 1
                %s192 = sphi %s177, %s177
                %s193 = sphi %s171, %s171
              $region39: #{_lambda_.22} parent=35 // loop_header_branch
                %190 = sbr.rel (%p188) target = $region43
              $region40: #{_lambda_.22} parent=35 // loop_body
                %v194 = vld [vmem:[%s192] sm:%s185]
                %195 = vst [vmem:[%s193] sm:%s185] %v194
                %v196 = vld [vmem:[%s192 + $0x48] sm:%s185]
                %197 = vst [vmem:[%s193 + $0x8] sm:%s185] %v196
              $region41: #{_lambda_.22} parent=35 // loop_footer
                %s191 = sadd.s32 1, %s187
              $region42: #{_lambda_.22} parent=35 // loop_footer_branch
                %186 = sbr.rel target = $region38
              $region43: #{_lambda_.22} parent=35 // loop_exit
                _
            $region36: #{_lambda_.22} parent=27 // pred_fallthru
              _
          $region28: #{_lambda_.22} parent=23 // pred_fallthru
            _
          %214 = vnop
        $region24: #{_lambda_.22} parent=19 // pred_fallthru
          _
        // Predicated region
        $region59: #{_lambda_.22} parent=19 // pred_check
          %p215 = pneg %p78
        $region60: #{_lambda_.22} parent=19 // pred_check_branch
          %217 = sbr.rel (%p215) target = $region62
        $region61: #{_lambda_.22} parent=19 // pred_region
          %s218 = smul.u32 32, %s18
          %s219 = smul.u32 4, %s17
          %p220 = scmp.lt.s32.totalorder %s218, 287
          %s221 = scalar_select %p220, %s218, 287
          %p222 = scmp.lt.s32.totalorder %s219, 3
          %s223 = scalar_select %p222, %s219, 3
          %s224 = smul.addr %s221, 4
          %s225 = sadd.s32 %s223, %s224
          %s226 = smul.addr %s225, 4
          %s227 = scalar_lea.vmem %s1, %s226
          %s228 = smul.u32 32, %s18
          %s229 = smul.u32 4, %s17
        $region62: #{_lambda_.22} parent=19 // pred_fallthru
          _
      $region20: #{_lambda_.22} parent=5 // pred_fallthru
        _
      %p230 = scmp.le.s32.totalorder 1, %s9
      %p231 = scmp.lt.s32.totalorder %s9, 10
      %p232 = pnand %p230, %p231
      %p233 = pneg %p232
      // Predicated region
      $region63: #{_lambda_.22} parent=5 // pred_check
        _
      $region64: #{_lambda_.22} parent=5 // pred_check_branch
        %235 = sbr.rel (%p232) target = $region66
      $region65: #{_lambda_.22} parent=5 // pred_region
        %s236 = ssub.s32 %s9, 1
        %s237 = sand.u32 %s43, 1
        %s238 = sand.u32 %s43, 1
        %s239 = smul.addr %s238, 16
        %s240 = scalar_lea.vmem [#allocation3], %s239
        // Predicated region
        $region67: #{_lambda_.22} parent=65 // pred_check
          %p241 = pneg %p56
        $region68: #{_lambda_.22} parent=65 // pred_check_branch
          %243 = sbr.rel (%p241) target = $region70
        $region69: #{_lambda_.22} parent=65 // pred_region
          _
        $region70: #{_lambda_.22} parent=65 // pred_fallthru
          _
        %s244 = sand.u32 %s43, 1
        %s245 = sand.u32 %s43, 1
        %s246 = smul.addr %s245, 16
        %s247 = scalar_lea.vmem [#allocation3], %s246
        %p248 = pneg %p56
        %p249 = pneg %p53
        %s250 = smul.u32 32, %s21
        %s251 = smul.u32 4, %s20
        %p252 = scmp.lt.s32.totalorder %s250, 287
        %s253 = scalar_select %p252, %s250, 287
        %p254 = scmp.lt.s32.totalorder %s251, 3
        %s255 = scalar_select %p254, %s251, 3
        %s256 = smul.addr %s253, 4
        %s257 = sadd.s32 %s255, %s256
        %s258 = smul.addr %s257, 4
        %s259 = scalar_lea.vmem %s1, %s258
        %p260 = pneg %p84
        %p261 = pneg %p81
        %s262 = smul.u32 4, %s20
        %p263 = scmp.lt.s32.totalorder %s262, 3
        %s264 = scalar_select %p263, %s262, 3
        %s265 = scalar_lea.vmem %s2, %s264
        %p266 = pneg %p110
        %p267 = pneg %p107
        %p268 = pneg %p138
        %p269 = pneg %p135
        %s270 = smul.u32 2, %s19
        %s271 = smul.u32 4, %s20
        %p272 = scmp.lt.s32.totalorder %s270, 1
        %s273 = scalar_select %p272, %s270, 1
        %p274 = scmp.lt.s32.totalorder %s271, 3
        %s275 = scalar_select %p274, %s271, 3
        %s276 = smul.addr %s273, 4
        %s277 = sadd.s32 %s275, %s276
        %s278 = smul.addr %s277, 4
        %s279 = scalar_lea.vmem %s3, %s278
        %s280 = smul.u32 2, %s19
        %s281 = smul.u32 2, %s21
        %s282 = smul.u32 32, %s21
        %s283 = smul.u32 4, %s20
        %p284 = scmp.lt.s32.totalorder %s282, 287
        %s285 = scalar_select %p284, %s282, 287
        %p286 = scmp.lt.s32.totalorder %s283, 3
        %s287 = scalar_select %p286, %s283, 3
        %s288 = smul.addr %s285, 4
        %s289 = sadd.s32 %s287, %s288
        %s290 = smul.addr %s289, 4
        %s291 = scalar_lea.vmem %s1, %s290
        %s292 = smul.u32 32, %s21
        %s293 = smul.u32 4, %s20
        %s294 = smul.u32 4, %s20
        %p295 = scmp.lt.s32.totalorder %s294, 3
        %s296 = scalar_select %p295, %s294, 3
        %s297 = scalar_lea.vmem %s2, %s296
        %s298 = smul.u32 4, %s20
        %s299 = smul.u32 2, %s19
        %s300 = smul.u32 4, %s20
        %p301 = scmp.lt.s32.totalorder %s299, 1
        %s302 = scalar_select %p301, %s299, 1
        %p303 = scmp.lt.s32.totalorder %s300, 3
        %s304 = scalar_select %p303, %s300, 3
        %s305 = smul.addr %s302, 4
        %s306 = sadd.s32 %s304, %s305
        %s307 = smul.addr %s306, 4
        %s308 = scalar_lea.vmem %s3, %s307
        %s309 = smul.u32 2, %s19
        %s310 = smul.u32 4, %s20
        %p311 = scmp.eq.s32.totalorder %s21, 0
        // Predicated region
        $region71: #{_lambda_.22} parent=65 // pred_check
          %p312 = pneg %p311
        $region72: #{_lambda_.22} parent=65 // pred_check_branch
          %314 = sbr.rel (%p312) target = $region74
        $region73: #{_lambda_.22} parent=65 // pred_region
          %315 = vst [vmem:[#allocation2] sm:$0xff] 0.0
          %316 = vst [vmem:[#allocation2 + $0x8] sm:$0xff] 0.0
          %317 = vst [vmem:[#allocation2 + $0x10] sm:$0xff] 0.0
          %318 = vst [vmem:[#allocation2 + $0x18] sm:$0xff] 0.0
          %319 = vst [vmem:[#allocation2 + $0x20] sm:$0xff] 0.0
          %320 = vst [vmem:[#allocation2 + $0x28] sm:$0xff] 0.0
          %321 = vst [vmem:[#allocation2 + $0x30] sm:$0xff] 0.0
          %322 = vst [vmem:[#allocation2 + $0x38] sm:$0xff] 0.0
        $region74: #{_lambda_.22} parent=65 // pred_fallthru
          _
        %v323 = vld [vmem:[#allocation2] sm:$0xff]
        %v324 = vld [vmem:[#allocation2 + $0x8] sm:$0xff]
        %v325 = vld [vmem:[#allocation2 + $0x10] sm:$0xff]
        %v326 = vld [vmem:[#allocation2 + $0x18] sm:$0xff]
        %v327 = vld [vmem:[#allocation2 + $0x20] sm:$0xff]
        %v328 = vld [vmem:[#allocation2 + $0x28] sm:$0xff]
        %v329 = vld [vmem:[#allocation2 + $0x30] sm:$0xff]
        %v330 = vld [vmem:[#allocation2 + $0x38] sm:$0xff]
        %v331 = vld [vmem:[%s240] sm:$0xff]
        %v332 = vld [vmem:[%s240 + $0x8] sm:$0xff]
        %v333 = vld [vmem:[%s291] sm:$0xff]
        %v334 = vld [vmem:[%s291 + $0x8] sm:$0xff]
        %v335 = vld [vmem:[%s291 + $0x10] sm:$0xff]
        %v336 = vld [vmem:[%s291 + $0x18] sm:$0xff]
        %v337 = vld [vmem:[%s291 + $0x20] sm:$0xff]
        %v338 = vld [vmem:[%s291 + $0x28] sm:$0xff]
        %v339 = vld [vmem:[%s291 + $0x30] sm:$0xff]
        %v340 = vld [vmem:[%s291 + $0x38] sm:$0xff]
        %v341 = vld [vmem:[%s291 + $0x40] sm:$0xff]
        %v342 = vld [vmem:[%s291 + $0x48] sm:$0xff]
        %v343 = vld [vmem:[%s291 + $0x50] sm:$0xff]
        %v344 = vld [vmem:[%s291 + $0x58] sm:$0xff]
        %v345 = vld [vmem:[%s291 + $0x60] sm:$0xff]
        %v346 = vld [vmem:[%s291 + $0x68] sm:$0xff]
        %v347 = vld [vmem:[%s291 + $0x70] sm:$0xff]
        %v348 = vld [vmem:[%s291 + $0x78] sm:$0xff]
        %v349 = vld [vmem:[%s291 + $0x80] sm:$0xff]
        %v350 = vld [vmem:[%s291 + $0x88] sm:$0xff]
        %v351 = vld [vmem:[%s291 + $0x90] sm:$0xff]
        %v352 = vld [vmem:[%s291 + $0x98] sm:$0xff]
        %v353 = vld [vmem:[%s291 + $0xa0] sm:$0xff]
        %v354 = vld [vmem:[%s291 + $0xa8] sm:$0xff]
        %v355 = vld [vmem:[%s291 + $0xb0] sm:$0xff]
        %v356 = vld [vmem:[%s291 + $0xb8] sm:$0xff]
        %v357 = vld [vmem:[%s291 + $0xc0] sm:$0xff]
        %v358 = vld [vmem:[%s291 + $0xc8] sm:$0xff]
        %v359 = vld [vmem:[%s291 + $0xd0] sm:$0xff]
        %v360 = vld [vmem:[%s291 + $0xd8] sm:$0xff]
        %v361 = vld [vmem:[%s291 + $0xe0] sm:$0xff]
        %v362 = vld [vmem:[%s291 + $0xe8] sm:$0xff]
        %v363 = vld [vmem:[%s291 + $0xf0] sm:$0xff]
        %v364 = vld [vmem:[%s291 + $0xf8] sm:$0xff]
        %v365 = vld [vmem:[%s291 + $0x100] sm:$0xff]
        %v366 = vld [vmem:[%s291 + $0x108] sm:$0xff]
        %v367 = vld [vmem:[%s291 + $0x110] sm:$0xff]
        %v368 = vld [vmem:[%s291 + $0x118] sm:$0xff]
        %v369 = vld [vmem:[%s291 + $0x120] sm:$0xff]
        %v370 = vld [vmem:[%s291 + $0x128] sm:$0xff]
        %v371 = vld [vmem:[%s291 + $0x130] sm:$0xff]
        %v372 = vld [vmem:[%s291 + $0x138] sm:$0xff]
        %v373 = vld [vmem:[%s291 + $0x140] sm:$0xff]
        %v374 = vld [vmem:[%s291 + $0x148] sm:$0xff]
        %v375 = vld [vmem:[%s291 + $0x150] sm:$0xff]
        %v376 = vld [vmem:[%s291 + $0x158] sm:$0xff]
        %v377 = vld [vmem:[%s291 + $0x160] sm:$0xff]
        %v378 = vld [vmem:[%s291 + $0x168] sm:$0xff]
        %v379 = vld [vmem:[%s291 + $0x170] sm:$0xff]
        %v380 = vld [vmem:[%s291 + $0x178] sm:$0xff]
        %v381 = vld [vmem:[%s291 + $0x180] sm:$0xff]
        %v382 = vld [vmem:[%s291 + $0x188] sm:$0xff]
        %v383 = vld [vmem:[%s291 + $0x190] sm:$0xff]
        %v384 = vld [vmem:[%s291 + $0x198] sm:$0xff]
        %v385 = vld [vmem:[%s291 + $0x1a0] sm:$0xff]
        %v386 = vld [vmem:[%s291 + $0x1a8] sm:$0xff]
        %v387 = vld [vmem:[%s291 + $0x1b0] sm:$0xff]
        %v388 = vld [vmem:[%s291 + $0x1b8] sm:$0xff]
        %v389 = vld [vmem:[%s291 + $0x1c0] sm:$0xff]
        %v390 = vld [vmem:[%s291 + $0x1c8] sm:$0xff]
        %v391 = vld [vmem:[%s291 + $0x1d0] sm:$0xff]
        %v392 = vld [vmem:[%s291 + $0x1d8] sm:$0xff]
        %v393 = vld [vmem:[%s291 + $0x1e0] sm:$0xff]
        %v394 = vld [vmem:[%s291 + $0x1e8] sm:$0xff]
        %v395 = vld [vmem:[%s291 + $0x1f0] sm:$0xff]
        %v396 = vld [vmem:[%s291 + $0x1f8] sm:$0xff]
        %v399 = vunpack.c.l.b16 %v331
        %v400 = vunpack.c.h.b16 %v331
        %v401 = vunpack.c.l.b16 %v332
        %v402 = vunpack.c.h.b16 %v332
        %v403 = vpack.c.b16 %v401, %v399
        %v404 = vpack.c.b16 %v402, %v400
        %v471 = vunpack.c.l.b16 %v333
        %v472 = vunpack.c.h.b16 %v333
        %v473 = vunpack.c.l.b16 %v334
        %v474 = vunpack.c.h.b16 %v334
        %v475 = vunpack.c.l.b16 %v335
        %v476 = vunpack.c.h.b16 %v335
        %v477 = vunpack.c.l.b16 %v336
        %v478 = vunpack.c.h.b16 %v336
        %v479 = vunpack.c.l.b16 %v337
        %v480 = vunpack.c.h.b16 %v337
        %v481 = vunpack.c.l.b16 %v338
        %v482 = vunpack.c.h.b16 %v338
        %v483 = vunpack.c.l.b16 %v339
        %v484 = vunpack.c.h.b16 %v339
        %v485 = vunpack.c.l.b16 %v340
        %v486 = vunpack.c.h.b16 %v340
        %v487 = vunpack.c.l.b16 %v341
        %v488 = vunpack.c.h.b16 %v341
        %v489 = vunpack.c.l.b16 %v342
        %v490 = vunpack.c.h.b16 %v342
        %v491 = vunpack.c.l.b16 %v343
        %v492 = vunpack.c.h.b16 %v343
        %v493 = vunpack.c.l.b16 %v344
        %v494 = vunpack.c.h.b16 %v344
        %v495 = vunpack.c.l.b16 %v345
        %v496 = vunpack.c.h.b16 %v345
        %v497 = vunpack.c.l.b16 %v346
        %v498 = vunpack.c.h.b16 %v346
        %v499 = vunpack.c.l.b16 %v347
        %v500 = vunpack.c.h.b16 %v347
        %v501 = vunpack.c.l.b16 %v348
        %v502 = vunpack.c.h.b16 %v348
        %v503 = vunpack.c.l.b16 %v349
        %v504 = vunpack.c.h.b16 %v349
        %v505 = vunpack.c.l.b16 %v350
        %v506 = vunpack.c.h.b16 %v350
        %v507 = vunpack.c.l.b16 %v351
        %v508 = vunpack.c.h.b16 %v351
        %v509 = vunpack.c.l.b16 %v352
        %v510 = vunpack.c.h.b16 %v352
        %v511 = vunpack.c.l.b16 %v353
        %v512 = vunpack.c.h.b16 %v353
        %v513 = vunpack.c.l.b16 %v354
        %v514 = vunpack.c.h.b16 %v354
        %v515 = vunpack.c.l.b16 %v355
        %v516 = vunpack.c.h.b16 %v355
        %v517 = vunpack.c.l.b16 %v356
        %v518 = vunpack.c.h.b16 %v356
        %v519 = vunpack.c.l.b16 %v357
        %v520 = vunpack.c.h.b16 %v357
        %v521 = vunpack.c.l.b16 %v358
        %v522 = vunpack.c.h.b16 %v358
        %v523 = vunpack.c.l.b16 %v359
        %v524 = vunpack.c.h.b16 %v359
        %v525 = vunpack.c.l.b16 %v360
        %v526 = vunpack.c.h.b16 %v360
        %v527 = vunpack.c.l.b16 %v361
        %v528 = vunpack.c.h.b16 %v361
        %v529 = vunpack.c.l.b16 %v362
        %v530 = vunpack.c.h.b16 %v362
        %v531 = vunpack.c.l.b16 %v363
        %v532 = vunpack.c.h.b16 %v363
        %v533 = vunpack.c.l.b16 %v364
        %v534 = vunpack.c.h.b16 %v364
        %v535 = vunpack.c.l.b16 %v365
        %v536 = vunpack.c.h.b16 %v365
        %v537 = vunpack.c.l.b16 %v366
        %v538 = vunpack.c.h.b16 %v366
        %v539 = vunpack.c.l.b16 %v367
        %v540 = vunpack.c.h.b16 %v367
        %v541 = vunpack.c.l.b16 %v368
        %v542 = vunpack.c.h.b16 %v368
        %v543 = vunpack.c.l.b16 %v369
        %v544 = vunpack.c.h.b16 %v369
        %v545 = vunpack.c.l.b16 %v370
        %v546 = vunpack.c.h.b16 %v370
        %v547 = vunpack.c.l.b16 %v371
        %v548 = vunpack.c.h.b16 %v371
        %v549 = vunpack.c.l.b16 %v372
        %v550 = vunpack.c.h.b16 %v372
        %v551 = vunpack.c.l.b16 %v373
        %v552 = vunpack.c.h.b16 %v373
        %v553 = vunpack.c.l.b16 %v374
        %v554 = vunpack.c.h.b16 %v374
        %v555 = vunpack.c.l.b16 %v375
        %v556 = vunpack.c.h.b16 %v375
        %v557 = vunpack.c.l.b16 %v376
        %v558 = vunpack.c.h.b16 %v376
        %v559 = vunpack.c.l.b16 %v377
        %v560 = vunpack.c.h.b16 %v377
        %v561 = vunpack.c.l.b16 %v378
        %v562 = vunpack.c.h.b16 %v378
        %v563 = vunpack.c.l.b16 %v379
        %v564 = vunpack.c.h.b16 %v379
        %v565 = vunpack.c.l.b16 %v380
        %v566 = vunpack.c.h.b16 %v380
        %v567 = vunpack.c.l.b16 %v381
        %v568 = vunpack.c.h.b16 %v381
        %v569 = vunpack.c.l.b16 %v382
        %v570 = vunpack.c.h.b16 %v382
        %v571 = vunpack.c.l.b16 %v383
        %v572 = vunpack.c.h.b16 %v383
        %v573 = vunpack.c.l.b16 %v384
        %v574 = vunpack.c.h.b16 %v384
        %v575 = vunpack.c.l.b16 %v385
        %v576 = vunpack.c.h.b16 %v385
        %v577 = vunpack.c.l.b16 %v386
        %v578 = vunpack.c.h.b16 %v386
        %v579 = vunpack.c.l.b16 %v387
        %v580 = vunpack.c.h.b16 %v387
        %v581 = vunpack.c.l.b16 %v388
        %v582 = vunpack.c.h.b16 %v388
        %v583 = vunpack.c.l.b16 %v389
        %v584 = vunpack.c.h.b16 %v389
        %v585 = vunpack.c.l.b16 %v390
        %v586 = vunpack.c.h.b16 %v390
        %v587 = vunpack.c.l.b16 %v391
        %v588 = vunpack.c.h.b16 %v391
        %v589 = vunpack.c.l.b16 %v392
        %v590 = vunpack.c.h.b16 %v392
        %v591 = vunpack.c.l.b16 %v393
        %v592 = vunpack.c.h.b16 %v393
        %v593 = vunpack.c.l.b16 %v394
        %v594 = vunpack.c.h.b16 %v394
        %v595 = vunpack.c.l.b16 %v395
        %v596 = vunpack.c.h.b16 %v395
        %v597 = vunpack.c.l.b16 %v396
        %v598 = vunpack.c.h.b16 %v396
        %v599 = vpack.c.b16 %v475, %v471
        %v600 = vpack.c.b16 %v476, %v472
        %v601 = vpack.c.b16 %v477, %v473
        %v602 = vpack.c.b16 %v478, %v474
        %v603 = vpack.c.b16 %v483, %v479
        %v604 = vpack.c.b16 %v484, %v480
        %v605 = vpack.c.b16 %v485, %v481
        %v606 = vpack.c.b16 %v486, %v482
        %v607 = vpack.c.b16 %v491, %v487
        %v608 = vpack.c.b16 %v492, %v488
        %v609 = vpack.c.b16 %v493, %v489
        %v610 = vpack.c.b16 %v494, %v490
        %v611 = vpack.c.b16 %v499, %v495
        %v612 = vpack.c.b16 %v500, %v496
        %v613 = vpack.c.b16 %v501, %v497
        %v614 = vpack.c.b16 %v502, %v498
        %v615 = vpack.c.b16 %v507, %v503
        %v616 = vpack.c.b16 %v508, %v504
        %v617 = vpack.c.b16 %v509, %v505
        %v618 = vpack.c.b16 %v510, %v506
        %v619 = vpack.c.b16 %v515, %v511
        %v620 = vpack.c.b16 %v516, %v512
        %v621 = vpack.c.b16 %v517, %v513
        %v622 = vpack.c.b16 %v518, %v514
        %v623 = vpack.c.b16 %v523, %v519
        %v624 = vpack.c.b16 %v524, %v520
        %v625 = vpack.c.b16 %v525, %v521
        %v626 = vpack.c.b16 %v526, %v522
        %v627 = vpack.c.b16 %v531, %v527
        %v628 = vpack.c.b16 %v532, %v528
        %v629 = vpack.c.b16 %v533, %v529
        %v630 = vpack.c.b16 %v534, %v530
        %v631 = vpack.c.b16 %v539, %v535
        %v632 = vpack.c.b16 %v540, %v536
        %v633 = vpack.c.b16 %v541, %v537
        %v634 = vpack.c.b16 %v542, %v538
        %v635 = vpack.c.b16 %v547, %v543
        %v636 = vpack.c.b16 %v548, %v544
        %v637 = vpack.c.b16 %v549, %v545
        %v638 = vpack.c.b16 %v550, %v546
        %v639 = vpack.c.b16 %v555, %v551
        %v640 = vpack.c.b16 %v556, %v552
        %v641 = vpack.c.b16 %v557, %v553
        %v642 = vpack.c.b16 %v558, %v554
        %v643 = vpack.c.b16 %v563, %v559
        %v644 = vpack.c.b16 %v564, %v560
        %v645 = vpack.c.b16 %v565, %v561
        %v646 = vpack.c.b16 %v566, %v562
        %v647 = vpack.c.b16 %v571, %v567
        %v648 = vpack.c.b16 %v572, %v568
        %v649 = vpack.c.b16 %v573, %v569
        %v650 = vpack.c.b16 %v574, %v570
        %v651 = vpack.c.b16 %v579, %v575
        %v652 = vpack.c.b16 %v580, %v576
        %v653 = vpack.c.b16 %v581, %v577
        %v654 = vpack.c.b16 %v582, %v578
        %v655 = vpack.c.b16 %v587, %v583
        %v656 = vpack.c.b16 %v588, %v584
        %v657 = vpack.c.b16 %v589, %v585
        %v658 = vpack.c.b16 %v590, %v586
        %v659 = vpack.c.b16 %v595, %v591
        %v660 = vpack.c.b16 %v596, %v592
        %v661 = vpack.c.b16 %v597, %v593
        %v662 = vpack.c.b16 %v598, %v594
        %727 = vmatprep.subr.bf16.mxu0 %v628
        %728 = vmatpush1.bf16.msra.mxu0 %v627
        %729 = vmatprep.subr.bf16.mxu0 %v624
        %730 = vmatpush1.bf16.msra.mxu0 %v623
        %731 = vmatprep.subr.bf16.mxu0 %v620
        %732 = vmatpush1.bf16.msra.mxu0 %v619
        %733 = vmatprep.subr.bf16.mxu0 %v616
        %734 = vmatpush1.bf16.msra.mxu0 %v615
        %735 = vmatprep.subr.bf16.mxu0 %v612
        %736 = vmatpush1.bf16.msra.mxu0 %v611
        %737 = vmatprep.subr.bf16.mxu0 %v608
        %738 = vmatpush1.bf16.msra.mxu0 %v607
        %739 = vmatprep.subr.bf16.mxu0 %v604
        %740 = vmatpush1.bf16.msra.mxu0 %v603
        %741 = vmatprep.subr.bf16.mxu0 %v600
        %742 = vmatpush1.bf16.msra.mxu0 %v599
        %743 = vmatprep.subr.bf16.mxu0 %v660
        %744 = vmatpush2.bf16.msra.mxu0 %v659
        %745 = vmatprep.subr.bf16.mxu0 %v656
        %746 = vmatpush2.bf16.msra.mxu0 %v655
        %747 = vmatprep.subr.bf16.mxu0 %v652
        %748 = vmatpush2.bf16.msra.mxu0 %v651
        %749 = vmatprep.subr.bf16.mxu0 %v648
        %750 = vmatpush2.bf16.msra.mxu0 %v647
        %751 = vmatprep.subr.bf16.mxu0 %v644
        %752 = vmatpush2.bf16.msra.mxu0 %v643
        %753 = vmatprep.subr.bf16.mxu0 %v640
        %754 = vmatpush2.bf16.msra.mxu0 %v639
        %755 = vmatprep.subr.bf16.mxu0 %v636
        %756 = vmatpush2.bf16.msra.mxu0 %v635
        %757 = vmatprep.subr.bf16.mxu0 %v632
        %758 = vmatpush2.bf16.msra.mxu0 %v631
        %759 = vmatprep.mubr.bf16.mxu0 %v404
        %760 = vmatmul.mubr.bf16.gmra.mxu0 %v403
        %v761 = vpop.f32.mrf.mxu0
        %v762 = vadd.f32 0.0, %v761
        %v763 = vpop.f32.mrf.mxu0
        %v764 = vadd.f32 0.0, %v763
        %v765 = vpop.f32.mrf.mxu0
        %v766 = vadd.f32 0.0, %v765
        %v767 = vpop.f32.mrf.mxu0
        %v768 = vadd.f32 0.0, %v767
        %769 = vdwg.mxu0
        %770 = vmatprep.subr.bf16.mxu0 %v630
        %771 = vmatpush1.bf16.msra.mxu0 %v629
        %772 = vmatprep.subr.bf16.mxu0 %v626
        %773 = vmatpush1.bf16.msra.mxu0 %v625
        %774 = vmatprep.subr.bf16.mxu0 %v622
        %775 = vmatpush1.bf16.msra.mxu0 %v621
        %776 = vmatprep.subr.bf16.mxu0 %v618
        %777 = vmatpush1.bf16.msra.mxu0 %v617
        %778 = vmatprep.subr.bf16.mxu0 %v614
        %779 = vmatpush1.bf16.msra.mxu0 %v613
        %780 = vmatprep.subr.bf16.mxu0 %v610
        %781 = vmatpush1.bf16.msra.mxu0 %v609
        %782 = vmatprep.subr.bf16.mxu0 %v606
        %783 = vmatpush1.bf16.msra.mxu0 %v605
        %784 = vmatprep.subr.bf16.mxu0 %v602
        %785 = vmatpush1.bf16.msra.mxu0 %v601
        %786 = vmatprep.subr.bf16.mxu0 %v662
        %787 = vmatpush2.bf16.msra.mxu0 %v661
        %788 = vmatprep.subr.bf16.mxu0 %v658
        %789 = vmatpush2.bf16.msra.mxu0 %v657
        %790 = vmatprep.subr.bf16.mxu0 %v654
        %791 = vmatpush2.bf16.msra.mxu0 %v653
        %792 = vmatprep.subr.bf16.mxu0 %v650
        %793 = vmatpush2.bf16.msra.mxu0 %v649
        %794 = vmatprep.subr.bf16.mxu0 %v646
        %795 = vmatpush2.bf16.msra.mxu0 %v645
        %796 = vmatprep.subr.bf16.mxu0 %v642
        %797 = vmatpush2.bf16.msra.mxu0 %v641
        %798 = vmatprep.subr.bf16.mxu0 %v638
        %799 = vmatpush2.bf16.msra.mxu0 %v637
        %800 = vmatprep.subr.bf16.mxu0 %v634
        %801 = vmatpush2.bf16.msra.mxu0 %v633
        %802 = vmatprep.mubr.bf16.mxu0 %v404
        %803 = vmatmul.mubr.bf16.gmra.mxu0 %v403
        %v804 = vpop.f32.mrf.mxu0
        %v805 = vadd.f32 0.0, %v804
        %v806 = vpop.f32.mrf.mxu0
        %v807 = vadd.f32 0.0, %v806
        %v808 = vpop.f32.mrf.mxu0
        %v809 = vadd.f32 0.0, %v808
        %v810 = vpop.f32.mrf.mxu0
        %v811 = vadd.f32 0.0, %v810
        %812 = vdwg.mxu0
        %v813 = vadd.f32 %v323, %v762
        %v814 = vadd.f32 %v324, %v764
        %v815 = vadd.f32 %v325, %v805
        %v816 = vadd.f32 %v326, %v807
        %v817 = vadd.f32 %v327, %v766
        %v818 = vadd.f32 %v328, %v768
        %v819 = vadd.f32 %v329, %v809
        %v820 = vadd.f32 %v330, %v811
        %821 = vst [vmem:[#allocation2] sm:$0xff] %v813
        %822 = vst [vmem:[#allocation2 + $0x8] sm:$0xff] %v814
        %823 = vst [vmem:[#allocation2 + $0x10] sm:$0xff] %v815
        %824 = vst [vmem:[#allocation2 + $0x18] sm:$0xff] %v816
        %825 = vst [vmem:[#allocation2 + $0x20] sm:$0xff] %v817
        %826 = vst [vmem:[#allocation2 + $0x28] sm:$0xff] %v818
        %827 = vst [vmem:[#allocation2 + $0x30] sm:$0xff] %v819
        %828 = vst [vmem:[#allocation2 + $0x38] sm:$0xff] %v820
        %p829 = scmp.eq.s32.totalorder %s21, 8
        // Predicated region
        $region75: #{_lambda_.22} parent=65 // pred_check
          %p830 = pneg %p829
        $region76: #{_lambda_.22} parent=65 // pred_check_branch
          %832 = sbr.rel (%p830) target = $region78
        $region77: #{_lambda_.22} parent=65 // pred_region
          %v833 = vld [vmem:[#allocation2] sm:$0xff]
          %v834 = vld [vmem:[#allocation2 + $0x8] sm:$0xff]
          %v835 = vld [vmem:[#allocation2 + $0x10] sm:$0xff]
          %v836 = vld [vmem:[#allocation2 + $0x18] sm:$0xff]
          %v837 = vld [vmem:[#allocation2 + $0x20] sm:$0xff]
          %v838 = vld [vmem:[#allocation2 + $0x28] sm:$0xff]
          %v839 = vld [vmem:[#allocation2 + $0x30] sm:$0xff]
          %v840 = vld [vmem:[#allocation2 + $0x38] sm:$0xff]
          %v841 = vld [vmem:[%s297] sm:$0xf]
          %v843 = vlaneseq
          %v844 = vshrl.u32 %v843, 7
          %v845 = vsub.s32 0, %v844
          %v846 = vrot.slane %v841, %v845
          %v847 = vlaneseq
          %v848 = vshrl.u32 %v847, 7
          %v849 = vsub.s32 1, %v848
          %v850 = vrot.slane %v841, %v849
          %v851 = vlaneseq
          %v852 = vshrl.u32 %v851, 7
          %v853 = vsub.s32 2, %v852
          %v854 = vrot.slane %v841, %v853
          %v855 = vlaneseq
          %v856 = vshrl.u32 %v855, 7
          %v857 = vsub.s32 3, %v856
          %v858 = vrot.slane %v841, %v857
          %v863 = vadd.f32 %v833, %v846
          %v864 = vadd.f32 %v834, %v850
          %v865 = vadd.f32 %v835, %v854
          %v866 = vadd.f32 %v836, %v858
          %v867 = vadd.f32 %v837, %v846
          %v868 = vadd.f32 %v838, %v850
          %v869 = vadd.f32 %v839, %v854
          %v870 = vadd.f32 %v840, %v858
          %v871 = vmax.f32 %v863, 0.0
          %v872 = vmax.f32 %v864, 0.0
          %v873 = vmax.f32 %v865, 0.0
          %v874 = vmax.f32 %v866, 0.0
          %v875 = vmax.f32 %v867, 0.0
          %v876 = vmax.f32 %v868, 0.0
          %v877 = vmax.f32 %v869, 0.0
          %v878 = vmax.f32 %v870, 0.0
          %v879 = vpack.c.bf16 %v875, %v871
          %v880 = vpack.c.bf16 %v876, %v872
          %v881 = vpack.c.bf16 %v877, %v873
          %v882 = vpack.c.bf16 %v878, %v874
          %v887 = vunpack.c.l.b16 %v879
          %v888 = vunpack.c.l.b16 %v880
          %v889 = vunpack.c.l.b16 %v881
          %v890 = vunpack.c.l.b16 %v882
          %v891 = vunpack.c.h.b16 %v879
          %v892 = vunpack.c.h.b16 %v880
          %v893 = vunpack.c.h.b16 %v881
          %v894 = vunpack.c.h.b16 %v882
          %v895 = vpack.c.b16 %v888, %v887
          %v896 = vpack.c.b16 %v890, %v889
          %v897 = vpack.c.b16 %v892, %v891
          %v898 = vpack.c.b16 %v894, %v893
          %903 = vst [vmem:[%s308] sm:$0xff] %v895
          %904 = vst [vmem:[%s308 + $0x8] sm:$0xff] %v896
          %905 = vst [vmem:[%s308 + $0x10] sm:$0xff] %v897
          %906 = vst [vmem:[%s308 + $0x18] sm:$0xff] %v898
        $region78: #{_lambda_.22} parent=65 // pred_fallthru
          _
        %s907 = smul.u32 2, %s19
        %s908 = smul.u32 4, %s20
        %p909 = scmp.lt.s32.totalorder %s907, 1
        %s910 = scalar_select %p909, %s907, 1
        %p911 = scmp.lt.s32.totalorder %s908, 3
        %s912 = scalar_select %p911, %s908, 3
        %s913 = smul.addr %s910, 4
        %s914 = sadd.s32 %s912, %s913
        %s915 = smul.addr %s914, 4
        %s916 = scalar_lea.vmem %s3, %s915
        // Predicated region
        $region79: #{_lambda_.22} parent=65 // pred_check
          %p917 = pneg %p135
        $region80: #{_lambda_.22} parent=65 // pred_check_branch
          %919 = sbr.rel (%p917) target = $region82
        $region81: #{_lambda_.22} parent=65 // pred_region
          %s920 = smul.u32 2, %s19
          %s921 = smul.u32 4, %s20
        $region82: #{_lambda_.22} parent=65 // pred_fallthru
          _
        // Predicated region
        $region83: #{_lambda_.22} parent=65 // pred_check
          %p922 = pneg %p135
        $region84: #{_lambda_.22} parent=65 // pred_check_branch
          %924 = sbr.rel (%p922) target = $region86
        $region85: #{_lambda_.22} parent=65 // pred_region
          %s925 = smul.u32 2, %s19
          %s926 = smul.u32 4, %s20
          %p927 = scmp.lt.s32.totalorder %s925, 1
          %s928 = scalar_select %p927, %s925, 1
          %p929 = scmp.lt.s32.totalorder %s926, 3
          %s930 = scalar_select %p929, %s926, 3
          %s931 = smul.addr %s928, 4
          %s932 = sadd.s32 %s930, %s931
          %s933 = smul.addr %s932, 4
          %s934 = scalar_lea.vmem %s3, %s933
        $region86: #{_lambda_.22} parent=65 // pred_fallthru
          _
      $region66: #{_lambda_.22} parent=5 // pred_fallthru
        _
      %p935 = scmp.le.s32.totalorder 2, %s9
      // Predicated region
      $region87: #{_lambda_.22} parent=5 // pred_check
        %p936 = pneg %p935
      $region88: #{_lambda_.22} parent=5 // pred_check_branch
        %938 = sbr.rel (%p936) target = $region90
      $region89: #{_lambda_.22} parent=5 // pred_region
        %s939 = ssub.s32 %s9, 2
      $region90: #{_lambda_.22} parent=5 // pred_fallthru
        _
    $region6: #{_lambda_.22} parent=1 // loop_footer
      %s13 = sadd.s32 1, %s9
    $region7: #{_lambda_.22} parent=1 // loop_footer_branch
      %8 = sbr.rel target = $region3
    $region8: #{_lambda_.22} parent=1 // loop_exit
      _

// kernel: _lambda_.21
$region0: #{_lambda_.21}
  #allocation0 [shape = 'u32[]', space=smem, size = 0x4, offset = 0x4, fixed_abs, tag = 'smem constant byte address 0x4 - core index']
  #allocation1 [shape = 'u32[144,128]{1,0:T(1,128)}', space=vmem, size = 0x12000, scoped, tag = 'internal scratch']
  #allocation2 [shape = 'f32[16,256]{1,0:T(8,128)}', space=vmem, size = 0x4000, scoped, tag = 'scratch operand']
  %s0 = inlined_call_operand.vmem [shape: bf16[16,2304], index: 0, kind: input, shape index: {}]
  %s1 = inlined_call_operand.vmem [shape: bf16[2304,256], index: 1, kind: input, shape index: {}]
  %s2 = inlined_call_operand.vmem [shape: f32[1,256], index: 2, kind: input, shape index: {}]
  %s3 = inlined_call_operand.vmem [shape: bf16[16,256], index: 3, kind: input, shape index: {}]
  %s4 = inlined_call_operand.vmem [shape: bf16[16,256], index: 4, kind: output, shape index: {}]
  %s5 = sld [smem:[#allocation0]]
  $region95: #{_lambda_.21} parent=0
    _
  %s7 = ssub.s32 1, %s5
  %s8 = scalar_select 0, %s7, %s5
  $region1: #{_lambda_.21} parent=0
    #allocation3 [shape = 'u8[16384]{0}', space=vmem, size = 0x4000, scoped, tag = 'input window, operand 0']
    loop: start=0, step=1, limit=11
    $region2: #{_lambda_.21} parent=1 // loop_pre_header
      _
    $region3: #{_lambda_.21} parent=1 // loop_header
      %s10 = sphi 0, %s14
      %p11 = scmp.ge.s32.totalorder %s10, 11
      %s17 = sphi 0, %s36
      %s18 = sphi 0, %s32
      %s19 = sphi 0, %s28
      %s20 = sphi 0, %s17
      %s21 = sphi 0, %s18
      %s22 = sphi 0, %s19
      %s23 = sphi 0, %s20
      %s24 = sphi 0, %s21
      %s25 = sphi 0, %s22
      %s41 = sphi 0, %s43
      %s44 = sphi 0, %s41
      %s45 = sphi 0, %s44
      %s61 = sphi 0, %s45
      %s69 = sphi 0, %s71
      %s72 = sphi 0, %s69
      %s73 = sphi 0, %s72
      %s89 = sphi 0, %s73
      %s95 = sphi 0, %s97
      %s98 = sphi 0, %s95
      %s99 = sphi 0, %s98
      %s115 = sphi 0, %s99
      %s123 = sphi 0, %s125
      %s126 = sphi 0, %s123
      %s127 = sphi 0, %s126
      %s143 = sphi 0, %s127
      %s151 = sphi 0, %s153
      %s154 = sphi 0, %s151
      %s155 = sphi 0, %s154
      %s171 = sphi 0, %s155
    $region4: #{_lambda_.21} parent=1 // loop_header_branch
      %13 = sbr.rel (%p11) target = $region8
    $region5: #{_lambda_.21} parent=1 // loop_body
      %s15 = ssub.s32 %s10, 1
      %s16 = ssub.s32 %s10, 2
      %s26 = sadd.s32 1, %s19
      %p27 = scmp.ge.s32.totalorder %s26, 9
      %s28 = scalar_select %p27, 0, %s26
      %s29 = sadd.s32 1, %s18
      %s30 = scalar_select %p27, %s29, %s18
      %p31 = scmp.ge.s32.totalorder %s30, 1
      %s32 = scalar_select %p31, 0, %s30
      %s33 = sadd.s32 1, %s17
      %s34 = scalar_select %p31, %s33, %s17
      %p35 = scmp.ge.s32.totalorder %s34, 1
      %s36 = scalar_select %p35, 0, %s34
      %s37 = ssub.s32 %s17, %s36
      %s38 = ssub.s32 %s19, %s28
      %s39 = sor.u32 %s37, %s38
      %p40 = scmp.eq.s32.totalorder %s39, 0
      %s42 = sadd.s32 %s41, 1
      %s43 = scalar_select %p40, %s41, %s42
      %p46 = pneg %p40
      %p47 = scmp.eq.s32.totalorder %s10, 8
      %p48 = por %p46, %p47
      %p49 = scmp.ne.s32.totalorder %s41, %s44
      %p50 = scmp.eq.s32.totalorder %s10, 0
      %p51 = por %p49, %p50
      %p52 = scmp.ne.s32.totalorder %s41, %s44
      %p53 = scmp.eq.s32.totalorder %s15, 8
      %p54 = por %p52, %p53
      %p55 = scmp.ne.s32.totalorder %s44, %s45
      %p56 = scmp.eq.s32.totalorder %s15, 0
      %p57 = por %p55, %p56
      %p58 = scmp.ne.s32.totalorder %s44, %s45
      %p59 = scmp.eq.s32.totalorder %s16, 8
      %p60 = por %p58, %p59
      %p62 = scmp.ne.s32.totalorder %s45, %s61
      %p63 = scmp.eq.s32.totalorder %s16, 0
      %p64 = por %p62, %p63
      %s65 = ssub.s32 %s19, %s28
      %s66 = ssub.s32 %s18, %s32
      %s67 = sor.u32 %s65, %s66
      %p68 = scmp.eq.s32.totalorder %s67, 0
      %s70 = sadd.s32 %s69, 1
      %s71 = scalar_select %p68, %s69, %s70
      %p74 = pneg %p68
      %p75 = scmp.eq.s32.totalorder %s10, 8
      %p76 = por %p74, %p75
      %p77 = scmp.ne.s32.totalorder %s69, %s72
      %p78 = scmp.eq.s32.totalorder %s10, 0
      %p79 = por %p77, %p78
      %p80 = scmp.ne.s32.totalorder %s69, %s72
      %p81 = scmp.eq.s32.totalorder %s15, 8
      %p82 = por %p80, %p81
      %p83 = scmp.ne.s32.totalorder %s72, %s73
      %p84 = scmp.eq.s32.totalorder %s15, 0
      %p85 = por %p83, %p84
      %p86 = scmp.ne.s32.totalorder %s72, %s73
      %p87 = scmp.eq.s32.totalorder %s16, 8
      %p88 = por %p86, %p87
      %p90 = scmp.ne.s32.totalorder %s73, %s89
      %p91 = scmp.eq.s32.totalorder %s16, 0
      %p92 = por %p90, %p91
      %s93 = ssub.s32 %s18, %s32
      %p94 = scmp.eq.s32.totalorder %s93, 0
      %s96 = sadd.s32 %s95, 1
      %s97 = scalar_select %p94, %s95, %s96
      %p100 = pneg %p94
      %p101 = scmp.eq.s32.totalorder %s10, 8
      %p102 = por %p100, %p101
      %p103 = scmp.ne.s32.totalorder %s95, %s98
      %p104 = scmp.eq.s32.totalorder %s10, 0
      %p105 = por %p103, %p104
      %p106 = scmp.ne.s32.totalorder %s95, %s98
      %p107 = scmp.eq.s32.totalorder %s15, 8
      %p108 = por %p106, %p107
      %p109 = scmp.ne.s32.totalorder %s98, %s99
      %p110 = scmp.eq.s32.totalorder %s15, 0
      %p111 = por %p109, %p110
      %p112 = scmp.ne.s32.totalorder %s98, %s99
      %p113 = scmp.eq.s32.totalorder %s16, 8
      %p114 = por %p112, %p113
      %p116 = scmp.ne.s32.totalorder %s99, %s115
      %p117 = scmp.eq.s32.totalorder %s16, 0
      %p118 = por %p116, %p117
      %s119 = ssub.s32 %s17, %s36
      %s120 = ssub.s32 %s18, %s32
      %s121 = sor.u32 %s119, %s120
      %p122 = scmp.eq.s32.totalorder %s121, 0
      %s124 = sadd.s32 %s123, 1
      %s125 = scalar_select %p122, %s123, %s124
      %p128 = pneg %p122
      %p129 = scmp.eq.s32.totalorder %s10, 8
      %p130 = por %p128, %p129
      %p131 = scmp.ne.s32.totalorder %s123, %s126
      %p132 = scmp.eq.s32.totalorder %s10, 0
      %p133 = por %p131, %p132
      %p134 = scmp.ne.s32.totalorder %s123, %s126
      %p135 = scmp.eq.s32.totalorder %s15, 8
      %p136 = por %p134, %p135
      %p137 = scmp.ne.s32.totalorder %s126, %s127
      %p138 = scmp.eq.s32.totalorder %s15, 0
      %p139 = por %p137, %p138
      %p140 = scmp.ne.s32.totalorder %s126, %s127
      %p141 = scmp.eq.s32.totalorder %s16, 8
      %p142 = por %p140, %p141
      %p144 = scmp.ne.s32.totalorder %s127, %s143
      %p145 = scmp.eq.s32.totalorder %s16, 0
      %p146 = por %p144, %p145
      %s147 = ssub.s32 %s17, %s36
      %s148 = ssub.s32 %s18, %s32
      %s149 = sor.u32 %s147, %s148
      %p150 = scmp.eq.s32.totalorder %s149, 0
      %s152 = sadd.s32 %s151, 1
      %s153 = scalar_select %p150, %s151, %s152
      %p156 = pneg %p150
      %p157 = scmp.eq.s32.totalorder %s10, 8
      %p158 = por %p156, %p157
      %p159 = scmp.ne.s32.totalorder %s151, %s154
      %p160 = scmp.eq.s32.totalorder %s10, 0
      %p161 = por %p159, %p160
      %p162 = scmp.ne.s32.totalorder %s151, %s154
      %p163 = scmp.eq.s32.totalorder %s15, 8
      %p164 = por %p162, %p163
      %p165 = scmp.ne.s32.totalorder %s154, %s155
      %p166 = scmp.eq.s32.totalorder %s15, 0
      %p167 = por %p165, %p166
      %p168 = scmp.ne.s32.totalorder %s154, %s155
      %p169 = scmp.eq.s32.totalorder %s16, 8
      %p170 = por %p168, %p169
      %p172 = scmp.ne.s32.totalorder %s155, %s171
      %p173 = scmp.eq.s32.totalorder %s16, 0
      %p174 = por %p172, %p173
      %p175 = scmp.le.s32.totalorder 1, %s10
      %p176 = scmp.lt.s32.totalorder %s10, 10
      %p177 = pnand %p175, %p176
      %p178 = pneg %p177
      // Predicated region
      $region9: #{_lambda_.21} parent=5 // pred_check
        _
      $region10: #{_lambda_.21} parent=5 // pred_check_branch
        %180 = sbr.rel (%p177) target = $region12
      $region11: #{_lambda_.21} parent=5 // pred_region
        %s181 = ssub.s32 %s10, 1
        // Predicated region
        $region13: #{_lambda_.21} parent=11 // pred_check
          %p182 = pneg %p111
        $region14: #{_lambda_.21} parent=11 // pred_check_branch
          %184 = sbr.rel (%p182) target = $region16
        $region15: #{_lambda_.21} parent=11 // pred_region
          %s185 = smul.u32 2, %s21
          %p186 = scmp.lt.s32.totalorder %s185, 1
          %s187 = scalar_select %p186, %s185, 1
          %s188 = scalar_lea.vmem %s2, %s187
          %s189 = smul.u32 2, %s21
        $region16: #{_lambda_.21} parent=11 // pred_fallthru
          _
        // Predicated region
        $region17: #{_lambda_.21} parent=11 // pred_check
          %p190 = pneg %p139
        $region18: #{_lambda_.21} parent=11 // pred_check_branch
          %192 = sbr.rel (%p190) target = $region20
        $region19: #{_lambda_.21} parent=11 // pred_region
          %s193 = smul.u32 2, %s20
          %s194 = smul.u32 2, %s21
          %p195 = scmp.lt.s32.totalorder %s193, 1
          %s196 = scalar_select %p195, %s193, 1
          %p197 = scmp.lt.s32.totalorder %s194, 1
          %s198 = scalar_select %p197, %s194, 1
          %s199 = smul.addr %s196, 2
          %s200 = sadd.s32 %s198, %s199
          %s201 = smul.addr %s200, 4
          %s202 = scalar_lea.vmem %s3, %s201
          %s203 = smul.u32 2, %s20
          %s204 = smul.u32 2, %s21
        $region20: #{_lambda_.21} parent=11 // pred_fallthru
          _
      $region12: #{_lambda_.21} parent=5 // pred_fallthru
        _
      %p205 = scmp.lt.s32.totalorder %s10, 9
      // Predicated region
      $region21: #{_lambda_.21} parent=5 // pred_check
        %p206 = pneg %p205
      $region22: #{_lambda_.21} parent=5 // pred_check_branch
        %208 = sbr.rel (%p206) target = $region24
      $region23: #{_lambda_.21} parent=5 // pred_region
        // Predicated region
        $region25: #{_lambda_.21} parent=23 // pred_check
          %p209 = pneg %p51
        $region26: #{_lambda_.21} parent=23 // pred_check_branch
          %211 = sbr.rel (%p209) target = $region28
        $region27: #{_lambda_.21} parent=23 // pred_region
          %s212 = sand.u32 %s41, 1
          %s213 = sand.u32 %s41, 1
          %s214 = smul.addr %s213, 16
          %s215 = scalar_lea.vmem [#allocation3], %s214
          %s216 = smul.u32 2, %s17
          %s217 = smul.u32 2, %s19
          %s218 = smul.addr %s216, 18
          %s219 = sadd.s32 %s217, %s218
          %s220 = smul.addr %s219, 4
          %s221 = scalar_lea.vmem %s0, %s220
          // Predicated region
          $region29: #{_lambda_.21} parent=27 // pred_check
            _
          $region30: #{_lambda_.21} parent=27 // pred_check_branch
            %223 = sbr.rel (0) target = $region32
          $region31: #{_lambda_.21} parent=27 // pred_region
            // Predicated region
            $region33: #{_lambda_.21} parent=31 // pred_check
              _
            $region34: #{_lambda_.21} parent=31 // pred_check_branch
              %225 = sbr.rel (0) target = $region36
            $region35: #{_lambda_.21} parent=31 // pred_region
              // Predicated region
              $region48: #{_lambda_.21} parent=35 // pred_check
                _
              $region49: #{_lambda_.21} parent=35 // pred_check_branch
                %243 = sbr.rel (0) target = $region51
              $region50: #{_lambda_.21} parent=35 // pred_region
                loop: start=0, step=1, limit=1
                $region52: #{_lambda_.21} parent=50 // loop_pre_header
                  _
                $region53: #{_lambda_.21} parent=50 // loop_header
                  %s245 = sphi 0, %s249
                  %p246 = scmp.ge.s32.totalorder %s245, 1
                  %s250 = sphi %s221, %s221
                  %s251 = sphi %s215, %s215
                $region54: #{_lambda_.21} parent=50 // loop_header_branch
                  %248 = sbr.rel (%p246) target = $region58
                $region55: #{_lambda_.21} parent=50 // loop_body
                  %v252 = vld [vmem:[%s250] sm:$0xff]
                  %253 = vst [vmem:[%s251] sm:$0xff] %v252
                  %v254 = vld [vmem:[%s250 + $0x48] sm:$0xff]
                  %255 = vst [vmem:[%s251 + $0x8] sm:$0xff] %v254
                $region56: #{_lambda_.21} parent=50 // loop_footer
                  %s249 = sadd.s32 1, %s245
                $region57: #{_lambda_.21} parent=50 // loop_footer_branch
                  %244 = sbr.rel target = $region53
                $region58: #{_lambda_.21} parent=50 // loop_exit
                  _
              $region51: #{_lambda_.21} parent=35 // pred_fallthru
                _
              // Predicated region
              $region59: #{_lambda_.21} parent=35 // pred_check
                _
              $region60: #{_lambda_.21} parent=35 // pred_check_branch
                %257 = sbr.rel target = $region62
              $region61: #{_lambda_.21} parent=35 // pred_region
                _
              $region62: #{_lambda_.21} parent=35 // pred_fallthru
                _
            $region36: #{_lambda_.21} parent=31 // pred_fallthru
              _
            // Predicated region
            $region37: #{_lambda_.21} parent=31 // pred_check
              _
            $region38: #{_lambda_.21} parent=31 // pred_check_branch
              %227 = sbr.rel target = $region40
            $region39: #{_lambda_.21} parent=31 // pred_region
              %s229 = ssub.s32 256, 1
              loop: start=0, step=1, limit=1
              $region41: #{_lambda_.21} parent=39 // loop_pre_header
                _
              $region42: #{_lambda_.21} parent=39 // loop_header
                %s231 = sphi 0, %s235
                %p232 = scmp.ge.s32.totalorder %s231, 1
                %s236 = sphi %s221, %s221
                %s237 = sphi %s215, %s215
              $region43: #{_lambda_.21} parent=39 // loop_header_branch
                %234 = sbr.rel (%p232) target = $region47
              $region44: #{_lambda_.21} parent=39 // loop_body
                %v238 = vld [vmem:[%s236] sm:%s229]
                %239 = vst [vmem:[%s237] sm:%s229] %v238
                %v240 = vld [vmem:[%s236 + $0x48] sm:%s229]
                %241 = vst [vmem:[%s237 + $0x8] sm:%s229] %v240
              $region45: #{_lambda_.21} parent=39 // loop_footer
                %s235 = sadd.s32 1, %s231
              $region46: #{_lambda_.21} parent=39 // loop_footer_branch
                %230 = sbr.rel target = $region42
              $region47: #{_lambda_.21} parent=39 // loop_exit
                _
            $region40: #{_lambda_.21} parent=31 // pred_fallthru
              _
          $region32: #{_lambda_.21} parent=27 // pred_fallthru
            _
          %258 = vnop
        $region28: #{_lambda_.21} parent=23 // pred_fallthru
          _
        // Predicated region
        $region63: #{_lambda_.21} parent=23 // pred_check
          %p259 = pneg %p79
        $region64: #{_lambda_.21} parent=23 // pred_check_branch
          %261 = sbr.rel (%p259) target = $region66
        $region65: #{_lambda_.21} parent=23 // pred_region
          %s262 = smul.u32 32, %s19
          %s263 = smul.u32 2, %s18
          %p264 = scmp.lt.s32.totalorder %s262, 287
          %s265 = scalar_select %p264, %s262, 287
          %p266 = scmp.lt.s32.totalorder %s263, 1
          %s267 = scalar_select %p266, %s263, 1
          %s268 = smul.addr %s265, 2
          %s269 = sadd.s32 %s267, %s268
          %s270 = smul.addr %s269, 4
          %s271 = scalar_lea.vmem %s1, %s270
          %s272 = smul.u32 32, %s19
          %s273 = smul.u32 2, %s18
        $region66: #{_lambda_.21} parent=23 // pred_fallthru
          _
      $region24: #{_lambda_.21} parent=5 // pred_fallthru
        _
      %p274 = scmp.le.s32.totalorder 1, %s10
      %p275 = scmp.lt.s32.totalorder %s10, 10
      %p276 = pnand %p274, %p275
      %p277 = pneg %p276
      // Predicated region
      $region67: #{_lambda_.21} parent=5 // pred_check
        _
      $region68: #{_lambda_.21} parent=5 // pred_check_branch
        %279 = sbr.rel (%p276) target = $region70
      $region69: #{_lambda_.21} parent=5 // pred_region
        %s280 = ssub.s32 %s10, 1
        %s281 = sand.u32 %s44, 1
        %s282 = sand.u32 %s44, 1
        %s283 = smul.addr %s282, 16
        %s284 = scalar_lea.vmem [#allocation3], %s283
        // Predicated region
        $region71: #{_lambda_.21} parent=69 // pred_check
          %p285 = pneg %p57
        $region72: #{_lambda_.21} parent=69 // pred_check_branch
          %287 = sbr.rel (%p285) target = $region74
        $region73: #{_lambda_.21} parent=69 // pred_region
          _
        $region74: #{_lambda_.21} parent=69 // pred_fallthru
          _
        %s288 = sand.u32 %s44, 1
        %s289 = sand.u32 %s44, 1
        %s290 = smul.addr %s289, 16
        %s291 = scalar_lea.vmem [#allocation3], %s290
        %p292 = pneg %p57
        %p293 = pneg %p54
        %s294 = smul.u32 32, %s22
        %s295 = smul.u32 2, %s21
        %p296 = scmp.lt.s32.totalorder %s294, 287
        %s297 = scalar_select %p296, %s294, 287
        %p298 = scmp.lt.s32.totalorder %s295, 1
        %s299 = scalar_select %p298, %s295, 1
        %s300 = smul.addr %s297, 2
        %s301 = sadd.s32 %s299, %s300
        %s302 = smul.addr %s301, 4
        %s303 = scalar_lea.vmem %s1, %s302
        %p304 = pneg %p85
        %p305 = pneg %p82
        %s306 = smul.u32 2, %s21
        %p307 = scmp.lt.s32.totalorder %s306, 1
        %s308 = scalar_select %p307, %s306, 1
        %s309 = scalar_lea.vmem %s2, %s308
        %p310 = pneg %p111
        %p311 = pneg %p108
        %s312 = smul.u32 2, %s20
        %s313 = smul.u32 2, %s21
        %p314 = scmp.lt.s32.totalorder %s312, 1
        %s315 = scalar_select %p314, %s312, 1
        %p316 = scmp.lt.s32.totalorder %s313, 1
        %s317 = scalar_select %p316, %s313, 1
        %s318 = smul.addr %s315, 2
        %s319 = sadd.s32 %s317, %s318
        %s320 = smul.addr %s319, 4
        %s321 = scalar_lea.vmem %s3, %s320
        %p322 = pneg %p139
        %p323 = pneg %p136
        %p324 = pneg %p167
        %p325 = pneg %p164
        %s326 = smul.u32 2, %s20
        %s327 = smul.u32 2, %s21
        %p328 = scmp.lt.s32.totalorder %s326, 1
        %s329 = scalar_select %p328, %s326, 1
        %p330 = scmp.lt.s32.totalorder %s327, 1
        %s331 = scalar_select %p330, %s327, 1
        %s332 = smul.addr %s329, 2
        %s333 = sadd.s32 %s331, %s332
        %s334 = smul.addr %s333, 4
        %s335 = scalar_lea.vmem %s4, %s334
        %s336 = smul.u32 2, %s20
        %s337 = smul.u32 2, %s22
        %s338 = smul.u32 32, %s22
        %s339 = smul.u32 2, %s21
        %p340 = scmp.lt.s32.totalorder %s338, 287
        %s341 = scalar_select %p340, %s338, 287
        %p342 = scmp.lt.s32.totalorder %s339, 1
        %s343 = scalar_select %p342, %s339, 1
        %s344 = smul.addr %s341, 2
        %s345 = sadd.s32 %s343, %s344
        %s346 = smul.addr %s345, 4
        %s347 = scalar_lea.vmem %s1, %s346
        %s348 = smul.u32 32, %s22
        %s349 = smul.u32 2, %s21
        %s350 = smul.u32 2, %s21
        %p351 = scmp.lt.s32.totalorder %s350, 1
        %s352 = scalar_select %p351, %s350, 1
        %s353 = scalar_lea.vmem %s2, %s352
        %s354 = smul.u32 2, %s21
        %s355 = smul.u32 2, %s20
        %s356 = smul.u32 2, %s21
        %p357 = scmp.lt.s32.totalorder %s355, 1
        %s358 = scalar_select %p357, %s355, 1
        %p359 = scmp.lt.s32.totalorder %s356, 1
        %s360 = scalar_select %p359, %s356, 1
        %s361 = smul.addr %s358, 2
        %s362 = sadd.s32 %s360, %s361
        %s363 = smul.addr %s362, 4
        %s364 = scalar_lea.vmem %s3, %s363
        %s365 = smul.u32 2, %s20
        %s366 = smul.u32 2, %s21
        %s367 = smul.u32 2, %s20
        %s368 = smul.u32 2, %s21
        %p369 = scmp.lt.s32.totalorder %s367, 1
        %s370 = scalar_select %p369, %s367, 1
        %p371 = scmp.lt.s32.totalorder %s368, 1
        %s372 = scalar_select %p371, %s368, 1
        %s373 = smul.addr %s370, 2
        %s374 = sadd.s32 %s372, %s373
        %s375 = smul.addr %s374, 4
        %s376 = scalar_lea.vmem %s4, %s375
        %s377 = smul.u32 2, %s20
        %s378 = smul.u32 2, %s21
        %p379 = scmp.eq.s32.totalorder %s22, 0
        // Predicated region
        $region75: #{_lambda_.21} parent=69 // pred_check
          %p380 = pneg %p379
        $region76: #{_lambda_.21} parent=69 // pred_check_branch
          %382 = sbr.rel (%p380) target = $region78
        $region77: #{_lambda_.21} parent=69 // pred_region
          %383 = vst [vmem:[#allocation2] sm:$0xff] 0.0
          %384 = vst [vmem:[#allocation2 + $0x8] sm:$0xff] 0.0
          %385 = vst [vmem:[#allocation2 + $0x10] sm:$0xff] 0.0
          %386 = vst [vmem:[#allocation2 + $0x18] sm:$0xff] 0.0
        $region78: #{_lambda_.21} parent=69 // pred_fallthru
          _
        %v387 = vld [vmem:[#allocation2] sm:$0xff]
        %v388 = vld [vmem:[#allocation2 + $0x8] sm:$0xff]
        %v389 = vld [vmem:[#allocation2 + $0x10] sm:$0xff]
        %v390 = vld [vmem:[#allocation2 + $0x18] sm:$0xff]
        %v391 = vld [vmem:[%s284] sm:$0xff]
        %v392 = vld [vmem:[%s284 + $0x8] sm:$0xff]
        %v393 = vld [vmem:[%s347] sm:$0xff]
        %v394 = vld [vmem:[%s347 + $0x8] sm:$0xff]
        %v395 = vld [vmem:[%s347 + $0x10] sm:$0xff]
        %v396 = vld [vmem:[%s347 + $0x18] sm:$0xff]
        %v397 = vld [vmem:[%s347 + $0x20] sm:$0xff]
        %v398 = vld [vmem:[%s347 + $0x28] sm:$0xff]
        %v399 = vld [vmem:[%s347 + $0x30] sm:$0xff]
        %v400 = vld [vmem:[%s347 + $0x38] sm:$0xff]
        %v401 = vld [vmem:[%s347 + $0x40] sm:$0xff]
        %v402 = vld [vmem:[%s347 + $0x48] sm:$0xff]
        %v403 = vld [vmem:[%s347 + $0x50] sm:$0xff]
        %v404 = vld [vmem:[%s347 + $0x58] sm:$0xff]
        %v405 = vld [vmem:[%s347 + $0x60] sm:$0xff]
        %v406 = vld [vmem:[%s347 + $0x68] sm:$0xff]
        %v407 = vld [vmem:[%s347 + $0x70] sm:$0xff]
        %v408 = vld [vmem:[%s347 + $0x78] sm:$0xff]
        %v409 = vld [vmem:[%s347 + $0x80] sm:$0xff]
        %v410 = vld [vmem:[%s347 + $0x88] sm:$0xff]
        %v411 = vld [vmem:[%s347 + $0x90] sm:$0xff]
        %v412 = vld [vmem:[%s347 + $0x98] sm:$0xff]
        %v413 = vld [vmem:[%s347 + $0xa0] sm:$0xff]
        %v414 = vld [vmem:[%s347 + $0xa8] sm:$0xff]
        %v415 = vld [vmem:[%s347 + $0xb0] sm:$0xff]
        %v416 = vld [vmem:[%s347 + $0xb8] sm:$0xff]
        %v417 = vld [vmem:[%s347 + $0xc0] sm:$0xff]
        %v418 = vld [vmem:[%s347 + $0xc8] sm:$0xff]
        %v419 = vld [vmem:[%s347 + $0xd0] sm:$0xff]
        %v420 = vld [vmem:[%s347 + $0xd8] sm:$0xff]
        %v421 = vld [vmem:[%s347 + $0xe0] sm:$0xff]
        %v422 = vld [vmem:[%s347 + $0xe8] sm:$0xff]
        %v423 = vld [vmem:[%s347 + $0xf0] sm:$0xff]
        %v424 = vld [vmem:[%s347 + $0xf8] sm:$0xff]
        %v427 = vunpack.c.l.b16 %v391
        %v428 = vunpack.c.h.b16 %v391
        %v429 = vunpack.c.l.b16 %v392
        %v430 = vunpack.c.h.b16 %v392
        %v431 = vpack.c.b16 %v429, %v427
        %v432 = vpack.c.b16 %v430, %v428
        %v467 = vunpack.c.l.b16 %v393
        %v468 = vunpack.c.h.b16 %v393
        %v469 = vunpack.c.l.b16 %v394
        %v470 = vunpack.c.h.b16 %v394
        %v471 = vunpack.c.l.b16 %v395
        %v472 = vunpack.c.h.b16 %v395
        %v473 = vunpack.c.l.b16 %v396
        %v474 = vunpack.c.h.b16 %v396
        %v475 = vunpack.c.l.b16 %v397
        %v476 = vunpack.c.h.b16 %v397
        %v477 = vunpack.c.l.b16 %v398
        %v478 = vunpack.c.h.b16 %v398
        %v479 = vunpack.c.l.b16 %v399
        %v480 = vunpack.c.h.b16 %v399
        %v481 = vunpack.c.l.b16 %v400
        %v482 = vunpack.c.h.b16 %v400
        %v483 = vunpack.c.l.b16 %v401
        %v484 = vunpack.c.h.b16 %v401
        %v485 = vunpack.c.l.b16 %v402
        %v486 = vunpack.c.h.b16 %v402
        %v487 = vunpack.c.l.b16 %v403
        %v488 = vunpack.c.h.b16 %v403
        %v489 = vunpack.c.l.b16 %v404
        %v490 = vunpack.c.h.b16 %v404
        %v491 = vunpack.c.l.b16 %v405
        %v492 = vunpack.c.h.b16 %v405
        %v493 = vunpack.c.l.b16 %v406
        %v494 = vunpack.c.h.b16 %v406
        %v495 = vunpack.c.l.b16 %v407
        %v496 = vunpack.c.h.b16 %v407
        %v497 = vunpack.c.l.b16 %v408
        %v498 = vunpack.c.h.b16 %v408
        %v499 = vunpack.c.l.b16 %v409
        %v500 = vunpack.c.h.b16 %v409
        %v501 = vunpack.c.l.b16 %v410
        %v502 = vunpack.c.h.b16 %v410
        %v503 = vunpack.c.l.b16 %v411
        %v504 = vunpack.c.h.b16 %v411
        %v505 = vunpack.c.l.b16 %v412
        %v506 = vunpack.c.h.b16 %v412
        %v507 = vunpack.c.l.b16 %v413
        %v508 = vunpack.c.h.b16 %v413
        %v509 = vunpack.c.l.b16 %v414
        %v510 = vunpack.c.h.b16 %v414
        %v511 = vunpack.c.l.b16 %v415
        %v512 = vunpack.c.h.b16 %v415
        %v513 = vunpack.c.l.b16 %v416
        %v514 = vunpack.c.h.b16 %v416
        %v515 = vunpack.c.l.b16 %v417
        %v516 = vunpack.c.h.b16 %v417
        %v517 = vunpack.c.l.b16 %v418
        %v518 = vunpack.c.h.b16 %v418
        %v519 = vunpack.c.l.b16 %v419
        %v520 = vunpack.c.h.b16 %v419
        %v521 = vunpack.c.l.b16 %v420
        %v522 = vunpack.c.h.b16 %v420
        %v523 = vunpack.c.l.b16 %v421
        %v524 = vunpack.c.h.b16 %v421
        %v525 = vunpack.c.l.b16 %v422
        %v526 = vunpack.c.h.b16 %v422
        %v527 = vunpack.c.l.b16 %v423
        %v528 = vunpack.c.h.b16 %v423
        %v529 = vunpack.c.l.b16 %v424
        %v530 = vunpack.c.h.b16 %v424
        %v531 = vpack.c.b16 %v469, %v467
        %v532 = vpack.c.b16 %v470, %v468
        %v533 = vpack.c.b16 %v473, %v471
        %v534 = vpack.c.b16 %v474, %v472
        %v535 = vpack.c.b16 %v477, %v475
        %v536 = vpack.c.b16 %v478, %v476
        %v537 = vpack.c.b16 %v481, %v479
        %v538 = vpack.c.b16 %v482, %v480
        %v539 = vpack.c.b16 %v485, %v483
        %v540 = vpack.c.b16 %v486, %v484
        %v541 = vpack.c.b16 %v489, %v487
        %v542 = vpack.c.b16 %v490, %v488
        %v543 = vpack.c.b16 %v493, %v491
        %v544 = vpack.c.b16 %v494, %v492
        %v545 = vpack.c.b16 %v497, %v495
        %v546 = vpack.c.b16 %v498, %v496
        %v547 = vpack.c.b16 %v501, %v499
        %v548 = vpack.c.b16 %v502, %v500
        %v549 = vpack.c.b16 %v505, %v503
        %v550 = vpack.c.b16 %v506, %v504
        %v551 = vpack.c.b16 %v509, %v507
        %v552 = vpack.c.b16 %v510, %v508
        %v553 = vpack.c.b16 %v513, %v511
        %v554 = vpack.c.b16 %v514, %v512
        %v555 = vpack.c.b16 %v517, %v515
        %v556 = vpack.c.b16 %v518, %v516
        %v557 = vpack.c.b16 %v521, %v519
        %v558 = vpack.c.b16 %v522, %v520
        %v559 = vpack.c.b16 %v525, %v523
        %v560 = vpack.c.b16 %v526, %v524
        %v561 = vpack.c.b16 %v529, %v527
        %v562 = vpack.c.b16 %v530, %v528
        %595 = vmatprep.subr.bf16.mxu0 %v546
        %596 = vmatpush1.bf16.msra.mxu0 %v545
        %597 = vmatprep.subr.bf16.mxu0 %v544
        %598 = vmatpush1.bf16.msra.mxu0 %v543
        %599 = vmatprep.subr.bf16.mxu0 %v542
        %600 = vmatpush1.bf16.msra.mxu0 %v541
        %601 = vmatprep.subr.bf16.mxu0 %v540
        %602 = vmatpush1.bf16.msra.mxu0 %v539
        %603 = vmatprep.subr.bf16.mxu0 %v538
        %604 = vmatpush1.bf16.msra.mxu0 %v537
        %605 = vmatprep.subr.bf16.mxu0 %v536
        %606 = vmatpush1.bf16.msra.mxu0 %v535
        %607 = vmatprep.subr.bf16.mxu0 %v534
        %608 = vmatpush1.bf16.msra.mxu0 %v533
        %609 = vmatprep.subr.bf16.mxu0 %v532
        %610 = vmatpush1.bf16.msra.mxu0 %v531
        %611 = vmatprep.subr.bf16.mxu0 %v562
        %612 = vmatpush2.bf16.msra.mxu0 %v561
        %613 = vmatprep.subr.bf16.mxu0 %v560
        %614 = vmatpush2.bf16.msra.mxu0 %v559
        %615 = vmatprep.subr.bf16.mxu0 %v558
        %616 = vmatpush2.bf16.msra.mxu0 %v557
        %617 = vmatprep.subr.bf16.mxu0 %v556
        %618 = vmatpush2.bf16.msra.mxu0 %v555
        %619 = vmatprep.subr.bf16.mxu0 %v554
        %620 = vmatpush2.bf16.msra.mxu0 %v553
        %621 = vmatprep.subr.bf16.mxu0 %v552
        %622 = vmatpush2.bf16.msra.mxu0 %v551
        %623 = vmatprep.subr.bf16.mxu0 %v550
        %624 = vmatpush2.bf16.msra.mxu0 %v549
        %625 = vmatprep.subr.bf16.mxu0 %v548
        %626 = vmatpush2.bf16.msra.mxu0 %v547
        %627 = vmatprep.mubr.bf16.mxu0 %v432
        %628 = vmatmul.mubr.bf16.gmra.mxu0 %v431
        %v629 = vpop.f32.mrf.mxu0
        %v630 = vadd.f32 0.0, %v629
        %v631 = vpop.f32.mrf.mxu0
        %v632 = vadd.f32 0.0, %v631
        %v633 = vpop.f32.mrf.mxu0
        %v634 = vadd.f32 0.0, %v633
        %v635 = vpop.f32.mrf.mxu0
        %v636 = vadd.f32 0.0, %v635
        %637 = vdwg.mxu0
        %v638 = vadd.f32 %v387, %v630
        %v639 = vadd.f32 %v388, %v632
        %v640 = vadd.f32 %v389, %v634
        %v641 = vadd.f32 %v390, %v636
        %642 = vst [vmem:[#allocation2] sm:$0xff] %v638
        %643 = vst [vmem:[#allocation2 + $0x8] sm:$0xff] %v639
        %644 = vst [vmem:[#allocation2 + $0x10] sm:$0xff] %v640
        %645 = vst [vmem:[#allocation2 + $0x18] sm:$0xff] %v641
        %p646 = scmp.eq.s32.totalorder %s22, 8
        // Predicated region
        $region79: #{_lambda_.21} parent=69 // pred_check
          %p647 = pneg %p646
        $region80: #{_lambda_.21} parent=69 // pred_check_branch
          %649 = sbr.rel (%p647) target = $region82
        $region81: #{_lambda_.21} parent=69 // pred_region
          %v650 = vld [vmem:[#allocation2] sm:$0xff]
          %v651 = vld [vmem:[#allocation2 + $0x8] sm:$0xff]
          %v652 = vld [vmem:[#allocation2 + $0x10] sm:$0xff]
          %v653 = vld [vmem:[#allocation2 + $0x18] sm:$0xff]
          %v654 = vld [vmem:[%s353] sm:$0x3]
          %v656 = vlaneseq
          %v657 = vshrl.u32 %v656, 7
          %v658 = vsub.s32 0, %v657
          %v659 = vrot.slane %v654, %v658
          %v660 = vlaneseq
          %v661 = vshrl.u32 %v660, 7
          %v662 = vsub.s32 1, %v661
          %v663 = vrot.slane %v654, %v662
          %v666 = vadd.f32 %v650, %v659
          %v667 = vadd.f32 %v651, %v663
          %v668 = vadd.f32 %v652, %v659
          %v669 = vadd.f32 %v653, %v663
          %v670 = vld [vmem:[%s364] sm:$0xff]
          %v671 = vld [vmem:[%s364 + $0x8] sm:$0xff]
          %v672 = vunpack.c.l.bf16 %v670
          %v673 = vunpack.c.h.bf16 %v670
          %v674 = vunpack.c.l.bf16 %v671
          %v675 = vunpack.c.h.bf16 %v671
          %v676 = vadd.f32 %v666, %v672
          %v677 = vadd.f32 %v667, %v673
          %v678 = vadd.f32 %v668, %v674
          %v679 = vadd.f32 %v669, %v675
          %v680 = vmax.f32 %v676, 0.0
          %v681 = vmax.f32 %v677, 0.0
          %v682 = vmax.f32 %v678, 0.0
          %v683 = vmax.f32 %v679, 0.0
          %v684 = vpack.c.bf16 %v682, %v680
          %v685 = vpack.c.bf16 %v683, %v681
          %v688 = vunpack.c.l.b16 %v684
          %v689 = vunpack.c.l.b16 %v685
          %v690 = vunpack.c.h.b16 %v684
          %v691 = vunpack.c.h.b16 %v685
          %v692 = vpack.c.b16 %v689, %v688
          %v693 = vpack.c.b16 %v691, %v690
          %696 = vst [vmem:[%s376] sm:$0xff] %v692
          %697 = vst [vmem:[%s376 + $0x8] sm:$0xff] %v693
        $region82: #{_lambda_.21} parent=69 // pred_fallthru
          _
        %s698 = smul.u32 2, %s20
        %s699 = smul.u32 2, %s21
        %p700 = scmp.lt.s32.totalorder %s698, 1
        %s701 = scalar_select %p700, %s698, 1
        %p702 = scmp.lt.s32.totalorder %s699, 1
        %s703 = scalar_select %p702, %s699, 1
        %s704 = smul.addr %s701, 2
        %s705 = sadd.s32 %s703, %s704
        %s706 = smul.addr %s705, 4
        %s707 = scalar_lea.vmem %s4, %s706
        // Predicated region
        $region83: #{_lambda_.21} parent=69 // pred_check
          %p708 = pneg %p164
        $region84: #{_lambda_.21} parent=69 // pred_check_branch
          %710 = sbr.rel (%p708) target = $region86
        $region85: #{_lambda_.21} parent=69 // pred_region
          %s711 = smul.u32 2, %s20
          %s712 = smul.u32 2, %s21
        $region86: #{_lambda_.21} parent=69 // pred_fallthru
          _
        // Predicated region
        $region87: #{_lambda_.21} parent=69 // pred_check
          %p713 = pneg %p164
        $region88: #{_lambda_.21} parent=69 // pred_check_branch
          %715 = sbr.rel (%p713) target = $region90
        $region89: #{_lambda_.21} parent=69 // pred_region
          %s716 = smul.u32 2, %s20
          %s717 = smul.u32 2, %s21
          %p718 = scmp.lt.s32.totalorder %s716, 1
          %s719 = scalar_select %p718, %s716, 1
          %p720 = scmp.lt.s32.totalorder %s717, 1
          %s721 = scalar_select %p720, %s717, 1
          %s722 = smul.addr %s719, 2
          %s723 = sadd.s32 %s721, %s722
          %s724 = smul.addr %s723, 4
          %s725 = scalar_lea.vmem %s4, %s724
        $region90: #{_lambda_.21} parent=69 // pred_fallthru
          _
      $region70: #{_lambda_.21} parent=5 // pred_fallthru
        _
      %p726 = scmp.le.s32.totalorder 2, %s10
      // Predicated region
      $region91: #{_lambda_.21} parent=5 // pred_check
        %p727 = pneg %p726
      $region92: #{_lambda_.21} parent=5 // pred_check_branch
        %729 = sbr.rel (%p727) target = $region94
      $region93: #{_lambda_.21} parent=5 // pred_region
        %s730 = ssub.s32 %s10, 2
      $region94: #{_lambda_.21} parent=5 // pred_fallthru
        _
    $region6: #{_lambda_.21} parent=1 // loop_footer
      %s14 = sadd.s32 1, %s10
    $region7: #{_lambda_.21} parent=1 // loop_footer_branch
      %9 = sbr.rel target = $region3
    $region8: #{_lambda_.21} parent=1 // loop_exit
      _

// kernel: _lambda_.24
$region0: #{_lambda_.24}
  #allocation0 [shape = 'u32[]', space=smem, size = 0x4, offset = 0x4, fixed_abs, tag = 'smem constant byte address 0x4 - core index']
  #allocation1 [shape = 'u32[144,128]{1,0:T(1,128)}', space=vmem, size = 0x12000, scoped, tag = 'internal scratch']
  #allocation2 [shape = 'f32[16,512]{1,0:T(8,128)}', space=vmem, size = 0x8000, scoped, tag = 'scratch operand']
  %s0 = inlined_call_operand.vmem [shape: bf16[16,4608], index: 0, kind: input, shape index: {}]
  %s1 = inlined_call_operand.vmem [shape: bf16[4608,512], index: 1, kind: input, shape index: {}]
  %s2 = inlined_call_operand.vmem [shape: f32[1,512], index: 2, kind: input, shape index: {}]
  %s3 = inlined_call_operand.vmem [shape: bf16[16,512], index: 3, kind: input, shape index: {}]
  %s4 = inlined_call_operand.vmem [shape: bf16[16,512], index: 4, kind: output, shape index: {}]
  %s5 = sld [smem:[#allocation0]]
  $region80: #{_lambda_.24} parent=0
    _
  %s7 = ssub.s32 1, %s5
  %s8 = scalar_select 0, %s7, %s5
  $region1: #{_lambda_.24} parent=0
    #allocation3 [shape = 'u8[32768]{0}', space=vmem, size = 0x8000, scoped, tag = 'input window, operand 0']
    loop: start=0, step=1, limit=11
    $region2: #{_lambda_.24} parent=1 // loop_pre_header
      _
    $region3: #{_lambda_.24} parent=1 // loop_header
      %s10 = sphi 0, %s14
      %p11 = scmp.ge.s32.totalorder %s10, 11
      %s17 = sphi 0, %s36
      %s18 = sphi 0, %s32
      %s19 = sphi 0, %s28
      %s20 = sphi 0, %s17
      %s21 = sphi 0, %s18
      %s22 = sphi 0, %s19
      %s23 = sphi 0, %s20
      %s24 = sphi 0, %s21
      %s25 = sphi 0, %s22
      %s41 = sphi 0, %s43
      %s44 = sphi 0, %s41
      %s45 = sphi 0, %s44
      %s61 = sphi 0, %s45
      %s69 = sphi 0, %s71
      %s72 = sphi 0, %s69
      %s73 = sphi 0, %s72
      %s89 = sphi 0, %s73
      %s95 = sphi 0, %s97
      %s98 = sphi 0, %s95
      %s99 = sphi 0, %s98
      %s115 = sphi 0, %s99
      %s123 = sphi 0, %s125
      %s126 = sphi 0, %s123
      %s127 = sphi 0, %s126
      %s143 = sphi 0, %s127
      %s151 = sphi 0, %s153
      %s154 = sphi 0, %s151
      %s155 = sphi 0, %s154
      %s171 = sphi 0, %s155
    $region4: #{_lambda_.24} parent=1 // loop_header_branch
      %13 = sbr.rel (%p11) target = $region8
    $region5: #{_lambda_.24} parent=1 // loop_body
      %s15 = ssub.s32 %s10, 1
      %s16 = ssub.s32 %s10, 2
      %s26 = sadd.s32 1, %s19
      %p27 = scmp.ge.s32.totalorder %s26, 9
      %s28 = scalar_select %p27, 0, %s26
      %s29 = sadd.s32 1, %s18
      %s30 = scalar_select %p27, %s29, %s18
      %p31 = scmp.ge.s32.totalorder %s30, 1
      %s32 = scalar_select %p31, 0, %s30
      %s33 = sadd.s32 1, %s17
      %s34 = scalar_select %p31, %s33, %s17
      %p35 = scmp.ge.s32.totalorder %s34, 1
      %s36 = scalar_select %p35, 0, %s34
      %s37 = ssub.s32 %s17, %s36
      %s38 = ssub.s32 %s19, %s28
      %s39 = sor.u32 %s37, %s38
      %p40 = scmp.eq.s32.totalorder %s39, 0
      %s42 = sadd.s32 %s41, 1
      %s43 = scalar_select %p40, %s41, %s42
      %p46 = pneg %p40
      %p47 = scmp.eq.s32.totalorder %s10, 8
      %p48 = por %p46, %p47
      %p49 = scmp.ne.s32.totalorder %s41, %s44
      %p50 = scmp.eq.s32.totalorder %s10, 0
      %p51 = por %p49, %p50
      %p52 = scmp.ne.s32.totalorder %s41, %s44
      %p53 = scmp.eq.s32.totalorder %s15, 8
      %p54 = por %p52, %p53
      %p55 = scmp.ne.s32.totalorder %s44, %s45
      %p56 = scmp.eq.s32.totalorder %s15, 0
      %p57 = por %p55, %p56
      %p58 = scmp.ne.s32.totalorder %s44, %s45
      %p59 = scmp.eq.s32.totalorder %s16, 8
      %p60 = por %p58, %p59
      %p62 = scmp.ne.s32.totalorder %s45, %s61
      %p63 = scmp.eq.s32.totalorder %s16, 0
      %p64 = por %p62, %p63
      %s65 = ssub.s32 %s19, %s28
      %s66 = ssub.s32 %s18, %s32
      %s67 = sor.u32 %s65, %s66
      %p68 = scmp.eq.s32.totalorder %s67, 0
      %s70 = sadd.s32 %s69, 1
      %s71 = scalar_select %p68, %s69, %s70
      %p74 = pneg %p68
      %p75 = scmp.eq.s32.totalorder %s10, 8
      %p76 = por %p74, %p75
      %p77 = scmp.ne.s32.totalorder %s69, %s72
      %p78 = scmp.eq.s32.totalorder %s10, 0
      %p79 = por %p77, %p78
      %p80 = scmp.ne.s32.totalorder %s69, %s72
      %p81 = scmp.eq.s32.totalorder %s15, 8
      %p82 = por %p80, %p81
      %p83 = scmp.ne.s32.totalorder %s72, %s73
      %p84 = scmp.eq.s32.totalorder %s15, 0
      %p85 = por %p83, %p84
      %p86 = scmp.ne.s32.totalorder %s72, %s73
      %p87 = scmp.eq.s32.totalorder %s16, 8
      %p88 = por %p86, %p87
      %p90 = scmp.ne.s32.totalorder %s73, %s89
      %p91 = scmp.eq.s32.totalorder %s16, 0
      %p92 = por %p90, %p91
      %s93 = ssub.s32 %s18, %s32
      %p94 = scmp.eq.s32.totalorder %s93, 0
      %s96 = sadd.s32 %s95, 1
      %s97 = scalar_select %p94, %s95, %s96
      %p100 = pneg %p94
      %p101 = scmp.eq.s32.totalorder %s10, 8
      %p102 = por %p100, %p101
      %p103 = scmp.ne.s32.totalorder %s95, %s98
      %p104 = scmp.eq.s32.totalorder %s10, 0
      %p105 = por %p103, %p104
      %p106 = scmp.ne.s32.totalorder %s95, %s98
      %p107 = scmp.eq.s32.totalorder %s15, 8
      %p108 = por %p106, %p107
      %p109 = scmp.ne.s32.totalorder %s98, %s99
      %p110 = scmp.eq.s32.totalorder %s15, 0
      %p111 = por %p109, %p110
      %p112 = scmp.ne.s32.totalorder %s98, %s99
      %p113 = scmp.eq.s32.totalorder %s16, 8
      %p114 = por %p112, %p113
      %p116 = scmp.ne.s32.totalorder %s99, %s115
      %p117 = scmp.eq.s32.totalorder %s16, 0
      %p118 = por %p116, %p117
      %s119 = ssub.s32 %s17, %s36
      %s120 = ssub.s32 %s18, %s32
      %s121 = sor.u32 %s119, %s120
      %p122 = scmp.eq.s32.totalorder %s121, 0
      %s124 = sadd.s32 %s123, 1
      %s125 = scalar_select %p122, %s123, %s124
      %p128 = pneg %p122
      %p129 = scmp.eq.s32.totalorder %s10, 8
      %p130 = por %p128, %p129
      %p131 = scmp.ne.s32.totalorder %s123, %s126
      %p132 = scmp.eq.s32.totalorder %s10, 0
      %p133 = por %p131, %p132
      %p134 = scmp.ne.s32.totalorder %s123, %s126
      %p135 = scmp.eq.s32.totalorder %s15, 8
      %p136 = por %p134, %p135
      %p137 = scmp.ne.s32.totalorder %s126, %s127
      %p138 = scmp.eq.s32.totalorder %s15, 0
      %p139 = por %p137, %p138
      %p140 = scmp.ne.s32.totalorder %s126, %s127
      %p141 = scmp.eq.s32.totalorder %s16, 8
      %p142 = por %p140, %p141
      %p144 = scmp.ne.s32.totalorder %s127, %s143
      %p145 = scmp.eq.s32.totalorder %s16, 0
      %p146 = por %p144, %p145
      %s147 = ssub.s32 %s17, %s36
      %s148 = ssub.s32 %s18, %s32
      %s149 = sor.u32 %s147, %s148
      %p150 = scmp.eq.s32.totalorder %s149, 0
      %s152 = sadd.s32 %s151, 1
      %s153 = scalar_select %p150, %s151, %s152
      %p156 = pneg %p150
      %p157 = scmp.eq.s32.totalorder %s10, 8
      %p158 = por %p156, %p157
      %p159 = scmp.ne.s32.totalorder %s151, %s154
      %p160 = scmp.eq.s32.totalorder %s10, 0
      %p161 = por %p159, %p160
      %p162 = scmp.ne.s32.totalorder %s151, %s154
      %p163 = scmp.eq.s32.totalorder %s15, 8
      %p164 = por %p162, %p163
      %p165 = scmp.ne.s32.totalorder %s154, %s155
      %p166 = scmp.eq.s32.totalorder %s15, 0
      %p167 = por %p165, %p166
      %p168 = scmp.ne.s32.totalorder %s154, %s155
      %p169 = scmp.eq.s32.totalorder %s16, 8
      %p170 = por %p168, %p169
      %p172 = scmp.ne.s32.totalorder %s155, %s171
      %p173 = scmp.eq.s32.totalorder %s16, 0
      %p174 = por %p172, %p173
      %p175 = scmp.le.s32.totalorder 1, %s10
      %p176 = scmp.lt.s32.totalorder %s10, 10
      %p177 = pnand %p175, %p176
      %p178 = pneg %p177
      // Predicated region
      $region9: #{_lambda_.24} parent=5 // pred_check
        _
      $region10: #{_lambda_.24} parent=5 // pred_check_branch
        %180 = sbr.rel (%p177) target = $region12
      $region11: #{_lambda_.24} parent=5 // pred_region
        %s181 = ssub.s32 %s10, 1
        // Predicated region
        $region13: #{_lambda_.24} parent=11 // pred_check
          %p182 = pneg %p111
        $region14: #{_lambda_.24} parent=11 // pred_check_branch
          %184 = sbr.rel (%p182) target = $region16
        $region15: #{_lambda_.24} parent=11 // pred_region
          %s185 = smul.u32 4, %s21
          %p186 = scmp.lt.s32.totalorder %s185, 3
          %s187 = scalar_select %p186, %s185, 3
          %s188 = scalar_lea.vmem %s2, %s187
          %s189 = smul.u32 4, %s21
        $region16: #{_lambda_.24} parent=11 // pred_fallthru
          _
        // Predicated region
        $region17: #{_lambda_.24} parent=11 // pred_check
          %p190 = pneg %p139
        $region18: #{_lambda_.24} parent=11 // pred_check_branch
          %192 = sbr.rel (%p190) target = $region20
        $region19: #{_lambda_.24} parent=11 // pred_region
          %s193 = smul.u32 2, %s20
          %s194 = smul.u32 4, %s21
          %p195 = scmp.lt.s32.totalorder %s193, 1
          %s196 = scalar_select %p195, %s193, 1
          %p197 = scmp.lt.s32.totalorder %s194, 3
          %s198 = scalar_select %p197, %s194, 3
          %s199 = smul.addr %s196, 4
          %s200 = sadd.s32 %s198, %s199
          %s201 = smul.addr %s200, 4
          %s202 = scalar_lea.vmem %s3, %s201
          %s203 = smul.u32 2, %s20
          %s204 = smul.u32 4, %s21
        $region20: #{_lambda_.24} parent=11 // pred_fallthru
          _
      $region12: #{_lambda_.24} parent=5 // pred_fallthru
        _
      %p205 = scmp.lt.s32.totalorder %s10, 9
      // Predicated region
      $region21: #{_lambda_.24} parent=5 // pred_check
        %p206 = pneg %p205
      $region22: #{_lambda_.24} parent=5 // pred_check_branch
        %208 = sbr.rel (%p206) target = $region24
      $region23: #{_lambda_.24} parent=5 // pred_region
        // Predicated region
        $region25: #{_lambda_.24} parent=23 // pred_check
          %p209 = pneg %p51
        $region26: #{_lambda_.24} parent=23 // pred_check_branch
          %211 = sbr.rel (%p209) target = $region28
        $region27: #{_lambda_.24} parent=23 // pred_region
          %s212 = sand.u32 %s41, 1
          %s213 = sand.u32 %s41, 1
          %s214 = smul.addr %s213, 32
          %s215 = scalar_lea.vmem [#allocation3], %s214
          %s216 = smul.u32 2, %s17
          %s217 = smul.u32 4, %s19
          %s218 = smul.addr %s216, 36
          %s219 = sadd.s32 %s217, %s218
          %s220 = smul.addr %s219, 4
          %s221 = scalar_lea.vmem %s0, %s220
          // Predicated region
          $region29: #{_lambda_.24} parent=27 // pred_check
            _
          $region30: #{_lambda_.24} parent=27 // pred_check_branch
            %223 = sbr.rel (0) target = $region32
          $region31: #{_lambda_.24} parent=27 // pred_region
            // Predicated region
            $region33: #{_lambda_.24} parent=31 // pred_check
              _
            $region34: #{_lambda_.24} parent=31 // pred_check_branch
              %225 = sbr.rel (0) target = $region36
            $region35: #{_lambda_.24} parent=31 // pred_region
              loop: start=0, step=1, limit=1
              $region37: #{_lambda_.24} parent=35 // loop_pre_header
                _
              $region38: #{_lambda_.24} parent=35 // loop_header
                %s227 = sphi 0, %s231
                %p228 = scmp.ge.s32.totalorder %s227, 1
                %s232 = sphi %s221, %s221
                %s233 = sphi %s215, %s215
              $region39: #{_lambda_.24} parent=35 // loop_header_branch
                %230 = sbr.rel (%p228) target = $region43
              $region40: #{_lambda_.24} parent=35 // loop_body
                %v234 = vld [vmem:[%s232] sm:$0xff]
                %235 = vst [vmem:[%s233] sm:$0xff] %v234
                %v236 = vld [vmem:[%s232 + $0x8] sm:$0xff]
                %237 = vst [vmem:[%s233 + $0x8] sm:$0xff] %v236
                %v238 = vld [vmem:[%s232 + $0x90] sm:$0xff]
                %239 = vst [vmem:[%s233 + $0x10] sm:$0xff] %v238
                %v240 = vld [vmem:[%s232 + $0x98] sm:$0xff]
                %241 = vst [vmem:[%s233 + $0x18] sm:$0xff] %v240
              $region41: #{_lambda_.24} parent=35 // loop_footer
                %s231 = sadd.s32 1, %s227
              $region42: #{_lambda_.24} parent=35 // loop_footer_branch
                %226 = sbr.rel target = $region38
              $region43: #{_lambda_.24} parent=35 // loop_exit
                _
            $region36: #{_lambda_.24} parent=31 // pred_fallthru
              _
            // Predicated region
            $region44: #{_lambda_.24} parent=31 // pred_check
              _
            $region45: #{_lambda_.24} parent=31 // pred_check_branch
              %243 = sbr.rel target = $region47
            $region46: #{_lambda_.24} parent=31 // pred_region
              _
            $region47: #{_lambda_.24} parent=31 // pred_fallthru
              _
          $region32: #{_lambda_.24} parent=27 // pred_fallthru
            _
          %244 = vnop
        $region28: #{_lambda_.24} parent=23 // pred_fallthru
          _
        // Predicated region
        $region48: #{_lambda_.24} parent=23 // pred_check
          %p245 = pneg %p79
        $region49: #{_lambda_.24} parent=23 // pred_check_branch
          %247 = sbr.rel (%p245) target = $region51
        $region50: #{_lambda_.24} parent=23 // pred_region
          %s248 = smul.u32 64, %s19
          %s249 = smul.u32 4, %s18
          %p250 = scmp.lt.s32.totalorder %s248, 575
          %s251 = scalar_select %p250, %s248, 575
          %p252 = scmp.lt.s32.totalorder %s249, 3
          %s253 = scalar_select %p252, %s249, 3
          %s254 = smul.addr %s251, 4
          %s255 = sadd.s32 %s253, %s254
          %s256 = smul.addr %s255, 4
          %s257 = scalar_lea.vmem %s1, %s256
          %s258 = smul.u32 64, %s19
          %s259 = smul.u32 4, %s18
        $region51: #{_lambda_.24} parent=23 // pred_fallthru
          _
      $region24: #{_lambda_.24} parent=5 // pred_fallthru
        _
      %p260 = scmp.le.s32.totalorder 1, %s10
      %p261 = scmp.lt.s32.totalorder %s10, 10
      %p262 = pnand %p260, %p261
      %p263 = pneg %p262
      // Predicated region
      $region52: #{_lambda_.24} parent=5 // pred_check
        _
      $region53: #{_lambda_.24} parent=5 // pred_check_branch
        %265 = sbr.rel (%p262) target = $region55
      $region54: #{_lambda_.24} parent=5 // pred_region
        %s266 = ssub.s32 %s10, 1
        %s267 = sand.u32 %s44, 1
        %s268 = sand.u32 %s44, 1
        %s269 = smul.addr %s268, 32
        %s270 = scalar_lea.vmem [#allocation3], %s269
        // Predicated region
        $region56: #{_lambda_.24} parent=54 // pred_check
          %p271 = pneg %p57
        $region57: #{_lambda_.24} parent=54 // pred_check_branch
          %273 = sbr.rel (%p271) target = $region59
        $region58: #{_lambda_.24} parent=54 // pred_region
          _
        $region59: #{_lambda_.24} parent=54 // pred_fallthru
          _
        %s274 = sand.u32 %s44, 1
        %s275 = sand.u32 %s44, 1
        %s276 = smul.addr %s275, 32
        %s277 = scalar_lea.vmem [#allocation3], %s276
        %p278 = pneg %p57
        %p279 = pneg %p54
        %s280 = smul.u32 64, %s22
        %s281 = smul.u32 4, %s21
        %p282 = scmp.lt.s32.totalorder %s280, 575
        %s283 = scalar_select %p282, %s280, 575
        %p284 = scmp.lt.s32.totalorder %s281, 3
        %s285 = scalar_select %p284, %s281, 3
        %s286 = smul.addr %s283, 4
        %s287 = sadd.s32 %s285, %s286
        %s288 = smul.addr %s287, 4
        %s289 = scalar_lea.vmem %s1, %s288
        %p290 = pneg %p85
        %p291 = pneg %p82
        %s292 = smul.u32 4, %s21
        %p293 = scmp.lt.s32.totalorder %s292, 3
        %s294 = scalar_select %p293, %s292, 3
        %s295 = scalar_lea.vmem %s2, %s294
        %p296 = pneg %p111
        %p297 = pneg %p108
        %s298 = smul.u32 2, %s20
        %s299 = smul.u32 4, %s21
        %p300 = scmp.lt.s32.totalorder %s298, 1
        %s301 = scalar_select %p300, %s298, 1
        %p302 = scmp.lt.s32.totalorder %s299, 3
        %s303 = scalar_select %p302, %s299, 3
        %s304 = smul.addr %s301, 4
        %s305 = sadd.s32 %s303, %s304
        %s306 = smul.addr %s305, 4
        %s307 = scalar_lea.vmem %s3, %s306
        %p308 = pneg %p139
        %p309 = pneg %p136
        %p310 = pneg %p167
        %p311 = pneg %p164
        %s312 = smul.u32 2, %s20
        %s313 = smul.u32 4, %s21
        %p314 = scmp.lt.s32.totalorder %s312, 1
        %s315 = scalar_select %p314, %s312, 1
        %p316 = scmp.lt.s32.totalorder %s313, 3
        %s317 = scalar_select %p316, %s313, 3
        %s318 = smul.addr %s315, 4
        %s319 = sadd.s32 %s317, %s318
        %s320 = smul.addr %s319, 4
        %s321 = scalar_lea.vmem %s4, %s320
        %s322 = smul.u32 2, %s20
        %s323 = smul.u32 4, %s22
        %s324 = smul.u32 64, %s22
        %s325 = smul.u32 4, %s21
        %p326 = scmp.lt.s32.totalorder %s324, 575
        %s327 = scalar_select %p326, %s324, 575
        %p328 = scmp.lt.s32.totalorder %s325, 3
        %s329 = scalar_select %p328, %s325, 3
        %s330 = smul.addr %s327, 4
        %s331 = sadd.s32 %s329, %s330
        %s332 = smul.addr %s331, 4
        %s333 = scalar_lea.vmem %s1, %s332
        %s334 = smul.u32 64, %s22
        %s335 = smul.u32 4, %s21
        %s336 = smul.u32 4, %s21
        %p337 = scmp.lt.s32.totalorder %s336, 3
        %s338 = scalar_select %p337, %s336, 3
        %s339 = scalar_lea.vmem %s2, %s338
        %s340 = smul.u32 4, %s21
        %s341 = smul.u32 2, %s20
        %s342 = smul.u32 4, %s21
        %p343 = scmp.lt.s32.totalorder %s341, 1
        %s344 = scalar_select %p343, %s341, 1
        %p345 = scmp.lt.s32.totalorder %s342, 3
        %s346 = scalar_select %p345, %s342, 3
        %s347 = smul.addr %s344, 4
        %s348 = sadd.s32 %s346, %s347
        %s349 = smul.addr %s348, 4
        %s350 = scalar_lea.vmem %s3, %s349
        %s351 = smul.u32 2, %s20
        %s352 = smul.u32 4, %s21
        %s353 = smul.u32 2, %s20
        %s354 = smul.u32 4, %s21
        %p355 = scmp.lt.s32.totalorder %s353, 1
        %s356 = scalar_select %p355, %s353, 1
        %p357 = scmp.lt.s32.totalorder %s354, 3
        %s358 = scalar_select %p357, %s354, 3
        %s359 = smul.addr %s356, 4
        %s360 = sadd.s32 %s358, %s359
        %s361 = smul.addr %s360, 4
        %s362 = scalar_lea.vmem %s4, %s361
        %s363 = smul.u32 2, %s20
        %s364 = smul.u32 4, %s21
        %p365 = scmp.eq.s32.totalorder %s22, 0
        // Predicated region
        $region60: #{_lambda_.24} parent=54 // pred_check
          %p366 = pneg %p365
        $region61: #{_lambda_.24} parent=54 // pred_check_branch
          %368 = sbr.rel (%p366) target = $region63
        $region62: #{_lambda_.24} parent=54 // pred_region
          %369 = vst [vmem:[#allocation2] sm:$0xff] 0.0
          %370 = vst [vmem:[#allocation2 + $0x8] sm:$0xff] 0.0
          %371 = vst [vmem:[#allocation2 + $0x10] sm:$0xff] 0.0
          %372 = vst [vmem:[#allocation2 + $0x18] sm:$0xff] 0.0
          %373 = vst [vmem:[#allocation2 + $0x20] sm:$0xff] 0.0
          %374 = vst [vmem:[#allocation2 + $0x28] sm:$0xff] 0.0
          %375 = vst [vmem:[#allocation2 + $0x30] sm:$0xff] 0.0
          %376 = vst [vmem:[#allocation2 + $0x38] sm:$0xff] 0.0
        $region63: #{_lambda_.24} parent=54 // pred_fallthru
          _
        %v377 = vld [vmem:[#allocation2] sm:$0xff]
        %v378 = vld [vmem:[#allocation2 + $0x8] sm:$0xff]
        %v379 = vld [vmem:[#allocation2 + $0x10] sm:$0xff]
        %v380 = vld [vmem:[#allocation2 + $0x18] sm:$0xff]
        %v381 = vld [vmem:[#allocation2 + $0x20] sm:$0xff]
        %v382 = vld [vmem:[#allocation2 + $0x28] sm:$0xff]
        %v383 = vld [vmem:[#allocation2 + $0x30] sm:$0xff]
        %v384 = vld [vmem:[#allocation2 + $0x38] sm:$0xff]
        %v385 = vld [vmem:[%s270] sm:$0xff]
        %v386 = vld [vmem:[%s270 + $0x8] sm:$0xff]
        %v387 = vld [vmem:[%s270 + $0x10] sm:$0xff]
        %v388 = vld [vmem:[%s270 + $0x18] sm:$0xff]
        %v389 = vld [vmem:[%s333] sm:$0xff]
        %v390 = vld [vmem:[%s333 + $0x8] sm:$0xff]
        %v391 = vld [vmem:[%s333 + $0x10] sm:$0xff]
        %v392 = vld [vmem:[%s333 + $0x18] sm:$0xff]
        %v393 = vld [vmem:[%s333 + $0x20] sm:$0xff]
        %v394 = vld [vmem:[%s333 + $0x28] sm:$0xff]
        %v395 = vld [vmem:[%s333 + $0x30] sm:$0xff]
        %v396 = vld [vmem:[%s333 + $0x38] sm:$0xff]
        %v397 = vld [vmem:[%s333 + $0x40] sm:$0xff]
        %v398 = vld [vmem:[%s333 + $0x48] sm:$0xff]
        %v399 = vld [vmem:[%s333 + $0x50] sm:$0xff]
        %v400 = vld [vmem:[%s333 + $0x58] sm:$0xff]
        %v401 = vld [vmem:[%s333 + $0x60] sm:$0xff]
        %v402 = vld [vmem:[%s333 + $0x68] sm:$0xff]
        %v403 = vld [vmem:[%s333 + $0x70] sm:$0xff]
        %v404 = vld [vmem:[%s333 + $0x78] sm:$0xff]
        %v405 = vld [vmem:[%s333 + $0x80] sm:$0xff]
        %v406 = vld [vmem:[%s333 + $0x88] sm:$0xff]
        %v407 = vld [vmem:[%s333 + $0x90] sm:$0xff]
        %v408 = vld [vmem:[%s333 + $0x98] sm:$0xff]
        %v409 = vld [vmem:[%s333 + $0xa0] sm:$0xff]
        %v410 = vld [vmem:[%s333 + $0xa8] sm:$0xff]
        %v411 = vld [vmem:[%s333 + $0xb0] sm:$0xff]
        %v412 = vld [vmem:[%s333 + $0xb8] sm:$0xff]
        %v413 = vld [vmem:[%s333 + $0xc0] sm:$0xff]
        %v414 = vld [vmem:[%s333 + $0xc8] sm:$0xff]
        %v415 = vld [vmem:[%s333 + $0xd0] sm:$0xff]
        %v416 = vld [vmem:[%s333 + $0xd8] sm:$0xff]
        %v417 = vld [vmem:[%s333 + $0xe0] sm:$0xff]
        %v418 = vld [vmem:[%s333 + $0xe8] sm:$0xff]
        %v419 = vld [vmem:[%s333 + $0xf0] sm:$0xff]
        %v420 = vld [vmem:[%s333 + $0xf8] sm:$0xff]
        %v421 = vld [vmem:[%s333 + $0x100] sm:$0xff]
        %v422 = vld [vmem:[%s333 + $0x108] sm:$0xff]
        %v423 = vld [vmem:[%s333 + $0x110] sm:$0xff]
        %v424 = vld [vmem:[%s333 + $0x118] sm:$0xff]
        %v425 = vld [vmem:[%s333 + $0x120] sm:$0xff]
        %v426 = vld [vmem:[%s333 + $0x128] sm:$0xff]
        %v427 = vld [vmem:[%s333 + $0x130] sm:$0xff]
        %v428 = vld [vmem:[%s333 + $0x138] sm:$0xff]
        %v429 = vld [vmem:[%s333 + $0x140] sm:$0xff]
        %v430 = vld [vmem:[%s333 + $0x148] sm:$0xff]
        %v431 = vld [vmem:[%s333 + $0x150] sm:$0xff]
        %v432 = vld [vmem:[%s333 + $0x158] sm:$0xff]
        %v433 = vld [vmem:[%s333 + $0x160] sm:$0xff]
        %v434 = vld [vmem:[%s333 + $0x168] sm:$0xff]
        %v435 = vld [vmem:[%s333 + $0x170] sm:$0xff]
        %v436 = vld [vmem:[%s333 + $0x178] sm:$0xff]
        %v437 = vld [vmem:[%s333 + $0x180] sm:$0xff]
        %v438 = vld [vmem:[%s333 + $0x188] sm:$0xff]
        %v439 = vld [vmem:[%s333 + $0x190] sm:$0xff]
        %v440 = vld [vmem:[%s333 + $0x198] sm:$0xff]
        %v441 = vld [vmem:[%s333 + $0x1a0] sm:$0xff]
        %v442 = vld [vmem:[%s333 + $0x1a8] sm:$0xff]
        %v443 = vld [vmem:[%s333 + $0x1b0] sm:$0xff]
        %v444 = vld [vmem:[%s333 + $0x1b8] sm:$0xff]
        %v445 = vld [vmem:[%s333 + $0x1c0] sm:$0xff]
        %v446 = vld [vmem:[%s333 + $0x1c8] sm:$0xff]
        %v447 = vld [vmem:[%s333 + $0x1d0] sm:$0xff]
        %v448 = vld [vmem:[%s333 + $0x1d8] sm:$0xff]
        %v449 = vld [vmem:[%s333 + $0x1e0] sm:$0xff]
        %v450 = vld [vmem:[%s333 + $0x1e8] sm:$0xff]
        %v451 = vld [vmem:[%s333 + $0x1f0] sm:$0xff]
        %v452 = vld [vmem:[%s333 + $0x1f8] sm:$0xff]
        %v453 = vld [vmem:[%s333 + $0x200] sm:$0xff]
        %v454 = vld [vmem:[%s333 + $0x208] sm:$0xff]
        %v455 = vld [vmem:[%s333 + $0x210] sm:$0xff]
        %v456 = vld [vmem:[%s333 + $0x218] sm:$0xff]
        %v457 = vld [vmem:[%s333 + $0x220] sm:$0xff]
        %v458 = vld [vmem:[%s333 + $0x228] sm:$0xff]
        %v459 = vld [vmem:[%s333 + $0x230] sm:$0xff]
        %v460 = vld [vmem:[%s333 + $0x238] sm:$0xff]
        %v461 = vld [vmem:[%s333 + $0x240] sm:$0xff]
        %v462 = vld [vmem:[%s333 + $0x248] sm:$0xff]
        %v463 = vld [vmem:[%s333 + $0x250] sm:$0xff]
        %v464 = vld [vmem:[%s333 + $0x258] sm:$0xff]
        %v465 = vld [vmem:[%s333 + $0x260] sm:$0xff]
        %v466 = vld [vmem:[%s333 + $0x268] sm:$0xff]
        %v467 = vld [vmem:[%s333 + $0x270] sm:$0xff]
        %v468 = vld [vmem:[%s333 + $0x278] sm:$0xff]
        %v469 = vld [vmem:[%s333 + $0x280] sm:$0xff]
        %v470 = vld [vmem:[%s333 + $0x288] sm:$0xff]
        %v471 = vld [vmem:[%s333 + $0x290] sm:$0xff]
        %v472 = vld [vmem:[%s333 + $0x298] sm:$0xff]
        %v473 = vld [vmem:[%s333 + $0x2a0] sm:$0xff]
        %v474 = vld [vmem:[%s333 + $0x2a8] sm:$0xff]
        %v475 = vld [vmem:[%s333 + $0x2b0] sm:$0xff]
        %v476 = vld [vmem:[%s333 + $0x2b8] sm:$0xff]
        %v477 = vld [vmem:[%s333 + $0x2c0] sm:$0xff]
        %v478 = vld [vmem:[%s333 + $0x2c8] sm:$0xff]
        %v479 = vld [vmem:[%s333 + $0x2d0] sm:$0xff]
        %v480 = vld [vmem:[%s333 + $0x2d8] sm:$0xff]
        %v481 = vld [vmem:[%s333 + $0x2e0] sm:$0xff]
        %v482 = vld [vmem:[%s333 + $0x2e8] sm:$0xff]
        %v483 = vld [vmem:[%s333 + $0x2f0] sm:$0xff]
        %v484 = vld [vmem:[%s333 + $0x2f8] sm:$0xff]
        %v485 = vld [vmem:[%s333 + $0x300] sm:$0xff]
        %v486 = vld [vmem:[%s333 + $0x308] sm:$0xff]
        %v487 = vld [vmem:[%s333 + $0x310] sm:$0xff]
        %v488 = vld [vmem:[%s333 + $0x318] sm:$0xff]
        %v489 = vld [vmem:[%s333 + $0x320] sm:$0xff]
        %v490 = vld [vmem:[%s333 + $0x328] sm:$0xff]
        %v491 = vld [vmem:[%s333 + $0x330] sm:$0xff]
        %v492 = vld [vmem:[%s333 + $0x338] sm:$0xff]
        %v493 = vld [vmem:[%s333 + $0x340] sm:$0xff]
        %v494 = vld [vmem:[%s333 + $0x348] sm:$0xff]
        %v495 = vld [vmem:[%s333 + $0x350] sm:$0xff]
        %v496 = vld [vmem:[%s333 + $0x358] sm:$0xff]
        %v497 = vld [vmem:[%s333 + $0x360] sm:$0xff]
        %v498 = vld [vmem:[%s333 + $0x368] sm:$0xff]
        %v499 = vld [vmem:[%s333 + $0x370] sm:$0xff]
        %v500 = vld [vmem:[%s333 + $0x378] sm:$0xff]
        %v501 = vld [vmem:[%s333 + $0x380] sm:$0xff]
        %v502 = vld [vmem:[%s333 + $0x388] sm:$0xff]
        %v503 = vld [vmem:[%s333 + $0x390] sm:$0xff]
        %v504 = vld [vmem:[%s333 + $0x398] sm:$0xff]
        %v505 = vld [vmem:[%s333 + $0x3a0] sm:$0xff]
        %v506 = vld [vmem:[%s333 + $0x3a8] sm:$0xff]
        %v507 = vld [vmem:[%s333 + $0x3b0] sm:$0xff]
        %v508 = vld [vmem:[%s333 + $0x3b8] sm:$0xff]
        %v509 = vld [vmem:[%s333 + $0x3c0] sm:$0xff]
        %v510 = vld [vmem:[%s333 + $0x3c8] sm:$0xff]
        %v511 = vld [vmem:[%s333 + $0x3d0] sm:$0xff]
        %v512 = vld [vmem:[%s333 + $0x3d8] sm:$0xff]
        %v513 = vld [vmem:[%s333 + $0x3e0] sm:$0xff]
        %v514 = vld [vmem:[%s333 + $0x3e8] sm:$0xff]
        %v515 = vld [vmem:[%s333 + $0x3f0] sm:$0xff]
        %v516 = vld [vmem:[%s333 + $0x3f8] sm:$0xff]
        %v521 = vunpack.c.l.b16 %v385
        %v522 = vunpack.c.h.b16 %v385
        %v523 = vunpack.c.l.b16 %v386
        %v524 = vunpack.c.h.b16 %v386
        %v525 = vunpack.c.l.b16 %v387
        %v526 = vunpack.c.h.b16 %v387
        %v527 = vunpack.c.l.b16 %v388
        %v528 = vunpack.c.h.b16 %v388
        %v529 = vpack.c.b16 %v525, %v521
        %v530 = vpack.c.b16 %v526, %v522
        %v531 = vpack.c.b16 %v527, %v523
        %v532 = vpack.c.b16 %v528, %v524
        %v665 = vunpack.c.l.b16 %v389
        %v666 = vunpack.c.h.b16 %v389
        %v667 = vunpack.c.l.b16 %v390
        %v668 = vunpack.c.h.b16 %v390
        %v669 = vunpack.c.l.b16 %v391
        %v670 = vunpack.c.h.b16 %v391
        %v671 = vunpack.c.l.b16 %v392
        %v672 = vunpack.c.h.b16 %v392
        %v673 = vunpack.c.l.b16 %v393
        %v674 = vunpack.c.h.b16 %v393
        %v675 = vunpack.c.l.b16 %v394
        %v676 = vunpack.c.h.b16 %v394
        %v677 = vunpack.c.l.b16 %v395
        %v678 = vunpack.c.h.b16 %v395
        %v679 = vunpack.c.l.b16 %v396
        %v680 = vunpack.c.h.b16 %v396
        %v681 = vunpack.c.l.b16 %v397
        %v682 = vunpack.c.h.b16 %v397
        %v683 = vunpack.c.l.b16 %v398
        %v684 = vunpack.c.h.b16 %v398
        %v685 = vunpack.c.l.b16 %v399
        %v686 = vunpack.c.h.b16 %v399
        %v687 = vunpack.c.l.b16 %v400
        %v688 = vunpack.c.h.b16 %v400
        %v689 = vunpack.c.l.b16 %v401
        %v690 = vunpack.c.h.b16 %v401
        %v691 = vunpack.c.l.b16 %v402
        %v692 = vunpack.c.h.b16 %v402
        %v693 = vunpack.c.l.b16 %v403
        %v694 = vunpack.c.h.b16 %v403
        %v695 = vunpack.c.l.b16 %v404
        %v696 = vunpack.c.h.b16 %v404
        %v697 = vunpack.c.l.b16 %v405
        %v698 = vunpack.c.h.b16 %v405
        %v699 = vunpack.c.l.b16 %v406
        %v700 = vunpack.c.h.b16 %v406
        %v701 = vunpack.c.l.b16 %v407
        %v702 = vunpack.c.h.b16 %v407
        %v703 = vunpack.c.l.b16 %v408
        %v704 = vunpack.c.h.b16 %v408
        %v705 = vunpack.c.l.b16 %v409
        %v706 = vunpack.c.h.b16 %v409
        %v707 = vunpack.c.l.b16 %v410
        %v708 = vunpack.c.h.b16 %v410
        %v709 = vunpack.c.l.b16 %v411
        %v710 = vunpack.c.h.b16 %v411
        %v711 = vunpack.c.l.b16 %v412
        %v712 = vunpack.c.h.b16 %v412
        %v713 = vunpack.c.l.b16 %v413
        %v714 = vunpack.c.h.b16 %v413
        %v715 = vunpack.c.l.b16 %v414
        %v716 = vunpack.c.h.b16 %v414
        %v717 = vunpack.c.l.b16 %v415
        %v718 = vunpack.c.h.b16 %v415
        %v719 = vunpack.c.l.b16 %v416
        %v720 = vunpack.c.h.b16 %v416
        %v721 = vunpack.c.l.b16 %v417
        %v722 = vunpack.c.h.b16 %v417
        %v723 = vunpack.c.l.b16 %v418
        %v724 = vunpack.c.h.b16 %v418
        %v725 = vunpack.c.l.b16 %v419
        %v726 = vunpack.c.h.b16 %v419
        %v727 = vunpack.c.l.b16 %v420
        %v728 = vunpack.c.h.b16 %v420
        %v729 = vunpack.c.l.b16 %v421
        %v730 = vunpack.c.h.b16 %v421
        %v731 = vunpack.c.l.b16 %v422
        %v732 = vunpack.c.h.b16 %v422
        %v733 = vunpack.c.l.b16 %v423
        %v734 = vunpack.c.h.b16 %v423
        %v735 = vunpack.c.l.b16 %v424
        %v736 = vunpack.c.h.b16 %v424
        %v737 = vunpack.c.l.b16 %v425
        %v738 = vunpack.c.h.b16 %v425
        %v739 = vunpack.c.l.b16 %v426
        %v740 = vunpack.c.h.b16 %v426
        %v741 = vunpack.c.l.b16 %v427
        %v742 = vunpack.c.h.b16 %v427
        %v743 = vunpack.c.l.b16 %v428
        %v744 = vunpack.c.h.b16 %v428
        %v745 = vunpack.c.l.b16 %v429
        %v746 = vunpack.c.h.b16 %v429
        %v747 = vunpack.c.l.b16 %v430
        %v748 = vunpack.c.h.b16 %v430
        %v749 = vunpack.c.l.b16 %v431
        %v750 = vunpack.c.h.b16 %v431
        %v751 = vunpack.c.l.b16 %v432
        %v752 = vunpack.c.h.b16 %v432
        %v753 = vunpack.c.l.b16 %v433
        %v754 = vunpack.c.h.b16 %v433
        %v755 = vunpack.c.l.b16 %v434
        %v756 = vunpack.c.h.b16 %v434
        %v757 = vunpack.c.l.b16 %v435
        %v758 = vunpack.c.h.b16 %v435
        %v759 = vunpack.c.l.b16 %v436
        %v760 = vunpack.c.h.b16 %v436
        %v761 = vunpack.c.l.b16 %v437
        %v762 = vunpack.c.h.b16 %v437
        %v763 = vunpack.c.l.b16 %v438
        %v764 = vunpack.c.h.b16 %v438
        %v765 = vunpack.c.l.b16 %v439
        %v766 = vunpack.c.h.b16 %v439
        %v767 = vunpack.c.l.b16 %v440
        %v768 = vunpack.c.h.b16 %v440
        %v769 = vunpack.c.l.b16 %v441
        %v770 = vunpack.c.h.b16 %v441
        %v771 = vunpack.c.l.b16 %v442
        %v772 = vunpack.c.h.b16 %v442
        %v773 = vunpack.c.l.b16 %v443
        %v774 = vunpack.c.h.b16 %v443
        %v775 = vunpack.c.l.b16 %v444
        %v776 = vunpack.c.h.b16 %v444
        %v777 = vunpack.c.l.b16 %v445
        %v778 = vunpack.c.h.b16 %v445
        %v779 = vunpack.c.l.b16 %v446
        %v780 = vunpack.c.h.b16 %v446
        %v781 = vunpack.c.l.b16 %v447
        %v782 = vunpack.c.h.b16 %v447
        %v783 = vunpack.c.l.b16 %v448
        %v784 = vunpack.c.h.b16 %v448
        %v785 = vunpack.c.l.b16 %v449
        %v786 = vunpack.c.h.b16 %v449
        %v787 = vunpack.c.l.b16 %v450
        %v788 = vunpack.c.h.b16 %v450
        %v789 = vunpack.c.l.b16 %v451
        %v790 = vunpack.c.h.b16 %v451
        %v791 = vunpack.c.l.b16 %v452
        %v792 = vunpack.c.h.b16 %v452
        %v793 = vunpack.c.l.b16 %v453
        %v794 = vunpack.c.h.b16 %v453
        %v795 = vunpack.c.l.b16 %v454
        %v796 = vunpack.c.h.b16 %v454
        %v797 = vunpack.c.l.b16 %v455
        %v798 = vunpack.c.h.b16 %v455
        %v799 = vunpack.c.l.b16 %v456
        %v800 = vunpack.c.h.b16 %v456
        %v801 = vunpack.c.l.b16 %v457
        %v802 = vunpack.c.h.b16 %v457
        %v803 = vunpack.c.l.b16 %v458
        %v804 = vunpack.c.h.b16 %v458
        %v805 = vunpack.c.l.b16 %v459
        %v806 = vunpack.c.h.b16 %v459
        %v807 = vunpack.c.l.b16 %v460
        %v808 = vunpack.c.h.b16 %v460
        %v809 = vunpack.c.l.b16 %v461
        %v810 = vunpack.c.h.b16 %v461
        %v811 = vunpack.c.l.b16 %v462
        %v812 = vunpack.c.h.b16 %v462
        %v813 = vunpack.c.l.b16 %v463
        %v814 = vunpack.c.h.b16 %v463
        %v815 = vunpack.c.l.b16 %v464
        %v816 = vunpack.c.h.b16 %v464
        %v817 = vunpack.c.l.b16 %v465
        %v818 = vunpack.c.h.b16 %v465
        %v819 = vunpack.c.l.b16 %v466
        %v820 = vunpack.c.h.b16 %v466
        %v821 = vunpack.c.l.b16 %v467
        %v822 = vunpack.c.h.b16 %v467
        %v823 = vunpack.c.l.b16 %v468
        %v824 = vunpack.c.h.b16 %v468
        %v825 = vunpack.c.l.b16 %v469
        %v826 = vunpack.c.h.b16 %v469
        %v827 = vunpack.c.l.b16 %v470
        %v828 = vunpack.c.h.b16 %v470
        %v829 = vunpack.c.l.b16 %v471
        %v830 = vunpack.c.h.b16 %v471
        %v831 = vunpack.c.l.b16 %v472
        %v832 = vunpack.c.h.b16 %v472
        %v833 = vunpack.c.l.b16 %v473
        %v834 = vunpack.c.h.b16 %v473
        %v835 = vunpack.c.l.b16 %v474
        %v836 = vunpack.c.h.b16 %v474
        %v837 = vunpack.c.l.b16 %v475
        %v838 = vunpack.c.h.b16 %v475
        %v839 = vunpack.c.l.b16 %v476
        %v840 = vunpack.c.h.b16 %v476
        %v841 = vunpack.c.l.b16 %v477
        %v842 = vunpack.c.h.b16 %v477
        %v843 = vunpack.c.l.b16 %v478
        %v844 = vunpack.c.h.b16 %v478
        %v845 = vunpack.c.l.b16 %v479
        %v846 = vunpack.c.h.b16 %v479
        %v847 = vunpack.c.l.b16 %v480
        %v848 = vunpack.c.h.b16 %v480
        %v849 = vunpack.c.l.b16 %v481
        %v850 = vunpack.c.h.b16 %v481
        %v851 = vunpack.c.l.b16 %v482
        %v852 = vunpack.c.h.b16 %v482
        %v853 = vunpack.c.l.b16 %v483
        %v854 = vunpack.c.h.b16 %v483
        %v855 = vunpack.c.l.b16 %v484
        %v856 = vunpack.c.h.b16 %v484
        %v857 = vunpack.c.l.b16 %v485
        %v858 = vunpack.c.h.b16 %v485
        %v859 = vunpack.c.l.b16 %v486
        %v860 = vunpack.c.h.b16 %v486
        %v861 = vunpack.c.l.b16 %v487
        %v862 = vunpack.c.h.b16 %v487
        %v863 = vunpack.c.l.b16 %v488
        %v864 = vunpack.c.h.b16 %v488
        %v865 = vunpack.c.l.b16 %v489
        %v866 = vunpack.c.h.b16 %v489
        %v867 = vunpack.c.l.b16 %v490
        %v868 = vunpack.c.h.b16 %v490
        %v869 = vunpack.c.l.b16 %v491
        %v870 = vunpack.c.h.b16 %v491
        %v871 = vunpack.c.l.b16 %v492
        %v872 = vunpack.c.h.b16 %v492
        %v873 = vunpack.c.l.b16 %v493
        %v874 = vunpack.c.h.b16 %v493
        %v875 = vunpack.c.l.b16 %v494
        %v876 = vunpack.c.h.b16 %v494
        %v877 = vunpack.c.l.b16 %v495
        %v878 = vunpack.c.h.b16 %v495
        %v879 = vunpack.c.l.b16 %v496
        %v880 = vunpack.c.h.b16 %v496
        %v881 = vunpack.c.l.b16 %v497
        %v882 = vunpack.c.h.b16 %v497
        %v883 = vunpack.c.l.b16 %v498
        %v884 = vunpack.c.h.b16 %v498
        %v885 = vunpack.c.l.b16 %v499
        %v886 = vunpack.c.h.b16 %v499
        %v887 = vunpack.c.l.b16 %v500
        %v888 = vunpack.c.h.b16 %v500
        %v889 = vunpack.c.l.b16 %v501
        %v890 = vunpack.c.h.b16 %v501
        %v891 = vunpack.c.l.b16 %v502
        %v892 = vunpack.c.h.b16 %v502
        %v893 = vunpack.c.l.b16 %v503
        %v894 = vunpack.c.h.b16 %v503
        %v895 = vunpack.c.l.b16 %v504
        %v896 = vunpack.c.h.b16 %v504
        %v897 = vunpack.c.l.b16 %v505
        %v898 = vunpack.c.h.b16 %v505
        %v899 = vunpack.c.l.b16 %v506
        %v900 = vunpack.c.h.b16 %v506
        %v901 = vunpack.c.l.b16 %v507
        %v902 = vunpack.c.h.b16 %v507
        %v903 = vunpack.c.l.b16 %v508
        %v904 = vunpack.c.h.b16 %v508
        %v905 = vunpack.c.l.b16 %v509
        %v906 = vunpack.c.h.b16 %v509
        %v907 = vunpack.c.l.b16 %v510
        %v908 = vunpack.c.h.b16 %v510
        %v909 = vunpack.c.l.b16 %v511
        %v910 = vunpack.c.h.b16 %v511
        %v911 = vunpack.c.l.b16 %v512
        %v912 = vunpack.c.h.b16 %v512
        %v913 = vunpack.c.l.b16 %v513
        %v914 = vunpack.c.h.b16 %v513
        %v915 = vunpack.c.l.b16 %v514
        %v916 = vunpack.c.h.b16 %v514
        %v917 = vunpack.c.l.b16 %v515
        %v918 = vunpack.c.h.b16 %v515
        %v919 = vunpack.c.l.b16 %v516
        %v920 = vunpack.c.h.b16 %v516
        %v921 = vpack.c.b16 %v669, %v665
        %v922 = vpack.c.b16 %v670, %v666
        %v923 = vpack.c.b16 %v671, %v667
        %v924 = vpack.c.b16 %v672, %v668
        %v925 = vpack.c.b16 %v677, %v673
        %v926 = vpack.c.b16 %v678, %v674
        %v927 = vpack.c.b16 %v679, %v675
        %v928 = vpack.c.b16 %v680, %v676
        %v929 = vpack.c.b16 %v685, %v681
        %v930 = vpack.c.b16 %v686, %v682
        %v931 = vpack.c.b16 %v687, %v683
        %v932 = vpack.c.b16 %v688, %v684
        %v933 = vpack.c.b16 %v693, %v689
        %v934 = vpack.c.b16 %v694, %v690
        %v935 = vpack.c.b16 %v695, %v691
        %v936 = vpack.c.b16 %v696, %v692
        %v937 = vpack.c.b16 %v701, %v697
        %v938 = vpack.c.b16 %v702, %v698
        %v939 = vpack.c.b16 %v703, %v699
        %v940 = vpack.c.b16 %v704, %v700
        %v941 = vpack.c.b16 %v709, %v705
        %v942 = vpack.c.b16 %v710, %v706
        %v943 = vpack.c.b16 %v711, %v707
        %v944 = vpack.c.b16 %v712, %v708
        %v945 = vpack.c.b16 %v717, %v713
        %v946 = vpack.c.b16 %v718, %v714
        %v947 = vpack.c.b16 %v719, %v715
        %v948 = vpack.c.b16 %v720, %v716
        %v949 = vpack.c.b16 %v725, %v721
        %v950 = vpack.c.b16 %v726, %v722
        %v951 = vpack.c.b16 %v727, %v723
        %v952 = vpack.c.b16 %v728, %v724
        %v953 = vpack.c.b16 %v733, %v729
        %v954 = vpack.c.b16 %v734, %v730
        %v955 = vpack.c.b16 %v735, %v731
        %v956 = vpack.c.b16 %v736, %v732
        %v957 = vpack.c.b16 %v741, %v737
        %v958 = vpack.c.b16 %v742, %v738
        %v959 = vpack.c.b16 %v743, %v739
        %v960 = vpack.c.b16 %v744, %v740
        %v961 = vpack.c.b16 %v749, %v745
        %v962 = vpack.c.b16 %v750, %v746
        %v963 = vpack.c.b16 %v751, %v747
        %v964 = vpack.c.b16 %v752, %v748
        %v965 = vpack.c.b16 %v757, %v753
        %v966 = vpack.c.b16 %v758, %v754
        %v967 = vpack.c.b16 %v759, %v755
        %v968 = vpack.c.b16 %v760, %v756
        %v969 = vpack.c.b16 %v765, %v761
        %v970 = vpack.c.b16 %v766, %v762
        %v971 = vpack.c.b16 %v767, %v763
        %v972 = vpack.c.b16 %v768, %v764
        %v973 = vpack.c.b16 %v773, %v769
        %v974 = vpack.c.b16 %v774, %v770
        %v975 = vpack.c.b16 %v775, %v771
        %v976 = vpack.c.b16 %v776, %v772
        %v977 = vpack.c.b16 %v781, %v777
        %v978 = vpack.c.b16 %v782, %v778
        %v979 = vpack.c.b16 %v783, %v779
        %v980 = vpack.c.b16 %v784, %v780
        %v981 = vpack.c.b16 %v789, %v785
        %v982 = vpack.c.b16 %v790, %v786
        %v983 = vpack.c.b16 %v791, %v787
        %v984 = vpack.c.b16 %v792, %v788
        %v985 = vpack.c.b16 %v797, %v793
        %v986 = vpack.c.b16 %v798, %v794
        %v987 = vpack.c.b16 %v799, %v795
        %v988 = vpack.c.b16 %v800, %v796
        %v989 = vpack.c.b16 %v805, %v801
        %v990 = vpack.c.b16 %v806, %v802
        %v991 = vpack.c.b16 %v807, %v803
        %v992 = vpack.c.b16 %v808, %v804
        %v993 = vpack.c.b16 %v813, %v809
        %v994 = vpack.c.b16 %v814, %v810
        %v995 = vpack.c.b16 %v815, %v811
        %v996 = vpack.c.b16 %v816, %v812
        %v997 = vpack.c.b16 %v821, %v817
        %v998 = vpack.c.b16 %v822, %v818
        %v999 = vpack.c.b16 %v823, %v819
        %v1000 = vpack.c.b16 %v824, %v820
        %v1001 = vpack.c.b16 %v829, %v825
        %v1002 = vpack.c.b16 %v830, %v826
        %v1003 = vpack.c.b16 %v831, %v827
        %v1004 = vpack.c.b16 %v832, %v828
        %v1005 = vpack.c.b16 %v837, %v833
        %v1006 = vpack.c.b16 %v838, %v834
        %v1007 = vpack.c.b16 %v839, %v835
        %v1008 = vpack.c.b16 %v840, %v836
        %v1009 = vpack.c.b16 %v845, %v841
        %v1010 = vpack.c.b16 %v846, %v842
        %v1011 = vpack.c.b16 %v847, %v843
        %v1012 = vpack.c.b16 %v848, %v844
        %v1013 = vpack.c.b16 %v853, %v849
        %v1014 = vpack.c.b16 %v854, %v850
        %v1015 = vpack.c.b16 %v855, %v851
        %v1016 = vpack.c.b16 %v856, %v852
        %v1017 = vpack.c.b16 %v861, %v857
        %v1018 = vpack.c.b16 %v862, %v858
        %v1019 = vpack.c.b16 %v863, %v859
        %v1020 = vpack.c.b16 %v864, %v860
        %v1021 = vpack.c.b16 %v869, %v865
        %v1022 = vpack.c.b16 %v870, %v866
        %v1023 = vpack.c.b16 %v871, %v867
        %v1024 = vpack.c.b16 %v872, %v868
        %v1025 = vpack.c.b16 %v877, %v873
        %v1026 = vpack.c.b16 %v878, %v874
        %v1027 = vpack.c.b16 %v879, %v875
        %v1028 = vpack.c.b16 %v880, %v876
        %v1029 = vpack.c.b16 %v885, %v881
        %v1030 = vpack.c.b16 %v886, %v882
        %v1031 = vpack.c.b16 %v887, %v883
        %v1032 = vpack.c.b16 %v888, %v884
        %v1033 = vpack.c.b16 %v893, %v889
        %v1034 = vpack.c.b16 %v894, %v890
        %v1035 = vpack.c.b16 %v895, %v891
        %v1036 = vpack.c.b16 %v896, %v892
        %v1037 = vpack.c.b16 %v901, %v897
        %v1038 = vpack.c.b16 %v902, %v898
        %v1039 = vpack.c.b16 %v903, %v899
        %v1040 = vpack.c.b16 %v904, %v900
        %v1041 = vpack.c.b16 %v909, %v905
        %v1042 = vpack.c.b16 %v910, %v906
        %v1043 = vpack.c.b16 %v911, %v907
        %v1044 = vpack.c.b16 %v912, %v908
        %v1045 = vpack.c.b16 %v917, %v913
        %v1046 = vpack.c.b16 %v918, %v914
        %v1047 = vpack.c.b16 %v919, %v915
        %v1048 = vpack.c.b16 %v920, %v916
        %1177 = vmatprep.subr.bf16.mxu0 %v950
        %1178 = vmatpush1.bf16.msra.mxu0 %v949
        %1179 = vmatprep.subr.bf16.mxu0 %v946
        %1180 = vmatpush1.bf16.msra.mxu0 %v945
        %1181 = vmatprep.subr.bf16.mxu0 %v942
        %1182 = vmatpush1.bf16.msra.mxu0 %v941
        %1183 = vmatprep.subr.bf16.mxu0 %v938
        %1184 = vmatpush1.bf16.msra.mxu0 %v937
        %1185 = vmatprep.subr.bf16.mxu0 %v934
        %1186 = vmatpush1.bf16.msra.mxu0 %v933
        %1187 = vmatprep.subr.bf16.mxu0 %v930
        %1188 = vmatpush1.bf16.msra.mxu0 %v929
        %1189 = vmatprep.subr.bf16.mxu0 %v926
        %1190 = vmatpush1.bf16.msra.mxu0 %v925
        %1191 = vmatprep.subr.bf16.mxu0 %v922
        %1192 = vmatpush1.bf16.msra.mxu0 %v921
        %1193 = vmatprep.subr.bf16.mxu0 %v982
        %1194 = vmatpush2.bf16.msra.mxu0 %v981
        %1195 = vmatprep.subr.bf16.mxu0 %v978
        %1196 = vmatpush2.bf16.msra.mxu0 %v977
        %1197 = vmatprep.subr.bf16.mxu0 %v974
        %1198 = vmatpush2.bf16.msra.mxu0 %v973
        %1199 = vmatprep.subr.bf16.mxu0 %v970
        %1200 = vmatpush2.bf16.msra.mxu0 %v969
        %1201 = vmatprep.subr.bf16.mxu0 %v966
        %1202 = vmatpush2.bf16.msra.mxu0 %v965
        %1203 = vmatprep.subr.bf16.mxu0 %v962
        %1204 = vmatpush2.bf16.msra.mxu0 %v961
        %1205 = vmatprep.subr.bf16.mxu0 %v958
        %1206 = vmatpush2.bf16.msra.mxu0 %v957
        %1207 = vmatprep.subr.bf16.mxu0 %v954
        %1208 = vmatpush2.bf16.msra.mxu0 %v953
        %1209 = vmatprep.mubr.bf16.mxu0 %v530
        %1210 = vmatmul.mubr.bf16.gmra.mxu0 %v529
        %v1211 = vpop.f32.mrf.mxu0
        %v1212 = vadd.f32 0.0, %v1211
        %v1213 = vpop.f32.mrf.mxu0
        %v1214 = vadd.f32 0.0, %v1213
        %v1215 = vpop.f32.mrf.mxu0
        %v1216 = vadd.f32 0.0, %v1215
        %v1217 = vpop.f32.mrf.mxu0
        %v1218 = vadd.f32 0.0, %v1217
        %1219 = vdwg.mxu0
        %1220 = vmatprep.subr.bf16.mxu0 %v1014
        %1221 = vmatpush1.bf16.msra.mxu0 %v1013
        %1222 = vmatprep.subr.bf16.mxu0 %v1010
        %1223 = vmatpush1.bf16.msra.mxu0 %v1009
        %1224 = vmatprep.subr.bf16.mxu0 %v1006
        %1225 = vmatpush1.bf16.msra.mxu0 %v1005
        %1226 = vmatprep.subr.bf16.mxu0 %v1002
        %1227 = vmatpush1.bf16.msra.mxu0 %v1001
        %1228 = vmatprep.subr.bf16.mxu0 %v998
        %1229 = vmatpush1.bf16.msra.mxu0 %v997
        %1230 = vmatprep.subr.bf16.mxu0 %v994
        %1231 = vmatpush1.bf16.msra.mxu0 %v993
        %1232 = vmatprep.subr.bf16.mxu0 %v990
        %1233 = vmatpush1.bf16.msra.mxu0 %v989
        %1234 = vmatprep.subr.bf16.mxu0 %v986
        %1235 = vmatpush1.bf16.msra.mxu0 %v985
        %1236 = vmatprep.subr.bf16.mxu0 %v1046
        %1237 = vmatpush2.bf16.msra.mxu0 %v1045
        %1238 = vmatprep.subr.bf16.mxu0 %v1042
        %1239 = vmatpush2.bf16.msra.mxu0 %v1041
        %1240 = vmatprep.subr.bf16.mxu0 %v1038
        %1241 = vmatpush2.bf16.msra.mxu0 %v1037
        %1242 = vmatprep.subr.bf16.mxu0 %v1034
        %1243 = vmatpush2.bf16.msra.mxu0 %v1033
        %1244 = vmatprep.subr.bf16.mxu0 %v1030
        %1245 = vmatpush2.bf16.msra.mxu0 %v1029
        %1246 = vmatprep.subr.bf16.mxu0 %v1026
        %1247 = vmatpush2.bf16.msra.mxu0 %v1025
        %1248 = vmatprep.subr.bf16.mxu0 %v1022
        %1249 = vmatpush2.bf16.msra.mxu0 %v1021
        %1250 = vmatprep.subr.bf16.mxu0 %v1018
        %1251 = vmatpush2.bf16.msra.mxu0 %v1017
        %1252 = vmatprep.mubr.bf16.mxu0 %v532
        %1253 = vmatmul.mubr.bf16.gmra.mxu0 %v531
        %v1254 = vpop.f32.mrf.mxu0
        %v1255 = vadd.f32 %v1212, %v1254
        %v1256 = vpop.f32.mrf.mxu0
        %v1257 = vadd.f32 %v1214, %v1256
        %v1258 = vpop.f32.mrf.mxu0
        %v1259 = vadd.f32 %v1216, %v1258
        %v1260 = vpop.f32.mrf.mxu0
        %v1261 = vadd.f32 %v1218, %v1260
        %1262 = vdwg.mxu0
        %1263 = vmatprep.subr.bf16.mxu0 %v952
        %1264 = vmatpush1.bf16.msra.mxu0 %v951
        %1265 = vmatprep.subr.bf16.mxu0 %v948
        %1266 = vmatpush1.bf16.msra.mxu0 %v947
        %1267 = vmatprep.subr.bf16.mxu0 %v944
        %1268 = vmatpush1.bf16.msra.mxu0 %v943
        %1269 = vmatprep.subr.bf16.mxu0 %v940
        %1270 = vmatpush1.bf16.msra.mxu0 %v939
        %1271 = vmatprep.subr.bf16.mxu0 %v936
        %1272 = vmatpush1.bf16.msra.mxu0 %v935
        %1273 = vmatprep.subr.bf16.mxu0 %v932
        %1274 = vmatpush1.bf16.msra.mxu0 %v931
        %1275 = vmatprep.subr.bf16.mxu0 %v928
        %1276 = vmatpush1.bf16.msra.mxu0 %v927
        %1277 = vmatprep.subr.bf16.mxu0 %v924
        %1278 = vmatpush1.bf16.msra.mxu0 %v923
        %1279 = vmatprep.subr.bf16.mxu0 %v984
        %1280 = vmatpush2.bf16.msra.mxu0 %v983
        %1281 = vmatprep.subr.bf16.mxu0 %v980
        %1282 = vmatpush2.bf16.msra.mxu0 %v979
        %1283 = vmatprep.subr.bf16.mxu0 %v976
        %1284 = vmatpush2.bf16.msra.mxu0 %v975
        %1285 = vmatprep.subr.bf16.mxu0 %v972
        %1286 = vmatpush2.bf16.msra.mxu0 %v971
        %1287 = vmatprep.subr.bf16.mxu0 %v968
        %1288 = vmatpush2.bf16.msra.mxu0 %v967
        %1289 = vmatprep.subr.bf16.mxu0 %v964
        %1290 = vmatpush2.bf16.msra.mxu0 %v963
        %1291 = vmatprep.subr.bf16.mxu0 %v960
        %1292 = vmatpush2.bf16.msra.mxu0 %v959
        %1293 = vmatprep.subr.bf16.mxu0 %v956
        %1294 = vmatpush2.bf16.msra.mxu0 %v955
        %1295 = vmatprep.mubr.bf16.mxu0 %v530
        %1296 = vmatmul.mubr.bf16.gmra.mxu0 %v529
        %v1297 = vpop.f32.mrf.mxu0
        %v1298 = vadd.f32 0.0, %v1297
        %v1299 = vpop.f32.mrf.mxu0
        %v1300 = vadd.f32 0.0, %v1299
        %v1301 = vpop.f32.mrf.mxu0
        %v1302 = vadd.f32 0.0, %v1301
        %v1303 = vpop.f32.mrf.mxu0
        %v1304 = vadd.f32 0.0, %v1303
        %1305 = vdwg.mxu0
        %1306 = vmatprep.subr.bf16.mxu0 %v1016
        %1307 = vmatpush1.bf16.msra.mxu0 %v1015
        %1308 = vmatprep.subr.bf16.mxu0 %v1012
        %1309 = vmatpush1.bf16.msra.mxu0 %v1011
        %1310 = vmatprep.subr.bf16.mxu0 %v1008
        %1311 = vmatpush1.bf16.msra.mxu0 %v1007
        %1312 = vmatprep.subr.bf16.mxu0 %v1004
        %1313 = vmatpush1.bf16.msra.mxu0 %v1003
        %1314 = vmatprep.subr.bf16.mxu0 %v1000
        %1315 = vmatpush1.bf16.msra.mxu0 %v999
        %1316 = vmatprep.subr.bf16.mxu0 %v996
        %1317 = vmatpush1.bf16.msra.mxu0 %v995
        %1318 = vmatprep.subr.bf16.mxu0 %v992
        %1319 = vmatpush1.bf16.msra.mxu0 %v991
        %1320 = vmatprep.subr.bf16.mxu0 %v988
        %1321 = vmatpush1.bf16.msra.mxu0 %v987
        %1322 = vmatprep.subr.bf16.mxu0 %v1048
        %1323 = vmatpush2.bf16.msra.mxu0 %v1047
        %1324 = vmatprep.subr.bf16.mxu0 %v1044
        %1325 = vmatpush2.bf16.msra.mxu0 %v1043
        %1326 = vmatprep.subr.bf16.mxu0 %v1040
        %1327 = vmatpush2.bf16.msra.mxu0 %v1039
        %1328 = vmatprep.subr.bf16.mxu0 %v1036
        %1329 = vmatpush2.bf16.msra.mxu0 %v1035
        %1330 = vmatprep.subr.bf16.mxu0 %v1032
        %1331 = vmatpush2.bf16.msra.mxu0 %v1031
        %1332 = vmatprep.subr.bf16.mxu0 %v1028
        %1333 = vmatpush2.bf16.msra.mxu0 %v1027
        %1334 = vmatprep.subr.bf16.mxu0 %v1024
        %1335 = vmatpush2.bf16.msra.mxu0 %v1023
        %1336 = vmatprep.subr.bf16.mxu0 %v1020
        %1337 = vmatpush2.bf16.msra.mxu0 %v1019
        %1338 = vmatprep.mubr.bf16.mxu0 %v532
        %1339 = vmatmul.mubr.bf16.gmra.mxu0 %v531
        %v1340 = vpop.f32.mrf.mxu0
        %v1341 = vadd.f32 %v1298, %v1340
        %v1342 = vpop.f32.mrf.mxu0
        %v1343 = vadd.f32 %v1300, %v1342
        %v1344 = vpop.f32.mrf.mxu0
        %v1345 = vadd.f32 %v1302, %v1344
        %v1346 = vpop.f32.mrf.mxu0
        %v1347 = vadd.f32 %v1304, %v1346
        %1348 = vdwg.mxu0
        %v1349 = vadd.f32 %v377, %v1255
        %v1350 = vadd.f32 %v378, %v1257
        %v1351 = vadd.f32 %v379, %v1341
        %v1352 = vadd.f32 %v380, %v1343
        %v1353 = vadd.f32 %v381, %v1259
        %v1354 = vadd.f32 %v382, %v1261
        %v1355 = vadd.f32 %v383, %v1345
        %v1356 = vadd.f32 %v384, %v1347
        %1357 = vst [vmem:[#allocation2] sm:$0xff] %v1349
        %1358 = vst [vmem:[#allocation2 + $0x8] sm:$0xff] %v1350
        %1359 = vst [vmem:[#allocation2 + $0x10] sm:$0xff] %v1351
        %1360 = vst [vmem:[#allocation2 + $0x18] sm:$0xff] %v1352
        %1361 = vst [vmem:[#allocation2 + $0x20] sm:$0xff] %v1353
        %1362 = vst [vmem:[#allocation2 + $0x28] sm:$0xff] %v1354
        %1363 = vst [vmem:[#allocation2 + $0x30] sm:$0xff] %v1355
        %1364 = vst [vmem:[#allocation2 + $0x38] sm:$0xff] %v1356
        %p1365 = scmp.eq.s32.totalorder %s22, 8
        // Predicated region
        $region64: #{_lambda_.24} parent=54 // pred_check
          %p1366 = pneg %p1365
        $region65: #{_lambda_.24} parent=54 // pred_check_branch
          %1368 = sbr.rel (%p1366) target = $region67
        $region66: #{_lambda_.24} parent=54 // pred_region
          %v1369 = vld [vmem:[#allocation2] sm:$0xff]
          %v1370 = vld [vmem:[#allocation2 + $0x8] sm:$0xff]
          %v1371 = vld [vmem:[#allocation2 + $0x10] sm:$0xff]
          %v1372 = vld [vmem:[#allocation2 + $0x18] sm:$0xff]
          %v1373 = vld [vmem:[#allocation2 + $0x20] sm:$0xff]
          %v1374 = vld [vmem:[#allocation2 + $0x28] sm:$0xff]
          %v1375 = vld [vmem:[#allocation2 + $0x30] sm:$0xff]
          %v1376 = vld [vmem:[#allocation2 + $0x38] sm:$0xff]
          %v1377 = vld [vmem:[%s339] sm:$0xf]
          %v1379 = vlaneseq
          %v1380 = vshrl.u32 %v1379, 7
          %v1381 = vsub.s32 0, %v1380
          %v1382 = vrot.slane %v1377, %v1381
          %v1383 = vlaneseq
          %v1384 = vshrl.u32 %v1383, 7
          %v1385 = vsub.s32 1, %v1384
          %v1386 = vrot.slane %v1377, %v1385
          %v1387 = vlaneseq
          %v1388 = vshrl.u32 %v1387, 7
          %v1389 = vsub.s32 2, %v1388
          %v1390 = vrot.slane %v1377, %v1389
          %v1391 = vlaneseq
          %v1392 = vshrl.u32 %v1391, 7
          %v1393 = vsub.s32 3, %v1392
          %v1394 = vrot.slane %v1377, %v1393
          %v1399 = vadd.f32 %v1369, %v1382
          %v1400 = vadd.f32 %v1370, %v1386
          %v1401 = vadd.f32 %v1371, %v1390
          %v1402 = vadd.f32 %v1372, %v1394
          %v1403 = vadd.f32 %v1373, %v1382
          %v1404 = vadd.f32 %v1374, %v1386
          %v1405 = vadd.f32 %v1375, %v1390
          %v1406 = vadd.f32 %v1376, %v1394
          %v1407 = vld [vmem:[%s350] sm:$0xff]
          %v1408 = vld [vmem:[%s350 + $0x8] sm:$0xff]
          %v1409 = vld [vmem:[%s350 + $0x10] sm:$0xff]
          %v1410 = vld [vmem:[%s350 + $0x18] sm:$0xff]
          %v1411 = vunpack.c.l.bf16 %v1407
          %v1412 = vunpack.c.h.bf16 %v1407
          %v1413 = vunpack.c.l.bf16 %v1408
          %v1414 = vunpack.c.h.bf16 %v1408
          %v1415 = vunpack.c.l.bf16 %v1409
          %v1416 = vunpack.c.h.bf16 %v1409
          %v1417 = vunpack.c.l.bf16 %v1410
          %v1418 = vunpack.c.h.bf16 %v1410
          %v1419 = vadd.f32 %v1399, %v1411
          %v1420 = vadd.f32 %v1400, %v1412
          %v1421 = vadd.f32 %v1401, %v1413
          %v1422 = vadd.f32 %v1402, %v1414
          %v1423 = vadd.f32 %v1403, %v1415
          %v1424 = vadd.f32 %v1404, %v1416
          %v1425 = vadd.f32 %v1405, %v1417
          %v1426 = vadd.f32 %v1406, %v1418
          %v1427 = vmax.f32 %v1419, 0.0
          %v1428 = vmax.f32 %v1420, 0.0
          %v1429 = vmax.f32 %v1421, 0.0
          %v1430 = vmax.f32 %v1422, 0.0
          %v1431 = vmax.f32 %v1423, 0.0
          %v1432 = vmax.f32 %v1424, 0.0
          %v1433 = vmax.f32 %v1425, 0.0
          %v1434 = vmax.f32 %v1426, 0.0
          %v1435 = vpack.c.bf16 %v1431, %v1427
          %v1436 = vpack.c.bf16 %v1432, %v1428
          %v1437 = vpack.c.bf16 %v1433, %v1429
          %v1438 = vpack.c.bf16 %v1434, %v1430
          %v1443 = vunpack.c.l.b16 %v1435
          %v1444 = vunpack.c.l.b16 %v1436
          %v1445 = vunpack.c.l.b16 %v1437
          %v1446 = vunpack.c.l.b16 %v1438
          %v1447 = vunpack.c.h.b16 %v1435
          %v1448 = vunpack.c.h.b16 %v1436
          %v1449 = vunpack.c.h.b16 %v1437
          %v1450 = vunpack.c.h.b16 %v1438
          %v1451 = vpack.c.b16 %v1444, %v1443
          %v1452 = vpack.c.b16 %v1446, %v1445
          %v1453 = vpack.c.b16 %v1448, %v1447
          %v1454 = vpack.c.b16 %v1450, %v1449
          %1459 = vst [vmem:[%s362] sm:$0xff] %v1451
          %1460 = vst [vmem:[%s362 + $0x8] sm:$0xff] %v1452
          %1461 = vst [vmem:[%s362 + $0x10] sm:$0xff] %v1453
          %1462 = vst [vmem:[%s362 + $0x18] sm:$0xff] %v1454
        $region67: #{_lambda_.24} parent=54 // pred_fallthru
          _
        %s1463 = smul.u32 2, %s20
        %s1464 = smul.u32 4, %s21
        %p1465 = scmp.lt.s32.totalorder %s1463, 1
        %s1466 = scalar_select %p1465, %s1463, 1
        %p1467 = scmp.lt.s32.totalorder %s1464, 3
        %s1468 = scalar_select %p1467, %s1464, 3
        %s1469 = smul.addr %s1466, 4
        %s1470 = sadd.s32 %s1468, %s1469
        %s1471 = smul.addr %s1470, 4
        %s1472 = scalar_lea.vmem %s4, %s1471
        // Predicated region
        $region68: #{_lambda_.24} parent=54 // pred_check
          %p1473 = pneg %p164
        $region69: #{_lambda_.24} parent=54 // pred_check_branch
          %1475 = sbr.rel (%p1473) target = $region71
        $region70: #{_lambda_.24} parent=54 // pred_region
          %s1476 = smul.u32 2, %s20
          %s1477 = smul.u32 4, %s21
        $region71: #{_lambda_.24} parent=54 // pred_fallthru
          _
        // Predicated region
        $region72: #{_lambda_.24} parent=54 // pred_check
          %p1478 = pneg %p164
        $region73: #{_lambda_.24} parent=54 // pred_check_branch
          %1480 = sbr.rel (%p1478) target = $region75
        $region74: #{_lambda_.24} parent=54 // pred_region
          %s1481 = smul.u32 2, %s20
          %s1482 = smul.u32 4, %s21
          %p1483 = scmp.lt.s32.totalorder %s1481, 1
          %s1484 = scalar_select %p1483, %s1481, 1
          %p1485 = scmp.lt.s32.totalorder %s1482, 3
          %s1486 = scalar_select %p1485, %s1482, 3
          %s1487 = smul.addr %s1484, 4
          %s1488 = sadd.s32 %s1486, %s1487
          %s1489 = smul.addr %s1488, 4
          %s1490 = scalar_lea.vmem %s4, %s1489
        $region75: #{_lambda_.24} parent=54 // pred_fallthru
          _
      $region55: #{_lambda_.24} parent=5 // pred_fallthru
        _
      %p1491 = scmp.le.s32.totalorder 2, %s10
      // Predicated region
      $region76: #{_lambda_.24} parent=5 // pred_check
        %p1492 = pneg %p1491
      $region77: #{_lambda_.24} parent=5 // pred_check_branch
        %1494 = sbr.rel (%p1492) target = $region79
      $region78: #{_lambda_.24} parent=5 // pred_region
        %s1495 = ssub.s32 %s10, 2
      $region79: #{_lambda_.24} parent=5 // pred_fallthru
        _
    $region6: #{_lambda_.24} parent=1 // loop_footer
      %s14 = sadd.s32 1, %s10
    $region7: #{_lambda_.24} parent=1 // loop_footer_branch
      %9 = sbr.rel target = $region3
    $region8: #{_lambda_.24} parent=1 // loop_exit
      _

// kernel: _lambda_.25
$region0: #{_lambda_.25}
  #allocation0 [shape = 'u32[]', space=smem, size = 0x4, offset = 0x4, fixed_abs, tag = 'smem constant byte address 0x4 - core index']
  #allocation1 [shape = 'u32[144,128]{1,0:T(1,128)}', space=vmem, size = 0x12000, scoped, tag = 'internal scratch']
  #allocation2 [shape = 'f32[16,128]{1,0:T(8,128)}', space=vmem, size = 0x2000, scoped, tag = 'scratch operand']
  %s0 = inlined_call_operand.vmem [shape: bf16[16,512], index: 0, kind: input, shape index: {}]
  %s1 = inlined_call_operand.vmem [shape: bf16[512,128], index: 1, kind: input, shape index: {}]
  %s2 = inlined_call_operand.vmem [shape: f32[1,128], index: 2, kind: input, shape index: {}]
  %s3 = inlined_call_operand.vmem [shape: f32[16,128], index: 3, kind: output, shape index: {}]
  %s4 = sld [smem:[#allocation0]]
  $region30: #{_lambda_.25} parent=0
    _
  %s6 = ssub.s32 1, %s4
  %s7 = scalar_select 0, %s6, %s4
  // Predicated region
  $region2: #{_lambda_.25} parent=0 // pred_check
    _
  $region3: #{_lambda_.25} parent=0 // pred_check_branch
    %9 = sbr.rel (0) target = $region5
  $region4: #{_lambda_.25} parent=0 // pred_region
    _
  $region5: #{_lambda_.25} parent=0 // pred_fallthru
    _
  // Predicated region
  $region6: #{_lambda_.25} parent=0 // pred_check
    _
  $region7: #{_lambda_.25} parent=0 // pred_check_branch
    %11 = sbr.rel (0) target = $region9
  $region8: #{_lambda_.25} parent=0 // pred_region
    _
  $region9: #{_lambda_.25} parent=0 // pred_fallthru
    _
  // Predicated region
  $region10: #{_lambda_.25} parent=0 // pred_check
    _
  $region11: #{_lambda_.25} parent=0 // pred_check_branch
    %13 = sbr.rel (0) target = $region13
  $region12: #{_lambda_.25} parent=0 // pred_region
    _
  $region13: #{_lambda_.25} parent=0 // pred_fallthru
    _
  %p15 = scmp.eq.s32.totalorder 0, 0
  // Predicated region
  $region14: #{_lambda_.25} parent=0 // pred_check
    %p16 = pneg %p15
  $region15: #{_lambda_.25} parent=0 // pred_check_branch
    %18 = sbr.rel (%p16) target = $region17
  $region16: #{_lambda_.25} parent=0 // pred_region
    %19 = vst [vmem:[#allocation2] sm:$0xff] 0.0
    %20 = vst [vmem:[#allocation2 + $0x8] sm:$0xff] 0.0
  $region17: #{_lambda_.25} parent=0 // pred_fallthru
    _
  %v21 = vld [vmem:[#allocation2] sm:$0xff]
  %v22 = vld [vmem:[#allocation2 + $0x8] sm:$0xff]
  %v23 = vld [vmem:[%s0] sm:$0xff]
  %v24 = vld [vmem:[%s0 + $0x8] sm:$0xff]
  %v25 = vld [vmem:[%s0 + $0x10] sm:$0xff]
  %v26 = vld [vmem:[%s0 + $0x18] sm:$0xff]
  %v27 = vld [vmem:[%s1] sm:$0xf]
  %v28 = vld [vmem:[%s1 + $0x4] sm:$0xf]
  %v29 = vld [vmem:[%s1 + $0x8] sm:$0xf]
  %v30 = vld [vmem:[%s1 + $0xc] sm:$0xf]
  %v31 = vld [vmem:[%s1 + $0x10] sm:$0xf]
  %v32 = vld [vmem:[%s1 + $0x14] sm:$0xf]
  %v33 = vld [vmem:[%s1 + $0x18] sm:$0xf]
  %v34 = vld [vmem:[%s1 + $0x1c] sm:$0xf]
  %v35 = vld [vmem:[%s1 + $0x20] sm:$0xf]
  %v36 = vld [vmem:[%s1 + $0x24] sm:$0xf]
  %v37 = vld [vmem:[%s1 + $0x28] sm:$0xf]
  %v38 = vld [vmem:[%s1 + $0x2c] sm:$0xf]
  %v39 = vld [vmem:[%s1 + $0x30] sm:$0xf]
  %v40 = vld [vmem:[%s1 + $0x34] sm:$0xf]
  %v41 = vld [vmem:[%s1 + $0x38] sm:$0xf]
  %v42 = vld [vmem:[%s1 + $0x3c] sm:$0xf]
  %v43 = vld [vmem:[%s1 + $0x40] sm:$0xf]
  %v44 = vld [vmem:[%s1 + $0x44] sm:$0xf]
  %v45 = vld [vmem:[%s1 + $0x48] sm:$0xf]
  %v46 = vld [vmem:[%s1 + $0x4c] sm:$0xf]
  %v47 = vld [vmem:[%s1 + $0x50] sm:$0xf]
  %v48 = vld [vmem:[%s1 + $0x54] sm:$0xf]
  %v49 = vld [vmem:[%s1 + $0x58] sm:$0xf]
  %v50 = vld [vmem:[%s1 + $0x5c] sm:$0xf]
  %v51 = vld [vmem:[%s1 + $0x60] sm:$0xf]
  %v52 = vld [vmem:[%s1 + $0x64] sm:$0xf]
  %v53 = vld [vmem:[%s1 + $0x68] sm:$0xf]
  %v54 = vld [vmem:[%s1 + $0x6c] sm:$0xf]
  %v55 = vld [vmem:[%s1 + $0x70] sm:$0xf]
  %v56 = vld [vmem:[%s1 + $0x74] sm:$0xf]
  %v57 = vld [vmem:[%s1 + $0x78] sm:$0xf]
  %v58 = vld [vmem:[%s1 + $0x7c] sm:$0xf]
  %v59 = vld [vmem:[%s1 + $0x80] sm:$0xf]
  %v60 = vld [vmem:[%s1 + $0x84] sm:$0xf]
  %v61 = vld [vmem:[%s1 + $0x88] sm:$0xf]
  %v62 = vld [vmem:[%s1 + $0x8c] sm:$0xf]
  %v63 = vld [vmem:[%s1 + $0x90] sm:$0xf]
  %v64 = vld [vmem:[%s1 + $0x94] sm:$0xf]
  %v65 = vld [vmem:[%s1 + $0x98] sm:$0xf]
  %v66 = vld [vmem:[%s1 + $0x9c] sm:$0xf]
  %v67 = vld [vmem:[%s1 + $0xa0] sm:$0xf]
  %v68 = vld [vmem:[%s1 + $0xa4] sm:$0xf]
  %v69 = vld [vmem:[%s1 + $0xa8] sm:$0xf]
  %v70 = vld [vmem:[%s1 + $0xac] sm:$0xf]
  %v71 = vld [vmem:[%s1 + $0xb0] sm:$0xf]
  %v72 = vld [vmem:[%s1 + $0xb4] sm:$0xf]
  %v73 = vld [vmem:[%s1 + $0xb8] sm:$0xf]
  %v74 = vld [vmem:[%s1 + $0xbc] sm:$0xf]
  %v75 = vld [vmem:[%s1 + $0xc0] sm:$0xf]
  %v76 = vld [vmem:[%s1 + $0xc4] sm:$0xf]
  %v77 = vld [vmem:[%s1 + $0xc8] sm:$0xf]
  %v78 = vld [vmem:[%s1 + $0xcc] sm:$0xf]
  %v79 = vld [vmem:[%s1 + $0xd0] sm:$0xf]
  %v80 = vld [vmem:[%s1 + $0xd4] sm:$0xf]
  %v81 = vld [vmem:[%s1 + $0xd8] sm:$0xf]
  %v82 = vld [vmem:[%s1 + $0xdc] sm:$0xf]
  %v83 = vld [vmem:[%s1 + $0xe0] sm:$0xf]
  %v84 = vld [vmem:[%s1 + $0xe4] sm:$0xf]
  %v85 = vld [vmem:[%s1 + $0xe8] sm:$0xf]
  %v86 = vld [vmem:[%s1 + $0xec] sm:$0xf]
  %v87 = vld [vmem:[%s1 + $0xf0] sm:$0xf]
  %v88 = vld [vmem:[%s1 + $0xf4] sm:$0xf]
  %v89 = vld [vmem:[%s1 + $0xf8] sm:$0xf]
  %v90 = vld [vmem:[%s1 + $0xfc] sm:$0xf]
  %v95 = vunpack.c.l.b16 %v23
  %v96 = vunpack.c.h.b16 %v23
  %v97 = vunpack.c.l.b16 %v24
  %v98 = vunpack.c.h.b16 %v24
  %v99 = vunpack.c.l.b16 %v25
  %v100 = vunpack.c.h.b16 %v25
  %v101 = vunpack.c.l.b16 %v26
  %v102 = vunpack.c.h.b16 %v26
  %v103 = vpack.c.b16 %v99, %v95
  %v104 = vpack.c.b16 %v100, %v96
  %v105 = vpack.c.b16 %v101, %v97
  %v106 = vpack.c.b16 %v102, %v98
  %v175 = vunpack.c.l.b16 %v27
  %v176 = vunpack.c.l.b16 %v28
  %v177 = vunpack.c.l.b16 %v29
  %v178 = vunpack.c.l.b16 %v30
  %v179 = vunpack.c.l.b16 %v31
  %v180 = vunpack.c.l.b16 %v32
  %v181 = vunpack.c.l.b16 %v33
  %v182 = vunpack.c.l.b16 %v34
  %v183 = vunpack.c.l.b16 %v35
  %v184 = vunpack.c.l.b16 %v36
  %v185 = vunpack.c.l.b16 %v37
  %v186 = vunpack.c.l.b16 %v38
  %v187 = vunpack.c.l.b16 %v39
  %v188 = vunpack.c.l.b16 %v40
  %v189 = vunpack.c.l.b16 %v41
  %v190 = vunpack.c.l.b16 %v42
  %v191 = vunpack.c.l.b16 %v43
  %v192 = vunpack.c.l.b16 %v44
  %v193 = vunpack.c.l.b16 %v45
  %v194 = vunpack.c.l.b16 %v46
  %v195 = vunpack.c.l.b16 %v47
  %v196 = vunpack.c.l.b16 %v48
  %v197 = vunpack.c.l.b16 %v49
  %v198 = vunpack.c.l.b16 %v50
  %v199 = vunpack.c.l.b16 %v51
  %v200 = vunpack.c.l.b16 %v52
  %v201 = vunpack.c.l.b16 %v53
  %v202 = vunpack.c.l.b16 %v54
  %v203 = vunpack.c.l.b16 %v55
  %v204 = vunpack.c.l.b16 %v56
  %v205 = vunpack.c.l.b16 %v57
  %v206 = vunpack.c.l.b16 %v58
  %v207 = vunpack.c.l.b16 %v59
  %v208 = vunpack.c.l.b16 %v60
  %v209 = vunpack.c.l.b16 %v61
  %v210 = vunpack.c.l.b16 %v62
  %v211 = vunpack.c.l.b16 %v63
  %v212 = vunpack.c.l.b16 %v64
  %v213 = vunpack.c.l.b16 %v65
  %v214 = vunpack.c.l.b16 %v66
  %v215 = vunpack.c.l.b16 %v67
  %v216 = vunpack.c.l.b16 %v68
  %v217 = vunpack.c.l.b16 %v69
  %v218 = vunpack.c.l.b16 %v70
  %v219 = vunpack.c.l.b16 %v71
  %v220 = vunpack.c.l.b16 %v72
  %v221 = vunpack.c.l.b16 %v73
  %v222 = vunpack.c.l.b16 %v74
  %v223 = vunpack.c.l.b16 %v75
  %v224 = vunpack.c.l.b16 %v76
  %v225 = vunpack.c.l.b16 %v77
  %v226 = vunpack.c.l.b16 %v78
  %v227 = vunpack.c.l.b16 %v79
  %v228 = vunpack.c.l.b16 %v80
  %v229 = vunpack.c.l.b16 %v81
  %v230 = vunpack.c.l.b16 %v82
  %v231 = vunpack.c.l.b16 %v83
  %v232 = vunpack.c.l.b16 %v84
  %v233 = vunpack.c.l.b16 %v85
  %v234 = vunpack.c.l.b16 %v86
  %v235 = vunpack.c.l.b16 %v87
  %v236 = vunpack.c.l.b16 %v88
  %v237 = vunpack.c.l.b16 %v89
  %v238 = vunpack.c.l.b16 %v90
  %v239 = vpack.c.b16 %v176, %v175
  %v240 = vpack.c.b16 %v178, %v177
  %v241 = vpack.c.b16 %v180, %v179
  %v242 = vpack.c.b16 %v182, %v181
  %v243 = vpack.c.b16 %v184, %v183
  %v244 = vpack.c.b16 %v186, %v185
  %v245 = vpack.c.b16 %v188, %v187
  %v246 = vpack.c.b16 %v190, %v189
  %v247 = vpack.c.b16 %v192, %v191
  %v248 = vpack.c.b16 %v194, %v193
  %v249 = vpack.c.b16 %v196, %v195
  %v250 = vpack.c.b16 %v198, %v197
  %v251 = vpack.c.b16 %v200, %v199
  %v252 = vpack.c.b16 %v202, %v201
  %v253 = vpack.c.b16 %v204, %v203
  %v254 = vpack.c.b16 %v206, %v205
  %v255 = vpack.c.b16 %v208, %v207
  %v256 = vpack.c.b16 %v210, %v209
  %v257 = vpack.c.b16 %v212, %v211
  %v258 = vpack.c.b16 %v214, %v213
  %v259 = vpack.c.b16 %v216, %v215
  %v260 = vpack.c.b16 %v218, %v217
  %v261 = vpack.c.b16 %v220, %v219
  %v262 = vpack.c.b16 %v222, %v221
  %v263 = vpack.c.b16 %v224, %v223
  %v264 = vpack.c.b16 %v226, %v225
  %v265 = vpack.c.b16 %v228, %v227
  %v266 = vpack.c.b16 %v230, %v229
  %v267 = vpack.c.b16 %v232, %v231
  %v268 = vpack.c.b16 %v234, %v233
  %v269 = vpack.c.b16 %v236, %v235
  %v270 = vpack.c.b16 %v238, %v237
  %303 = vmatprep.subr.bf16.mxu0 0
  %304 = vmatpush1.bf16.msra.mxu0 %v246
  %305 = vmatprep.subr.bf16.mxu0 0
  %306 = vmatpush1.bf16.msra.mxu0 %v245
  %307 = vmatprep.subr.bf16.mxu0 0
  %308 = vmatpush1.bf16.msra.mxu0 %v244
  %309 = vmatprep.subr.bf16.mxu0 0
  %310 = vmatpush1.bf16.msra.mxu0 %v243
  %311 = vmatprep.subr.bf16.mxu0 0
  %312 = vmatpush1.bf16.msra.mxu0 %v242
  %313 = vmatprep.subr.bf16.mxu0 0
  %314 = vmatpush1.bf16.msra.mxu0 %v241
  %315 = vmatprep.subr.bf16.mxu0 0
  %316 = vmatpush1.bf16.msra.mxu0 %v240
  %317 = vmatprep.subr.bf16.mxu0 0
  %318 = vmatpush1.bf16.msra.mxu0 %v239
  %319 = vmatprep.subr.bf16.mxu0 0
  %320 = vmatpush2.bf16.msra.mxu0 %v254
  %321 = vmatprep.subr.bf16.mxu0 0
  %322 = vmatpush2.bf16.msra.mxu0 %v253
  %323 = vmatprep.subr.bf16.mxu0 0
  %324 = vmatpush2.bf16.msra.mxu0 %v252
  %325 = vmatprep.subr.bf16.mxu0 0
  %326 = vmatpush2.bf16.msra.mxu0 %v251
  %327 = vmatprep.subr.bf16.mxu0 0
  %328 = vmatpush2.bf16.msra.mxu0 %v250
  %329 = vmatprep.subr.bf16.mxu0 0
  %330 = vmatpush2.bf16.msra.mxu0 %v249
  %331 = vmatprep.subr.bf16.mxu0 0
  %332 = vmatpush2.bf16.msra.mxu0 %v248
  %333 = vmatprep.subr.bf16.mxu0 0
  %334 = vmatpush2.bf16.msra.mxu0 %v247
  %335 = vmatprep.mubr.bf16.mxu0 %v104
  %336 = vmatmul.mubr.bf16.gmra.mxu0 %v103
  %v337 = vpop.f32.mrf.mxu0
  %v338 = vadd.f32 0.0, %v337
  %v339 = vpop.f32.mrf.mxu0
  %v340 = vpop.f32.mrf.mxu0
  %v341 = vadd.f32 0.0, %v340
  %v342 = vpop.f32.mrf.mxu0
  %343 = vdwg.mxu0
  %344 = vmatprep.subr.bf16.mxu0 0
  %345 = vmatpush1.bf16.msra.mxu0 %v262
  %346 = vmatprep.subr.bf16.mxu0 0
  %347 = vmatpush1.bf16.msra.mxu0 %v261
  %348 = vmatprep.subr.bf16.mxu0 0
  %349 = vmatpush1.bf16.msra.mxu0 %v260
  %350 = vmatprep.subr.bf16.mxu0 0
  %351 = vmatpush1.bf16.msra.mxu0 %v259
  %352 = vmatprep.subr.bf16.mxu0 0
  %353 = vmatpush1.bf16.msra.mxu0 %v258
  %354 = vmatprep.subr.bf16.mxu0 0
  %355 = vmatpush1.bf16.msra.mxu0 %v257
  %356 = vmatprep.subr.bf16.mxu0 0
  %357 = vmatpush1.bf16.msra.mxu0 %v256
  %358 = vmatprep.subr.bf16.mxu0 0
  %359 = vmatpush1.bf16.msra.mxu0 %v255
  %360 = vmatprep.subr.bf16.mxu0 0
  %361 = vmatpush2.bf16.msra.mxu0 %v270
  %362 = vmatprep.subr.bf16.mxu0 0
  %363 = vmatpush2.bf16.msra.mxu0 %v269
  %364 = vmatprep.subr.bf16.mxu0 0
  %365 = vmatpush2.bf16.msra.mxu0 %v268
  %366 = vmatprep.subr.bf16.mxu0 0
  %367 = vmatpush2.bf16.msra.mxu0 %v267
  %368 = vmatprep.subr.bf16.mxu0 0
  %369 = vmatpush2.bf16.msra.mxu0 %v266
  %370 = vmatprep.subr.bf16.mxu0 0
  %371 = vmatpush2.bf16.msra.mxu0 %v265
  %372 = vmatprep.subr.bf16.mxu0 0
  %373 = vmatpush2.bf16.msra.mxu0 %v264
  %374 = vmatprep.subr.bf16.mxu0 0
  %375 = vmatpush2.bf16.msra.mxu0 %v263
  %376 = vmatprep.mubr.bf16.mxu0 %v106
  %377 = vmatmul.mubr.bf16.gmra.mxu0 %v105
  %v378 = vpop.f32.mrf.mxu0
  %v379 = vadd.f32 %v338, %v378
  %v380 = vpop.f32.mrf.mxu0
  %v381 = vpop.f32.mrf.mxu0
  %v382 = vadd.f32 %v341, %v381
  %v383 = vpop.f32.mrf.mxu0
  %384 = vdwg.mxu0
  %v385 = vadd.f32 %v21, %v379
  %v386 = vadd.f32 %v22, %v382
  %387 = vst [vmem:[#allocation2] sm:$0xff] %v385
  %388 = vst [vmem:[#allocation2 + $0x8] sm:$0xff] %v386
  // Predicated region
  $region18: #{_lambda_.25} parent=0 // pred_check
    %p389 = pneg %p15
  $region19: #{_lambda_.25} parent=0 // pred_check_branch
    %391 = sbr.rel (%p389) target = $region21
  $region20: #{_lambda_.25} parent=0 // pred_region
    %v392 = vld [vmem:[#allocation2] sm:$0xff]
    %v393 = vld [vmem:[#allocation2 + $0x8] sm:$0xff]
    %v394 = vld [vmem:[%s2] sm:$0x1]
    %v396 = vlaneseq
    %v397 = vshrl.u32 %v396, 7
    %v398 = vsub.s32 0, %v397
    %v399 = vrot.slane %v394, %v398
    %v401 = vadd.f32 %v392, %v399
    %v402 = vadd.f32 %v393, %v399
    %403 = vst [vmem:[%s3] sm:$0xff] %v401
    %404 = vst [vmem:[%s3 + $0x8] sm:$0xff] %v402
  $region21: #{_lambda_.25} parent=0 // pred_fallthru
    _
  // Predicated region
  $region22: #{_lambda_.25} parent=0 // pred_check
    _
  $region23: #{_lambda_.25} parent=0 // pred_check_branch
    %406 = sbr.rel (0) target = $region25
  $region24: #{_lambda_.25} parent=0 // pred_region
    _
  $region25: #{_lambda_.25} parent=0 // pred_fallthru
    _
  // Predicated region
  $region26: #{_lambda_.25} parent=0 // pred_check
    _
  $region27: #{_lambda_.25} parent=0 // pred_check_branch
    %408 = sbr.rel (0) target = $region29
  $region28: #{_lambda_.25} parent=0 // pred_region
    _
  $region29: #{_lambda_.25} parent=0 // pred_fallthru
    _

</llo_original>
